<compile_context>
chip_gen: v7x
topology: tpu7x:2x2x1
jax: 0.10.0
libtpu: 0.0.40
codegen_flags: <defaults>
</compile_context>

<pallas_src>
import math

import jax
import jax.numpy as jnp
from jax import lax
from jax.experimental import pallas as pl
from jax.experimental.pallas import tpu as pltpu

# ------------------------- config (small, synthetic) -------------------------
B = 2        # batch
T = 8        # decoder sequence length (== block_size)
T_ENC = 8    # encoder sequence length
C = 32       # n_embd
N_HEAD = 4   # n_head
HD = C // N_HEAD
LN_EPS = 1e-5


def _gelu_tanh(x):
    # GELU(approximate='tanh'), matches torch.nn.GELU(approximate='tanh')
    c = math.sqrt(2.0 / math.pi)
    return 0.5 * x * (1.0 + jnp.tanh(c * (x + 0.044715 * x * x * x)))


def _layernorm(x, g, b):
    # Fused stats: one pass over x, var = E[x^2] - E[x]^2 (halves XLU reduces).
    mu = jnp.mean(x, axis=-1, keepdims=True)
    ms = jnp.mean(x * x, axis=-1, keepdims=True)
    var = ms - mu * mu
    return (x - mu) * lax.rsqrt(var + LN_EPS) * g + b


def _softmax(a):
    m = jnp.max(a, axis=-1, keepdims=True)
    e = jnp.exp(a - m)
    return e * pl.reciprocal(jnp.sum(e, axis=-1, keepdims=True), approx=True)


# ------------------------------- Pallas kernel -------------------------------
def block_kernel(
    x_ref, enc_ref,
    ln1g_ref, ln1b_ref, ln2g_ref, ln2b_ref, ln3g_ref, ln3b_ref,
    awq_ref, awk_ref, awv_ref, abq_ref, abk_ref, abv_ref, apw_ref, apb_ref,
    cwq_ref, cbq_ref, cwk_ref, cbk_ref, cwv_ref, cbv_ref, cpw_ref, cpb_ref,
    fcw_ref, fcb_ref, pw_ref, pb_ref,
    o_ref,
):
    scale = jnp.float32(1.0 / math.sqrt(HD))

    # Load every (tiny) weight exactly once; the B loop below is a trace-time
    # unroll so these are shared across batch elements.
    g1, be1 = ln1g_ref[...], ln1b_ref[...]
    g2, be2 = ln2g_ref[...], ln2b_ref[...]
    g3, be3 = ln3g_ref[...], ln3b_ref[...]
    awq, awk, awv = awq_ref[...], awk_ref[...], awv_ref[...]
    abq, abk, abv = abq_ref[...], abk_ref[...], abv_ref[...]
    apw, apb = apw_ref[...], apb_ref[...]
    cwq, cbq = cwq_ref[...], cbq_ref[...]
    cwk, cbk = cwk_ref[...], cbk_ref[...]
    cwv, cbv = cwv_ref[...], cbv_ref[...]
    cpw, cpb = cpw_ref[...], cpb_ref[...]
    fcw, fcb = fcw_ref[...], fcb_ref[...]
    pw, pb = pw_ref[...], pb_ref[...]

    # Causal additive bias (0 / -1e30): built once, broadcast over heads/batch.
    row = lax.broadcasted_iota(jnp.int32, (T, T), 0)
    col = lax.broadcasted_iota(jnp.int32, (T, T), 1)
    causal_bias = jnp.where(row >= col, 0.0, -1e30).astype(jnp.float32)[None]  # (1,T,T)

    def proj(tokb, w3, bvec):
        # tokb: (NH, S, C) pre-broadcast; w3: (NH, C, HD); bvec: (NH, 1, HD)
        return jnp.einsum("nsc,ncd->nsd", tokb, w3,
                          preferred_element_type=jnp.float32) + bvec

    def head_merge_proj(o3, w3, bias):
        # o3: (NH, T, HD); w3: (NH, HD, C); bias: (1, C)  ->  (T, C)
        p = jnp.einsum("ntd,ndc->ntc", o3, w3,
                       preferred_element_type=jnp.float32)
        return jnp.sum(p, axis=0) + bias

    for bi in range(B):            # B is tiny & static: full unroll, no grid.
        x = x_ref[bi]              # (T, C)
        enc = enc_ref[bi]          # (T_ENC, C)

        # ---------------- causal self-attention ----------------
        h = _layernorm(x, g1, be1)
        hb = jnp.broadcast_to(h[None], (N_HEAD, T, C))   # hoisted: shared q/k/v
        q = proj(hb, awq, abq)                           # (NH, T, HD)
        k = proj(hb, awk, abk)
        v = proj(hb, awv, abv)
        att = jnp.einsum("ntd,nsd->nts", q, k,
                         preferred_element_type=jnp.float32) * scale
        att = _softmax(att + causal_bias)
        o = jnp.einsum("nts,nsd->ntd", att, v,
                       preferred_element_type=jnp.float32)
        x = x + head_merge_proj(o, apw, apb)

        # ------------- cross-attention (no mask) ----------------
        hdec = _layernorm(x, g2, be2)
        hdb = jnp.broadcast_to(hdec[None], (N_HEAD, T, C))
        encb = jnp.broadcast_to(enc[None], (N_HEAD, T_ENC, C))  # shared k/v
        qd = proj(hdb, cwq, cbq)             # decoder query   (NH, T, HD)
        ke = proj(encb, cwk, cbk)            # encoder key     (NH, T_ENC, HD)
        ve = proj(encb, cwv, cbv)            # encoder value
        catt = jnp.einsum("ntd,nsd->nts", qd, ke,
                          preferred_element_type=jnp.float32) * scale
        catt = _softmax(catt)
        co = jnp.einsum("nts,nsd->ntd", catt, ve,
                        preferred_element_type=jnp.float32)
        x = x + head_merge_proj(co, cpw, cpb)

        # ------------------------ MLP ---------------------------
        hm = _layernorm(x, g3, be3)
        hm = _gelu_tanh(jnp.dot(hm, fcw, preferred_element_type=jnp.float32) + fcb)
        x = x + jnp.dot(hm, pw, preferred_element_type=jnp.float32) + pb

        o_ref[bi] = x


# ------------------------------- wrapper -------------------------------
def _split_qkv_w(w_col):
    """(C, C) column block of a fused qkv weight -> (NH, C, HD), head-major."""
    return w_col.reshape(C, N_HEAD, HD).transpose(1, 0, 2)


def _split_qkv_b(b_col):
    """(1, C) bias block -> (NH, 1, HD)."""
    return b_col.reshape(N_HEAD, 1, HD)


def block_forward(x, enc, params):
    """x: (B, T, C), enc: (B, T_ENC, C). Returns (B, T, C)."""
    aw, ab = params["aw"], params["ab"]
    cw, cb = params["cw"], params["cb"]

    # Wrapper-side (free, static) pre-splitting of the fused projections:
    # removes all in-kernel lane slices and the wasted 3C cross-attn columns.
    ordered = [
        params["ln1g"], params["ln1b"],
        params["ln2g"], params["ln2b"],
        params["ln3g"], params["ln3b"],
        # self-attention: per-head q/k/v projections + output projection
        _split_qkv_w(aw[:, 0 * C:1 * C]),
        _split_qkv_w(aw[:, 1 * C:2 * C]),
        _split_qkv_w(aw[:, 2 * C:3 * C]),
        _split_qkv_b(ab[:, 0 * C:1 * C]),
        _split_qkv_b(ab[:, 1 * C:2 * C]),
        _split_qkv_b(ab[:, 2 * C:3 * C]),
        params["apw"].reshape(N_HEAD, HD, C),
        params["apb"],
        # cross-attention: decoder-q, encoder-k, encoder-v only
        _split_qkv_w(cw[:, 0 * C:1 * C]),
        _split_qkv_b(cb[:, 0 * C:1 * C]),
        _split_qkv_w(cw[:, 1 * C:2 * C]),
        _split_qkv_b(cb[:, 1 * C:2 * C]),
        _split_qkv_w(cw[:, 2 * C:3 * C]),
        _split_qkv_b(cb[:, 2 * C:3 * C]),
        params["cpw"].reshape(N_HEAD, HD, C),
        params["cpb"],
        # MLP
        params["fcw"], params["fcb"], params["pw"], params["pb"],
    ]

    n_inputs = 2 + len(ordered)
    vmem = lambda: pl.BlockSpec(memory_space=pltpu.MemorySpace.VMEM)

    # Single invocation (no grid): the whole working set (<1 MiB) is resident
    # in VMEM and weights are loaded once.  On v7x a grid=(B,) "parallel" split
    # only pays off once T/C grow well past this size.
    fn = pl.pallas_call(
        block_kernel,
        out_shape=jax.ShapeDtypeStruct((B, T, C), jnp.float32),
        in_specs=[vmem() for _ in range(n_inputs)],
        out_specs=vmem(),
    )
    return fn(x, enc, *ordered)


# ------------------------------- pure-JAX reference -------------------------------
def block_reference(x, enc, p):
    scale = 1.0 / math.sqrt(HD)

    def heads(t):  # (B, S, C) -> (B, nh, S, hd)
        Bb, Ss, Cc = t.shape
        return t.reshape(Bb, Ss, N_HEAD, HD).transpose(0, 2, 1, 3)

    def merge(t):  # (B, nh, S, hd) -> (B, S, C)
        Bb, nh, Ss, hd = t.shape
        return t.transpose(0, 2, 1, 3).reshape(Bb, Ss, nh * hd)

    # self attn
    h = _layernorm(x, p["ln1g"], p["ln1b"])
    qkv = h @ p["aw"] + p["ab"]
    q, k, v = jnp.split(qkv, 3, axis=-1)
    q, k, v = heads(q), heads(k), heads(v)
    att = jnp.einsum("bhtd,bhsd->bhts", q, k) * scale
    mask = jnp.tril(jnp.ones((T, T), bool))
    att = jnp.where(mask[None, None], att, -jnp.inf)
    att = jax.nn.softmax(att, axis=-1)
    x = x + (merge(jnp.einsum("bhts,bhsd->bhtd", att, v)) @ p["apw"] + p["apb"])

    # cross attn
    hdec = _layernorm(x, p["ln2g"], p["ln2b"])
    qkv_d = hdec @ p["cw"] + p["cb"]
    qkv_e = enc @ p["cw"] + p["cb"]
    qd = heads(jnp.split(qkv_d, 3, axis=-1)[0])
    ke = heads(jnp.split(qkv_e, 3, axis=-1)[1])
    ve = heads(jnp.split(qkv_e, 3, axis=-1)[2])
    att = jax.nn.softmax(jnp.einsum("bhtd,bhsd->bhts", qd, ke) * scale, axis=-1)
    x = x + (merge(jnp.einsum("bhts,bhsd->bhtd", att, ve)) @ p["cpw"] + p["cpb"])

    # mlp
    h = _layernorm(x, p["ln3g"], p["ln3b"])
    h = _gelu_tanh(h @ p["fcw"] + p["fcb"]) @ p["pw"] + p["pb"]
    return x + h


# ------------------------------- param init -------------------------------
def init_params(key):
    ks = jax.random.split(key, 16)
    n = lambda k, shp, s=0.02: (s * jax.random.normal(k, shp)).astype(jnp.float32)
    return {
        # LayerNorms (PyTorch default: gamma=1, beta=0), kept 2D (1, C) for TPU
        "ln1g": jnp.ones((1, C), jnp.float32), "ln1b": jnp.zeros((1, C), jnp.float32),
        "ln2g": jnp.ones((1, C), jnp.float32), "ln2b": jnp.zeros((1, C), jnp.float32),
        "ln3g": jnp.ones((1, C), jnp.float32), "ln3b": jnp.zeros((1, C), jnp.float32),
        # self-attention (weights stored (in, out): y = x @ W + b)
        "aw": n(ks[0], (C, 3 * C)),  "ab": n(ks[1], (1, 3 * C)),
        "apw": n(ks[2], (C, C)),     "apb": n(ks[3], (1, C)),
        # cross-attention
        "cw": n(ks[4], (C, 3 * C)),  "cb": n(ks[5], (1, 3 * C)),
        "cpw": n(ks[6], (C, C)),     "cpb": n(ks[7], (1, C)),
        # MLP
        "fcw": n(ks[8], (C, 4 * C)), "fcb": n(ks[9], (1, 4 * C)),
        "pw": n(ks[10], (4 * C, C)), "pb": n(ks[11], (1, C)),
    }


if __name__ == "__main__":
    key = jax.random.PRNGKey(0)
    kx, kenc, kp = jax.random.split(key, 3)
    x = jax.random.normal(kx, (B, T, C), jnp.float32)
    enc = jax.random.normal(kenc, (B, T_ENC, C), jnp.float32)
    params = init_params(kp)

    out = block_forward(x, enc, params)
    out = jax.block_until_ready(out)

    ref = block_reference(x, enc, params)
    assert out.shape == (B, T, C)
    err = float(jnp.max(jnp.abs(out - ref)))
    # tolerance relaxed slightly vs f64: softmax uses the EUP approx reciprocal
    assert jnp.allclose(out, ref, atol=1e-3, rtol=1e-3), err
    print("KERNEL_OK")
</pallas_src>

<mosaic_0001>
module attributes {stable_mosaic.version = 11 : i64} {
  func.func @block_kernel(%arg0: memref<2x8x32xf32, #tpu.memory_space<vmem>>, %arg1: memref<2x8x32xf32, #tpu.memory_space<vmem>>, %arg2: memref<1x32xf32, #tpu.memory_space<vmem>>, %arg3: memref<1x32xf32, #tpu.memory_space<vmem>>, %arg4: memref<1x32xf32, #tpu.memory_space<vmem>>, %arg5: memref<1x32xf32, #tpu.memory_space<vmem>>, %arg6: memref<1x32xf32, #tpu.memory_space<vmem>>, %arg7: memref<1x32xf32, #tpu.memory_space<vmem>>, %arg8: memref<4x32x8xf32, #tpu.memory_space<vmem>>, %arg9: memref<4x32x8xf32, #tpu.memory_space<vmem>>, %arg10: memref<4x32x8xf32, #tpu.memory_space<vmem>>, %arg11: memref<4x1x8xf32, #tpu.memory_space<vmem>>, %arg12: memref<4x1x8xf32, #tpu.memory_space<vmem>>, %arg13: memref<4x1x8xf32, #tpu.memory_space<vmem>>, %arg14: memref<4x8x32xf32, #tpu.memory_space<vmem>>, %arg15: memref<1x32xf32, #tpu.memory_space<vmem>>, %arg16: memref<4x32x8xf32, #tpu.memory_space<vmem>>, %arg17: memref<4x1x8xf32, #tpu.memory_space<vmem>>, %arg18: memref<4x32x8xf32, #tpu.memory_space<vmem>>, %arg19: memref<4x1x8xf32, #tpu.memory_space<vmem>>, %arg20: memref<4x32x8xf32, #tpu.memory_space<vmem>>, %arg21: memref<4x1x8xf32, #tpu.memory_space<vmem>>, %arg22: memref<4x8x32xf32, #tpu.memory_space<vmem>>, %arg23: memref<1x32xf32, #tpu.memory_space<vmem>>, %arg24: memref<32x128xf32, #tpu.memory_space<vmem>>, %arg25: memref<1x128xf32, #tpu.memory_space<vmem>>, %arg26: memref<128x32xf32, #tpu.memory_space<vmem>>, %arg27: memref<1x32xf32, #tpu.memory_space<vmem>>, %arg28: memref<2x8x32xf32, #tpu.memory_space<vmem>>) attributes {dimension_semantics = [], scalar_prefetch = 0 : i64, scratch_operands = 0 : i64, tpu.core_type = #tpu.core_type<tc>} {
    %c0 = arith.constant 0 : index
    %c0_0 = arith.constant 0 : index
    %0 = vector.load %arg2[%c0, %c0_0] : memref<1x32xf32, #tpu.memory_space<vmem>>, vector<1x32xf32>
    %c0_1 = arith.constant 0 : index
    %c0_2 = arith.constant 0 : index
    %1 = vector.load %arg3[%c0_1, %c0_2] : memref<1x32xf32, #tpu.memory_space<vmem>>, vector<1x32xf32>
    %c0_3 = arith.constant 0 : index
    %c0_4 = arith.constant 0 : index
    %2 = vector.load %arg4[%c0_3, %c0_4] : memref<1x32xf32, #tpu.memory_space<vmem>>, vector<1x32xf32>
    %c0_5 = arith.constant 0 : index
    %c0_6 = arith.constant 0 : index
    %3 = vector.load %arg5[%c0_5, %c0_6] : memref<1x32xf32, #tpu.memory_space<vmem>>, vector<1x32xf32>
    %c0_7 = arith.constant 0 : index
    %c0_8 = arith.constant 0 : index
    %4 = vector.load %arg6[%c0_7, %c0_8] : memref<1x32xf32, #tpu.memory_space<vmem>>, vector<1x32xf32>
    %c0_9 = arith.constant 0 : index
    %c0_10 = arith.constant 0 : index
    %5 = vector.load %arg7[%c0_9, %c0_10] : memref<1x32xf32, #tpu.memory_space<vmem>>, vector<1x32xf32>
    %c0_11 = arith.constant 0 : index
    %c0_12 = arith.constant 0 : index
    %c0_13 = arith.constant 0 : index
    %6 = vector.load %arg8[%c0_11, %c0_12, %c0_13] : memref<4x32x8xf32, #tpu.memory_space<vmem>>, vector<4x32x8xf32>
    %c0_14 = arith.constant 0 : index
    %c0_15 = arith.constant 0 : index
    %c0_16 = arith.constant 0 : index
    %7 = vector.load %arg9[%c0_14, %c0_15, %c0_16] : memref<4x32x8xf32, #tpu.memory_space<vmem>>, vector<4x32x8xf32>
    %c0_17 = arith.constant 0 : index
    %c0_18 = arith.constant 0 : index
    %c0_19 = arith.constant 0 : index
    %8 = vector.load %arg10[%c0_17, %c0_18, %c0_19] : memref<4x32x8xf32, #tpu.memory_space<vmem>>, vector<4x32x8xf32>
    %c0_20 = arith.constant 0 : index
    %c0_21 = arith.constant 0 : index
    %c0_22 = arith.constant 0 : index
    %9 = vector.load %arg11[%c0_20, %c0_21, %c0_22] : memref<4x1x8xf32, #tpu.memory_space<vmem>>, vector<4x1x8xf32>
    %c0_23 = arith.constant 0 : index
    %c0_24 = arith.constant 0 : index
    %c0_25 = arith.constant 0 : index
    %10 = vector.load %arg12[%c0_23, %c0_24, %c0_25] : memref<4x1x8xf32, #tpu.memory_space<vmem>>, vector<4x1x8xf32>
    %c0_26 = arith.constant 0 : index
    %c0_27 = arith.constant 0 : index
    %c0_28 = arith.constant 0 : index
    %11 = vector.load %arg13[%c0_26, %c0_27, %c0_28] : memref<4x1x8xf32, #tpu.memory_space<vmem>>, vector<4x1x8xf32>
    %c0_29 = arith.constant 0 : index
    %c0_30 = arith.constant 0 : index
    %c0_31 = arith.constant 0 : index
    %12 = vector.load %arg14[%c0_29, %c0_30, %c0_31] : memref<4x8x32xf32, #tpu.memory_space<vmem>>, vector<4x8x32xf32>
    %c0_32 = arith.constant 0 : index
    %c0_33 = arith.constant 0 : index
    %13 = vector.load %arg15[%c0_32, %c0_33] : memref<1x32xf32, #tpu.memory_space<vmem>>, vector<1x32xf32>
    %c0_34 = arith.constant 0 : index
    %c0_35 = arith.constant 0 : index
    %c0_36 = arith.constant 0 : index
    %14 = vector.load %arg16[%c0_34, %c0_35, %c0_36] : memref<4x32x8xf32, #tpu.memory_space<vmem>>, vector<4x32x8xf32>
    %c0_37 = arith.constant 0 : index
    %c0_38 = arith.constant 0 : index
    %c0_39 = arith.constant 0 : index
    %15 = vector.load %arg17[%c0_37, %c0_38, %c0_39] : memref<4x1x8xf32, #tpu.memory_space<vmem>>, vector<4x1x8xf32>
    %c0_40 = arith.constant 0 : index
    %c0_41 = arith.constant 0 : index
    %c0_42 = arith.constant 0 : index
    %16 = vector.load %arg18[%c0_40, %c0_41, %c0_42] : memref<4x32x8xf32, #tpu.memory_space<vmem>>, vector<4x32x8xf32>
    %c0_43 = arith.constant 0 : index
    %c0_44 = arith.constant 0 : index
    %c0_45 = arith.constant 0 : index
    %17 = vector.load %arg19[%c0_43, %c0_44, %c0_45] : memref<4x1x8xf32, #tpu.memory_space<vmem>>, vector<4x1x8xf32>
    %c0_46 = arith.constant 0 : index
    %c0_47 = arith.constant 0 : index
    %c0_48 = arith.constant 0 : index
    %18 = vector.load %arg20[%c0_46, %c0_47, %c0_48] : memref<4x32x8xf32, #tpu.memory_space<vmem>>, vector<4x32x8xf32>
    %c0_49 = arith.constant 0 : index
    %c0_50 = arith.constant 0 : index
    %c0_51 = arith.constant 0 : index
    %19 = vector.load %arg21[%c0_49, %c0_50, %c0_51] : memref<4x1x8xf32, #tpu.memory_space<vmem>>, vector<4x1x8xf32>
    %c0_52 = arith.constant 0 : index
    %c0_53 = arith.constant 0 : index
    %c0_54 = arith.constant 0 : index
    %20 = vector.load %arg22[%c0_52, %c0_53, %c0_54] : memref<4x8x32xf32, #tpu.memory_space<vmem>>, vector<4x8x32xf32>
    %c0_55 = arith.constant 0 : index
    %c0_56 = arith.constant 0 : index
    %21 = vector.load %arg23[%c0_55, %c0_56] : memref<1x32xf32, #tpu.memory_space<vmem>>, vector<1x32xf32>
    %c0_57 = arith.constant 0 : index
    %c0_58 = arith.constant 0 : index
    %22 = vector.load %arg24[%c0_57, %c0_58] : memref<32x128xf32, #tpu.memory_space<vmem>>, vector<32x128xf32>
    %c0_59 = arith.constant 0 : index
    %c0_60 = arith.constant 0 : index
    %23 = vector.load %arg25[%c0_59, %c0_60] : memref<1x128xf32, #tpu.memory_space<vmem>>, vector<1x128xf32>
    %c0_61 = arith.constant 0 : index
    %c0_62 = arith.constant 0 : index
    %24 = vector.load %arg26[%c0_61, %c0_62] : memref<128x32xf32, #tpu.memory_space<vmem>>, vector<128x32xf32>
    %c0_63 = arith.constant 0 : index
    %c0_64 = arith.constant 0 : index
    %25 = vector.load %arg27[%c0_63, %c0_64] : memref<1x32xf32, #tpu.memory_space<vmem>>, vector<1x32xf32>
    %26 = tpu.iota {dimensions = array<i32: 0>} : vector<8x8xi32>
    %27 = tpu.iota {dimensions = array<i32: 1>} : vector<8x8xi32>
    %28 = arith.cmpi sge, %26, %27 : vector<8x8xi32>
    %cst = arith.constant 0.000000e+00 : f32
    %cst_65 = arith.constant -1.000000e+30 : f32
    %29 = vector.broadcast %cst : f32 to vector<8x8xf32>
    %30 = vector.broadcast %cst_65 : f32 to vector<8x8xf32>
    %31 = arith.select %28, %29, %30 : vector<8x8xi1>, vector<8x8xf32>
    %32 = vector.shape_cast %31 : vector<8x8xf32> to vector<1x8x8xf32>
    %c0_66 = arith.constant 0 : index
    %c0_67 = arith.constant 0 : index
    %c0_68 = arith.constant 0 : index
    %33 = vector.load %arg0[%c0_66, %c0_67, %c0_68] : memref<2x8x32xf32, #tpu.memory_space<vmem>>, vector<1x8x32xf32>
    %34 = vector.shape_cast %33 : vector<1x8x32xf32> to vector<8x32xf32>
    %c0_69 = arith.constant 0 : index
    %c0_70 = arith.constant 0 : index
    %c0_71 = arith.constant 0 : index
    %35 = vector.load %arg1[%c0_69, %c0_70, %c0_71] : memref<2x8x32xf32, #tpu.memory_space<vmem>>, vector<1x8x32xf32>
    %36 = vector.shape_cast %35 : vector<1x8x32xf32> to vector<8x32xf32>
    %cst_72 = arith.constant dense<0.000000e+00> : vector<8xf32>
    %37 = vector.multi_reduction <add>, %34, %cst_72 [1] : vector<8x32xf32> to vector<8xf32>
    %38 = vector.shape_cast %37 : vector<8xf32> to vector<8x1xf32>
    %cst_73 = arith.constant 3.200000e+01 : f32
    %39 = vector.broadcast %cst_73 : f32 to vector<8x1xf32>
    %40 = arith.divf %38, %39 : vector<8x1xf32>
    %41 = arith.mulf %34, %34 : vector<8x32xf32>
    %cst_74 = arith.constant dense<0.000000e+00> : vector<8xf32>
    %42 = vector.multi_reduction <add>, %41, %cst_74 [1] : vector<8x32xf32> to vector<8xf32>
    %43 = vector.shape_cast %42 : vector<8xf32> to vector<8x1xf32>
    %cst_75 = arith.constant 3.200000e+01 : f32
    %44 = vector.broadcast %cst_75 : f32 to vector<8x1xf32>
    %45 = arith.divf %43, %44 : vector<8x1xf32>
    %46 = arith.mulf %40, %40 : vector<8x1xf32>
    %47 = arith.subf %45, %46 : vector<8x1xf32>
    %48 = vector.broadcast %40 : vector<8x1xf32> to vector<8x32xf32>
    %49 = arith.subf %34, %48 : vector<8x32xf32>
    %cst_76 = arith.constant 9.99999974E-6 : f32
    %50 = vector.broadcast %cst_76 : f32 to vector<8x1xf32>
    %51 = arith.addf %47, %50 : vector<8x1xf32>
    %52 = math.rsqrt %51 : vector<8x1xf32>
    %53 = vector.broadcast %52 : vector<8x1xf32> to vector<8x32xf32>
    %54 = arith.mulf %49, %53 : vector<8x32xf32>
    %55 = vector.broadcast %0 : vector<1x32xf32> to vector<8x32xf32>
    %56 = arith.mulf %54, %55 : vector<8x32xf32>
    %57 = vector.broadcast %1 : vector<1x32xf32> to vector<8x32xf32>
    %58 = arith.addf %56, %57 : vector<8x32xf32>
    %59 = vector.shape_cast %58 : vector<8x32xf32> to vector<1x8x32xf32>
    %60 = vector.shape_cast %59 : vector<1x8x32xf32> to vector<1x8x32xf32>
    %61 = vector.broadcast %60 : vector<1x8x32xf32> to vector<4x8x32xf32>
    "tpu.trace_start"() <{level = 10 : i32, message = "nsc,ncd->nsd"}> : () -> ()
    %cst_77 = arith.constant dense<0.000000e+00> : vector<4x8x8xf32>
    %62 = tpu.matmul %61, %6, %cst_77 {dimension_numbers = #tpu.dot_dimension_numbers<[2], [1], [1], [2], [0, 0, 0, 1, 1, 2], [0], [0]>} : vector<4x8x32xf32>, vector<4x32x8xf32>, vector<4x8x8xf32> -> vector<4x8x8xf32>
    "tpu.trace_stop"() : () -> ()
    %63 = vector.broadcast %9 : vector<4x1x8xf32> to vector<4x8x8xf32>
    %64 = arith.addf %62, %63 : vector<4x8x8xf32>
    "tpu.trace_start"() <{level = 10 : i32, message = "nsc,ncd->nsd"}> : () -> ()
    %cst_78 = arith.constant dense<0.000000e+00> : vector<4x8x8xf32>
    %65 = tpu.matmul %61, %7, %cst_78 {dimension_numbers = #tpu.dot_dimension_numbers<[2], [1], [1], [2], [0, 0, 0, 1, 1, 2], [0], [0]>} : vector<4x8x32xf32>, vector<4x32x8xf32>, vector<4x8x8xf32> -> vector<4x8x8xf32>
    "tpu.trace_stop"() : () -> ()
    %66 = vector.broadcast %10 : vector<4x1x8xf32> to vector<4x8x8xf32>
    %67 = arith.addf %65, %66 : vector<4x8x8xf32>
    "tpu.trace_start"() <{level = 10 : i32, message = "nsc,ncd->nsd"}> : () -> ()
    %cst_79 = arith.constant dense<0.000000e+00> : vector<4x8x8xf32>
    %68 = tpu.matmul %61, %8, %cst_79 {dimension_numbers = #tpu.dot_dimension_numbers<[2], [1], [1], [2], [0, 0, 0, 1, 1, 2], [0], [0]>} : vector<4x8x32xf32>, vector<4x32x8xf32>, vector<4x8x8xf32> -> vector<4x8x8xf32>
    "tpu.trace_stop"() : () -> ()
    %69 = vector.broadcast %11 : vector<4x1x8xf32> to vector<4x8x8xf32>
    %70 = arith.addf %68, %69 : vector<4x8x8xf32>
    "tpu.trace_start"() <{level = 10 : i32, message = "ntd,nsd->nts"}> : () -> ()
    %cst_80 = arith.constant dense<0.000000e+00> : vector<4x8x8xf32>
    %71 = tpu.matmul %64, %67, %cst_80 {dimension_numbers = #tpu.dot_dimension_numbers<[2], [2], [1], [1], [0, 0, 0, 1, 1, 1], [0], [0]>} : vector<4x8x8xf32>, vector<4x8x8xf32>, vector<4x8x8xf32> -> vector<4x8x8xf32>
    "tpu.trace_stop"() : () -> ()
    %cst_81 = arith.constant 0.353553385 : f32
    %72 = vector.broadcast %cst_81 : f32 to vector<4x8x8xf32>
    %73 = arith.mulf %71, %72 : vector<4x8x8xf32>
    %74 = vector.broadcast %32 : vector<1x8x8xf32> to vector<4x8x8xf32>
    %75 = arith.addf %73, %74 : vector<4x8x8xf32>
    %cst_82 = arith.constant dense<0xFF800000> : vector<4x8xf32>
    %76 = vector.multi_reduction <maximumf>, %75, %cst_82 [2] : vector<4x8x8xf32> to vector<4x8xf32>
    %77 = vector.shape_cast %76 : vector<4x8xf32> to vector<4x8x1xf32>
    %78 = vector.broadcast %77 : vector<4x8x1xf32> to vector<4x8x8xf32>
    %79 = arith.subf %75, %78 : vector<4x8x8xf32>
    %80 = math.exp %79 : vector<4x8x8xf32>
    %cst_83 = arith.constant dense<0.000000e+00> : vector<4x8xf32>
    %81 = vector.multi_reduction <add>, %80, %cst_83 [2] : vector<4x8x8xf32> to vector<4x8xf32>
    %82 = vector.shape_cast %81 : vector<4x8xf32> to vector<4x8x1xf32>
    %83 = tpu.reciprocal %82 {approx = true} : vector<4x8x1xf32> -> vector<4x8x1xf32>
    %84 = vector.broadcast %83 : vector<4x8x1xf32> to vector<4x8x8xf32>
    %85 = arith.mulf %80, %84 : vector<4x8x8xf32>
    "tpu.trace_start"() <{level = 10 : i32, message = "nts,nsd->ntd"}> : () -> ()
    %cst_84 = arith.constant dense<0.000000e+00> : vector<4x8x8xf32>
    %86 = tpu.matmul %85, %70, %cst_84 {dimension_numbers = #tpu.dot_dimension_numbers<[2], [1], [1], [2], [0, 0, 0, 1, 1, 2], [0], [0]>} : vector<4x8x8xf32>, vector<4x8x8xf32>, vector<4x8x8xf32> -> vector<4x8x8xf32>
    "tpu.trace_stop"() : () -> ()
    "tpu.trace_start"() <{level = 10 : i32, message = "ntd,ndc->ntc"}> : () -> ()
    %cst_85 = arith.constant dense<0.000000e+00> : vector<4x8x32xf32>
    %87 = tpu.matmul %86, %12, %cst_85 {dimension_numbers = #tpu.dot_dimension_numbers<[2], [1], [1], [2], [0, 0, 0, 1, 1, 2], [0], [0]>} : vector<4x8x8xf32>, vector<4x8x32xf32>, vector<4x8x32xf32> -> vector<4x8x32xf32>
    "tpu.trace_stop"() : () -> ()
    %cst_86 = arith.constant dense<0.000000e+00> : vector<8x32xf32>
    %88 = vector.multi_reduction <add>, %87, %cst_86 [0] : vector<4x8x32xf32> to vector<8x32xf32>
    %89 = vector.broadcast %13 : vector<1x32xf32> to vector<8x32xf32>
    %90 = arith.addf %88, %89 : vector<8x32xf32>
    %91 = arith.addf %34, %90 : vector<8x32xf32>
    %cst_87 = arith.constant dense<0.000000e+00> : vector<8xf32>
    %92 = vector.multi_reduction <add>, %91, %cst_87 [1] : vector<8x32xf32> to vector<8xf32>
    %93 = vector.shape_cast %92 : vector<8xf32> to vector<8x1xf32>
    %cst_88 = arith.constant 3.200000e+01 : f32
    %94 = vector.broadcast %cst_88 : f32 to vector<8x1xf32>
    %95 = arith.divf %93, %94 : vector<8x1xf32>
    %96 = arith.mulf %91, %91 : vector<8x32xf32>
    %cst_89 = arith.constant dense<0.000000e+00> : vector<8xf32>
    %97 = vector.multi_reduction <add>, %96, %cst_89 [1] : vector<8x32xf32> to vector<8xf32>
    %98 = vector.shape_cast %97 : vector<8xf32> to vector<8x1xf32>
    %cst_90 = arith.constant 3.200000e+01 : f32
    %99 = vector.broadcast %cst_90 : f32 to vector<8x1xf32>
    %100 = arith.divf %98, %99 : vector<8x1xf32>
    %101 = arith.mulf %95, %95 : vector<8x1xf32>
    %102 = arith.subf %100, %101 : vector<8x1xf32>
    %103 = vector.broadcast %95 : vector<8x1xf32> to vector<8x32xf32>
    %104 = arith.subf %91, %103 : vector<8x32xf32>
    %cst_91 = arith.constant 9.99999974E-6 : f32
    %105 = vector.broadcast %cst_91 : f32 to vector<8x1xf32>
    %106 = arith.addf %102, %105 : vector<8x1xf32>
    %107 = math.rsqrt %106 : vector<8x1xf32>
    %108 = vector.broadcast %107 : vector<8x1xf32> to vector<8x32xf32>
    %109 = arith.mulf %104, %108 : vector<8x32xf32>
    %110 = vector.broadcast %2 : vector<1x32xf32> to vector<8x32xf32>
    %111 = arith.mulf %109, %110 : vector<8x32xf32>
    %112 = vector.broadcast %3 : vector<1x32xf32> to vector<8x32xf32>
    %113 = arith.addf %111, %112 : vector<8x32xf32>
    %114 = vector.shape_cast %113 : vector<8x32xf32> to vector<1x8x32xf32>
    %115 = vector.shape_cast %114 : vector<1x8x32xf32> to vector<1x8x32xf32>
    %116 = vector.broadcast %115 : vector<1x8x32xf32> to vector<4x8x32xf32>
    %117 = vector.shape_cast %36 : vector<8x32xf32> to vector<1x8x32xf32>
    %118 = vector.shape_cast %117 : vector<1x8x32xf32> to vector<1x8x32xf32>
    %119 = vector.broadcast %118 : vector<1x8x32xf32> to vector<4x8x32xf32>
    "tpu.trace_start"() <{level = 10 : i32, message = "nsc,ncd->nsd"}> : () -> ()
    %cst_92 = arith.constant dense<0.000000e+00> : vector<4x8x8xf32>
    %120 = tpu.matmul %116, %14, %cst_92 {dimension_numbers = #tpu.dot_dimension_numbers<[2], [1], [1], [2], [0, 0, 0, 1, 1, 2], [0], [0]>} : vector<4x8x32xf32>, vector<4x32x8xf32>, vector<4x8x8xf32> -> vector<4x8x8xf32>
    "tpu.trace_stop"() : () -> ()
    %121 = vector.broadcast %15 : vector<4x1x8xf32> to vector<4x8x8xf32>
    %122 = arith.addf %120, %121 : vector<4x8x8xf32>
    "tpu.trace_start"() <{level = 10 : i32, message = "nsc,ncd->nsd"}> : () -> ()
    %cst_93 = arith.constant dense<0.000000e+00> : vector<4x8x8xf32>
    %123 = tpu.matmul %119, %16, %cst_93 {dimension_numbers = #tpu.dot_dimension_numbers<[2], [1], [1], [2], [0, 0, 0, 1, 1, 2], [0], [0]>} : vector<4x8x32xf32>, vector<4x32x8xf32>, vector<4x8x8xf32> -> vector<4x8x8xf32>
    "tpu.trace_stop"() : () -> ()
    %124 = vector.broadcast %17 : vector<4x1x8xf32> to vector<4x8x8xf32>
    %125 = arith.addf %123, %124 : vector<4x8x8xf32>
    "tpu.trace_start"() <{level = 10 : i32, message = "nsc,ncd->nsd"}> : () -> ()
    %cst_94 = arith.constant dense<0.000000e+00> : vector<4x8x8xf32>
    %126 = tpu.matmul %119, %18, %cst_94 {dimension_numbers = #tpu.dot_dimension_numbers<[2], [1], [1], [2], [0, 0, 0, 1, 1, 2], [0], [0]>} : vector<4x8x32xf32>, vector<4x32x8xf32>, vector<4x8x8xf32> -> vector<4x8x8xf32>
    "tpu.trace_stop"() : () -> ()
    %127 = vector.broadcast %19 : vector<4x1x8xf32> to vector<4x8x8xf32>
    %128 = arith.addf %126, %127 : vector<4x8x8xf32>
    "tpu.trace_start"() <{level = 10 : i32, message = "ntd,nsd->nts"}> : () -> ()
    %cst_95 = arith.constant dense<0.000000e+00> : vector<4x8x8xf32>
    %129 = tpu.matmul %122, %125, %cst_95 {dimension_numbers = #tpu.dot_dimension_numbers<[2], [2], [1], [1], [0, 0, 0, 1, 1, 1], [0], [0]>} : vector<4x8x8xf32>, vector<4x8x8xf32>, vector<4x8x8xf32> -> vector<4x8x8xf32>
    "tpu.trace_stop"() : () -> ()
    %cst_96 = arith.constant 0.353553385 : f32
    %130 = vector.broadcast %cst_96 : f32 to vector<4x8x8xf32>
    %131 = arith.mulf %129, %130 : vector<4x8x8xf32>
    %cst_97 = arith.constant dense<0xFF800000> : vector<4x8xf32>
    %132 = vector.multi_reduction <maximumf>, %131, %cst_97 [2] : vector<4x8x8xf32> to vector<4x8xf32>
    %133 = vector.shape_cast %132 : vector<4x8xf32> to vector<4x8x1xf32>
    %134 = vector.broadcast %133 : vector<4x8x1xf32> to vector<4x8x8xf32>
    %135 = arith.subf %131, %134 : vector<4x8x8xf32>
    %136 = math.exp %135 : vector<4x8x8xf32>
    %cst_98 = arith.constant dense<0.000000e+00> : vector<4x8xf32>
    %137 = vector.multi_reduction <add>, %136, %cst_98 [2] : vector<4x8x8xf32> to vector<4x8xf32>
    %138 = vector.shape_cast %137 : vector<4x8xf32> to vector<4x8x1xf32>
    %139 = tpu.reciprocal %138 {approx = true} : vector<4x8x1xf32> -> vector<4x8x1xf32>
    %140 = vector.broadcast %139 : vector<4x8x1xf32> to vector<4x8x8xf32>
    %141 = arith.mulf %136, %140 : vector<4x8x8xf32>
    "tpu.trace_start"() <{level = 10 : i32, message = "nts,nsd->ntd"}> : () -> ()
    %cst_99 = arith.constant dense<0.000000e+00> : vector<4x8x8xf32>
    %142 = tpu.matmul %141, %128, %cst_99 {dimension_numbers = #tpu.dot_dimension_numbers<[2], [1], [1], [2], [0, 0, 0, 1, 1, 2], [0], [0]>} : vector<4x8x8xf32>, vector<4x8x8xf32>, vector<4x8x8xf32> -> vector<4x8x8xf32>
    "tpu.trace_stop"() : () -> ()
    "tpu.trace_start"() <{level = 10 : i32, message = "ntd,ndc->ntc"}> : () -> ()
    %cst_100 = arith.constant dense<0.000000e+00> : vector<4x8x32xf32>
    %143 = tpu.matmul %142, %20, %cst_100 {dimension_numbers = #tpu.dot_dimension_numbers<[2], [1], [1], [2], [0, 0, 0, 1, 1, 2], [0], [0]>} : vector<4x8x8xf32>, vector<4x8x32xf32>, vector<4x8x32xf32> -> vector<4x8x32xf32>
    "tpu.trace_stop"() : () -> ()
    %cst_101 = arith.constant dense<0.000000e+00> : vector<8x32xf32>
    %144 = vector.multi_reduction <add>, %143, %cst_101 [0] : vector<4x8x32xf32> to vector<8x32xf32>
    %145 = vector.broadcast %21 : vector<1x32xf32> to vector<8x32xf32>
    %146 = arith.addf %144, %145 : vector<8x32xf32>
    %147 = arith.addf %91, %146 : vector<8x32xf32>
    %cst_102 = arith.constant dense<0.000000e+00> : vector<8xf32>
    %148 = vector.multi_reduction <add>, %147, %cst_102 [1] : vector<8x32xf32> to vector<8xf32>
    %149 = vector.shape_cast %148 : vector<8xf32> to vector<8x1xf32>
    %cst_103 = arith.constant 3.200000e+01 : f32
    %150 = vector.broadcast %cst_103 : f32 to vector<8x1xf32>
    %151 = arith.divf %149, %150 : vector<8x1xf32>
    %152 = arith.mulf %147, %147 : vector<8x32xf32>
    %cst_104 = arith.constant dense<0.000000e+00> : vector<8xf32>
    %153 = vector.multi_reduction <add>, %152, %cst_104 [1] : vector<8x32xf32> to vector<8xf32>
    %154 = vector.shape_cast %153 : vector<8xf32> to vector<8x1xf32>
    %cst_105 = arith.constant 3.200000e+01 : f32
    %155 = vector.broadcast %cst_105 : f32 to vector<8x1xf32>
    %156 = arith.divf %154, %155 : vector<8x1xf32>
    %157 = arith.mulf %151, %151 : vector<8x1xf32>
    %158 = arith.subf %156, %157 : vector<8x1xf32>
    %159 = vector.broadcast %151 : vector<8x1xf32> to vector<8x32xf32>
    %160 = arith.subf %147, %159 : vector<8x32xf32>
    %cst_106 = arith.constant 9.99999974E-6 : f32
    %161 = vector.broadcast %cst_106 : f32 to vector<8x1xf32>
    %162 = arith.addf %158, %161 : vector<8x1xf32>
    %163 = math.rsqrt %162 : vector<8x1xf32>
    %164 = vector.broadcast %163 : vector<8x1xf32> to vector<8x32xf32>
    %165 = arith.mulf %160, %164 : vector<8x32xf32>
    %166 = vector.broadcast %4 : vector<1x32xf32> to vector<8x32xf32>
    %167 = arith.mulf %165, %166 : vector<8x32xf32>
    %168 = vector.broadcast %5 : vector<1x32xf32> to vector<8x32xf32>
    %169 = arith.addf %167, %168 : vector<8x32xf32>
    %cst_107 = arith.constant dense<0.000000e+00> : vector<8x128xf32>
    %170 = tpu.matmul %169, %22, %cst_107 {dimension_numbers = #tpu.dot_dimension_numbers<[1], [0], [0], [1], [0, 0, 1, 1], [], []>} : vector<8x32xf32>, vector<32x128xf32>, vector<8x128xf32> -> vector<8x128xf32>
    %171 = vector.broadcast %23 : vector<1x128xf32> to vector<8x128xf32>
    %172 = arith.addf %170, %171 : vector<8x128xf32>
    %cst_108 = arith.constant 5.000000e-01 : f32
    %173 = vector.broadcast %cst_108 : f32 to vector<8x128xf32>
    %174 = arith.mulf %173, %172 : vector<8x128xf32>
    %cst_109 = arith.constant 4.471500e-02 : f32
    %175 = vector.broadcast %cst_109 : f32 to vector<8x128xf32>
    %176 = arith.mulf %175, %172 : vector<8x128xf32>
    %177 = arith.mulf %176, %172 : vector<8x128xf32>
    %178 = arith.mulf %177, %172 : vector<8x128xf32>
    %179 = arith.addf %172, %178 : vector<8x128xf32>
    %cst_110 = arith.constant 0.797884583 : f32
    %180 = vector.broadcast %cst_110 : f32 to vector<8x128xf32>
    %181 = arith.mulf %180, %179 : vector<8x128xf32>
    %182 = math.tanh %181 : vector<8x128xf32>
    %cst_111 = arith.constant 1.000000e+00 : f32
    %183 = vector.broadcast %cst_111 : f32 to vector<8x128xf32>
    %184 = arith.addf %183, %182 : vector<8x128xf32>
    %185 = arith.mulf %174, %184 : vector<8x128xf32>
    %cst_112 = arith.constant dense<0.000000e+00> : vector<8x32xf32>
    %186 = tpu.matmul %185, %24, %cst_112 {dimension_numbers = #tpu.dot_dimension_numbers<[1], [0], [0], [1], [0, 0, 1, 1], [], []>} : vector<8x128xf32>, vector<128x32xf32>, vector<8x32xf32> -> vector<8x32xf32>
    %187 = arith.addf %147, %186 : vector<8x32xf32>
    %188 = vector.broadcast %25 : vector<1x32xf32> to vector<8x32xf32>
    %189 = arith.addf %187, %188 : vector<8x32xf32>
    %c0_113 = arith.constant 0 : index
    %c0_114 = arith.constant 0 : index
    %c0_115 = arith.constant 0 : index
    %190 = vector.load %arg28[%c0_113, %c0_114, %c0_115] : memref<2x8x32xf32, #tpu.memory_space<vmem>>, vector<1x8x32xf32>
    %191 = vector.shape_cast %190 : vector<1x8x32xf32> to vector<8x32xf32>
    %192 = vector.shape_cast %189 : vector<8x32xf32> to vector<1x8x32xf32>
    tpu.vector_store %arg28[%c0_113, %c0_114, %c0_115], %192 {strides = array<i32>} : memref<2x8x32xf32, #tpu.memory_space<vmem>>, vector<1x8x32xf32>,
    %c1 = arith.constant 1 : index
    %c0_116 = arith.constant 0 : index
    %c0_117 = arith.constant 0 : index
    %193 = vector.load %arg0[%c1, %c0_116, %c0_117] : memref<2x8x32xf32, #tpu.memory_space<vmem>>, vector<1x8x32xf32>
    %194 = vector.shape_cast %193 : vector<1x8x32xf32> to vector<8x32xf32>
    %c1_118 = arith.constant 1 : index
    %c0_119 = arith.constant 0 : index
    %c0_120 = arith.constant 0 : index
    %195 = vector.load %arg1[%c1_118, %c0_119, %c0_120] : memref<2x8x32xf32, #tpu.memory_space<vmem>>, vector<1x8x32xf32>
    %196 = vector.shape_cast %195 : vector<1x8x32xf32> to vector<8x32xf32>
    %cst_121 = arith.constant dense<0.000000e+00> : vector<8xf32>
    %197 = vector.multi_reduction <add>, %194, %cst_121 [1] : vector<8x32xf32> to vector<8xf32>
    %198 = vector.shape_cast %197 : vector<8xf32> to vector<8x1xf32>
    %cst_122 = arith.constant 3.200000e+01 : f32
    %199 = vector.broadcast %cst_122 : f32 to vector<8x1xf32>
    %200 = arith.divf %198, %199 : vector<8x1xf32>
    %201 = arith.mulf %194, %194 : vector<8x32xf32>
    %cst_123 = arith.constant dense<0.000000e+00> : vector<8xf32>
    %202 = vector.multi_reduction <add>, %201, %cst_123 [1] : vector<8x32xf32> to vector<8xf32>
    %203 = vector.shape_cast %202 : vector<8xf32> to vector<8x1xf32>
    %cst_124 = arith.constant 3.200000e+01 : f32
    %204 = vector.broadcast %cst_124 : f32 to vector<8x1xf32>
    %205 = arith.divf %203, %204 : vector<8x1xf32>
    %206 = arith.mulf %200, %200 : vector<8x1xf32>
    %207 = arith.subf %205, %206 : vector<8x1xf32>
    %208 = vector.broadcast %200 : vector<8x1xf32> to vector<8x32xf32>
    %209 = arith.subf %194, %208 : vector<8x32xf32>
    %cst_125 = arith.constant 9.99999974E-6 : f32
    %210 = vector.broadcast %cst_125 : f32 to vector<8x1xf32>
    %211 = arith.addf %207, %210 : vector<8x1xf32>
    %212 = math.rsqrt %211 : vector<8x1xf32>
    %213 = vector.broadcast %212 : vector<8x1xf32> to vector<8x32xf32>
    %214 = arith.mulf %209, %213 : vector<8x32xf32>
    %215 = vector.broadcast %0 : vector<1x32xf32> to vector<8x32xf32>
    %216 = arith.mulf %214, %215 : vector<8x32xf32>
    %217 = vector.broadcast %1 : vector<1x32xf32> to vector<8x32xf32>
    %218 = arith.addf %216, %217 : vector<8x32xf32>
    %219 = vector.shape_cast %218 : vector<8x32xf32> to vector<1x8x32xf32>
    %220 = vector.shape_cast %219 : vector<1x8x32xf32> to vector<1x8x32xf32>
    %221 = vector.broadcast %220 : vector<1x8x32xf32> to vector<4x8x32xf32>
    "tpu.trace_start"() <{level = 10 : i32, message = "nsc,ncd->nsd"}> : () -> ()
    %cst_126 = arith.constant dense<0.000000e+00> : vector<4x8x8xf32>
    %222 = tpu.matmul %221, %6, %cst_126 {dimension_numbers = #tpu.dot_dimension_numbers<[2], [1], [1], [2], [0, 0, 0, 1, 1, 2], [0], [0]>} : vector<4x8x32xf32>, vector<4x32x8xf32>, vector<4x8x8xf32> -> vector<4x8x8xf32>
    "tpu.trace_stop"() : () -> ()
    %223 = vector.broadcast %9 : vector<4x1x8xf32> to vector<4x8x8xf32>
    %224 = arith.addf %222, %223 : vector<4x8x8xf32>
    "tpu.trace_start"() <{level = 10 : i32, message = "nsc,ncd->nsd"}> : () -> ()
    %cst_127 = arith.constant dense<0.000000e+00> : vector<4x8x8xf32>
    %225 = tpu.matmul %221, %7, %cst_127 {dimension_numbers = #tpu.dot_dimension_numbers<[2], [1], [1], [2], [0, 0, 0, 1, 1, 2], [0], [0]>} : vector<4x8x32xf32>, vector<4x32x8xf32>, vector<4x8x8xf32> -> vector<4x8x8xf32>
    "tpu.trace_stop"() : () -> ()
    %226 = vector.broadcast %10 : vector<4x1x8xf32> to vector<4x8x8xf32>
    %227 = arith.addf %225, %226 : vector<4x8x8xf32>
    "tpu.trace_start"() <{level = 10 : i32, message = "nsc,ncd->nsd"}> : () -> ()
    %cst_128 = arith.constant dense<0.000000e+00> : vector<4x8x8xf32>
    %228 = tpu.matmul %221, %8, %cst_128 {dimension_numbers = #tpu.dot_dimension_numbers<[2], [1], [1], [2], [0, 0, 0, 1, 1, 2], [0], [0]>} : vector<4x8x32xf32>, vector<4x32x8xf32>, vector<4x8x8xf32> -> vector<4x8x8xf32>
    "tpu.trace_stop"() : () -> ()
    %229 = vector.broadcast %11 : vector<4x1x8xf32> to vector<4x8x8xf32>
    %230 = arith.addf %228, %229 : vector<4x8x8xf32>
    "tpu.trace_start"() <{level = 10 : i32, message = "ntd,nsd->nts"}> : () -> ()
    %cst_129 = arith.constant dense<0.000000e+00> : vector<4x8x8xf32>
    %231 = tpu.matmul %224, %227, %cst_129 {dimension_numbers = #tpu.dot_dimension_numbers<[2], [2], [1], [1], [0, 0, 0, 1, 1, 1], [0], [0]>} : vector<4x8x8xf32>, vector<4x8x8xf32>, vector<4x8x8xf32> -> vector<4x8x8xf32>
    "tpu.trace_stop"() : () -> ()
    %cst_130 = arith.constant 0.353553385 : f32
    %232 = vector.broadcast %cst_130 : f32 to vector<4x8x8xf32>
    %233 = arith.mulf %231, %232 : vector<4x8x8xf32>
    %234 = vector.broadcast %32 : vector<1x8x8xf32> to vector<4x8x8xf32>
    %235 = arith.addf %233, %234 : vector<4x8x8xf32>
    %cst_131 = arith.constant dense<0xFF800000> : vector<4x8xf32>
    %236 = vector.multi_reduction <maximumf>, %235, %cst_131 [2] : vector<4x8x8xf32> to vector<4x8xf32>
    %237 = vector.shape_cast %236 : vector<4x8xf32> to vector<4x8x1xf32>
    %238 = vector.broadcast %237 : vector<4x8x1xf32> to vector<4x8x8xf32>
    %239 = arith.subf %235, %238 : vector<4x8x8xf32>
    %240 = math.exp %239 : vector<4x8x8xf32>
    %cst_132 = arith.constant dense<0.000000e+00> : vector<4x8xf32>
    %241 = vector.multi_reduction <add>, %240, %cst_132 [2] : vector<4x8x8xf32> to vector<4x8xf32>
    %242 = vector.shape_cast %241 : vector<4x8xf32> to vector<4x8x1xf32>
    %243 = tpu.reciprocal %242 {approx = true} : vector<4x8x1xf32> -> vector<4x8x1xf32>
    %244 = vector.broadcast %243 : vector<4x8x1xf32> to vector<4x8x8xf32>
    %245 = arith.mulf %240, %244 : vector<4x8x8xf32>
    "tpu.trace_start"() <{level = 10 : i32, message = "nts,nsd->ntd"}> : () -> ()
    %cst_133 = arith.constant dense<0.000000e+00> : vector<4x8x8xf32>
    %246 = tpu.matmul %245, %230, %cst_133 {dimension_numbers = #tpu.dot_dimension_numbers<[2], [1], [1], [2], [0, 0, 0, 1, 1, 2], [0], [0]>} : vector<4x8x8xf32>, vector<4x8x8xf32>, vector<4x8x8xf32> -> vector<4x8x8xf32>
    "tpu.trace_stop"() : () -> ()
    "tpu.trace_start"() <{level = 10 : i32, message = "ntd,ndc->ntc"}> : () -> ()
    %cst_134 = arith.constant dense<0.000000e+00> : vector<4x8x32xf32>
    %247 = tpu.matmul %246, %12, %cst_134 {dimension_numbers = #tpu.dot_dimension_numbers<[2], [1], [1], [2], [0, 0, 0, 1, 1, 2], [0], [0]>} : vector<4x8x8xf32>, vector<4x8x32xf32>, vector<4x8x32xf32> -> vector<4x8x32xf32>
    "tpu.trace_stop"() : () -> ()
    %cst_135 = arith.constant dense<0.000000e+00> : vector<8x32xf32>
    %248 = vector.multi_reduction <add>, %247, %cst_135 [0] : vector<4x8x32xf32> to vector<8x32xf32>
    %249 = vector.broadcast %13 : vector<1x32xf32> to vector<8x32xf32>
    %250 = arith.addf %248, %249 : vector<8x32xf32>
    %251 = arith.addf %194, %250 : vector<8x32xf32>
    %cst_136 = arith.constant dense<0.000000e+00> : vector<8xf32>
    %252 = vector.multi_reduction <add>, %251, %cst_136 [1] : vector<8x32xf32> to vector<8xf32>
    %253 = vector.shape_cast %252 : vector<8xf32> to vector<8x1xf32>
    %cst_137 = arith.constant 3.200000e+01 : f32
    %254 = vector.broadcast %cst_137 : f32 to vector<8x1xf32>
    %255 = arith.divf %253, %254 : vector<8x1xf32>
    %256 = arith.mulf %251, %251 : vector<8x32xf32>
    %cst_138 = arith.constant dense<0.000000e+00> : vector<8xf32>
    %257 = vector.multi_reduction <add>, %256, %cst_138 [1] : vector<8x32xf32> to vector<8xf32>
    %258 = vector.shape_cast %257 : vector<8xf32> to vector<8x1xf32>
    %cst_139 = arith.constant 3.200000e+01 : f32
    %259 = vector.broadcast %cst_139 : f32 to vector<8x1xf32>
    %260 = arith.divf %258, %259 : vector<8x1xf32>
    %261 = arith.mulf %255, %255 : vector<8x1xf32>
    %262 = arith.subf %260, %261 : vector<8x1xf32>
    %263 = vector.broadcast %255 : vector<8x1xf32> to vector<8x32xf32>
    %264 = arith.subf %251, %263 : vector<8x32xf32>
    %cst_140 = arith.constant 9.99999974E-6 : f32
    %265 = vector.broadcast %cst_140 : f32 to vector<8x1xf32>
    %266 = arith.addf %262, %265 : vector<8x1xf32>
    %267 = math.rsqrt %266 : vector<8x1xf32>
    %268 = vector.broadcast %267 : vector<8x1xf32> to vector<8x32xf32>
    %269 = arith.mulf %264, %268 : vector<8x32xf32>
    %270 = vector.broadcast %2 : vector<1x32xf32> to vector<8x32xf32>
    %271 = arith.mulf %269, %270 : vector<8x32xf32>
    %272 = vector.broadcast %3 : vector<1x32xf32> to vector<8x32xf32>
    %273 = arith.addf %271, %272 : vector<8x32xf32>
    %274 = vector.shape_cast %273 : vector<8x32xf32> to vector<1x8x32xf32>
    %275 = vector.shape_cast %274 : vector<1x8x32xf32> to vector<1x8x32xf32>
    %276 = vector.broadcast %275 : vector<1x8x32xf32> to vector<4x8x32xf32>
    %277 = vector.shape_cast %196 : vector<8x32xf32> to vector<1x8x32xf32>
    %278 = vector.shape_cast %277 : vector<1x8x32xf32> to vector<1x8x32xf32>
    %279 = vector.broadcast %278 : vector<1x8x32xf32> to vector<4x8x32xf32>
    "tpu.trace_start"() <{level = 10 : i32, message = "nsc,ncd->nsd"}> : () -> ()
    %cst_141 = arith.constant dense<0.000000e+00> : vector<4x8x8xf32>
    %280 = tpu.matmul %276, %14, %cst_141 {dimension_numbers = #tpu.dot_dimension_numbers<[2], [1], [1], [2], [0, 0, 0, 1, 1, 2], [0], [0]>} : vector<4x8x32xf32>, vector<4x32x8xf32>, vector<4x8x8xf32> -> vector<4x8x8xf32>
    "tpu.trace_stop"() : () -> ()
    %281 = vector.broadcast %15 : vector<4x1x8xf32> to vector<4x8x8xf32>
    %282 = arith.addf %280, %281 : vector<4x8x8xf32>
    "tpu.trace_start"() <{level = 10 : i32, message = "nsc,ncd->nsd"}> : () -> ()
    %cst_142 = arith.constant dense<0.000000e+00> : vector<4x8x8xf32>
    %283 = tpu.matmul %279, %16, %cst_142 {dimension_numbers = #tpu.dot_dimension_numbers<[2], [1], [1], [2], [0, 0, 0, 1, 1, 2], [0], [0]>} : vector<4x8x32xf32>, vector<4x32x8xf32>, vector<4x8x8xf32> -> vector<4x8x8xf32>
    "tpu.trace_stop"() : () -> ()
    %284 = vector.broadcast %17 : vector<4x1x8xf32> to vector<4x8x8xf32>
    %285 = arith.addf %283, %284 : vector<4x8x8xf32>
    "tpu.trace_start"() <{level = 10 : i32, message = "nsc,ncd->nsd"}> : () -> ()
    %cst_143 = arith.constant dense<0.000000e+00> : vector<4x8x8xf32>
    %286 = tpu.matmul %279, %18, %cst_143 {dimension_numbers = #tpu.dot_dimension_numbers<[2], [1], [1], [2], [0, 0, 0, 1, 1, 2], [0], [0]>} : vector<4x8x32xf32>, vector<4x32x8xf32>, vector<4x8x8xf32> -> vector<4x8x8xf32>
    "tpu.trace_stop"() : () -> ()
    %287 = vector.broadcast %19 : vector<4x1x8xf32> to vector<4x8x8xf32>
    %288 = arith.addf %286, %287 : vector<4x8x8xf32>
    "tpu.trace_start"() <{level = 10 : i32, message = "ntd,nsd->nts"}> : () -> ()
    %cst_144 = arith.constant dense<0.000000e+00> : vector<4x8x8xf32>
    %289 = tpu.matmul %282, %285, %cst_144 {dimension_numbers = #tpu.dot_dimension_numbers<[2], [2], [1], [1], [0, 0, 0, 1, 1, 1], [0], [0]>} : vector<4x8x8xf32>, vector<4x8x8xf32>, vector<4x8x8xf32> -> vector<4x8x8xf32>
    "tpu.trace_stop"() : () -> ()
    %cst_145 = arith.constant 0.353553385 : f32
    %290 = vector.broadcast %cst_145 : f32 to vector<4x8x8xf32>
    %291 = arith.mulf %289, %290 : vector<4x8x8xf32>
    %cst_146 = arith.constant dense<0xFF800000> : vector<4x8xf32>
    %292 = vector.multi_reduction <maximumf>, %291, %cst_146 [2] : vector<4x8x8xf32> to vector<4x8xf32>
    %293 = vector.shape_cast %292 : vector<4x8xf32> to vector<4x8x1xf32>
    %294 = vector.broadcast %293 : vector<4x8x1xf32> to vector<4x8x8xf32>
    %295 = arith.subf %291, %294 : vector<4x8x8xf32>
    %296 = math.exp %295 : vector<4x8x8xf32>
    %cst_147 = arith.constant dense<0.000000e+00> : vector<4x8xf32>
    %297 = vector.multi_reduction <add>, %296, %cst_147 [2] : vector<4x8x8xf32> to vector<4x8xf32>
    %298 = vector.shape_cast %297 : vector<4x8xf32> to vector<4x8x1xf32>
    %299 = tpu.reciprocal %298 {approx = true} : vector<4x8x1xf32> -> vector<4x8x1xf32>
    %300 = vector.broadcast %299 : vector<4x8x1xf32> to vector<4x8x8xf32>
    %301 = arith.mulf %296, %300 : vector<4x8x8xf32>
    "tpu.trace_start"() <{level = 10 : i32, message = "nts,nsd->ntd"}> : () -> ()
    %cst_148 = arith.constant dense<0.000000e+00> : vector<4x8x8xf32>
    %302 = tpu.matmul %301, %288, %cst_148 {dimension_numbers = #tpu.dot_dimension_numbers<[2], [1], [1], [2], [0, 0, 0, 1, 1, 2], [0], [0]>} : vector<4x8x8xf32>, vector<4x8x8xf32>, vector<4x8x8xf32> -> vector<4x8x8xf32>
    "tpu.trace_stop"() : () -> ()
    "tpu.trace_start"() <{level = 10 : i32, message = "ntd,ndc->ntc"}> : () -> ()
    %cst_149 = arith.constant dense<0.000000e+00> : vector<4x8x32xf32>
    %303 = tpu.matmul %302, %20, %cst_149 {dimension_numbers = #tpu.dot_dimension_numbers<[2], [1], [1], [2], [0, 0, 0, 1, 1, 2], [0], [0]>} : vector<4x8x8xf32>, vector<4x8x32xf32>, vector<4x8x32xf32> -> vector<4x8x32xf32>
    "tpu.trace_stop"() : () -> ()
    %cst_150 = arith.constant dense<0.000000e+00> : vector<8x32xf32>
    %304 = vector.multi_reduction <add>, %303, %cst_150 [0] : vector<4x8x32xf32> to vector<8x32xf32>
    %305 = vector.broadcast %21 : vector<1x32xf32> to vector<8x32xf32>
    %306 = arith.addf %304, %305 : vector<8x32xf32>
    %307 = arith.addf %251, %306 : vector<8x32xf32>
    %cst_151 = arith.constant dense<0.000000e+00> : vector<8xf32>
    %308 = vector.multi_reduction <add>, %307, %cst_151 [1] : vector<8x32xf32> to vector<8xf32>
    %309 = vector.shape_cast %308 : vector<8xf32> to vector<8x1xf32>
    %cst_152 = arith.constant 3.200000e+01 : f32
    %310 = vector.broadcast %cst_152 : f32 to vector<8x1xf32>
    %311 = arith.divf %309, %310 : vector<8x1xf32>
    %312 = arith.mulf %307, %307 : vector<8x32xf32>
    %cst_153 = arith.constant dense<0.000000e+00> : vector<8xf32>
    %313 = vector.multi_reduction <add>, %312, %cst_153 [1] : vector<8x32xf32> to vector<8xf32>
    %314 = vector.shape_cast %313 : vector<8xf32> to vector<8x1xf32>
    %cst_154 = arith.constant 3.200000e+01 : f32
    %315 = vector.broadcast %cst_154 : f32 to vector<8x1xf32>
    %316 = arith.divf %314, %315 : vector<8x1xf32>
    %317 = arith.mulf %311, %311 : vector<8x1xf32>
    %318 = arith.subf %316, %317 : vector<8x1xf32>
    %319 = vector.broadcast %311 : vector<8x1xf32> to vector<8x32xf32>
    %320 = arith.subf %307, %319 : vector<8x32xf32>
    %cst_155 = arith.constant 9.99999974E-6 : f32
    %321 = vector.broadcast %cst_155 : f32 to vector<8x1xf32>
    %322 = arith.addf %318, %321 : vector<8x1xf32>
    %323 = math.rsqrt %322 : vector<8x1xf32>
    %324 = vector.broadcast %323 : vector<8x1xf32> to vector<8x32xf32>
    %325 = arith.mulf %320, %324 : vector<8x32xf32>
    %326 = vector.broadcast %4 : vector<1x32xf32> to vector<8x32xf32>
    %327 = arith.mulf %325, %326 : vector<8x32xf32>
    %328 = vector.broadcast %5 : vector<1x32xf32> to vector<8x32xf32>
    %329 = arith.addf %327, %328 : vector<8x32xf32>
    %cst_156 = arith.constant dense<0.000000e+00> : vector<8x128xf32>
    %330 = tpu.matmul %329, %22, %cst_156 {dimension_numbers = #tpu.dot_dimension_numbers<[1], [0], [0], [1], [0, 0, 1, 1], [], []>} : vector<8x32xf32>, vector<32x128xf32>, vector<8x128xf32> -> vector<8x128xf32>
    %331 = vector.broadcast %23 : vector<1x128xf32> to vector<8x128xf32>
    %332 = arith.addf %330, %331 : vector<8x128xf32>
    %cst_157 = arith.constant 5.000000e-01 : f32
    %333 = vector.broadcast %cst_157 : f32 to vector<8x128xf32>
    %334 = arith.mulf %333, %332 : vector<8x128xf32>
    %cst_158 = arith.constant 4.471500e-02 : f32
    %335 = vector.broadcast %cst_158 : f32 to vector<8x128xf32>
    %336 = arith.mulf %335, %332 : vector<8x128xf32>
    %337 = arith.mulf %336, %332 : vector<8x128xf32>
    %338 = arith.mulf %337, %332 : vector<8x128xf32>
    %339 = arith.addf %332, %338 : vector<8x128xf32>
    %cst_159 = arith.constant 0.797884583 : f32
    %340 = vector.broadcast %cst_159 : f32 to vector<8x128xf32>
    %341 = arith.mulf %340, %339 : vector<8x128xf32>
    %342 = math.tanh %341 : vector<8x128xf32>
    %cst_160 = arith.constant 1.000000e+00 : f32
    %343 = vector.broadcast %cst_160 : f32 to vector<8x128xf32>
    %344 = arith.addf %343, %342 : vector<8x128xf32>
    %345 = arith.mulf %334, %344 : vector<8x128xf32>
    %cst_161 = arith.constant dense<0.000000e+00> : vector<8x32xf32>
    %346 = tpu.matmul %345, %24, %cst_161 {dimension_numbers = #tpu.dot_dimension_numbers<[1], [0], [0], [1], [0, 0, 1, 1], [], []>} : vector<8x128xf32>, vector<128x32xf32>, vector<8x32xf32> -> vector<8x32xf32>
    %347 = arith.addf %307, %346 : vector<8x32xf32>
    %348 = vector.broadcast %25 : vector<1x32xf32> to vector<8x32xf32>
    %349 = arith.addf %347, %348 : vector<8x32xf32>
    %c1_162 = arith.constant 1 : index
    %c0_163 = arith.constant 0 : index
    %c0_164 = arith.constant 0 : index
    %350 = vector.load %arg28[%c1_162, %c0_163, %c0_164] : memref<2x8x32xf32, #tpu.memory_space<vmem>>, vector<1x8x32xf32>
    %351 = vector.shape_cast %350 : vector<1x8x32xf32> to vector<8x32xf32>
    %352 = vector.shape_cast %349 : vector<8x32xf32> to vector<1x8x32xf32>
    tpu.vector_store %arg28[%c1_162, %c0_163, %c0_164], %352 {strides = array<i32>} : memref<2x8x32xf32, #tpu.memory_space<vmem>>, vector<1x8x32xf32>,
    return
  }
}

</mosaic_0001>

<llo_original>
// kernel: tpu_custom_call.1
$region0: #{tpu_custom_call.1}
  #allocation0 [shape = 'u32[]', space=smem, size = 0x4, offset = 0x4, fixed_abs, tag = 'smem constant byte address 0x4 - core index']
  #allocation1 [shape = 'u32[144,128]{1,0:T(1,128)}', space=vmem, size = 0x12000, scoped, tag = 'internal scratch']
  %s0 = inlined_call_operand.vmem [shape: f32[2,8,32], index: 0, kind: input, shape index: {}]
  %s1 = inlined_call_operand.vmem [shape: f32[2,8,32], index: 1, kind: input, shape index: {}]
  %s2 = inlined_call_operand.vmem [shape: f32[1,32], index: 2, kind: input, shape index: {}]
  %s3 = inlined_call_operand.vmem [shape: f32[1,32], index: 3, kind: input, shape index: {}]
  %s4 = inlined_call_operand.vmem [shape: f32[1,32], index: 4, kind: input, shape index: {}]
  %s5 = inlined_call_operand.vmem [shape: f32[1,32], index: 5, kind: input, shape index: {}]
  %s6 = inlined_call_operand.vmem [shape: f32[1,32], index: 6, kind: input, shape index: {}]
  %s7 = inlined_call_operand.vmem [shape: f32[1,32], index: 7, kind: input, shape index: {}]
  %s8 = inlined_call_operand.vmem [shape: f32[4,32,8], index: 8, kind: input, shape index: {}]
  %s9 = inlined_call_operand.vmem [shape: f32[4,32,8], index: 9, kind: input, shape index: {}]
  %s10 = inlined_call_operand.vmem [shape: f32[4,32,8], index: 10, kind: input, shape index: {}]
  %s11 = inlined_call_operand.vmem [shape: f32[4,1,8], index: 11, kind: input, shape index: {}]
  %s12 = inlined_call_operand.vmem [shape: f32[4,1,8], index: 12, kind: input, shape index: {}]
  %s13 = inlined_call_operand.vmem [shape: f32[4,1,8], index: 13, kind: input, shape index: {}]
  %s14 = inlined_call_operand.vmem [shape: f32[4,8,32], index: 14, kind: input, shape index: {}]
  %s15 = inlined_call_operand.vmem [shape: f32[1,32], index: 15, kind: input, shape index: {}]
  %s16 = inlined_call_operand.vmem [shape: f32[4,32,8], index: 16, kind: input, shape index: {}]
  %s17 = inlined_call_operand.vmem [shape: f32[4,1,8], index: 17, kind: input, shape index: {}]
  %s18 = inlined_call_operand.vmem [shape: f32[4,32,8], index: 18, kind: input, shape index: {}]
  %s19 = inlined_call_operand.vmem [shape: f32[4,1,8], index: 19, kind: input, shape index: {}]
  %s20 = inlined_call_operand.vmem [shape: f32[4,32,8], index: 20, kind: input, shape index: {}]
  %s21 = inlined_call_operand.vmem [shape: f32[4,1,8], index: 21, kind: input, shape index: {}]
  %s22 = inlined_call_operand.vmem [shape: f32[4,8,32], index: 22, kind: input, shape index: {}]
  %s23 = inlined_call_operand.vmem [shape: f32[1,32], index: 23, kind: input, shape index: {}]
  %s24 = inlined_call_operand.vmem [shape: f32[32,128], index: 24, kind: input, shape index: {}]
  %s25 = inlined_call_operand.vmem [shape: f32[1,128], index: 25, kind: input, shape index: {}]
  %s26 = inlined_call_operand.vmem [shape: f32[128,32], index: 26, kind: input, shape index: {}]
  %s27 = inlined_call_operand.vmem [shape: f32[1,32], index: 27, kind: input, shape index: {}]
  %s28 = inlined_call_operand.hbm [shape: f32[2,8,32], index: 28, kind: output, shape index: {}]
  %s29 = sld [smem:[#allocation0]]
  $region122: #{tpu_custom_call.1} parent=0
    _
  %s31 = ssub.s32 1, %s29
  %s32 = scalar_select 0, %s31, %s29
  $region1: #{tpu_custom_call.1} parent=0
    #allocation2 [shape = 'u8[8192]{0}', space=vmem, size = 0x2000, scoped, tag = 'output window, operand 0, single buffered']
    #allocation3 [shape = 's32[1]{0}', space=sflag, size = 0x4, scoped, tag = 'scoped memory for tpu_custom_call.1']
    %33 = vsyncpa [#allocation3], 0
    // Predicated region
    $region2: #{tpu_custom_call.1} parent=1 // pred_check
      _
    $region3: #{tpu_custom_call.1} parent=1 // pred_check_branch
      %35 = sbr.rel (0) target = $region5
    $region4: #{tpu_custom_call.1} parent=1 // pred_region
      _
    $region5: #{tpu_custom_call.1} parent=1 // pred_fallthru
      _
    // Predicated region
    $region6: #{tpu_custom_call.1} parent=1 // pred_check
      _
    $region7: #{tpu_custom_call.1} parent=1 // pred_check_branch
      %37 = sbr.rel (0) target = $region9
    $region8: #{tpu_custom_call.1} parent=1 // pred_region
      _
    $region9: #{tpu_custom_call.1} parent=1 // pred_fallthru
      _
    // Predicated region
    $region10: #{tpu_custom_call.1} parent=1 // pred_check
      _
    $region11: #{tpu_custom_call.1} parent=1 // pred_check_branch
      %39 = sbr.rel (0) target = $region13
    $region12: #{tpu_custom_call.1} parent=1 // pred_region
      _
    $region13: #{tpu_custom_call.1} parent=1 // pred_fallthru
      _
    // Predicated region
    $region14: #{tpu_custom_call.1} parent=1 // pred_check
      _
    $region15: #{tpu_custom_call.1} parent=1 // pred_check_branch
      %41 = sbr.rel (0) target = $region17
    $region16: #{tpu_custom_call.1} parent=1 // pred_region
      _
    $region17: #{tpu_custom_call.1} parent=1 // pred_fallthru
      _
    // Predicated region
    $region18: #{tpu_custom_call.1} parent=1 // pred_check
      _
    $region19: #{tpu_custom_call.1} parent=1 // pred_check_branch
      %43 = sbr.rel (0) target = $region21
    $region20: #{tpu_custom_call.1} parent=1 // pred_region
      _
    $region21: #{tpu_custom_call.1} parent=1 // pred_fallthru
      _
    // Predicated region
    $region22: #{tpu_custom_call.1} parent=1 // pred_check
      _
    $region23: #{tpu_custom_call.1} parent=1 // pred_check_branch
      %45 = sbr.rel (0) target = $region25
    $region24: #{tpu_custom_call.1} parent=1 // pred_region
      _
    $region25: #{tpu_custom_call.1} parent=1 // pred_fallthru
      _
    // Predicated region
    $region26: #{tpu_custom_call.1} parent=1 // pred_check
      _
    $region27: #{tpu_custom_call.1} parent=1 // pred_check_branch
      %47 = sbr.rel (0) target = $region29
    $region28: #{tpu_custom_call.1} parent=1 // pred_region
      _
    $region29: #{tpu_custom_call.1} parent=1 // pred_fallthru
      _
    // Predicated region
    $region30: #{tpu_custom_call.1} parent=1 // pred_check
      _
    $region31: #{tpu_custom_call.1} parent=1 // pred_check_branch
      %49 = sbr.rel (0) target = $region33
    $region32: #{tpu_custom_call.1} parent=1 // pred_region
      _
    $region33: #{tpu_custom_call.1} parent=1 // pred_fallthru
      _
    // Predicated region
    $region34: #{tpu_custom_call.1} parent=1 // pred_check
      _
    $region35: #{tpu_custom_call.1} parent=1 // pred_check_branch
      %51 = sbr.rel (0) target = $region37
    $region36: #{tpu_custom_call.1} parent=1 // pred_region
      _
    $region37: #{tpu_custom_call.1} parent=1 // pred_fallthru
      _
    // Predicated region
    $region38: #{tpu_custom_call.1} parent=1 // pred_check
      _
    $region39: #{tpu_custom_call.1} parent=1 // pred_check_branch
      %53 = sbr.rel (0) target = $region41
    $region40: #{tpu_custom_call.1} parent=1 // pred_region
      _
    $region41: #{tpu_custom_call.1} parent=1 // pred_fallthru
      _
    // Predicated region
    $region42: #{tpu_custom_call.1} parent=1 // pred_check
      _
    $region43: #{tpu_custom_call.1} parent=1 // pred_check_branch
      %55 = sbr.rel (0) target = $region45
    $region44: #{tpu_custom_call.1} parent=1 // pred_region
      _
    $region45: #{tpu_custom_call.1} parent=1 // pred_fallthru
      _
    // Predicated region
    $region46: #{tpu_custom_call.1} parent=1 // pred_check
      _
    $region47: #{tpu_custom_call.1} parent=1 // pred_check_branch
      %57 = sbr.rel (0) target = $region49
    $region48: #{tpu_custom_call.1} parent=1 // pred_region
      _
    $region49: #{tpu_custom_call.1} parent=1 // pred_fallthru
      _
    // Predicated region
    $region50: #{tpu_custom_call.1} parent=1 // pred_check
      _
    $region51: #{tpu_custom_call.1} parent=1 // pred_check_branch
      %59 = sbr.rel (0) target = $region53
    $region52: #{tpu_custom_call.1} parent=1 // pred_region
      _
    $region53: #{tpu_custom_call.1} parent=1 // pred_fallthru
      _
    // Predicated region
    $region54: #{tpu_custom_call.1} parent=1 // pred_check
      _
    $region55: #{tpu_custom_call.1} parent=1 // pred_check_branch
      %61 = sbr.rel (0) target = $region57
    $region56: #{tpu_custom_call.1} parent=1 // pred_region
      _
    $region57: #{tpu_custom_call.1} parent=1 // pred_fallthru
      _
    // Predicated region
    $region58: #{tpu_custom_call.1} parent=1 // pred_check
      _
    $region59: #{tpu_custom_call.1} parent=1 // pred_check_branch
      %63 = sbr.rel (0) target = $region61
    $region60: #{tpu_custom_call.1} parent=1 // pred_region
      _
    $region61: #{tpu_custom_call.1} parent=1 // pred_fallthru
      _
    // Predicated region
    $region62: #{tpu_custom_call.1} parent=1 // pred_check
      _
    $region63: #{tpu_custom_call.1} parent=1 // pred_check_branch
      %65 = sbr.rel (0) target = $region65
    $region64: #{tpu_custom_call.1} parent=1 // pred_region
      _
    $region65: #{tpu_custom_call.1} parent=1 // pred_fallthru
      _
    // Predicated region
    $region66: #{tpu_custom_call.1} parent=1 // pred_check
      _
    $region67: #{tpu_custom_call.1} parent=1 // pred_check_branch
      %67 = sbr.rel (0) target = $region69
    $region68: #{tpu_custom_call.1} parent=1 // pred_region
      _
    $region69: #{tpu_custom_call.1} parent=1 // pred_fallthru
      _
    // Predicated region
    $region70: #{tpu_custom_call.1} parent=1 // pred_check
      _
    $region71: #{tpu_custom_call.1} parent=1 // pred_check_branch
      %69 = sbr.rel (0) target = $region73
    $region72: #{tpu_custom_call.1} parent=1 // pred_region
      _
    $region73: #{tpu_custom_call.1} parent=1 // pred_fallthru
      _
    // Predicated region
    $region74: #{tpu_custom_call.1} parent=1 // pred_check
      _
    $region75: #{tpu_custom_call.1} parent=1 // pred_check_branch
      %71 = sbr.rel (0) target = $region77
    $region76: #{tpu_custom_call.1} parent=1 // pred_region
      _
    $region77: #{tpu_custom_call.1} parent=1 // pred_fallthru
      _
    // Predicated region
    $region78: #{tpu_custom_call.1} parent=1 // pred_check
      _
    $region79: #{tpu_custom_call.1} parent=1 // pred_check_branch
      %73 = sbr.rel (0) target = $region81
    $region80: #{tpu_custom_call.1} parent=1 // pred_region
      _
    $region81: #{tpu_custom_call.1} parent=1 // pred_fallthru
      _
    // Predicated region
    $region82: #{tpu_custom_call.1} parent=1 // pred_check
      _
    $region83: #{tpu_custom_call.1} parent=1 // pred_check_branch
      %75 = sbr.rel (0) target = $region85
    $region84: #{tpu_custom_call.1} parent=1 // pred_region
      _
    $region85: #{tpu_custom_call.1} parent=1 // pred_fallthru
      _
    // Predicated region
    $region86: #{tpu_custom_call.1} parent=1 // pred_check
      _
    $region87: #{tpu_custom_call.1} parent=1 // pred_check_branch
      %77 = sbr.rel (0) target = $region89
    $region88: #{tpu_custom_call.1} parent=1 // pred_region
      _
    $region89: #{tpu_custom_call.1} parent=1 // pred_fallthru
      _
    // Predicated region
    $region90: #{tpu_custom_call.1} parent=1 // pred_check
      _
    $region91: #{tpu_custom_call.1} parent=1 // pred_check_branch
      %79 = sbr.rel (0) target = $region93
    $region92: #{tpu_custom_call.1} parent=1 // pred_region
      _
    $region93: #{tpu_custom_call.1} parent=1 // pred_fallthru
      _
    // Predicated region
    $region94: #{tpu_custom_call.1} parent=1 // pred_check
      _
    $region95: #{tpu_custom_call.1} parent=1 // pred_check_branch
      %81 = sbr.rel (0) target = $region97
    $region96: #{tpu_custom_call.1} parent=1 // pred_region
      _
    $region97: #{tpu_custom_call.1} parent=1 // pred_fallthru
      _
    // Predicated region
    $region98: #{tpu_custom_call.1} parent=1 // pred_check
      _
    $region99: #{tpu_custom_call.1} parent=1 // pred_check_branch
      %83 = sbr.rel (0) target = $region101
    $region100: #{tpu_custom_call.1} parent=1 // pred_region
      _
    $region101: #{tpu_custom_call.1} parent=1 // pred_fallthru
      _
    // Predicated region
    $region102: #{tpu_custom_call.1} parent=1 // pred_check
      _
    $region103: #{tpu_custom_call.1} parent=1 // pred_check_branch
      %85 = sbr.rel (0) target = $region105
    $region104: #{tpu_custom_call.1} parent=1 // pred_region
      _
    $region105: #{tpu_custom_call.1} parent=1 // pred_fallthru
      _
    // Predicated region
    $region106: #{tpu_custom_call.1} parent=1 // pred_check
      _
    $region107: #{tpu_custom_call.1} parent=1 // pred_check_branch
      %87 = sbr.rel (0) target = $region109
    $region108: #{tpu_custom_call.1} parent=1 // pred_region
      _
    $region109: #{tpu_custom_call.1} parent=1 // pred_fallthru
      _
    // Predicated region
    $region110: #{tpu_custom_call.1} parent=1 // pred_check
      _
    $region111: #{tpu_custom_call.1} parent=1 // pred_check_branch
      %89 = sbr.rel (0) target = $region113
    $region112: #{tpu_custom_call.1} parent=1 // pred_region
      _
    $region113: #{tpu_custom_call.1} parent=1 // pred_fallthru
      _
    %v90 = vld [vmem:[%s2] sm:$0x1]
    %v91 = vld [vmem:[%s3] sm:$0x1]
    %v92 = vld [vmem:[%s4] sm:$0x1]
    %v93 = vld [vmem:[%s5] sm:$0x1]
    %v94 = vld [vmem:[%s6] sm:$0x1]
    %v95 = vld [vmem:[%s7] sm:$0x1]
    %v96 = vld [vmem:[%s8] sm:$0xff]
    %v97 = vld [vmem:[%s8 + $0x8] sm:$0xff]
    %v98 = vld [vmem:[%s8 + $0x10] sm:$0xff]
    %v99 = vld [vmem:[%s8 + $0x18] sm:$0xff]
    %v100 = vld [vmem:[%s8 + $0x20] sm:$0xff]
    %v101 = vld [vmem:[%s8 + $0x28] sm:$0xff]
    %v102 = vld [vmem:[%s8 + $0x30] sm:$0xff]
    %v103 = vld [vmem:[%s8 + $0x38] sm:$0xff]
    %v104 = vld [vmem:[%s8 + $0x40] sm:$0xff]
    %v105 = vld [vmem:[%s8 + $0x48] sm:$0xff]
    %v106 = vld [vmem:[%s8 + $0x50] sm:$0xff]
    %v107 = vld [vmem:[%s8 + $0x58] sm:$0xff]
    %v108 = vld [vmem:[%s8 + $0x60] sm:$0xff]
    %v109 = vld [vmem:[%s8 + $0x68] sm:$0xff]
    %v110 = vld [vmem:[%s8 + $0x70] sm:$0xff]
    %v111 = vld [vmem:[%s8 + $0x78] sm:$0xff]
    %v112 = vld [vmem:[%s9] sm:$0xff]
    %v113 = vld [vmem:[%s9 + $0x8] sm:$0xff]
    %v114 = vld [vmem:[%s9 + $0x10] sm:$0xff]
    %v115 = vld [vmem:[%s9 + $0x18] sm:$0xff]
    %v116 = vld [vmem:[%s9 + $0x20] sm:$0xff]
    %v117 = vld [vmem:[%s9 + $0x28] sm:$0xff]
    %v118 = vld [vmem:[%s9 + $0x30] sm:$0xff]
    %v119 = vld [vmem:[%s9 + $0x38] sm:$0xff]
    %v120 = vld [vmem:[%s9 + $0x40] sm:$0xff]
    %v121 = vld [vmem:[%s9 + $0x48] sm:$0xff]
    %v122 = vld [vmem:[%s9 + $0x50] sm:$0xff]
    %v123 = vld [vmem:[%s9 + $0x58] sm:$0xff]
    %v124 = vld [vmem:[%s9 + $0x60] sm:$0xff]
    %v125 = vld [vmem:[%s9 + $0x68] sm:$0xff]
    %v126 = vld [vmem:[%s9 + $0x70] sm:$0xff]
    %v127 = vld [vmem:[%s9 + $0x78] sm:$0xff]
    %v128 = vld [vmem:[%s10] sm:$0xff]
    %v129 = vld [vmem:[%s10 + $0x8] sm:$0xff]
    %v130 = vld [vmem:[%s10 + $0x10] sm:$0xff]
    %v131 = vld [vmem:[%s10 + $0x18] sm:$0xff]
    %v132 = vld [vmem:[%s10 + $0x20] sm:$0xff]
    %v133 = vld [vmem:[%s10 + $0x28] sm:$0xff]
    %v134 = vld [vmem:[%s10 + $0x30] sm:$0xff]
    %v135 = vld [vmem:[%s10 + $0x38] sm:$0xff]
    %v136 = vld [vmem:[%s10 + $0x40] sm:$0xff]
    %v137 = vld [vmem:[%s10 + $0x48] sm:$0xff]
    %v138 = vld [vmem:[%s10 + $0x50] sm:$0xff]
    %v139 = vld [vmem:[%s10 + $0x58] sm:$0xff]
    %v140 = vld [vmem:[%s10 + $0x60] sm:$0xff]
    %v141 = vld [vmem:[%s10 + $0x68] sm:$0xff]
    %v142 = vld [vmem:[%s10 + $0x70] sm:$0xff]
    %v143 = vld [vmem:[%s10 + $0x78] sm:$0xff]
    %v144 = vld [vmem:[%s11] sm:$0x1]
    %v145 = vld [vmem:[%s11 + $0x1] sm:$0x1]
    %v146 = vld [vmem:[%s11 + $0x2] sm:$0x1]
    %v147 = vld [vmem:[%s11 + $0x3] sm:$0x1]
    %v148 = vld [vmem:[%s12] sm:$0x1]
    %v149 = vld [vmem:[%s12 + $0x1] sm:$0x1]
    %v150 = vld [vmem:[%s12 + $0x2] sm:$0x1]
    %v151 = vld [vmem:[%s12 + $0x3] sm:$0x1]
    %v152 = vld [vmem:[%s13] sm:$0x1]
    %v153 = vld [vmem:[%s13 + $0x1] sm:$0x1]
    %v154 = vld [vmem:[%s13 + $0x2] sm:$0x1]
    %v155 = vld [vmem:[%s13 + $0x3] sm:$0x1]
    %v156 = vld [vmem:[%s14] sm:$0xff]
    %v157 = vld [vmem:[%s14 + $0x8] sm:$0xff]
    %v158 = vld [vmem:[%s14 + $0x10] sm:$0xff]
    %v159 = vld [vmem:[%s14 + $0x18] sm:$0xff]
    %v160 = vld [vmem:[%s15] sm:$0x1]
    %v161 = vld [vmem:[%s16] sm:$0xff]
    %v162 = vld [vmem:[%s16 + $0x8] sm:$0xff]
    %v163 = vld [vmem:[%s16 + $0x10] sm:$0xff]
    %v164 = vld [vmem:[%s16 + $0x18] sm:$0xff]
    %v165 = vld [vmem:[%s16 + $0x20] sm:$0xff]
    %v166 = vld [vmem:[%s16 + $0x28] sm:$0xff]
    %v167 = vld [vmem:[%s16 + $0x30] sm:$0xff]
    %v168 = vld [vmem:[%s16 + $0x38] sm:$0xff]
    %v169 = vld [vmem:[%s16 + $0x40] sm:$0xff]
    %v170 = vld [vmem:[%s16 + $0x48] sm:$0xff]
    %v171 = vld [vmem:[%s16 + $0x50] sm:$0xff]
    %v172 = vld [vmem:[%s16 + $0x58] sm:$0xff]
    %v173 = vld [vmem:[%s16 + $0x60] sm:$0xff]
    %v174 = vld [vmem:[%s16 + $0x68] sm:$0xff]
    %v175 = vld [vmem:[%s16 + $0x70] sm:$0xff]
    %v176 = vld [vmem:[%s16 + $0x78] sm:$0xff]
    %v177 = vld [vmem:[%s17] sm:$0x1]
    %v178 = vld [vmem:[%s17 + $0x1] sm:$0x1]
    %v179 = vld [vmem:[%s17 + $0x2] sm:$0x1]
    %v180 = vld [vmem:[%s17 + $0x3] sm:$0x1]
    %v181 = vld [vmem:[%s18] sm:$0xff]
    %v182 = vld [vmem:[%s18 + $0x8] sm:$0xff]
    %v183 = vld [vmem:[%s18 + $0x10] sm:$0xff]
    %v184 = vld [vmem:[%s18 + $0x18] sm:$0xff]
    %v185 = vld [vmem:[%s18 + $0x20] sm:$0xff]
    %v186 = vld [vmem:[%s18 + $0x28] sm:$0xff]
    %v187 = vld [vmem:[%s18 + $0x30] sm:$0xff]
    %v188 = vld [vmem:[%s18 + $0x38] sm:$0xff]
    %v189 = vld [vmem:[%s18 + $0x40] sm:$0xff]
    %v190 = vld [vmem:[%s18 + $0x48] sm:$0xff]
    %v191 = vld [vmem:[%s18 + $0x50] sm:$0xff]
    %v192 = vld [vmem:[%s18 + $0x58] sm:$0xff]
    %v193 = vld [vmem:[%s18 + $0x60] sm:$0xff]
    %v194 = vld [vmem:[%s18 + $0x68] sm:$0xff]
    %v195 = vld [vmem:[%s18 + $0x70] sm:$0xff]
    %v196 = vld [vmem:[%s18 + $0x78] sm:$0xff]
    %v197 = vld [vmem:[%s19] sm:$0x1]
    %v198 = vld [vmem:[%s19 + $0x1] sm:$0x1]
    %v199 = vld [vmem:[%s19 + $0x2] sm:$0x1]
    %v200 = vld [vmem:[%s19 + $0x3] sm:$0x1]
    %v201 = vld [vmem:[%s20] sm:$0xff]
    %v202 = vld [vmem:[%s20 + $0x8] sm:$0xff]
    %v203 = vld [vmem:[%s20 + $0x10] sm:$0xff]
    %v204 = vld [vmem:[%s20 + $0x18] sm:$0xff]
    %v205 = vld [vmem:[%s20 + $0x20] sm:$0xff]
    %v206 = vld [vmem:[%s20 + $0x28] sm:$0xff]
    %v207 = vld [vmem:[%s20 + $0x30] sm:$0xff]
    %v208 = vld [vmem:[%s20 + $0x38] sm:$0xff]
    %v209 = vld [vmem:[%s20 + $0x40] sm:$0xff]
    %v210 = vld [vmem:[%s20 + $0x48] sm:$0xff]
    %v211 = vld [vmem:[%s20 + $0x50] sm:$0xff]
    %v212 = vld [vmem:[%s20 + $0x58] sm:$0xff]
    %v213 = vld [vmem:[%s20 + $0x60] sm:$0xff]
    %v214 = vld [vmem:[%s20 + $0x68] sm:$0xff]
    %v215 = vld [vmem:[%s20 + $0x70] sm:$0xff]
    %v216 = vld [vmem:[%s20 + $0x78] sm:$0xff]
    %v217 = vld [vmem:[%s21] sm:$0x1]
    %v218 = vld [vmem:[%s21 + $0x1] sm:$0x1]
    %v219 = vld [vmem:[%s21 + $0x2] sm:$0x1]
    %v220 = vld [vmem:[%s21 + $0x3] sm:$0x1]
    %v221 = vld [vmem:[%s22] sm:$0xff]
    %v222 = vld [vmem:[%s22 + $0x8] sm:$0xff]
    %v223 = vld [vmem:[%s22 + $0x10] sm:$0xff]
    %v224 = vld [vmem:[%s22 + $0x18] sm:$0xff]
    %v225 = vld [vmem:[%s23] sm:$0x1]
    %v226 = vld [vmem:[%s24] sm:$0xff]
    %v227 = vld [vmem:[%s24 + $0x8] sm:$0xff]
    %v228 = vld [vmem:[%s24 + $0x10] sm:$0xff]
    %v229 = vld [vmem:[%s24 + $0x18] sm:$0xff]
    %v230 = vld [vmem:[%s25] sm:$0x1]
    %v231 = vld [vmem:[%s26] sm:$0xff]
    %v232 = vld [vmem:[%s26 + $0x8] sm:$0xff]
    %v233 = vld [vmem:[%s26 + $0x10] sm:$0xff]
    %v234 = vld [vmem:[%s26 + $0x18] sm:$0xff]
    %v235 = vld [vmem:[%s26 + $0x20] sm:$0xff]
    %v236 = vld [vmem:[%s26 + $0x28] sm:$0xff]
    %v237 = vld [vmem:[%s26 + $0x30] sm:$0xff]
    %v238 = vld [vmem:[%s26 + $0x38] sm:$0xff]
    %v239 = vld [vmem:[%s26 + $0x40] sm:$0xff]
    %v240 = vld [vmem:[%s26 + $0x48] sm:$0xff]
    %v241 = vld [vmem:[%s26 + $0x50] sm:$0xff]
    %v242 = vld [vmem:[%s26 + $0x58] sm:$0xff]
    %v243 = vld [vmem:[%s26 + $0x60] sm:$0xff]
    %v244 = vld [vmem:[%s26 + $0x68] sm:$0xff]
    %v245 = vld [vmem:[%s26 + $0x70] sm:$0xff]
    %v246 = vld [vmem:[%s26 + $0x78] sm:$0xff]
    %v247 = vld [vmem:[%s27] sm:$0x1]
    %v248 = vlaneseq
    %v249 = vshrl.u32 %v248, 7
    %v250 = vlaneseq
    %v251 = vand.u32 %v250, 127
    %vm252 = vcmp.ge.s32.totalorder %v249, %v251
    %v253 = vsel %vm252, 0.0, -1e+30
    %v254 = vld [vmem:[%s0] sm:$0xff]
    %v255 = vld [vmem:[%s1] sm:$0xff]
    %vm256 = vcmask 261120
    %v257 = vsel %vm256, %v254, 0.0
    %258 = vadd.xlane.f32.xlu0 %v257
    %v259 = vpop.xlane.xlu0 %258
    %v260 = vrcp.pop 32.0
    %v261 = vmul.f32 %v259, %v260
    %v262 = vmul.f32 %v254, %v254
    %v263 = vsel %vm256, %v262, 0.0
    %264 = vadd.xlane.f32.xlu0 %v263
    %v265 = vpop.xlane.xlu0 %264
    %v266 = vmul.f32 %v265, %v260
    %v267 = vmul.f32 %v261, %v261
    %v268 = vsub.f32 %v266, %v267
    %v269 = vsub.f32 %v254, %v261
    %v270 = vadd.f32 %v268, 1e-05
    %v271 = vrsqrt.pop %v270
    %v272 = vmul.f32 %v269, %v271
    %v274 = vlaneseq
    %v275 = vshrl.u32 %v274, 7
    %v276 = vsub.s32 0, %v275
    %v277 = vrot.slane %v90, %v276
    %v279 = vmul.f32 %v272, %v277
    %v281 = vlaneseq
    %v282 = vshrl.u32 %v281, 7
    %v283 = vsub.s32 0, %v282
    %v284 = vrot.slane %v91, %v283
    %v286 = vadd.f32 %v279, %v284
    %v291 = vlaneseq
    %v292 = vshrl.u32 %v291, 7
    %v293 = vsub.s32 0, %v292
    %v294 = vrot.slane %v144, %v293
    %v295 = vlaneseq
    %v296 = vshrl.u32 %v295, 7
    %v297 = vsub.s32 0, %v296
    %v298 = vrot.slane %v145, %v297
    %v299 = vlaneseq
    %v300 = vshrl.u32 %v299, 7
    %v301 = vsub.s32 0, %v300
    %v302 = vrot.slane %v146, %v301
    %v303 = vlaneseq
    %v304 = vshrl.u32 %v303, 7
    %v305 = vsub.s32 0, %v304
    %v306 = vrot.slane %v147, %v305
    %v312 = vsel %vm256, %v286, 0
    %314 = vmatprep.subr.mxu0 0.0
    %315 = vmatpush1.msra.mxu0 %v96
    %316 = vmatprep.subr.mxu0 0.0
    %317 = vmatpush1.msra.mxu0 %v97
    %318 = vmatprep.subr.mxu0 0.0
    %319 = vmatpush1.msra.mxu0 %v98
    %320 = vmatprep.subr.mxu0 0.0
    %321 = vmatpush1.msra.mxu0 %v99
    %322 = vmatprep.subr.mxu0 0.0
    %323 = vmatpush1.msra.mxu0 0.0
    %324 = vmatprep.subr.mxu0 0.0
    %325 = vmatpush1.msra.mxu0 0.0
    %326 = vmatprep.subr.mxu0 0.0
    %327 = vmatpush1.msra.mxu0 0.0
    %328 = vmatprep.subr.mxu0 0.0
    %329 = vmatpush1.msra.mxu0 0.0
    %330 = vmatprep.subr.mxu0 0.0
    %331 = vmatpush1.msra.mxu0 0.0
    %332 = vmatprep.subr.mxu0 0.0
    %333 = vmatpush1.msra.mxu0 0.0
    %334 = vmatprep.subr.mxu0 0.0
    %335 = vmatpush1.msra.mxu0 0.0
    %336 = vmatprep.subr.mxu0 0.0
    %337 = vmatpush1.msra.mxu0 0.0
    %338 = vmatprep.subr.mxu0 0.0
    %339 = vmatpush1.msra.mxu0 0.0
    %340 = vmatprep.subr.mxu0 0.0
    %341 = vmatpush1.msra.mxu0 0.0
    %342 = vmatprep.subr.mxu0 0.0
    %343 = vmatpush1.msra.mxu0 0.0
    %344 = vmatprep.subr.mxu0 0.0
    %345 = vmatpush1.msra.mxu0 0.0
    %346 = vmatprep.subr.mxu0 0.0
    %347 = vmatpush1.msra.mxu0 0.0
    %348 = vmatprep.subr.mxu0 0.0
    %349 = vmatpush1.msra.mxu0 0.0
    %350 = vmatprep.subr.mxu0 0.0
    %351 = vmatpush1.msra.mxu0 0.0
    %352 = vmatprep.subr.mxu0 0.0
    %353 = vmatpush1.msra.mxu0 0.0
    %354 = vmatprep.subr.mxu0 0.0
    %355 = vmatpush1.msra.mxu0 0.0
    %356 = vmatprep.subr.mxu0 0.0
    %357 = vmatpush1.msra.mxu0 0.0
    %358 = vmatprep.subr.mxu0 0.0
    %359 = vmatpush1.msra.mxu0 0.0
    %360 = vmatprep.subr.mxu0 0.0
    %361 = vmatpush1.msra.mxu0 0.0
    %362 = vmatprep.subr.mxu0 0.0
    %363 = vmatpush1.msra.mxu0 0.0
    %364 = vmatprep.subr.mxu0 0.0
    %365 = vmatpush1.msra.mxu0 0.0
    %366 = vmatprep.subr.mxu0 0.0
    %367 = vmatpush1.msra.mxu0 0.0
    %368 = vmatprep.subr.mxu0 0.0
    %369 = vmatpush1.msra.mxu0 0.0
    %370 = vmatprep.subr.mxu0 0.0
    %371 = vmatpush1.msra.mxu0 0.0
    %372 = vmatprep.subr.mxu0 0.0
    %373 = vmatpush1.msra.mxu0 0.0
    %374 = vmatprep.subr.mxu0 0.0
    %375 = vmatpush1.msra.mxu0 0.0
    %376 = vmatprep.subr.mxu0 0.0
    %377 = vmatpush1.msra.mxu0 0.0
    %378 = vmatprep.mubr.f32.mxu0 0.0
    %379 = vmatmul.mubr.f32.gmra.mrb[0].mxu0 %v312
    %v380 = vpop.f32.mrb[0].mxu0
    %v381 = vadd.f32 %v294, %v380
    %v382 = vpop.f32.mrb[0].mxu0
    %383 = vdwg.mxu0
    %384 = vmatprep.subr.mxu0 0.0
    %385 = vmatpush1.msra.mxu0 %v100
    %386 = vmatprep.subr.mxu0 0.0
    %387 = vmatpush1.msra.mxu0 %v101
    %388 = vmatprep.subr.mxu0 0.0
    %389 = vmatpush1.msra.mxu0 %v102
    %390 = vmatprep.subr.mxu0 0.0
    %391 = vmatpush1.msra.mxu0 %v103
    %392 = vmatprep.subr.mxu0 0.0
    %393 = vmatpush1.msra.mxu0 0.0
    %394 = vmatprep.subr.mxu0 0.0
    %395 = vmatpush1.msra.mxu0 0.0
    %396 = vmatprep.subr.mxu0 0.0
    %397 = vmatpush1.msra.mxu0 0.0
    %398 = vmatprep.subr.mxu0 0.0
    %399 = vmatpush1.msra.mxu0 0.0
    %400 = vmatprep.subr.mxu0 0.0
    %401 = vmatpush1.msra.mxu0 0.0
    %402 = vmatprep.subr.mxu0 0.0
    %403 = vmatpush1.msra.mxu0 0.0
    %404 = vmatprep.subr.mxu0 0.0
    %405 = vmatpush1.msra.mxu0 0.0
    %406 = vmatprep.subr.mxu0 0.0
    %407 = vmatpush1.msra.mxu0 0.0
    %408 = vmatprep.subr.mxu0 0.0
    %409 = vmatpush1.msra.mxu0 0.0
    %410 = vmatprep.subr.mxu0 0.0
    %411 = vmatpush1.msra.mxu0 0.0
    %412 = vmatprep.subr.mxu0 0.0
    %413 = vmatpush1.msra.mxu0 0.0
    %414 = vmatprep.subr.mxu0 0.0
    %415 = vmatpush1.msra.mxu0 0.0
    %416 = vmatprep.subr.mxu0 0.0
    %417 = vmatpush1.msra.mxu0 0.0
    %418 = vmatprep.subr.mxu0 0.0
    %419 = vmatpush1.msra.mxu0 0.0
    %420 = vmatprep.subr.mxu0 0.0
    %421 = vmatpush1.msra.mxu0 0.0
    %422 = vmatprep.subr.mxu0 0.0
    %423 = vmatpush1.msra.mxu0 0.0
    %424 = vmatprep.subr.mxu0 0.0
    %425 = vmatpush1.msra.mxu0 0.0
    %426 = vmatprep.subr.mxu0 0.0
    %427 = vmatpush1.msra.mxu0 0.0
    %428 = vmatprep.subr.mxu0 0.0
    %429 = vmatpush1.msra.mxu0 0.0
    %430 = vmatprep.subr.mxu0 0.0
    %431 = vmatpush1.msra.mxu0 0.0
    %432 = vmatprep.subr.mxu0 0.0
    %433 = vmatpush1.msra.mxu0 0.0
    %434 = vmatprep.subr.mxu0 0.0
    %435 = vmatpush1.msra.mxu0 0.0
    %436 = vmatprep.subr.mxu0 0.0
    %437 = vmatpush1.msra.mxu0 0.0
    %438 = vmatprep.subr.mxu0 0.0
    %439 = vmatpush1.msra.mxu0 0.0
    %440 = vmatprep.subr.mxu0 0.0
    %441 = vmatpush1.msra.mxu0 0.0
    %442 = vmatprep.subr.mxu0 0.0
    %443 = vmatpush1.msra.mxu0 0.0
    %444 = vmatprep.subr.mxu0 0.0
    %445 = vmatpush1.msra.mxu0 0.0
    %446 = vmatprep.subr.mxu0 0.0
    %447 = vmatpush1.msra.mxu0 0.0
    %448 = vmatprep.mubr.f32.mxu0 0.0
    %449 = vmatmul.mubr.f32.gmra.mrb[0].mxu0 %v312
    %v450 = vpop.f32.mrb[0].mxu0
    %v451 = vadd.f32 %v298, %v450
    %v452 = vpop.f32.mrb[0].mxu0
    %453 = vdwg.mxu0
    %454 = vmatprep.subr.mxu0 0.0
    %455 = vmatpush1.msra.mxu0 %v104
    %456 = vmatprep.subr.mxu0 0.0
    %457 = vmatpush1.msra.mxu0 %v105
    %458 = vmatprep.subr.mxu0 0.0
    %459 = vmatpush1.msra.mxu0 %v106
    %460 = vmatprep.subr.mxu0 0.0
    %461 = vmatpush1.msra.mxu0 %v107
    %462 = vmatprep.subr.mxu0 0.0
    %463 = vmatpush1.msra.mxu0 0.0
    %464 = vmatprep.subr.mxu0 0.0
    %465 = vmatpush1.msra.mxu0 0.0
    %466 = vmatprep.subr.mxu0 0.0
    %467 = vmatpush1.msra.mxu0 0.0
    %468 = vmatprep.subr.mxu0 0.0
    %469 = vmatpush1.msra.mxu0 0.0
    %470 = vmatprep.subr.mxu0 0.0
    %471 = vmatpush1.msra.mxu0 0.0
    %472 = vmatprep.subr.mxu0 0.0
    %473 = vmatpush1.msra.mxu0 0.0
    %474 = vmatprep.subr.mxu0 0.0
    %475 = vmatpush1.msra.mxu0 0.0
    %476 = vmatprep.subr.mxu0 0.0
    %477 = vmatpush1.msra.mxu0 0.0
    %478 = vmatprep.subr.mxu0 0.0
    %479 = vmatpush1.msra.mxu0 0.0
    %480 = vmatprep.subr.mxu0 0.0
    %481 = vmatpush1.msra.mxu0 0.0
    %482 = vmatprep.subr.mxu0 0.0
    %483 = vmatpush1.msra.mxu0 0.0
    %484 = vmatprep.subr.mxu0 0.0
    %485 = vmatpush1.msra.mxu0 0.0
    %486 = vmatprep.subr.mxu0 0.0
    %487 = vmatpush1.msra.mxu0 0.0
    %488 = vmatprep.subr.mxu0 0.0
    %489 = vmatpush1.msra.mxu0 0.0
    %490 = vmatprep.subr.mxu0 0.0
    %491 = vmatpush1.msra.mxu0 0.0
    %492 = vmatprep.subr.mxu0 0.0
    %493 = vmatpush1.msra.mxu0 0.0
    %494 = vmatprep.subr.mxu0 0.0
    %495 = vmatpush1.msra.mxu0 0.0
    %496 = vmatprep.subr.mxu0 0.0
    %497 = vmatpush1.msra.mxu0 0.0
    %498 = vmatprep.subr.mxu0 0.0
    %499 = vmatpush1.msra.mxu0 0.0
    %500 = vmatprep.subr.mxu0 0.0
    %501 = vmatpush1.msra.mxu0 0.0
    %502 = vmatprep.subr.mxu0 0.0
    %503 = vmatpush1.msra.mxu0 0.0
    %504 = vmatprep.subr.mxu0 0.0
    %505 = vmatpush1.msra.mxu0 0.0
    %506 = vmatprep.subr.mxu0 0.0
    %507 = vmatpush1.msra.mxu0 0.0
    %508 = vmatprep.subr.mxu0 0.0
    %509 = vmatpush1.msra.mxu0 0.0
    %510 = vmatprep.subr.mxu0 0.0
    %511 = vmatpush1.msra.mxu0 0.0
    %512 = vmatprep.subr.mxu0 0.0
    %513 = vmatpush1.msra.mxu0 0.0
    %514 = vmatprep.subr.mxu0 0.0
    %515 = vmatpush1.msra.mxu0 0.0
    %516 = vmatprep.subr.mxu0 0.0
    %517 = vmatpush1.msra.mxu0 0.0
    %518 = vmatprep.mubr.f32.mxu0 0.0
    %519 = vmatmul.mubr.f32.gmra.mrb[0].mxu0 %v312
    %v520 = vpop.f32.mrb[0].mxu0
    %v521 = vadd.f32 %v302, %v520
    %v522 = vpop.f32.mrb[0].mxu0
    %523 = vdwg.mxu0
    %524 = vmatprep.subr.mxu0 0.0
    %525 = vmatpush1.msra.mxu0 %v108
    %526 = vmatprep.subr.mxu0 0.0
    %527 = vmatpush1.msra.mxu0 %v109
    %528 = vmatprep.subr.mxu0 0.0
    %529 = vmatpush1.msra.mxu0 %v110
    %530 = vmatprep.subr.mxu0 0.0
    %531 = vmatpush1.msra.mxu0 %v111
    %532 = vmatprep.subr.mxu0 0.0
    %533 = vmatpush1.msra.mxu0 0.0
    %534 = vmatprep.subr.mxu0 0.0
    %535 = vmatpush1.msra.mxu0 0.0
    %536 = vmatprep.subr.mxu0 0.0
    %537 = vmatpush1.msra.mxu0 0.0
    %538 = vmatprep.subr.mxu0 0.0
    %539 = vmatpush1.msra.mxu0 0.0
    %540 = vmatprep.subr.mxu0 0.0
    %541 = vmatpush1.msra.mxu0 0.0
    %542 = vmatprep.subr.mxu0 0.0
    %543 = vmatpush1.msra.mxu0 0.0
    %544 = vmatprep.subr.mxu0 0.0
    %545 = vmatpush1.msra.mxu0 0.0
    %546 = vmatprep.subr.mxu0 0.0
    %547 = vmatpush1.msra.mxu0 0.0
    %548 = vmatprep.subr.mxu0 0.0
    %549 = vmatpush1.msra.mxu0 0.0
    %550 = vmatprep.subr.mxu0 0.0
    %551 = vmatpush1.msra.mxu0 0.0
    %552 = vmatprep.subr.mxu0 0.0
    %553 = vmatpush1.msra.mxu0 0.0
    %554 = vmatprep.subr.mxu0 0.0
    %555 = vmatpush1.msra.mxu0 0.0
    %556 = vmatprep.subr.mxu0 0.0
    %557 = vmatpush1.msra.mxu0 0.0
    %558 = vmatprep.subr.mxu0 0.0
    %559 = vmatpush1.msra.mxu0 0.0
    %560 = vmatprep.subr.mxu0 0.0
    %561 = vmatpush1.msra.mxu0 0.0
    %562 = vmatprep.subr.mxu0 0.0
    %563 = vmatpush1.msra.mxu0 0.0
    %564 = vmatprep.subr.mxu0 0.0
    %565 = vmatpush1.msra.mxu0 0.0
    %566 = vmatprep.subr.mxu0 0.0
    %567 = vmatpush1.msra.mxu0 0.0
    %568 = vmatprep.subr.mxu0 0.0
    %569 = vmatpush1.msra.mxu0 0.0
    %570 = vmatprep.subr.mxu0 0.0
    %571 = vmatpush1.msra.mxu0 0.0
    %572 = vmatprep.subr.mxu0 0.0
    %573 = vmatpush1.msra.mxu0 0.0
    %574 = vmatprep.subr.mxu0 0.0
    %575 = vmatpush1.msra.mxu0 0.0
    %576 = vmatprep.subr.mxu0 0.0
    %577 = vmatpush1.msra.mxu0 0.0
    %578 = vmatprep.subr.mxu0 0.0
    %579 = vmatpush1.msra.mxu0 0.0
    %580 = vmatprep.subr.mxu0 0.0
    %581 = vmatpush1.msra.mxu0 0.0
    %582 = vmatprep.subr.mxu0 0.0
    %583 = vmatpush1.msra.mxu0 0.0
    %584 = vmatprep.subr.mxu0 0.0
    %585 = vmatpush1.msra.mxu0 0.0
    %586 = vmatprep.subr.mxu0 0.0
    %587 = vmatpush1.msra.mxu0 0.0
    %588 = vmatprep.mubr.f32.mxu0 0.0
    %589 = vmatmul.mubr.f32.gmra.mrb[0].mxu0 %v312
    %v590 = vpop.f32.mrb[0].mxu0
    %v591 = vadd.f32 %v306, %v590
    %v592 = vpop.f32.mrb[0].mxu0
    %593 = vdwg.mxu0
    %v598 = vlaneseq
    %v599 = vshrl.u32 %v598, 7
    %v600 = vsub.s32 0, %v599
    %v601 = vrot.slane %v148, %v600
    %v602 = vlaneseq
    %v603 = vshrl.u32 %v602, 7
    %v604 = vsub.s32 0, %v603
    %v605 = vrot.slane %v149, %v604
    %v606 = vlaneseq
    %v607 = vshrl.u32 %v606, 7
    %v608 = vsub.s32 0, %v607
    %v609 = vrot.slane %v150, %v608
    %v610 = vlaneseq
    %v611 = vshrl.u32 %v610, 7
    %v612 = vsub.s32 0, %v611
    %v613 = vrot.slane %v151, %v612
    %618 = vmatprep.subr.mxu0 0.0
    %619 = vmatpush1.msra.mxu0 %v112
    %620 = vmatprep.subr.mxu0 0.0
    %621 = vmatpush1.msra.mxu0 %v113
    %622 = vmatprep.subr.mxu0 0.0
    %623 = vmatpush1.msra.mxu0 %v114
    %624 = vmatprep.subr.mxu0 0.0
    %625 = vmatpush1.msra.mxu0 %v115
    %626 = vmatprep.subr.mxu0 0.0
    %627 = vmatpush1.msra.mxu0 0.0
    %628 = vmatprep.subr.mxu0 0.0
    %629 = vmatpush1.msra.mxu0 0.0
    %630 = vmatprep.subr.mxu0 0.0
    %631 = vmatpush1.msra.mxu0 0.0
    %632 = vmatprep.subr.mxu0 0.0
    %633 = vmatpush1.msra.mxu0 0.0
    %634 = vmatprep.subr.mxu0 0.0
    %635 = vmatpush1.msra.mxu0 0.0
    %636 = vmatprep.subr.mxu0 0.0
    %637 = vmatpush1.msra.mxu0 0.0
    %638 = vmatprep.subr.mxu0 0.0
    %639 = vmatpush1.msra.mxu0 0.0
    %640 = vmatprep.subr.mxu0 0.0
    %641 = vmatpush1.msra.mxu0 0.0
    %642 = vmatprep.subr.mxu0 0.0
    %643 = vmatpush1.msra.mxu0 0.0
    %644 = vmatprep.subr.mxu0 0.0
    %645 = vmatpush1.msra.mxu0 0.0
    %646 = vmatprep.subr.mxu0 0.0
    %647 = vmatpush1.msra.mxu0 0.0
    %648 = vmatprep.subr.mxu0 0.0
    %649 = vmatpush1.msra.mxu0 0.0
    %650 = vmatprep.subr.mxu0 0.0
    %651 = vmatpush1.msra.mxu0 0.0
    %652 = vmatprep.subr.mxu0 0.0
    %653 = vmatpush1.msra.mxu0 0.0
    %654 = vmatprep.subr.mxu0 0.0
    %655 = vmatpush1.msra.mxu0 0.0
    %656 = vmatprep.subr.mxu0 0.0
    %657 = vmatpush1.msra.mxu0 0.0
    %658 = vmatprep.subr.mxu0 0.0
    %659 = vmatpush1.msra.mxu0 0.0
    %660 = vmatprep.subr.mxu0 0.0
    %661 = vmatpush1.msra.mxu0 0.0
    %662 = vmatprep.subr.mxu0 0.0
    %663 = vmatpush1.msra.mxu0 0.0
    %664 = vmatprep.subr.mxu0 0.0
    %665 = vmatpush1.msra.mxu0 0.0
    %666 = vmatprep.subr.mxu0 0.0
    %667 = vmatpush1.msra.mxu0 0.0
    %668 = vmatprep.subr.mxu0 0.0
    %669 = vmatpush1.msra.mxu0 0.0
    %670 = vmatprep.subr.mxu0 0.0
    %671 = vmatpush1.msra.mxu0 0.0
    %672 = vmatprep.subr.mxu0 0.0
    %673 = vmatpush1.msra.mxu0 0.0
    %674 = vmatprep.subr.mxu0 0.0
    %675 = vmatpush1.msra.mxu0 0.0
    %676 = vmatprep.subr.mxu0 0.0
    %677 = vmatpush1.msra.mxu0 0.0
    %678 = vmatprep.subr.mxu0 0.0
    %679 = vmatpush1.msra.mxu0 0.0
    %680 = vmatprep.subr.mxu0 0.0
    %681 = vmatpush1.msra.mxu0 0.0
    %682 = vmatprep.mubr.f32.mxu0 0.0
    %683 = vmatmul.mubr.f32.gmra.mrb[0].mxu0 %v312
    %v684 = vpop.f32.mrb[0].mxu0
    %v685 = vadd.f32 %v601, %v684
    %v686 = vpop.f32.mrb[0].mxu0
    %687 = vdwg.mxu0
    %688 = vmatprep.subr.mxu0 0.0
    %689 = vmatpush1.msra.mxu0 %v116
    %690 = vmatprep.subr.mxu0 0.0
    %691 = vmatpush1.msra.mxu0 %v117
    %692 = vmatprep.subr.mxu0 0.0
    %693 = vmatpush1.msra.mxu0 %v118
    %694 = vmatprep.subr.mxu0 0.0
    %695 = vmatpush1.msra.mxu0 %v119
    %696 = vmatprep.subr.mxu0 0.0
    %697 = vmatpush1.msra.mxu0 0.0
    %698 = vmatprep.subr.mxu0 0.0
    %699 = vmatpush1.msra.mxu0 0.0
    %700 = vmatprep.subr.mxu0 0.0
    %701 = vmatpush1.msra.mxu0 0.0
    %702 = vmatprep.subr.mxu0 0.0
    %703 = vmatpush1.msra.mxu0 0.0
    %704 = vmatprep.subr.mxu0 0.0
    %705 = vmatpush1.msra.mxu0 0.0
    %706 = vmatprep.subr.mxu0 0.0
    %707 = vmatpush1.msra.mxu0 0.0
    %708 = vmatprep.subr.mxu0 0.0
    %709 = vmatpush1.msra.mxu0 0.0
    %710 = vmatprep.subr.mxu0 0.0
    %711 = vmatpush1.msra.mxu0 0.0
    %712 = vmatprep.subr.mxu0 0.0
    %713 = vmatpush1.msra.mxu0 0.0
    %714 = vmatprep.subr.mxu0 0.0
    %715 = vmatpush1.msra.mxu0 0.0
    %716 = vmatprep.subr.mxu0 0.0
    %717 = vmatpush1.msra.mxu0 0.0
    %718 = vmatprep.subr.mxu0 0.0
    %719 = vmatpush1.msra.mxu0 0.0
    %720 = vmatprep.subr.mxu0 0.0
    %721 = vmatpush1.msra.mxu0 0.0
    %722 = vmatprep.subr.mxu0 0.0
    %723 = vmatpush1.msra.mxu0 0.0
    %724 = vmatprep.subr.mxu0 0.0
    %725 = vmatpush1.msra.mxu0 0.0
    %726 = vmatprep.subr.mxu0 0.0
    %727 = vmatpush1.msra.mxu0 0.0
    %728 = vmatprep.subr.mxu0 0.0
    %729 = vmatpush1.msra.mxu0 0.0
    %730 = vmatprep.subr.mxu0 0.0
    %731 = vmatpush1.msra.mxu0 0.0
    %732 = vmatprep.subr.mxu0 0.0
    %733 = vmatpush1.msra.mxu0 0.0
    %734 = vmatprep.subr.mxu0 0.0
    %735 = vmatpush1.msra.mxu0 0.0
    %736 = vmatprep.subr.mxu0 0.0
    %737 = vmatpush1.msra.mxu0 0.0
    %738 = vmatprep.subr.mxu0 0.0
    %739 = vmatpush1.msra.mxu0 0.0
    %740 = vmatprep.subr.mxu0 0.0
    %741 = vmatpush1.msra.mxu0 0.0
    %742 = vmatprep.subr.mxu0 0.0
    %743 = vmatpush1.msra.mxu0 0.0
    %744 = vmatprep.subr.mxu0 0.0
    %745 = vmatpush1.msra.mxu0 0.0
    %746 = vmatprep.subr.mxu0 0.0
    %747 = vmatpush1.msra.mxu0 0.0
    %748 = vmatprep.subr.mxu0 0.0
    %749 = vmatpush1.msra.mxu0 0.0
    %750 = vmatprep.subr.mxu0 0.0
    %751 = vmatpush1.msra.mxu0 0.0
    %752 = vmatprep.mubr.f32.mxu0 0.0
    %753 = vmatmul.mubr.f32.gmra.mrb[0].mxu0 %v312
    %v754 = vpop.f32.mrb[0].mxu0
    %v755 = vadd.f32 %v605, %v754
    %v756 = vpop.f32.mrb[0].mxu0
    %757 = vdwg.mxu0
    %758 = vmatprep.subr.mxu0 0.0
    %759 = vmatpush1.msra.mxu0 %v120
    %760 = vmatprep.subr.mxu0 0.0
    %761 = vmatpush1.msra.mxu0 %v121
    %762 = vmatprep.subr.mxu0 0.0
    %763 = vmatpush1.msra.mxu0 %v122
    %764 = vmatprep.subr.mxu0 0.0
    %765 = vmatpush1.msra.mxu0 %v123
    %766 = vmatprep.subr.mxu0 0.0
    %767 = vmatpush1.msra.mxu0 0.0
    %768 = vmatprep.subr.mxu0 0.0
    %769 = vmatpush1.msra.mxu0 0.0
    %770 = vmatprep.subr.mxu0 0.0
    %771 = vmatpush1.msra.mxu0 0.0
    %772 = vmatprep.subr.mxu0 0.0
    %773 = vmatpush1.msra.mxu0 0.0
    %774 = vmatprep.subr.mxu0 0.0
    %775 = vmatpush1.msra.mxu0 0.0
    %776 = vmatprep.subr.mxu0 0.0
    %777 = vmatpush1.msra.mxu0 0.0
    %778 = vmatprep.subr.mxu0 0.0
    %779 = vmatpush1.msra.mxu0 0.0
    %780 = vmatprep.subr.mxu0 0.0
    %781 = vmatpush1.msra.mxu0 0.0
    %782 = vmatprep.subr.mxu0 0.0
    %783 = vmatpush1.msra.mxu0 0.0
    %784 = vmatprep.subr.mxu0 0.0
    %785 = vmatpush1.msra.mxu0 0.0
    %786 = vmatprep.subr.mxu0 0.0
    %787 = vmatpush1.msra.mxu0 0.0
    %788 = vmatprep.subr.mxu0 0.0
    %789 = vmatpush1.msra.mxu0 0.0
    %790 = vmatprep.subr.mxu0 0.0
    %791 = vmatpush1.msra.mxu0 0.0
    %792 = vmatprep.subr.mxu0 0.0
    %793 = vmatpush1.msra.mxu0 0.0
    %794 = vmatprep.subr.mxu0 0.0
    %795 = vmatpush1.msra.mxu0 0.0
    %796 = vmatprep.subr.mxu0 0.0
    %797 = vmatpush1.msra.mxu0 0.0
    %798 = vmatprep.subr.mxu0 0.0
    %799 = vmatpush1.msra.mxu0 0.0
    %800 = vmatprep.subr.mxu0 0.0
    %801 = vmatpush1.msra.mxu0 0.0
    %802 = vmatprep.subr.mxu0 0.0
    %803 = vmatpush1.msra.mxu0 0.0
    %804 = vmatprep.subr.mxu0 0.0
    %805 = vmatpush1.msra.mxu0 0.0
    %806 = vmatprep.subr.mxu0 0.0
    %807 = vmatpush1.msra.mxu0 0.0
    %808 = vmatprep.subr.mxu0 0.0
    %809 = vmatpush1.msra.mxu0 0.0
    %810 = vmatprep.subr.mxu0 0.0
    %811 = vmatpush1.msra.mxu0 0.0
    %812 = vmatprep.subr.mxu0 0.0
    %813 = vmatpush1.msra.mxu0 0.0
    %814 = vmatprep.subr.mxu0 0.0
    %815 = vmatpush1.msra.mxu0 0.0
    %816 = vmatprep.subr.mxu0 0.0
    %817 = vmatpush1.msra.mxu0 0.0
    %818 = vmatprep.subr.mxu0 0.0
    %819 = vmatpush1.msra.mxu0 0.0
    %820 = vmatprep.subr.mxu0 0.0
    %821 = vmatpush1.msra.mxu0 0.0
    %822 = vmatprep.mubr.f32.mxu0 0.0
    %823 = vmatmul.mubr.f32.gmra.mrb[0].mxu0 %v312
    %v824 = vpop.f32.mrb[0].mxu0
    %v825 = vadd.f32 %v609, %v824
    %v826 = vpop.f32.mrb[0].mxu0
    %827 = vdwg.mxu0
    %828 = vmatprep.subr.mxu0 0.0
    %829 = vmatpush1.msra.mxu0 %v124
    %830 = vmatprep.subr.mxu0 0.0
    %831 = vmatpush1.msra.mxu0 %v125
    %832 = vmatprep.subr.mxu0 0.0
    %833 = vmatpush1.msra.mxu0 %v126
    %834 = vmatprep.subr.mxu0 0.0
    %835 = vmatpush1.msra.mxu0 %v127
    %836 = vmatprep.subr.mxu0 0.0
    %837 = vmatpush1.msra.mxu0 0.0
    %838 = vmatprep.subr.mxu0 0.0
    %839 = vmatpush1.msra.mxu0 0.0
    %840 = vmatprep.subr.mxu0 0.0
    %841 = vmatpush1.msra.mxu0 0.0
    %842 = vmatprep.subr.mxu0 0.0
    %843 = vmatpush1.msra.mxu0 0.0
    %844 = vmatprep.subr.mxu0 0.0
    %845 = vmatpush1.msra.mxu0 0.0
    %846 = vmatprep.subr.mxu0 0.0
    %847 = vmatpush1.msra.mxu0 0.0
    %848 = vmatprep.subr.mxu0 0.0
    %849 = vmatpush1.msra.mxu0 0.0
    %850 = vmatprep.subr.mxu0 0.0
    %851 = vmatpush1.msra.mxu0 0.0
    %852 = vmatprep.subr.mxu0 0.0
    %853 = vmatpush1.msra.mxu0 0.0
    %854 = vmatprep.subr.mxu0 0.0
    %855 = vmatpush1.msra.mxu0 0.0
    %856 = vmatprep.subr.mxu0 0.0
    %857 = vmatpush1.msra.mxu0 0.0
    %858 = vmatprep.subr.mxu0 0.0
    %859 = vmatpush1.msra.mxu0 0.0
    %860 = vmatprep.subr.mxu0 0.0
    %861 = vmatpush1.msra.mxu0 0.0
    %862 = vmatprep.subr.mxu0 0.0
    %863 = vmatpush1.msra.mxu0 0.0
    %864 = vmatprep.subr.mxu0 0.0
    %865 = vmatpush1.msra.mxu0 0.0
    %866 = vmatprep.subr.mxu0 0.0
    %867 = vmatpush1.msra.mxu0 0.0
    %868 = vmatprep.subr.mxu0 0.0
    %869 = vmatpush1.msra.mxu0 0.0
    %870 = vmatprep.subr.mxu0 0.0
    %871 = vmatpush1.msra.mxu0 0.0
    %872 = vmatprep.subr.mxu0 0.0
    %873 = vmatpush1.msra.mxu0 0.0
    %874 = vmatprep.subr.mxu0 0.0
    %875 = vmatpush1.msra.mxu0 0.0
    %876 = vmatprep.subr.mxu0 0.0
    %877 = vmatpush1.msra.mxu0 0.0
    %878 = vmatprep.subr.mxu0 0.0
    %879 = vmatpush1.msra.mxu0 0.0
    %880 = vmatprep.subr.mxu0 0.0
    %881 = vmatpush1.msra.mxu0 0.0
    %882 = vmatprep.subr.mxu0 0.0
    %883 = vmatpush1.msra.mxu0 0.0
    %884 = vmatprep.subr.mxu0 0.0
    %885 = vmatpush1.msra.mxu0 0.0
    %886 = vmatprep.subr.mxu0 0.0
    %887 = vmatpush1.msra.mxu0 0.0
    %888 = vmatprep.subr.mxu0 0.0
    %889 = vmatpush1.msra.mxu0 0.0
    %890 = vmatprep.subr.mxu0 0.0
    %891 = vmatpush1.msra.mxu0 0.0
    %892 = vmatprep.mubr.f32.mxu0 0.0
    %893 = vmatmul.mubr.f32.gmra.mrb[0].mxu0 %v312
    %v894 = vpop.f32.mrb[0].mxu0
    %v895 = vadd.f32 %v613, %v894
    %v896 = vpop.f32.mrb[0].mxu0
    %897 = vdwg.mxu0
    %v902 = vlaneseq
    %v903 = vshrl.u32 %v902, 7
    %v904 = vsub.s32 0, %v903
    %v905 = vrot.slane %v152, %v904
    %v906 = vlaneseq
    %v907 = vshrl.u32 %v906, 7
    %v908 = vsub.s32 0, %v907
    %v909 = vrot.slane %v153, %v908
    %v910 = vlaneseq
    %v911 = vshrl.u32 %v910, 7
    %v912 = vsub.s32 0, %v911
    %v913 = vrot.slane %v154, %v912
    %v914 = vlaneseq
    %v915 = vshrl.u32 %v914, 7
    %v916 = vsub.s32 0, %v915
    %v917 = vrot.slane %v155, %v916
    %922 = vmatprep.subr.mxu0 0.0
    %923 = vmatpush1.msra.mxu0 %v128
    %924 = vmatprep.subr.mxu0 0.0
    %925 = vmatpush1.msra.mxu0 %v129
    %926 = vmatprep.subr.mxu0 0.0
    %927 = vmatpush1.msra.mxu0 %v130
    %928 = vmatprep.subr.mxu0 0.0
    %929 = vmatpush1.msra.mxu0 %v131
    %930 = vmatprep.subr.mxu0 0.0
    %931 = vmatpush1.msra.mxu0 0.0
    %932 = vmatprep.subr.mxu0 0.0
    %933 = vmatpush1.msra.mxu0 0.0
    %934 = vmatprep.subr.mxu0 0.0
    %935 = vmatpush1.msra.mxu0 0.0
    %936 = vmatprep.subr.mxu0 0.0
    %937 = vmatpush1.msra.mxu0 0.0
    %938 = vmatprep.subr.mxu0 0.0
    %939 = vmatpush1.msra.mxu0 0.0
    %940 = vmatprep.subr.mxu0 0.0
    %941 = vmatpush1.msra.mxu0 0.0
    %942 = vmatprep.subr.mxu0 0.0
    %943 = vmatpush1.msra.mxu0 0.0
    %944 = vmatprep.subr.mxu0 0.0
    %945 = vmatpush1.msra.mxu0 0.0
    %946 = vmatprep.subr.mxu0 0.0
    %947 = vmatpush1.msra.mxu0 0.0
    %948 = vmatprep.subr.mxu0 0.0
    %949 = vmatpush1.msra.mxu0 0.0
    %950 = vmatprep.subr.mxu0 0.0
    %951 = vmatpush1.msra.mxu0 0.0
    %952 = vmatprep.subr.mxu0 0.0
    %953 = vmatpush1.msra.mxu0 0.0
    %954 = vmatprep.subr.mxu0 0.0
    %955 = vmatpush1.msra.mxu0 0.0
    %956 = vmatprep.subr.mxu0 0.0
    %957 = vmatpush1.msra.mxu0 0.0
    %958 = vmatprep.subr.mxu0 0.0
    %959 = vmatpush1.msra.mxu0 0.0
    %960 = vmatprep.subr.mxu0 0.0
    %961 = vmatpush1.msra.mxu0 0.0
    %962 = vmatprep.subr.mxu0 0.0
    %963 = vmatpush1.msra.mxu0 0.0
    %964 = vmatprep.subr.mxu0 0.0
    %965 = vmatpush1.msra.mxu0 0.0
    %966 = vmatprep.subr.mxu0 0.0
    %967 = vmatpush1.msra.mxu0 0.0
    %968 = vmatprep.subr.mxu0 0.0
    %969 = vmatpush1.msra.mxu0 0.0
    %970 = vmatprep.subr.mxu0 0.0
    %971 = vmatpush1.msra.mxu0 0.0
    %972 = vmatprep.subr.mxu0 0.0
    %973 = vmatpush1.msra.mxu0 0.0
    %974 = vmatprep.subr.mxu0 0.0
    %975 = vmatpush1.msra.mxu0 0.0
    %976 = vmatprep.subr.mxu0 0.0
    %977 = vmatpush1.msra.mxu0 0.0
    %978 = vmatprep.subr.mxu0 0.0
    %979 = vmatpush1.msra.mxu0 0.0
    %980 = vmatprep.subr.mxu0 0.0
    %981 = vmatpush1.msra.mxu0 0.0
    %982 = vmatprep.subr.mxu0 0.0
    %983 = vmatpush1.msra.mxu0 0.0
    %984 = vmatprep.subr.mxu0 0.0
    %985 = vmatpush1.msra.mxu0 0.0
    %986 = vmatprep.mubr.f32.mxu0 0.0
    %987 = vmatmul.mubr.f32.gmra.mrb[0].mxu0 %v312
    %v988 = vpop.f32.mrb[0].mxu0
    %v989 = vadd.f32 %v905, %v988
    %v990 = vpop.f32.mrb[0].mxu0
    %991 = vdwg.mxu0
    %992 = vmatprep.subr.mxu0 0.0
    %993 = vmatpush1.msra.mxu0 %v132
    %994 = vmatprep.subr.mxu0 0.0
    %995 = vmatpush1.msra.mxu0 %v133
    %996 = vmatprep.subr.mxu0 0.0
    %997 = vmatpush1.msra.mxu0 %v134
    %998 = vmatprep.subr.mxu0 0.0
    %999 = vmatpush1.msra.mxu0 %v135
    %1000 = vmatprep.subr.mxu0 0.0
    %1001 = vmatpush1.msra.mxu0 0.0
    %1002 = vmatprep.subr.mxu0 0.0
    %1003 = vmatpush1.msra.mxu0 0.0
    %1004 = vmatprep.subr.mxu0 0.0
    %1005 = vmatpush1.msra.mxu0 0.0
    %1006 = vmatprep.subr.mxu0 0.0
    %1007 = vmatpush1.msra.mxu0 0.0
    %1008 = vmatprep.subr.mxu0 0.0
    %1009 = vmatpush1.msra.mxu0 0.0
    %1010 = vmatprep.subr.mxu0 0.0
    %1011 = vmatpush1.msra.mxu0 0.0
    %1012 = vmatprep.subr.mxu0 0.0
    %1013 = vmatpush1.msra.mxu0 0.0
    %1014 = vmatprep.subr.mxu0 0.0
    %1015 = vmatpush1.msra.mxu0 0.0
    %1016 = vmatprep.subr.mxu0 0.0
    %1017 = vmatpush1.msra.mxu0 0.0
    %1018 = vmatprep.subr.mxu0 0.0
    %1019 = vmatpush1.msra.mxu0 0.0
    %1020 = vmatprep.subr.mxu0 0.0
    %1021 = vmatpush1.msra.mxu0 0.0
    %1022 = vmatprep.subr.mxu0 0.0
    %1023 = vmatpush1.msra.mxu0 0.0
    %1024 = vmatprep.subr.mxu0 0.0
    %1025 = vmatpush1.msra.mxu0 0.0
    %1026 = vmatprep.subr.mxu0 0.0
    %1027 = vmatpush1.msra.mxu0 0.0
    %1028 = vmatprep.subr.mxu0 0.0
    %1029 = vmatpush1.msra.mxu0 0.0
    %1030 = vmatprep.subr.mxu0 0.0
    %1031 = vmatpush1.msra.mxu0 0.0
    %1032 = vmatprep.subr.mxu0 0.0
    %1033 = vmatpush1.msra.mxu0 0.0
    %1034 = vmatprep.subr.mxu0 0.0
    %1035 = vmatpush1.msra.mxu0 0.0
    %1036 = vmatprep.subr.mxu0 0.0
    %1037 = vmatpush1.msra.mxu0 0.0
    %1038 = vmatprep.subr.mxu0 0.0
    %1039 = vmatpush1.msra.mxu0 0.0
    %1040 = vmatprep.subr.mxu0 0.0
    %1041 = vmatpush1.msra.mxu0 0.0
    %1042 = vmatprep.subr.mxu0 0.0
    %1043 = vmatpush1.msra.mxu0 0.0
    %1044 = vmatprep.subr.mxu0 0.0
    %1045 = vmatpush1.msra.mxu0 0.0
    %1046 = vmatprep.subr.mxu0 0.0
    %1047 = vmatpush1.msra.mxu0 0.0
    %1048 = vmatprep.subr.mxu0 0.0
    %1049 = vmatpush1.msra.mxu0 0.0
    %1050 = vmatprep.subr.mxu0 0.0
    %1051 = vmatpush1.msra.mxu0 0.0
    %1052 = vmatprep.subr.mxu0 0.0
    %1053 = vmatpush1.msra.mxu0 0.0
    %1054 = vmatprep.subr.mxu0 0.0
    %1055 = vmatpush1.msra.mxu0 0.0
    %1056 = vmatprep.mubr.f32.mxu0 0.0
    %1057 = vmatmul.mubr.f32.gmra.mrb[0].mxu0 %v312
    %v1058 = vpop.f32.mrb[0].mxu0
    %v1059 = vadd.f32 %v909, %v1058
    %v1060 = vpop.f32.mrb[0].mxu0
    %1061 = vdwg.mxu0
    %1062 = vmatprep.subr.mxu0 0.0
    %1063 = vmatpush1.msra.mxu0 %v136
    %1064 = vmatprep.subr.mxu0 0.0
    %1065 = vmatpush1.msra.mxu0 %v137
    %1066 = vmatprep.subr.mxu0 0.0
    %1067 = vmatpush1.msra.mxu0 %v138
    %1068 = vmatprep.subr.mxu0 0.0
    %1069 = vmatpush1.msra.mxu0 %v139
    %1070 = vmatprep.subr.mxu0 0.0
    %1071 = vmatpush1.msra.mxu0 0.0
    %1072 = vmatprep.subr.mxu0 0.0
    %1073 = vmatpush1.msra.mxu0 0.0
    %1074 = vmatprep.subr.mxu0 0.0
    %1075 = vmatpush1.msra.mxu0 0.0
    %1076 = vmatprep.subr.mxu0 0.0
    %1077 = vmatpush1.msra.mxu0 0.0
    %1078 = vmatprep.subr.mxu0 0.0
    %1079 = vmatpush1.msra.mxu0 0.0
    %1080 = vmatprep.subr.mxu0 0.0
    %1081 = vmatpush1.msra.mxu0 0.0
    %1082 = vmatprep.subr.mxu0 0.0
    %1083 = vmatpush1.msra.mxu0 0.0
    %1084 = vmatprep.subr.mxu0 0.0
    %1085 = vmatpush1.msra.mxu0 0.0
    %1086 = vmatprep.subr.mxu0 0.0
    %1087 = vmatpush1.msra.mxu0 0.0
    %1088 = vmatprep.subr.mxu0 0.0
    %1089 = vmatpush1.msra.mxu0 0.0
    %1090 = vmatprep.subr.mxu0 0.0
    %1091 = vmatpush1.msra.mxu0 0.0
    %1092 = vmatprep.subr.mxu0 0.0
    %1093 = vmatpush1.msra.mxu0 0.0
    %1094 = vmatprep.subr.mxu0 0.0
    %1095 = vmatpush1.msra.mxu0 0.0
    %1096 = vmatprep.subr.mxu0 0.0
    %1097 = vmatpush1.msra.mxu0 0.0
    %1098 = vmatprep.subr.mxu0 0.0
    %1099 = vmatpush1.msra.mxu0 0.0
    %1100 = vmatprep.subr.mxu0 0.0
    %1101 = vmatpush1.msra.mxu0 0.0
    %1102 = vmatprep.subr.mxu0 0.0
    %1103 = vmatpush1.msra.mxu0 0.0
    %1104 = vmatprep.subr.mxu0 0.0
    %1105 = vmatpush1.msra.mxu0 0.0
    %1106 = vmatprep.subr.mxu0 0.0
    %1107 = vmatpush1.msra.mxu0 0.0
    %1108 = vmatprep.subr.mxu0 0.0
    %1109 = vmatpush1.msra.mxu0 0.0
    %1110 = vmatprep.subr.mxu0 0.0
    %1111 = vmatpush1.msra.mxu0 0.0
    %1112 = vmatprep.subr.mxu0 0.0
    %1113 = vmatpush1.msra.mxu0 0.0
    %1114 = vmatprep.subr.mxu0 0.0
    %1115 = vmatpush1.msra.mxu0 0.0
    %1116 = vmatprep.subr.mxu0 0.0
    %1117 = vmatpush1.msra.mxu0 0.0
    %1118 = vmatprep.subr.mxu0 0.0
    %1119 = vmatpush1.msra.mxu0 0.0
    %1120 = vmatprep.subr.mxu0 0.0
    %1121 = vmatpush1.msra.mxu0 0.0
    %1122 = vmatprep.subr.mxu0 0.0
    %1123 = vmatpush1.msra.mxu0 0.0
    %1124 = vmatprep.subr.mxu0 0.0
    %1125 = vmatpush1.msra.mxu0 0.0
    %1126 = vmatprep.mubr.f32.mxu0 0.0
    %1127 = vmatmul.mubr.f32.gmra.mrb[0].mxu0 %v312
    %v1128 = vpop.f32.mrb[0].mxu0
    %v1129 = vadd.f32 %v913, %v1128
    %v1130 = vpop.f32.mrb[0].mxu0
    %1131 = vdwg.mxu0
    %1132 = vmatprep.subr.mxu0 0.0
    %1133 = vmatpush1.msra.mxu0 %v140
    %1134 = vmatprep.subr.mxu0 0.0
    %1135 = vmatpush1.msra.mxu0 %v141
    %1136 = vmatprep.subr.mxu0 0.0
    %1137 = vmatpush1.msra.mxu0 %v142
    %1138 = vmatprep.subr.mxu0 0.0
    %1139 = vmatpush1.msra.mxu0 %v143
    %1140 = vmatprep.subr.mxu0 0.0
    %1141 = vmatpush1.msra.mxu0 0.0
    %1142 = vmatprep.subr.mxu0 0.0
    %1143 = vmatpush1.msra.mxu0 0.0
    %1144 = vmatprep.subr.mxu0 0.0
    %1145 = vmatpush1.msra.mxu0 0.0
    %1146 = vmatprep.subr.mxu0 0.0
    %1147 = vmatpush1.msra.mxu0 0.0
    %1148 = vmatprep.subr.mxu0 0.0
    %1149 = vmatpush1.msra.mxu0 0.0
    %1150 = vmatprep.subr.mxu0 0.0
    %1151 = vmatpush1.msra.mxu0 0.0
    %1152 = vmatprep.subr.mxu0 0.0
    %1153 = vmatpush1.msra.mxu0 0.0
    %1154 = vmatprep.subr.mxu0 0.0
    %1155 = vmatpush1.msra.mxu0 0.0
    %1156 = vmatprep.subr.mxu0 0.0
    %1157 = vmatpush1.msra.mxu0 0.0
    %1158 = vmatprep.subr.mxu0 0.0
    %1159 = vmatpush1.msra.mxu0 0.0
    %1160 = vmatprep.subr.mxu0 0.0
    %1161 = vmatpush1.msra.mxu0 0.0
    %1162 = vmatprep.subr.mxu0 0.0
    %1163 = vmatpush1.msra.mxu0 0.0
    %1164 = vmatprep.subr.mxu0 0.0
    %1165 = vmatpush1.msra.mxu0 0.0
    %1166 = vmatprep.subr.mxu0 0.0
    %1167 = vmatpush1.msra.mxu0 0.0
    %1168 = vmatprep.subr.mxu0 0.0
    %1169 = vmatpush1.msra.mxu0 0.0
    %1170 = vmatprep.subr.mxu0 0.0
    %1171 = vmatpush1.msra.mxu0 0.0
    %1172 = vmatprep.subr.mxu0 0.0
    %1173 = vmatpush1.msra.mxu0 0.0
    %1174 = vmatprep.subr.mxu0 0.0
    %1175 = vmatpush1.msra.mxu0 0.0
    %1176 = vmatprep.subr.mxu0 0.0
    %1177 = vmatpush1.msra.mxu0 0.0
    %1178 = vmatprep.subr.mxu0 0.0
    %1179 = vmatpush1.msra.mxu0 0.0
    %1180 = vmatprep.subr.mxu0 0.0
    %1181 = vmatpush1.msra.mxu0 0.0
    %1182 = vmatprep.subr.mxu0 0.0
    %1183 = vmatpush1.msra.mxu0 0.0
    %1184 = vmatprep.subr.mxu0 0.0
    %1185 = vmatpush1.msra.mxu0 0.0
    %1186 = vmatprep.subr.mxu0 0.0
    %1187 = vmatpush1.msra.mxu0 0.0
    %1188 = vmatprep.subr.mxu0 0.0
    %1189 = vmatpush1.msra.mxu0 0.0
    %1190 = vmatprep.subr.mxu0 0.0
    %1191 = vmatpush1.msra.mxu0 0.0
    %1192 = vmatprep.subr.mxu0 0.0
    %1193 = vmatpush1.msra.mxu0 0.0
    %1194 = vmatprep.subr.mxu0 0.0
    %1195 = vmatpush1.msra.mxu0 0.0
    %1196 = vmatprep.mubr.f32.mxu0 0.0
    %1197 = vmatmul.mubr.f32.gmra.mrb[0].mxu0 %v312
    %v1198 = vpop.f32.mrb[0].mxu0
    %v1199 = vadd.f32 %v917, %v1198
    %v1200 = vpop.f32.mrb[0].mxu0
    %1201 = vdwg.mxu0
    %vm1202 = vcmask 64512
    %v1204 = vsel %vm1202, %v381, 0
    %v1207 = vsel %vm1202, %v685, 0
    %1209 = vmatprep.subr.mxu0 0.0
    %1210 = vmatpush1.xpose.msra.mxu0 %v1207
    %1211 = vmatprep.subr.mxu0 0.0
    %1212 = vmatpush1.xpose.msra.mxu0 0.0
    %1213 = vmatprep.subr.mxu0 0.0
    %1214 = vmatpush1.xpose.msra.mxu0 0.0
    %1215 = vmatprep.subr.mxu0 0.0
    %1216 = vmatpush1.xpose.msra.mxu0 0.0
    %1217 = vmatprep.subr.mxu0 0.0
    %1218 = vmatpush1.xpose.msra.mxu0 0.0
    %1219 = vmatprep.subr.mxu0 0.0
    %1220 = vmatpush1.xpose.msra.mxu0 0.0
    %1221 = vmatprep.subr.mxu0 0.0
    %1222 = vmatpush1.xpose.msra.mxu0 0.0
    %1223 = vmatprep.subr.mxu0 0.0
    %1224 = vmatpush1.xpose.msra.mxu0 0.0
    %1225 = vmatprep.subr.mxu0 0.0
    %1226 = vmatpush1.xpose.msra.mxu0 0.0
    %1227 = vmatprep.subr.mxu0 0.0
    %1228 = vmatpush1.xpose.msra.mxu0 0.0
    %1229 = vmatprep.subr.mxu0 0.0
    %1230 = vmatpush1.xpose.msra.mxu0 0.0
    %1231 = vmatprep.subr.mxu0 0.0
    %1232 = vmatpush1.xpose.msra.mxu0 0.0
    %1233 = vmatprep.subr.mxu0 0.0
    %1234 = vmatpush1.xpose.msra.mxu0 0.0
    %1235 = vmatprep.subr.mxu0 0.0
    %1236 = vmatpush1.xpose.msra.mxu0 0.0
    %1237 = vmatprep.subr.mxu0 0.0
    %1238 = vmatpush1.xpose.msra.mxu0 0.0
    %1239 = vmatprep.subr.mxu0 0.0
    %1240 = vmatpush1.xpose.msra.mxu0 0.0
    %1241 = vmatprep.subr.mxu0 0.0
    %1242 = vmatpush1.xpose.msra.mxu0 0.0
    %1243 = vmatprep.subr.mxu0 0.0
    %1244 = vmatpush1.xpose.msra.mxu0 0.0
    %1245 = vmatprep.subr.mxu0 0.0
    %1246 = vmatpush1.xpose.msra.mxu0 0.0
    %1247 = vmatprep.subr.mxu0 0.0
    %1248 = vmatpush1.xpose.msra.mxu0 0.0
    %1249 = vmatprep.subr.mxu0 0.0
    %1250 = vmatpush1.xpose.msra.mxu0 0.0
    %1251 = vmatprep.subr.mxu0 0.0
    %1252 = vmatpush1.xpose.msra.mxu0 0.0
    %1253 = vmatprep.subr.mxu0 0.0
    %1254 = vmatpush1.xpose.msra.mxu0 0.0
    %1255 = vmatprep.subr.mxu0 0.0
    %1256 = vmatpush1.xpose.msra.mxu0 0.0
    %1257 = vmatprep.subr.mxu0 0.0
    %1258 = vmatpush1.xpose.msra.mxu0 0.0
    %1259 = vmatprep.subr.mxu0 0.0
    %1260 = vmatpush1.xpose.msra.mxu0 0.0
    %1261 = vmatprep.subr.mxu0 0.0
    %1262 = vmatpush1.xpose.msra.mxu0 0.0
    %1263 = vmatprep.subr.mxu0 0.0
    %1264 = vmatpush1.xpose.msra.mxu0 0.0
    %1265 = vmatprep.subr.mxu0 0.0
    %1266 = vmatpush1.xpose.msra.mxu0 0.0
    %1267 = vmatprep.subr.mxu0 0.0
    %1268 = vmatpush1.xpose.msra.mxu0 0.0
    %1269 = vmatprep.subr.mxu0 0.0
    %1270 = vmatpush1.xpose.msra.mxu0 0.0
    %1271 = vmatprep.subr.mxu0 0.0
    %1272 = vmatpush1.xpose.msra.mxu0 0.0
    %1273 = vmatprep.mubr.f32.mxu0 0.0
    %1274 = vmatmul.mubr.f32.gmra.mrb[0].mxu0 %v1204
    %v1275 = vpop.f32.mrb[0].mxu0
    %v1276 = vadd.f32 0.0, %v1275
    %v1277 = vpop.f32.mrb[0].mxu0
    %1278 = vdwg.mxu0
    %v1280 = vsel %vm1202, %v451, 0
    %v1283 = vsel %vm1202, %v755, 0
    %1285 = vmatprep.subr.mxu0 0.0
    %1286 = vmatpush1.xpose.msra.mxu0 %v1283
    %1287 = vmatprep.subr.mxu0 0.0
    %1288 = vmatpush1.xpose.msra.mxu0 0.0
    %1289 = vmatprep.subr.mxu0 0.0
    %1290 = vmatpush1.xpose.msra.mxu0 0.0
    %1291 = vmatprep.subr.mxu0 0.0
    %1292 = vmatpush1.xpose.msra.mxu0 0.0
    %1293 = vmatprep.subr.mxu0 0.0
    %1294 = vmatpush1.xpose.msra.mxu0 0.0
    %1295 = vmatprep.subr.mxu0 0.0
    %1296 = vmatpush1.xpose.msra.mxu0 0.0
    %1297 = vmatprep.subr.mxu0 0.0
    %1298 = vmatpush1.xpose.msra.mxu0 0.0
    %1299 = vmatprep.subr.mxu0 0.0
    %1300 = vmatpush1.xpose.msra.mxu0 0.0
    %1301 = vmatprep.subr.mxu0 0.0
    %1302 = vmatpush1.xpose.msra.mxu0 0.0
    %1303 = vmatprep.subr.mxu0 0.0
    %1304 = vmatpush1.xpose.msra.mxu0 0.0
    %1305 = vmatprep.subr.mxu0 0.0
    %1306 = vmatpush1.xpose.msra.mxu0 0.0
    %1307 = vmatprep.subr.mxu0 0.0
    %1308 = vmatpush1.xpose.msra.mxu0 0.0
    %1309 = vmatprep.subr.mxu0 0.0
    %1310 = vmatpush1.xpose.msra.mxu0 0.0
    %1311 = vmatprep.subr.mxu0 0.0
    %1312 = vmatpush1.xpose.msra.mxu0 0.0
    %1313 = vmatprep.subr.mxu0 0.0
    %1314 = vmatpush1.xpose.msra.mxu0 0.0
    %1315 = vmatprep.subr.mxu0 0.0
    %1316 = vmatpush1.xpose.msra.mxu0 0.0
    %1317 = vmatprep.subr.mxu0 0.0
    %1318 = vmatpush1.xpose.msra.mxu0 0.0
    %1319 = vmatprep.subr.mxu0 0.0
    %1320 = vmatpush1.xpose.msra.mxu0 0.0
    %1321 = vmatprep.subr.mxu0 0.0
    %1322 = vmatpush1.xpose.msra.mxu0 0.0
    %1323 = vmatprep.subr.mxu0 0.0
    %1324 = vmatpush1.xpose.msra.mxu0 0.0
    %1325 = vmatprep.subr.mxu0 0.0
    %1326 = vmatpush1.xpose.msra.mxu0 0.0
    %1327 = vmatprep.subr.mxu0 0.0
    %1328 = vmatpush1.xpose.msra.mxu0 0.0
    %1329 = vmatprep.subr.mxu0 0.0
    %1330 = vmatpush1.xpose.msra.mxu0 0.0
    %1331 = vmatprep.subr.mxu0 0.0
    %1332 = vmatpush1.xpose.msra.mxu0 0.0
    %1333 = vmatprep.subr.mxu0 0.0
    %1334 = vmatpush1.xpose.msra.mxu0 0.0
    %1335 = vmatprep.subr.mxu0 0.0
    %1336 = vmatpush1.xpose.msra.mxu0 0.0
    %1337 = vmatprep.subr.mxu0 0.0
    %1338 = vmatpush1.xpose.msra.mxu0 0.0
    %1339 = vmatprep.subr.mxu0 0.0
    %1340 = vmatpush1.xpose.msra.mxu0 0.0
    %1341 = vmatprep.subr.mxu0 0.0
    %1342 = vmatpush1.xpose.msra.mxu0 0.0
    %1343 = vmatprep.subr.mxu0 0.0
    %1344 = vmatpush1.xpose.msra.mxu0 0.0
    %1345 = vmatprep.subr.mxu0 0.0
    %1346 = vmatpush1.xpose.msra.mxu0 0.0
    %1347 = vmatprep.subr.mxu0 0.0
    %1348 = vmatpush1.xpose.msra.mxu0 0.0
    %1349 = vmatprep.mubr.f32.mxu0 0.0
    %1350 = vmatmul.mubr.f32.gmra.mrb[0].mxu0 %v1280
    %v1351 = vpop.f32.mrb[0].mxu0
    %v1352 = vadd.f32 0.0, %v1351
    %v1353 = vpop.f32.mrb[0].mxu0
    %1354 = vdwg.mxu0
    %v1356 = vsel %vm1202, %v521, 0
    %v1359 = vsel %vm1202, %v825, 0
    %1361 = vmatprep.subr.mxu0 0.0
    %1362 = vmatpush1.xpose.msra.mxu0 %v1359
    %1363 = vmatprep.subr.mxu0 0.0
    %1364 = vmatpush1.xpose.msra.mxu0 0.0
    %1365 = vmatprep.subr.mxu0 0.0
    %1366 = vmatpush1.xpose.msra.mxu0 0.0
    %1367 = vmatprep.subr.mxu0 0.0
    %1368 = vmatpush1.xpose.msra.mxu0 0.0
    %1369 = vmatprep.subr.mxu0 0.0
    %1370 = vmatpush1.xpose.msra.mxu0 0.0
    %1371 = vmatprep.subr.mxu0 0.0
    %1372 = vmatpush1.xpose.msra.mxu0 0.0
    %1373 = vmatprep.subr.mxu0 0.0
    %1374 = vmatpush1.xpose.msra.mxu0 0.0
    %1375 = vmatprep.subr.mxu0 0.0
    %1376 = vmatpush1.xpose.msra.mxu0 0.0
    %1377 = vmatprep.subr.mxu0 0.0
    %1378 = vmatpush1.xpose.msra.mxu0 0.0
    %1379 = vmatprep.subr.mxu0 0.0
    %1380 = vmatpush1.xpose.msra.mxu0 0.0
    %1381 = vmatprep.subr.mxu0 0.0
    %1382 = vmatpush1.xpose.msra.mxu0 0.0
    %1383 = vmatprep.subr.mxu0 0.0
    %1384 = vmatpush1.xpose.msra.mxu0 0.0
    %1385 = vmatprep.subr.mxu0 0.0
    %1386 = vmatpush1.xpose.msra.mxu0 0.0
    %1387 = vmatprep.subr.mxu0 0.0
    %1388 = vmatpush1.xpose.msra.mxu0 0.0
    %1389 = vmatprep.subr.mxu0 0.0
    %1390 = vmatpush1.xpose.msra.mxu0 0.0
    %1391 = vmatprep.subr.mxu0 0.0
    %1392 = vmatpush1.xpose.msra.mxu0 0.0
    %1393 = vmatprep.subr.mxu0 0.0
    %1394 = vmatpush1.xpose.msra.mxu0 0.0
    %1395 = vmatprep.subr.mxu0 0.0
    %1396 = vmatpush1.xpose.msra.mxu0 0.0
    %1397 = vmatprep.subr.mxu0 0.0
    %1398 = vmatpush1.xpose.msra.mxu0 0.0
    %1399 = vmatprep.subr.mxu0 0.0
    %1400 = vmatpush1.xpose.msra.mxu0 0.0
    %1401 = vmatprep.subr.mxu0 0.0
    %1402 = vmatpush1.xpose.msra.mxu0 0.0
    %1403 = vmatprep.subr.mxu0 0.0
    %1404 = vmatpush1.xpose.msra.mxu0 0.0
    %1405 = vmatprep.subr.mxu0 0.0
    %1406 = vmatpush1.xpose.msra.mxu0 0.0
    %1407 = vmatprep.subr.mxu0 0.0
    %1408 = vmatpush1.xpose.msra.mxu0 0.0
    %1409 = vmatprep.subr.mxu0 0.0
    %1410 = vmatpush1.xpose.msra.mxu0 0.0
    %1411 = vmatprep.subr.mxu0 0.0
    %1412 = vmatpush1.xpose.msra.mxu0 0.0
    %1413 = vmatprep.subr.mxu0 0.0
    %1414 = vmatpush1.xpose.msra.mxu0 0.0
    %1415 = vmatprep.subr.mxu0 0.0
    %1416 = vmatpush1.xpose.msra.mxu0 0.0
    %1417 = vmatprep.subr.mxu0 0.0
    %1418 = vmatpush1.xpose.msra.mxu0 0.0
    %1419 = vmatprep.subr.mxu0 0.0
    %1420 = vmatpush1.xpose.msra.mxu0 0.0
    %1421 = vmatprep.subr.mxu0 0.0
    %1422 = vmatpush1.xpose.msra.mxu0 0.0
    %1423 = vmatprep.subr.mxu0 0.0
    %1424 = vmatpush1.xpose.msra.mxu0 0.0
    %1425 = vmatprep.mubr.f32.mxu0 0.0
    %1426 = vmatmul.mubr.f32.gmra.mrb[0].mxu0 %v1356
    %v1427 = vpop.f32.mrb[0].mxu0
    %v1428 = vadd.f32 0.0, %v1427
    %v1429 = vpop.f32.mrb[0].mxu0
    %1430 = vdwg.mxu0
    %v1432 = vsel %vm1202, %v591, 0
    %v1435 = vsel %vm1202, %v895, 0
    %1437 = vmatprep.subr.mxu0 0.0
    %1438 = vmatpush1.xpose.msra.mxu0 %v1435
    %1439 = vmatprep.subr.mxu0 0.0
    %1440 = vmatpush1.xpose.msra.mxu0 0.0
    %1441 = vmatprep.subr.mxu0 0.0
    %1442 = vmatpush1.xpose.msra.mxu0 0.0
    %1443 = vmatprep.subr.mxu0 0.0
    %1444 = vmatpush1.xpose.msra.mxu0 0.0
    %1445 = vmatprep.subr.mxu0 0.0
    %1446 = vmatpush1.xpose.msra.mxu0 0.0
    %1447 = vmatprep.subr.mxu0 0.0
    %1448 = vmatpush1.xpose.msra.mxu0 0.0
    %1449 = vmatprep.subr.mxu0 0.0
    %1450 = vmatpush1.xpose.msra.mxu0 0.0
    %1451 = vmatprep.subr.mxu0 0.0
    %1452 = vmatpush1.xpose.msra.mxu0 0.0
    %1453 = vmatprep.subr.mxu0 0.0
    %1454 = vmatpush1.xpose.msra.mxu0 0.0
    %1455 = vmatprep.subr.mxu0 0.0
    %1456 = vmatpush1.xpose.msra.mxu0 0.0
    %1457 = vmatprep.subr.mxu0 0.0
    %1458 = vmatpush1.xpose.msra.mxu0 0.0
    %1459 = vmatprep.subr.mxu0 0.0
    %1460 = vmatpush1.xpose.msra.mxu0 0.0
    %1461 = vmatprep.subr.mxu0 0.0
    %1462 = vmatpush1.xpose.msra.mxu0 0.0
    %1463 = vmatprep.subr.mxu0 0.0
    %1464 = vmatpush1.xpose.msra.mxu0 0.0
    %1465 = vmatprep.subr.mxu0 0.0
    %1466 = vmatpush1.xpose.msra.mxu0 0.0
    %1467 = vmatprep.subr.mxu0 0.0
    %1468 = vmatpush1.xpose.msra.mxu0 0.0
    %1469 = vmatprep.subr.mxu0 0.0
    %1470 = vmatpush1.xpose.msra.mxu0 0.0
    %1471 = vmatprep.subr.mxu0 0.0
    %1472 = vmatpush1.xpose.msra.mxu0 0.0
    %1473 = vmatprep.subr.mxu0 0.0
    %1474 = vmatpush1.xpose.msra.mxu0 0.0
    %1475 = vmatprep.subr.mxu0 0.0
    %1476 = vmatpush1.xpose.msra.mxu0 0.0
    %1477 = vmatprep.subr.mxu0 0.0
    %1478 = vmatpush1.xpose.msra.mxu0 0.0
    %1479 = vmatprep.subr.mxu0 0.0
    %1480 = vmatpush1.xpose.msra.mxu0 0.0
    %1481 = vmatprep.subr.mxu0 0.0
    %1482 = vmatpush1.xpose.msra.mxu0 0.0
    %1483 = vmatprep.subr.mxu0 0.0
    %1484 = vmatpush1.xpose.msra.mxu0 0.0
    %1485 = vmatprep.subr.mxu0 0.0
    %1486 = vmatpush1.xpose.msra.mxu0 0.0
    %1487 = vmatprep.subr.mxu0 0.0
    %1488 = vmatpush1.xpose.msra.mxu0 0.0
    %1489 = vmatprep.subr.mxu0 0.0
    %1490 = vmatpush1.xpose.msra.mxu0 0.0
    %1491 = vmatprep.subr.mxu0 0.0
    %1492 = vmatpush1.xpose.msra.mxu0 0.0
    %1493 = vmatprep.subr.mxu0 0.0
    %1494 = vmatpush1.xpose.msra.mxu0 0.0
    %1495 = vmatprep.subr.mxu0 0.0
    %1496 = vmatpush1.xpose.msra.mxu0 0.0
    %1497 = vmatprep.subr.mxu0 0.0
    %1498 = vmatpush1.xpose.msra.mxu0 0.0
    %1499 = vmatprep.subr.mxu0 0.0
    %1500 = vmatpush1.xpose.msra.mxu0 0.0
    %1501 = vmatprep.mubr.f32.mxu0 0.0
    %1502 = vmatmul.mubr.f32.gmra.mrb[0].mxu0 %v1432
    %v1503 = vpop.f32.mrb[0].mxu0
    %v1504 = vadd.f32 0.0, %v1503
    %v1505 = vpop.f32.mrb[0].mxu0
    %1506 = vdwg.mxu0
    %v1507 = vmul.f32 %v1276, 0.35355338
    %v1508 = vmul.f32 %v1352, 0.35355338
    %v1509 = vmul.f32 %v1428, 0.35355338
    %v1510 = vmul.f32 %v1504, 0.35355338
    %v1511 = vadd.f32 %v1507, %v253
    %v1512 = vadd.f32 %v1508, %v253
    %v1513 = vadd.f32 %v1509, %v253
    %v1514 = vadd.f32 %v1510, %v253
    %v1515 = vsel %vm1202, %v1511, -inf
    %1516 = vmax.xlane.f32.xlu0 %v1515
    %v1517 = vpop.xlane.xlu0 %1516
    %v1518 = vsel %vm1202, %v1512, -inf
    %1519 = vmax.xlane.f32.xlu0 %v1518
    %v1520 = vpop.xlane.xlu0 %1519
    %v1521 = vsel %vm1202, %v1513, -inf
    %1522 = vmax.xlane.f32.xlu0 %v1521
    %v1523 = vpop.xlane.xlu0 %1522
    %v1524 = vsel %vm1202, %v1514, -inf
    %1525 = vmax.xlane.f32.xlu0 %v1524
    %v1526 = vpop.xlane.xlu0 %1525
    %v1527 = vsub.f32 %v1511, %v1517
    %v1528 = vsub.f32 %v1512, %v1520
    %v1529 = vsub.f32 %v1513, %v1523
    %v1530 = vsub.f32 %v1514, %v1526
    %v1531 = vmul.f32 %v1527, 1.442695
    %v1532 = vpow.pop %v1531
    %v1533 = vmul.f32 %v1528, 1.442695
    %v1534 = vpow.pop %v1533
    %v1535 = vmul.f32 %v1529, 1.442695
    %v1536 = vpow.pop %v1535
    %v1537 = vmul.f32 %v1530, 1.442695
    %v1538 = vpow.pop %v1537
    %v1539 = vsel %vm1202, %v1532, 0.0
    %1540 = vadd.xlane.f32.xlu0 %v1539
    %v1541 = vpop.xlane.xlu0 %1540
    %v1542 = vsel %vm1202, %v1534, 0.0
    %1543 = vadd.xlane.f32.xlu0 %v1542
    %v1544 = vpop.xlane.xlu0 %1543
    %v1545 = vsel %vm1202, %v1536, 0.0
    %1546 = vadd.xlane.f32.xlu0 %v1545
    %v1547 = vpop.xlane.xlu0 %1546
    %v1548 = vsel %vm1202, %v1538, 0.0
    %1549 = vadd.xlane.f32.xlu0 %v1548
    %v1550 = vpop.xlane.xlu0 %1549
    %v1551 = vrcp.pop %v1541
    %v1552 = vrcp.pop %v1544
    %v1553 = vrcp.pop %v1547
    %v1554 = vrcp.pop %v1550
    %v1555 = vmul.f32 %v1532, %v1551
    %v1556 = vmul.f32 %v1534, %v1552
    %v1557 = vmul.f32 %v1536, %v1553
    %v1558 = vmul.f32 %v1538, %v1554
    %v1560 = vsel %vm1202, %v1555, 0
    %1562 = vmatprep.subr.mxu0 0.0
    %1563 = vmatpush1.msra.mxu0 %v989
    %1564 = vmatprep.subr.mxu0 0.0
    %1565 = vmatpush1.msra.mxu0 0.0
    %1566 = vmatprep.subr.mxu0 0.0
    %1567 = vmatpush1.msra.mxu0 0.0
    %1568 = vmatprep.subr.mxu0 0.0
    %1569 = vmatpush1.msra.mxu0 0.0
    %1570 = vmatprep.subr.mxu0 0.0
    %1571 = vmatpush1.msra.mxu0 0.0
    %1572 = vmatprep.subr.mxu0 0.0
    %1573 = vmatpush1.msra.mxu0 0.0
    %1574 = vmatprep.subr.mxu0 0.0
    %1575 = vmatpush1.msra.mxu0 0.0
    %1576 = vmatprep.subr.mxu0 0.0
    %1577 = vmatpush1.msra.mxu0 0.0
    %1578 = vmatprep.subr.mxu0 0.0
    %1579 = vmatpush1.msra.mxu0 0.0
    %1580 = vmatprep.subr.mxu0 0.0
    %1581 = vmatpush1.msra.mxu0 0.0
    %1582 = vmatprep.subr.mxu0 0.0
    %1583 = vmatpush1.msra.mxu0 0.0
    %1584 = vmatprep.subr.mxu0 0.0
    %1585 = vmatpush1.msra.mxu0 0.0
    %1586 = vmatprep.subr.mxu0 0.0
    %1587 = vmatpush1.msra.mxu0 0.0
    %1588 = vmatprep.subr.mxu0 0.0
    %1589 = vmatpush1.msra.mxu0 0.0
    %1590 = vmatprep.subr.mxu0 0.0
    %1591 = vmatpush1.msra.mxu0 0.0
    %1592 = vmatprep.subr.mxu0 0.0
    %1593 = vmatpush1.msra.mxu0 0.0
    %1594 = vmatprep.subr.mxu0 0.0
    %1595 = vmatpush1.msra.mxu0 0.0
    %1596 = vmatprep.subr.mxu0 0.0
    %1597 = vmatpush1.msra.mxu0 0.0
    %1598 = vmatprep.subr.mxu0 0.0
    %1599 = vmatpush1.msra.mxu0 0.0
    %1600 = vmatprep.subr.mxu0 0.0
    %1601 = vmatpush1.msra.mxu0 0.0
    %1602 = vmatprep.subr.mxu0 0.0
    %1603 = vmatpush1.msra.mxu0 0.0
    %1604 = vmatprep.subr.mxu0 0.0
    %1605 = vmatpush1.msra.mxu0 0.0
    %1606 = vmatprep.subr.mxu0 0.0
    %1607 = vmatpush1.msra.mxu0 0.0
    %1608 = vmatprep.subr.mxu0 0.0
    %1609 = vmatpush1.msra.mxu0 0.0
    %1610 = vmatprep.subr.mxu0 0.0
    %1611 = vmatpush1.msra.mxu0 0.0
    %1612 = vmatprep.subr.mxu0 0.0
    %1613 = vmatpush1.msra.mxu0 0.0
    %1614 = vmatprep.subr.mxu0 0.0
    %1615 = vmatpush1.msra.mxu0 0.0
    %1616 = vmatprep.subr.mxu0 0.0
    %1617 = vmatpush1.msra.mxu0 0.0
    %1618 = vmatprep.subr.mxu0 0.0
    %1619 = vmatpush1.msra.mxu0 0.0
    %1620 = vmatprep.subr.mxu0 0.0
    %1621 = vmatpush1.msra.mxu0 0.0
    %1622 = vmatprep.subr.mxu0 0.0
    %1623 = vmatpush1.msra.mxu0 0.0
    %1624 = vmatprep.subr.mxu0 0.0
    %1625 = vmatpush1.msra.mxu0 0.0
    %1626 = vmatprep.mubr.f32.mxu0 0.0
    %1627 = vmatmul.mubr.f32.gmra.mrb[0].mxu0 %v1560
    %v1628 = vpop.f32.mrb[0].mxu0
    %v1629 = vadd.f32 0.0, %v1628
    %v1630 = vpop.f32.mrb[0].mxu0
    %1631 = vdwg.mxu0
    %v1633 = vsel %vm1202, %v1556, 0
    %1635 = vmatprep.subr.mxu0 0.0
    %1636 = vmatpush1.msra.mxu0 %v1059
    %1637 = vmatprep.subr.mxu0 0.0
    %1638 = vmatpush1.msra.mxu0 0.0
    %1639 = vmatprep.subr.mxu0 0.0
    %1640 = vmatpush1.msra.mxu0 0.0
    %1641 = vmatprep.subr.mxu0 0.0
    %1642 = vmatpush1.msra.mxu0 0.0
    %1643 = vmatprep.subr.mxu0 0.0
    %1644 = vmatpush1.msra.mxu0 0.0
    %1645 = vmatprep.subr.mxu0 0.0
    %1646 = vmatpush1.msra.mxu0 0.0
    %1647 = vmatprep.subr.mxu0 0.0
    %1648 = vmatpush1.msra.mxu0 0.0
    %1649 = vmatprep.subr.mxu0 0.0
    %1650 = vmatpush1.msra.mxu0 0.0
    %1651 = vmatprep.subr.mxu0 0.0
    %1652 = vmatpush1.msra.mxu0 0.0
    %1653 = vmatprep.subr.mxu0 0.0
    %1654 = vmatpush1.msra.mxu0 0.0
    %1655 = vmatprep.subr.mxu0 0.0
    %1656 = vmatpush1.msra.mxu0 0.0
    %1657 = vmatprep.subr.mxu0 0.0
    %1658 = vmatpush1.msra.mxu0 0.0
    %1659 = vmatprep.subr.mxu0 0.0
    %1660 = vmatpush1.msra.mxu0 0.0
    %1661 = vmatprep.subr.mxu0 0.0
    %1662 = vmatpush1.msra.mxu0 0.0
    %1663 = vmatprep.subr.mxu0 0.0
    %1664 = vmatpush1.msra.mxu0 0.0
    %1665 = vmatprep.subr.mxu0 0.0
    %1666 = vmatpush1.msra.mxu0 0.0
    %1667 = vmatprep.subr.mxu0 0.0
    %1668 = vmatpush1.msra.mxu0 0.0
    %1669 = vmatprep.subr.mxu0 0.0
    %1670 = vmatpush1.msra.mxu0 0.0
    %1671 = vmatprep.subr.mxu0 0.0
    %1672 = vmatpush1.msra.mxu0 0.0
    %1673 = vmatprep.subr.mxu0 0.0
    %1674 = vmatpush1.msra.mxu0 0.0
    %1675 = vmatprep.subr.mxu0 0.0
    %1676 = vmatpush1.msra.mxu0 0.0
    %1677 = vmatprep.subr.mxu0 0.0
    %1678 = vmatpush1.msra.mxu0 0.0
    %1679 = vmatprep.subr.mxu0 0.0
    %1680 = vmatpush1.msra.mxu0 0.0
    %1681 = vmatprep.subr.mxu0 0.0
    %1682 = vmatpush1.msra.mxu0 0.0
    %1683 = vmatprep.subr.mxu0 0.0
    %1684 = vmatpush1.msra.mxu0 0.0
    %1685 = vmatprep.subr.mxu0 0.0
    %1686 = vmatpush1.msra.mxu0 0.0
    %1687 = vmatprep.subr.mxu0 0.0
    %1688 = vmatpush1.msra.mxu0 0.0
    %1689 = vmatprep.subr.mxu0 0.0
    %1690 = vmatpush1.msra.mxu0 0.0
    %1691 = vmatprep.subr.mxu0 0.0
    %1692 = vmatpush1.msra.mxu0 0.0
    %1693 = vmatprep.subr.mxu0 0.0
    %1694 = vmatpush1.msra.mxu0 0.0
    %1695 = vmatprep.subr.mxu0 0.0
    %1696 = vmatpush1.msra.mxu0 0.0
    %1697 = vmatprep.subr.mxu0 0.0
    %1698 = vmatpush1.msra.mxu0 0.0
    %1699 = vmatprep.mubr.f32.mxu0 0.0
    %1700 = vmatmul.mubr.f32.gmra.mrb[0].mxu0 %v1633
    %v1701 = vpop.f32.mrb[0].mxu0
    %v1702 = vadd.f32 0.0, %v1701
    %v1703 = vpop.f32.mrb[0].mxu0
    %1704 = vdwg.mxu0
    %v1706 = vsel %vm1202, %v1557, 0
    %1708 = vmatprep.subr.mxu0 0.0
    %1709 = vmatpush1.msra.mxu0 %v1129
    %1710 = vmatprep.subr.mxu0 0.0
    %1711 = vmatpush1.msra.mxu0 0.0
    %1712 = vmatprep.subr.mxu0 0.0
    %1713 = vmatpush1.msra.mxu0 0.0
    %1714 = vmatprep.subr.mxu0 0.0
    %1715 = vmatpush1.msra.mxu0 0.0
    %1716 = vmatprep.subr.mxu0 0.0
    %1717 = vmatpush1.msra.mxu0 0.0
    %1718 = vmatprep.subr.mxu0 0.0
    %1719 = vmatpush1.msra.mxu0 0.0
    %1720 = vmatprep.subr.mxu0 0.0
    %1721 = vmatpush1.msra.mxu0 0.0
    %1722 = vmatprep.subr.mxu0 0.0
    %1723 = vmatpush1.msra.mxu0 0.0
    %1724 = vmatprep.subr.mxu0 0.0
    %1725 = vmatpush1.msra.mxu0 0.0
    %1726 = vmatprep.subr.mxu0 0.0
    %1727 = vmatpush1.msra.mxu0 0.0
    %1728 = vmatprep.subr.mxu0 0.0
    %1729 = vmatpush1.msra.mxu0 0.0
    %1730 = vmatprep.subr.mxu0 0.0
    %1731 = vmatpush1.msra.mxu0 0.0
    %1732 = vmatprep.subr.mxu0 0.0
    %1733 = vmatpush1.msra.mxu0 0.0
    %1734 = vmatprep.subr.mxu0 0.0
    %1735 = vmatpush1.msra.mxu0 0.0
    %1736 = vmatprep.subr.mxu0 0.0
    %1737 = vmatpush1.msra.mxu0 0.0
    %1738 = vmatprep.subr.mxu0 0.0
    %1739 = vmatpush1.msra.mxu0 0.0
    %1740 = vmatprep.subr.mxu0 0.0
    %1741 = vmatpush1.msra.mxu0 0.0
    %1742 = vmatprep.subr.mxu0 0.0
    %1743 = vmatpush1.msra.mxu0 0.0
    %1744 = vmatprep.subr.mxu0 0.0
    %1745 = vmatpush1.msra.mxu0 0.0
    %1746 = vmatprep.subr.mxu0 0.0
    %1747 = vmatpush1.msra.mxu0 0.0
    %1748 = vmatprep.subr.mxu0 0.0
    %1749 = vmatpush1.msra.mxu0 0.0
    %1750 = vmatprep.subr.mxu0 0.0
    %1751 = vmatpush1.msra.mxu0 0.0
    %1752 = vmatprep.subr.mxu0 0.0
    %1753 = vmatpush1.msra.mxu0 0.0
    %1754 = vmatprep.subr.mxu0 0.0
    %1755 = vmatpush1.msra.mxu0 0.0
    %1756 = vmatprep.subr.mxu0 0.0
    %1757 = vmatpush1.msra.mxu0 0.0
    %1758 = vmatprep.subr.mxu0 0.0
    %1759 = vmatpush1.msra.mxu0 0.0
    %1760 = vmatprep.subr.mxu0 0.0
    %1761 = vmatpush1.msra.mxu0 0.0
    %1762 = vmatprep.subr.mxu0 0.0
    %1763 = vmatpush1.msra.mxu0 0.0
    %1764 = vmatprep.subr.mxu0 0.0
    %1765 = vmatpush1.msra.mxu0 0.0
    %1766 = vmatprep.subr.mxu0 0.0
    %1767 = vmatpush1.msra.mxu0 0.0
    %1768 = vmatprep.subr.mxu0 0.0
    %1769 = vmatpush1.msra.mxu0 0.0
    %1770 = vmatprep.subr.mxu0 0.0
    %1771 = vmatpush1.msra.mxu0 0.0
    %1772 = vmatprep.mubr.f32.mxu0 0.0
    %1773 = vmatmul.mubr.f32.gmra.mrb[0].mxu0 %v1706
    %v1774 = vpop.f32.mrb[0].mxu0
    %v1775 = vadd.f32 0.0, %v1774
    %v1776 = vpop.f32.mrb[0].mxu0
    %1777 = vdwg.mxu0
    %v1779 = vsel %vm1202, %v1558, 0
    %1781 = vmatprep.subr.mxu0 0.0
    %1782 = vmatpush1.msra.mxu0 %v1199
    %1783 = vmatprep.subr.mxu0 0.0
    %1784 = vmatpush1.msra.mxu0 0.0
    %1785 = vmatprep.subr.mxu0 0.0
    %1786 = vmatpush1.msra.mxu0 0.0
    %1787 = vmatprep.subr.mxu0 0.0
    %1788 = vmatpush1.msra.mxu0 0.0
    %1789 = vmatprep.subr.mxu0 0.0
    %1790 = vmatpush1.msra.mxu0 0.0
    %1791 = vmatprep.subr.mxu0 0.0
    %1792 = vmatpush1.msra.mxu0 0.0
    %1793 = vmatprep.subr.mxu0 0.0
    %1794 = vmatpush1.msra.mxu0 0.0
    %1795 = vmatprep.subr.mxu0 0.0
    %1796 = vmatpush1.msra.mxu0 0.0
    %1797 = vmatprep.subr.mxu0 0.0
    %1798 = vmatpush1.msra.mxu0 0.0
    %1799 = vmatprep.subr.mxu0 0.0
    %1800 = vmatpush1.msra.mxu0 0.0
    %1801 = vmatprep.subr.mxu0 0.0
    %1802 = vmatpush1.msra.mxu0 0.0
    %1803 = vmatprep.subr.mxu0 0.0
    %1804 = vmatpush1.msra.mxu0 0.0
    %1805 = vmatprep.subr.mxu0 0.0
    %1806 = vmatpush1.msra.mxu0 0.0
    %1807 = vmatprep.subr.mxu0 0.0
    %1808 = vmatpush1.msra.mxu0 0.0
    %1809 = vmatprep.subr.mxu0 0.0
    %1810 = vmatpush1.msra.mxu0 0.0
    %1811 = vmatprep.subr.mxu0 0.0
    %1812 = vmatpush1.msra.mxu0 0.0
    %1813 = vmatprep.subr.mxu0 0.0
    %1814 = vmatpush1.msra.mxu0 0.0
    %1815 = vmatprep.subr.mxu0 0.0
    %1816 = vmatpush1.msra.mxu0 0.0
    %1817 = vmatprep.subr.mxu0 0.0
    %1818 = vmatpush1.msra.mxu0 0.0
    %1819 = vmatprep.subr.mxu0 0.0
    %1820 = vmatpush1.msra.mxu0 0.0
    %1821 = vmatprep.subr.mxu0 0.0
    %1822 = vmatpush1.msra.mxu0 0.0
    %1823 = vmatprep.subr.mxu0 0.0
    %1824 = vmatpush1.msra.mxu0 0.0
    %1825 = vmatprep.subr.mxu0 0.0
    %1826 = vmatpush1.msra.mxu0 0.0
    %1827 = vmatprep.subr.mxu0 0.0
    %1828 = vmatpush1.msra.mxu0 0.0
    %1829 = vmatprep.subr.mxu0 0.0
    %1830 = vmatpush1.msra.mxu0 0.0
    %1831 = vmatprep.subr.mxu0 0.0
    %1832 = vmatpush1.msra.mxu0 0.0
    %1833 = vmatprep.subr.mxu0 0.0
    %1834 = vmatpush1.msra.mxu0 0.0
    %1835 = vmatprep.subr.mxu0 0.0
    %1836 = vmatpush1.msra.mxu0 0.0
    %1837 = vmatprep.subr.mxu0 0.0
    %1838 = vmatpush1.msra.mxu0 0.0
    %1839 = vmatprep.subr.mxu0 0.0
    %1840 = vmatpush1.msra.mxu0 0.0
    %1841 = vmatprep.subr.mxu0 0.0
    %1842 = vmatpush1.msra.mxu0 0.0
    %1843 = vmatprep.subr.mxu0 0.0
    %1844 = vmatpush1.msra.mxu0 0.0
    %1845 = vmatprep.mubr.f32.mxu0 0.0
    %1846 = vmatmul.mubr.f32.gmra.mrb[0].mxu0 %v1779
    %v1847 = vpop.f32.mrb[0].mxu0
    %v1848 = vadd.f32 0.0, %v1847
    %v1849 = vpop.f32.mrb[0].mxu0
    %1850 = vdwg.mxu0
    %v1852 = vsel %vm1202, %v1629, 0
    %1854 = vmatprep.subr.mxu0 0.0
    %1855 = vmatpush1.msra.mxu0 %v156
    %1856 = vmatprep.subr.mxu0 0.0
    %1857 = vmatpush1.msra.mxu0 0.0
    %1858 = vmatprep.subr.mxu0 0.0
    %1859 = vmatpush1.msra.mxu0 0.0
    %1860 = vmatprep.subr.mxu0 0.0
    %1861 = vmatpush1.msra.mxu0 0.0
    %1862 = vmatprep.subr.mxu0 0.0
    %1863 = vmatpush1.msra.mxu0 0.0
    %1864 = vmatprep.subr.mxu0 0.0
    %1865 = vmatpush1.msra.mxu0 0.0
    %1866 = vmatprep.subr.mxu0 0.0
    %1867 = vmatpush1.msra.mxu0 0.0
    %1868 = vmatprep.subr.mxu0 0.0
    %1869 = vmatpush1.msra.mxu0 0.0
    %1870 = vmatprep.subr.mxu0 0.0
    %1871 = vmatpush1.msra.mxu0 0.0
    %1872 = vmatprep.subr.mxu0 0.0
    %1873 = vmatpush1.msra.mxu0 0.0
    %1874 = vmatprep.subr.mxu0 0.0
    %1875 = vmatpush1.msra.mxu0 0.0
    %1876 = vmatprep.subr.mxu0 0.0
    %1877 = vmatpush1.msra.mxu0 0.0
    %1878 = vmatprep.subr.mxu0 0.0
    %1879 = vmatpush1.msra.mxu0 0.0
    %1880 = vmatprep.subr.mxu0 0.0
    %1881 = vmatpush1.msra.mxu0 0.0
    %1882 = vmatprep.subr.mxu0 0.0
    %1883 = vmatpush1.msra.mxu0 0.0
    %1884 = vmatprep.subr.mxu0 0.0
    %1885 = vmatpush1.msra.mxu0 0.0
    %1886 = vmatprep.subr.mxu0 0.0
    %1887 = vmatpush1.msra.mxu0 0.0
    %1888 = vmatprep.subr.mxu0 0.0
    %1889 = vmatpush1.msra.mxu0 0.0
    %1890 = vmatprep.subr.mxu0 0.0
    %1891 = vmatpush1.msra.mxu0 0.0
    %1892 = vmatprep.subr.mxu0 0.0
    %1893 = vmatpush1.msra.mxu0 0.0
    %1894 = vmatprep.subr.mxu0 0.0
    %1895 = vmatpush1.msra.mxu0 0.0
    %1896 = vmatprep.subr.mxu0 0.0
    %1897 = vmatpush1.msra.mxu0 0.0
    %1898 = vmatprep.subr.mxu0 0.0
    %1899 = vmatpush1.msra.mxu0 0.0
    %1900 = vmatprep.subr.mxu0 0.0
    %1901 = vmatpush1.msra.mxu0 0.0
    %1902 = vmatprep.subr.mxu0 0.0
    %1903 = vmatpush1.msra.mxu0 0.0
    %1904 = vmatprep.subr.mxu0 0.0
    %1905 = vmatpush1.msra.mxu0 0.0
    %1906 = vmatprep.subr.mxu0 0.0
    %1907 = vmatpush1.msra.mxu0 0.0
    %1908 = vmatprep.subr.mxu0 0.0
    %1909 = vmatpush1.msra.mxu0 0.0
    %1910 = vmatprep.subr.mxu0 0.0
    %1911 = vmatpush1.msra.mxu0 0.0
    %1912 = vmatprep.subr.mxu0 0.0
    %1913 = vmatpush1.msra.mxu0 0.0
    %1914 = vmatprep.subr.mxu0 0.0
    %1915 = vmatpush1.msra.mxu0 0.0
    %1916 = vmatprep.subr.mxu0 0.0
    %1917 = vmatpush1.msra.mxu0 0.0
    %1918 = vmatprep.mubr.f32.mxu0 0.0
    %1919 = vmatmul.mubr.f32.gmra.mrb[0].mxu0 %v1852
    %v1920 = vpop.f32.mrb[0].mxu0
    %v1921 = vadd.f32 0.0, %v1920
    %v1922 = vpop.f32.mrb[0].mxu0
    %1923 = vdwg.mxu0
    %v1925 = vsel %vm1202, %v1702, 0
    %1927 = vmatprep.subr.mxu0 0.0
    %1928 = vmatpush1.msra.mxu0 %v157
    %1929 = vmatprep.subr.mxu0 0.0
    %1930 = vmatpush1.msra.mxu0 0.0
    %1931 = vmatprep.subr.mxu0 0.0
    %1932 = vmatpush1.msra.mxu0 0.0
    %1933 = vmatprep.subr.mxu0 0.0
    %1934 = vmatpush1.msra.mxu0 0.0
    %1935 = vmatprep.subr.mxu0 0.0
    %1936 = vmatpush1.msra.mxu0 0.0
    %1937 = vmatprep.subr.mxu0 0.0
    %1938 = vmatpush1.msra.mxu0 0.0
    %1939 = vmatprep.subr.mxu0 0.0
    %1940 = vmatpush1.msra.mxu0 0.0
    %1941 = vmatprep.subr.mxu0 0.0
    %1942 = vmatpush1.msra.mxu0 0.0
    %1943 = vmatprep.subr.mxu0 0.0
    %1944 = vmatpush1.msra.mxu0 0.0
    %1945 = vmatprep.subr.mxu0 0.0
    %1946 = vmatpush1.msra.mxu0 0.0
    %1947 = vmatprep.subr.mxu0 0.0
    %1948 = vmatpush1.msra.mxu0 0.0
    %1949 = vmatprep.subr.mxu0 0.0
    %1950 = vmatpush1.msra.mxu0 0.0
    %1951 = vmatprep.subr.mxu0 0.0
    %1952 = vmatpush1.msra.mxu0 0.0
    %1953 = vmatprep.subr.mxu0 0.0
    %1954 = vmatpush1.msra.mxu0 0.0
    %1955 = vmatprep.subr.mxu0 0.0
    %1956 = vmatpush1.msra.mxu0 0.0
    %1957 = vmatprep.subr.mxu0 0.0
    %1958 = vmatpush1.msra.mxu0 0.0
    %1959 = vmatprep.subr.mxu0 0.0
    %1960 = vmatpush1.msra.mxu0 0.0
    %1961 = vmatprep.subr.mxu0 0.0
    %1962 = vmatpush1.msra.mxu0 0.0
    %1963 = vmatprep.subr.mxu0 0.0
    %1964 = vmatpush1.msra.mxu0 0.0
    %1965 = vmatprep.subr.mxu0 0.0
    %1966 = vmatpush1.msra.mxu0 0.0
    %1967 = vmatprep.subr.mxu0 0.0
    %1968 = vmatpush1.msra.mxu0 0.0
    %1969 = vmatprep.subr.mxu0 0.0
    %1970 = vmatpush1.msra.mxu0 0.0
    %1971 = vmatprep.subr.mxu0 0.0
    %1972 = vmatpush1.msra.mxu0 0.0
    %1973 = vmatprep.subr.mxu0 0.0
    %1974 = vmatpush1.msra.mxu0 0.0
    %1975 = vmatprep.subr.mxu0 0.0
    %1976 = vmatpush1.msra.mxu0 0.0
    %1977 = vmatprep.subr.mxu0 0.0
    %1978 = vmatpush1.msra.mxu0 0.0
    %1979 = vmatprep.subr.mxu0 0.0
    %1980 = vmatpush1.msra.mxu0 0.0
    %1981 = vmatprep.subr.mxu0 0.0
    %1982 = vmatpush1.msra.mxu0 0.0
    %1983 = vmatprep.subr.mxu0 0.0
    %1984 = vmatpush1.msra.mxu0 0.0
    %1985 = vmatprep.subr.mxu0 0.0
    %1986 = vmatpush1.msra.mxu0 0.0
    %1987 = vmatprep.subr.mxu0 0.0
    %1988 = vmatpush1.msra.mxu0 0.0
    %1989 = vmatprep.subr.mxu0 0.0
    %1990 = vmatpush1.msra.mxu0 0.0
    %1991 = vmatprep.mubr.f32.mxu0 0.0
    %1992 = vmatmul.mubr.f32.gmra.mrb[0].mxu0 %v1925
    %v1993 = vpop.f32.mrb[0].mxu0
    %v1994 = vadd.f32 0.0, %v1993
    %v1995 = vpop.f32.mrb[0].mxu0
    %1996 = vdwg.mxu0
    %v1998 = vsel %vm1202, %v1775, 0
    %2000 = vmatprep.subr.mxu0 0.0
    %2001 = vmatpush1.msra.mxu0 %v158
    %2002 = vmatprep.subr.mxu0 0.0
    %2003 = vmatpush1.msra.mxu0 0.0
    %2004 = vmatprep.subr.mxu0 0.0
    %2005 = vmatpush1.msra.mxu0 0.0
    %2006 = vmatprep.subr.mxu0 0.0
    %2007 = vmatpush1.msra.mxu0 0.0
    %2008 = vmatprep.subr.mxu0 0.0
    %2009 = vmatpush1.msra.mxu0 0.0
    %2010 = vmatprep.subr.mxu0 0.0
    %2011 = vmatpush1.msra.mxu0 0.0
    %2012 = vmatprep.subr.mxu0 0.0
    %2013 = vmatpush1.msra.mxu0 0.0
    %2014 = vmatprep.subr.mxu0 0.0
    %2015 = vmatpush1.msra.mxu0 0.0
    %2016 = vmatprep.subr.mxu0 0.0
    %2017 = vmatpush1.msra.mxu0 0.0
    %2018 = vmatprep.subr.mxu0 0.0
    %2019 = vmatpush1.msra.mxu0 0.0
    %2020 = vmatprep.subr.mxu0 0.0
    %2021 = vmatpush1.msra.mxu0 0.0
    %2022 = vmatprep.subr.mxu0 0.0
    %2023 = vmatpush1.msra.mxu0 0.0
    %2024 = vmatprep.subr.mxu0 0.0
    %2025 = vmatpush1.msra.mxu0 0.0
    %2026 = vmatprep.subr.mxu0 0.0
    %2027 = vmatpush1.msra.mxu0 0.0
    %2028 = vmatprep.subr.mxu0 0.0
    %2029 = vmatpush1.msra.mxu0 0.0
    %2030 = vmatprep.subr.mxu0 0.0
    %2031 = vmatpush1.msra.mxu0 0.0
    %2032 = vmatprep.subr.mxu0 0.0
    %2033 = vmatpush1.msra.mxu0 0.0
    %2034 = vmatprep.subr.mxu0 0.0
    %2035 = vmatpush1.msra.mxu0 0.0
    %2036 = vmatprep.subr.mxu0 0.0
    %2037 = vmatpush1.msra.mxu0 0.0
    %2038 = vmatprep.subr.mxu0 0.0
    %2039 = vmatpush1.msra.mxu0 0.0
    %2040 = vmatprep.subr.mxu0 0.0
    %2041 = vmatpush1.msra.mxu0 0.0
    %2042 = vmatprep.subr.mxu0 0.0
    %2043 = vmatpush1.msra.mxu0 0.0
    %2044 = vmatprep.subr.mxu0 0.0
    %2045 = vmatpush1.msra.mxu0 0.0
    %2046 = vmatprep.subr.mxu0 0.0
    %2047 = vmatpush1.msra.mxu0 0.0
    %2048 = vmatprep.subr.mxu0 0.0
    %2049 = vmatpush1.msra.mxu0 0.0
    %2050 = vmatprep.subr.mxu0 0.0
    %2051 = vmatpush1.msra.mxu0 0.0
    %2052 = vmatprep.subr.mxu0 0.0
    %2053 = vmatpush1.msra.mxu0 0.0
    %2054 = vmatprep.subr.mxu0 0.0
    %2055 = vmatpush1.msra.mxu0 0.0
    %2056 = vmatprep.subr.mxu0 0.0
    %2057 = vmatpush1.msra.mxu0 0.0
    %2058 = vmatprep.subr.mxu0 0.0
    %2059 = vmatpush1.msra.mxu0 0.0
    %2060 = vmatprep.subr.mxu0 0.0
    %2061 = vmatpush1.msra.mxu0 0.0
    %2062 = vmatprep.subr.mxu0 0.0
    %2063 = vmatpush1.msra.mxu0 0.0
    %2064 = vmatprep.mubr.f32.mxu0 0.0
    %2065 = vmatmul.mubr.f32.gmra.mrb[0].mxu0 %v1998
    %v2066 = vpop.f32.mrb[0].mxu0
    %v2067 = vadd.f32 0.0, %v2066
    %v2068 = vpop.f32.mrb[0].mxu0
    %2069 = vdwg.mxu0
    %v2071 = vsel %vm1202, %v1848, 0
    %2073 = vmatprep.subr.mxu0 0.0
    %2074 = vmatpush1.msra.mxu0 %v159
    %2075 = vmatprep.subr.mxu0 0.0
    %2076 = vmatpush1.msra.mxu0 0.0
    %2077 = vmatprep.subr.mxu0 0.0
    %2078 = vmatpush1.msra.mxu0 0.0
    %2079 = vmatprep.subr.mxu0 0.0
    %2080 = vmatpush1.msra.mxu0 0.0
    %2081 = vmatprep.subr.mxu0 0.0
    %2082 = vmatpush1.msra.mxu0 0.0
    %2083 = vmatprep.subr.mxu0 0.0
    %2084 = vmatpush1.msra.mxu0 0.0
    %2085 = vmatprep.subr.mxu0 0.0
    %2086 = vmatpush1.msra.mxu0 0.0
    %2087 = vmatprep.subr.mxu0 0.0
    %2088 = vmatpush1.msra.mxu0 0.0
    %2089 = vmatprep.subr.mxu0 0.0
    %2090 = vmatpush1.msra.mxu0 0.0
    %2091 = vmatprep.subr.mxu0 0.0
    %2092 = vmatpush1.msra.mxu0 0.0
    %2093 = vmatprep.subr.mxu0 0.0
    %2094 = vmatpush1.msra.mxu0 0.0
    %2095 = vmatprep.subr.mxu0 0.0
    %2096 = vmatpush1.msra.mxu0 0.0
    %2097 = vmatprep.subr.mxu0 0.0
    %2098 = vmatpush1.msra.mxu0 0.0
    %2099 = vmatprep.subr.mxu0 0.0
    %2100 = vmatpush1.msra.mxu0 0.0
    %2101 = vmatprep.subr.mxu0 0.0
    %2102 = vmatpush1.msra.mxu0 0.0
    %2103 = vmatprep.subr.mxu0 0.0
    %2104 = vmatpush1.msra.mxu0 0.0
    %2105 = vmatprep.subr.mxu0 0.0
    %2106 = vmatpush1.msra.mxu0 0.0
    %2107 = vmatprep.subr.mxu0 0.0
    %2108 = vmatpush1.msra.mxu0 0.0
    %2109 = vmatprep.subr.mxu0 0.0
    %2110 = vmatpush1.msra.mxu0 0.0
    %2111 = vmatprep.subr.mxu0 0.0
    %2112 = vmatpush1.msra.mxu0 0.0
    %2113 = vmatprep.subr.mxu0 0.0
    %2114 = vmatpush1.msra.mxu0 0.0
    %2115 = vmatprep.subr.mxu0 0.0
    %2116 = vmatpush1.msra.mxu0 0.0
    %2117 = vmatprep.subr.mxu0 0.0
    %2118 = vmatpush1.msra.mxu0 0.0
    %2119 = vmatprep.subr.mxu0 0.0
    %2120 = vmatpush1.msra.mxu0 0.0
    %2121 = vmatprep.subr.mxu0 0.0
    %2122 = vmatpush1.msra.mxu0 0.0
    %2123 = vmatprep.subr.mxu0 0.0
    %2124 = vmatpush1.msra.mxu0 0.0
    %2125 = vmatprep.subr.mxu0 0.0
    %2126 = vmatpush1.msra.mxu0 0.0
    %2127 = vmatprep.subr.mxu0 0.0
    %2128 = vmatpush1.msra.mxu0 0.0
    %2129 = vmatprep.subr.mxu0 0.0
    %2130 = vmatpush1.msra.mxu0 0.0
    %2131 = vmatprep.subr.mxu0 0.0
    %2132 = vmatpush1.msra.mxu0 0.0
    %2133 = vmatprep.subr.mxu0 0.0
    %2134 = vmatpush1.msra.mxu0 0.0
    %2135 = vmatprep.subr.mxu0 0.0
    %2136 = vmatpush1.msra.mxu0 0.0
    %2137 = vmatprep.mubr.f32.mxu0 0.0
    %2138 = vmatmul.mubr.f32.gmra.mrb[0].mxu0 %v2071
    %v2139 = vpop.f32.mrb[0].mxu0
    %v2140 = vadd.f32 0.0, %v2139
    %v2141 = vpop.f32.mrb[0].mxu0
    %2142 = vdwg.mxu0
    %v2143 = vsel %vm256, %v1921, 0.0
    %v2144 = vsel %vm256, %v1994, 0.0
    %v2145 = vadd.f32 %v2143, %v2144
    %v2146 = vsel %vm256, %v2067, 0.0
    %v2147 = vadd.f32 %v2145, %v2146
    %v2148 = vsel %vm256, %v2140, 0.0
    %v2149 = vadd.f32 %v2147, %v2148
    %v2151 = vlaneseq
    %v2152 = vshrl.u32 %v2151, 7
    %v2153 = vsub.s32 0, %v2152
    %v2154 = vrot.slane %v160, %v2153
    %v2156 = vadd.f32 %v2149, %v2154
    %v2157 = vadd.f32 %v254, %v2156
    %v2158 = vsel %vm256, %v2157, 0.0
    %2159 = vadd.xlane.f32.xlu0 %v2158
    %v2160 = vpop.xlane.xlu0 %2159
    %v2161 = vmul.f32 %v2160, %v260
    %v2162 = vmul.f32 %v2157, %v2157
    %v2163 = vsel %vm256, %v2162, 0.0
    %2164 = vadd.xlane.f32.xlu0 %v2163
    %v2165 = vpop.xlane.xlu0 %2164
    %v2166 = vmul.f32 %v2165, %v260
    %v2167 = vmul.f32 %v2161, %v2161
    %v2168 = vsub.f32 %v2166, %v2167
    %v2169 = vsub.f32 %v2157, %v2161
    %v2170 = vadd.f32 %v2168, 1e-05
    %v2171 = vrsqrt.pop %v2170
    %v2172 = vmul.f32 %v2169, %v2171
    %v2174 = vlaneseq
    %v2175 = vshrl.u32 %v2174, 7
    %v2176 = vsub.s32 0, %v2175
    %v2177 = vrot.slane %v92, %v2176
    %v2179 = vmul.f32 %v2172, %v2177
    %v2181 = vlaneseq
    %v2182 = vshrl.u32 %v2181, 7
    %v2183 = vsub.s32 0, %v2182
    %v2184 = vrot.slane %v93, %v2183
    %v2186 = vadd.f32 %v2179, %v2184
    %v2191 = vlaneseq
    %v2192 = vshrl.u32 %v2191, 7
    %v2193 = vsub.s32 0, %v2192
    %v2194 = vrot.slane %v177, %v2193
    %v2195 = vlaneseq
    %v2196 = vshrl.u32 %v2195, 7
    %v2197 = vsub.s32 0, %v2196
    %v2198 = vrot.slane %v178, %v2197
    %v2199 = vlaneseq
    %v2200 = vshrl.u32 %v2199, 7
    %v2201 = vsub.s32 0, %v2200
    %v2202 = vrot.slane %v179, %v2201
    %v2203 = vlaneseq
    %v2204 = vshrl.u32 %v2203, 7
    %v2205 = vsub.s32 0, %v2204
    %v2206 = vrot.slane %v180, %v2205
    %v2212 = vsel %vm256, %v2186, 0
    %2214 = vmatprep.subr.mxu0 0.0
    %2215 = vmatpush1.msra.mxu0 %v161
    %2216 = vmatprep.subr.mxu0 0.0
    %2217 = vmatpush1.msra.mxu0 %v162
    %2218 = vmatprep.subr.mxu0 0.0
    %2219 = vmatpush1.msra.mxu0 %v163
    %2220 = vmatprep.subr.mxu0 0.0
    %2221 = vmatpush1.msra.mxu0 %v164
    %2222 = vmatprep.subr.mxu0 0.0
    %2223 = vmatpush1.msra.mxu0 0.0
    %2224 = vmatprep.subr.mxu0 0.0
    %2225 = vmatpush1.msra.mxu0 0.0
    %2226 = vmatprep.subr.mxu0 0.0
    %2227 = vmatpush1.msra.mxu0 0.0
    %2228 = vmatprep.subr.mxu0 0.0
    %2229 = vmatpush1.msra.mxu0 0.0
    %2230 = vmatprep.subr.mxu0 0.0
    %2231 = vmatpush1.msra.mxu0 0.0
    %2232 = vmatprep.subr.mxu0 0.0
    %2233 = vmatpush1.msra.mxu0 0.0
    %2234 = vmatprep.subr.mxu0 0.0
    %2235 = vmatpush1.msra.mxu0 0.0
    %2236 = vmatprep.subr.mxu0 0.0
    %2237 = vmatpush1.msra.mxu0 0.0
    %2238 = vmatprep.subr.mxu0 0.0
    %2239 = vmatpush1.msra.mxu0 0.0
    %2240 = vmatprep.subr.mxu0 0.0
    %2241 = vmatpush1.msra.mxu0 0.0
    %2242 = vmatprep.subr.mxu0 0.0
    %2243 = vmatpush1.msra.mxu0 0.0
    %2244 = vmatprep.subr.mxu0 0.0
    %2245 = vmatpush1.msra.mxu0 0.0
    %2246 = vmatprep.subr.mxu0 0.0
    %2247 = vmatpush1.msra.mxu0 0.0
    %2248 = vmatprep.subr.mxu0 0.0
    %2249 = vmatpush1.msra.mxu0 0.0
    %2250 = vmatprep.subr.mxu0 0.0
    %2251 = vmatpush1.msra.mxu0 0.0
    %2252 = vmatprep.subr.mxu0 0.0
    %2253 = vmatpush1.msra.mxu0 0.0
    %2254 = vmatprep.subr.mxu0 0.0
    %2255 = vmatpush1.msra.mxu0 0.0
    %2256 = vmatprep.subr.mxu0 0.0
    %2257 = vmatpush1.msra.mxu0 0.0
    %2258 = vmatprep.subr.mxu0 0.0
    %2259 = vmatpush1.msra.mxu0 0.0
    %2260 = vmatprep.subr.mxu0 0.0
    %2261 = vmatpush1.msra.mxu0 0.0
    %2262 = vmatprep.subr.mxu0 0.0
    %2263 = vmatpush1.msra.mxu0 0.0
    %2264 = vmatprep.subr.mxu0 0.0
    %2265 = vmatpush1.msra.mxu0 0.0
    %2266 = vmatprep.subr.mxu0 0.0
    %2267 = vmatpush1.msra.mxu0 0.0
    %2268 = vmatprep.subr.mxu0 0.0
    %2269 = vmatpush1.msra.mxu0 0.0
    %2270 = vmatprep.subr.mxu0 0.0
    %2271 = vmatpush1.msra.mxu0 0.0
    %2272 = vmatprep.subr.mxu0 0.0
    %2273 = vmatpush1.msra.mxu0 0.0
    %2274 = vmatprep.subr.mxu0 0.0
    %2275 = vmatpush1.msra.mxu0 0.0
    %2276 = vmatprep.subr.mxu0 0.0
    %2277 = vmatpush1.msra.mxu0 0.0
    %2278 = vmatprep.mubr.f32.mxu0 0.0
    %2279 = vmatmul.mubr.f32.gmra.mrb[0].mxu0 %v2212
    %v2280 = vpop.f32.mrb[0].mxu0
    %v2281 = vadd.f32 %v2194, %v2280
    %v2282 = vpop.f32.mrb[0].mxu0
    %2283 = vdwg.mxu0
    %2284 = vmatprep.subr.mxu0 0.0
    %2285 = vmatpush1.msra.mxu0 %v165
    %2286 = vmatprep.subr.mxu0 0.0
    %2287 = vmatpush1.msra.mxu0 %v166
    %2288 = vmatprep.subr.mxu0 0.0
    %2289 = vmatpush1.msra.mxu0 %v167
    %2290 = vmatprep.subr.mxu0 0.0
    %2291 = vmatpush1.msra.mxu0 %v168
    %2292 = vmatprep.subr.mxu0 0.0
    %2293 = vmatpush1.msra.mxu0 0.0
    %2294 = vmatprep.subr.mxu0 0.0
    %2295 = vmatpush1.msra.mxu0 0.0
    %2296 = vmatprep.subr.mxu0 0.0
    %2297 = vmatpush1.msra.mxu0 0.0
    %2298 = vmatprep.subr.mxu0 0.0
    %2299 = vmatpush1.msra.mxu0 0.0
    %2300 = vmatprep.subr.mxu0 0.0
    %2301 = vmatpush1.msra.mxu0 0.0
    %2302 = vmatprep.subr.mxu0 0.0
    %2303 = vmatpush1.msra.mxu0 0.0
    %2304 = vmatprep.subr.mxu0 0.0
    %2305 = vmatpush1.msra.mxu0 0.0
    %2306 = vmatprep.subr.mxu0 0.0
    %2307 = vmatpush1.msra.mxu0 0.0
    %2308 = vmatprep.subr.mxu0 0.0
    %2309 = vmatpush1.msra.mxu0 0.0
    %2310 = vmatprep.subr.mxu0 0.0
    %2311 = vmatpush1.msra.mxu0 0.0
    %2312 = vmatprep.subr.mxu0 0.0
    %2313 = vmatpush1.msra.mxu0 0.0
    %2314 = vmatprep.subr.mxu0 0.0
    %2315 = vmatpush1.msra.mxu0 0.0
    %2316 = vmatprep.subr.mxu0 0.0
    %2317 = vmatpush1.msra.mxu0 0.0
    %2318 = vmatprep.subr.mxu0 0.0
    %2319 = vmatpush1.msra.mxu0 0.0
    %2320 = vmatprep.subr.mxu0 0.0
    %2321 = vmatpush1.msra.mxu0 0.0
    %2322 = vmatprep.subr.mxu0 0.0
    %2323 = vmatpush1.msra.mxu0 0.0
    %2324 = vmatprep.subr.mxu0 0.0
    %2325 = vmatpush1.msra.mxu0 0.0
    %2326 = vmatprep.subr.mxu0 0.0
    %2327 = vmatpush1.msra.mxu0 0.0
    %2328 = vmatprep.subr.mxu0 0.0
    %2329 = vmatpush1.msra.mxu0 0.0
    %2330 = vmatprep.subr.mxu0 0.0
    %2331 = vmatpush1.msra.mxu0 0.0
    %2332 = vmatprep.subr.mxu0 0.0
    %2333 = vmatpush1.msra.mxu0 0.0
    %2334 = vmatprep.subr.mxu0 0.0
    %2335 = vmatpush1.msra.mxu0 0.0
    %2336 = vmatprep.subr.mxu0 0.0
    %2337 = vmatpush1.msra.mxu0 0.0
    %2338 = vmatprep.subr.mxu0 0.0
    %2339 = vmatpush1.msra.mxu0 0.0
    %2340 = vmatprep.subr.mxu0 0.0
    %2341 = vmatpush1.msra.mxu0 0.0
    %2342 = vmatprep.subr.mxu0 0.0
    %2343 = vmatpush1.msra.mxu0 0.0
    %2344 = vmatprep.subr.mxu0 0.0
    %2345 = vmatpush1.msra.mxu0 0.0
    %2346 = vmatprep.subr.mxu0 0.0
    %2347 = vmatpush1.msra.mxu0 0.0
    %2348 = vmatprep.mubr.f32.mxu0 0.0
    %2349 = vmatmul.mubr.f32.gmra.mrb[0].mxu0 %v2212
    %v2350 = vpop.f32.mrb[0].mxu0
    %v2351 = vadd.f32 %v2198, %v2350
    %v2352 = vpop.f32.mrb[0].mxu0
    %2353 = vdwg.mxu0
    %2354 = vmatprep.subr.mxu0 0.0
    %2355 = vmatpush1.msra.mxu0 %v169
    %2356 = vmatprep.subr.mxu0 0.0
    %2357 = vmatpush1.msra.mxu0 %v170
    %2358 = vmatprep.subr.mxu0 0.0
    %2359 = vmatpush1.msra.mxu0 %v171
    %2360 = vmatprep.subr.mxu0 0.0
    %2361 = vmatpush1.msra.mxu0 %v172
    %2362 = vmatprep.subr.mxu0 0.0
    %2363 = vmatpush1.msra.mxu0 0.0
    %2364 = vmatprep.subr.mxu0 0.0
    %2365 = vmatpush1.msra.mxu0 0.0
    %2366 = vmatprep.subr.mxu0 0.0
    %2367 = vmatpush1.msra.mxu0 0.0
    %2368 = vmatprep.subr.mxu0 0.0
    %2369 = vmatpush1.msra.mxu0 0.0
    %2370 = vmatprep.subr.mxu0 0.0
    %2371 = vmatpush1.msra.mxu0 0.0
    %2372 = vmatprep.subr.mxu0 0.0
    %2373 = vmatpush1.msra.mxu0 0.0
    %2374 = vmatprep.subr.mxu0 0.0
    %2375 = vmatpush1.msra.mxu0 0.0
    %2376 = vmatprep.subr.mxu0 0.0
    %2377 = vmatpush1.msra.mxu0 0.0
    %2378 = vmatprep.subr.mxu0 0.0
    %2379 = vmatpush1.msra.mxu0 0.0
    %2380 = vmatprep.subr.mxu0 0.0
    %2381 = vmatpush1.msra.mxu0 0.0
    %2382 = vmatprep.subr.mxu0 0.0
    %2383 = vmatpush1.msra.mxu0 0.0
    %2384 = vmatprep.subr.mxu0 0.0
    %2385 = vmatpush1.msra.mxu0 0.0
    %2386 = vmatprep.subr.mxu0 0.0
    %2387 = vmatpush1.msra.mxu0 0.0
    %2388 = vmatprep.subr.mxu0 0.0
    %2389 = vmatpush1.msra.mxu0 0.0
    %2390 = vmatprep.subr.mxu0 0.0
    %2391 = vmatpush1.msra.mxu0 0.0
    %2392 = vmatprep.subr.mxu0 0.0
    %2393 = vmatpush1.msra.mxu0 0.0
    %2394 = vmatprep.subr.mxu0 0.0
    %2395 = vmatpush1.msra.mxu0 0.0
    %2396 = vmatprep.subr.mxu0 0.0
    %2397 = vmatpush1.msra.mxu0 0.0
    %2398 = vmatprep.subr.mxu0 0.0
    %2399 = vmatpush1.msra.mxu0 0.0
    %2400 = vmatprep.subr.mxu0 0.0
    %2401 = vmatpush1.msra.mxu0 0.0
    %2402 = vmatprep.subr.mxu0 0.0
    %2403 = vmatpush1.msra.mxu0 0.0
    %2404 = vmatprep.subr.mxu0 0.0
    %2405 = vmatpush1.msra.mxu0 0.0
    %2406 = vmatprep.subr.mxu0 0.0
    %2407 = vmatpush1.msra.mxu0 0.0
    %2408 = vmatprep.subr.mxu0 0.0
    %2409 = vmatpush1.msra.mxu0 0.0
    %2410 = vmatprep.subr.mxu0 0.0
    %2411 = vmatpush1.msra.mxu0 0.0
    %2412 = vmatprep.subr.mxu0 0.0
    %2413 = vmatpush1.msra.mxu0 0.0
    %2414 = vmatprep.subr.mxu0 0.0
    %2415 = vmatpush1.msra.mxu0 0.0
    %2416 = vmatprep.subr.mxu0 0.0
    %2417 = vmatpush1.msra.mxu0 0.0
    %2418 = vmatprep.mubr.f32.mxu0 0.0
    %2419 = vmatmul.mubr.f32.gmra.mrb[0].mxu0 %v2212
    %v2420 = vpop.f32.mrb[0].mxu0
    %v2421 = vadd.f32 %v2202, %v2420
    %v2422 = vpop.f32.mrb[0].mxu0
    %2423 = vdwg.mxu0
    %2424 = vmatprep.subr.mxu0 0.0
    %2425 = vmatpush1.msra.mxu0 %v173
    %2426 = vmatprep.subr.mxu0 0.0
    %2427 = vmatpush1.msra.mxu0 %v174
    %2428 = vmatprep.subr.mxu0 0.0
    %2429 = vmatpush1.msra.mxu0 %v175
    %2430 = vmatprep.subr.mxu0 0.0
    %2431 = vmatpush1.msra.mxu0 %v176
    %2432 = vmatprep.subr.mxu0 0.0
    %2433 = vmatpush1.msra.mxu0 0.0
    %2434 = vmatprep.subr.mxu0 0.0
    %2435 = vmatpush1.msra.mxu0 0.0
    %2436 = vmatprep.subr.mxu0 0.0
    %2437 = vmatpush1.msra.mxu0 0.0
    %2438 = vmatprep.subr.mxu0 0.0
    %2439 = vmatpush1.msra.mxu0 0.0
    %2440 = vmatprep.subr.mxu0 0.0
    %2441 = vmatpush1.msra.mxu0 0.0
    %2442 = vmatprep.subr.mxu0 0.0
    %2443 = vmatpush1.msra.mxu0 0.0
    %2444 = vmatprep.subr.mxu0 0.0
    %2445 = vmatpush1.msra.mxu0 0.0
    %2446 = vmatprep.subr.mxu0 0.0
    %2447 = vmatpush1.msra.mxu0 0.0
    %2448 = vmatprep.subr.mxu0 0.0
    %2449 = vmatpush1.msra.mxu0 0.0
    %2450 = vmatprep.subr.mxu0 0.0
    %2451 = vmatpush1.msra.mxu0 0.0
    %2452 = vmatprep.subr.mxu0 0.0
    %2453 = vmatpush1.msra.mxu0 0.0
    %2454 = vmatprep.subr.mxu0 0.0
    %2455 = vmatpush1.msra.mxu0 0.0
    %2456 = vmatprep.subr.mxu0 0.0
    %2457 = vmatpush1.msra.mxu0 0.0
    %2458 = vmatprep.subr.mxu0 0.0
    %2459 = vmatpush1.msra.mxu0 0.0
    %2460 = vmatprep.subr.mxu0 0.0
    %2461 = vmatpush1.msra.mxu0 0.0
    %2462 = vmatprep.subr.mxu0 0.0
    %2463 = vmatpush1.msra.mxu0 0.0
    %2464 = vmatprep.subr.mxu0 0.0
    %2465 = vmatpush1.msra.mxu0 0.0
    %2466 = vmatprep.subr.mxu0 0.0
    %2467 = vmatpush1.msra.mxu0 0.0
    %2468 = vmatprep.subr.mxu0 0.0
    %2469 = vmatpush1.msra.mxu0 0.0
    %2470 = vmatprep.subr.mxu0 0.0
    %2471 = vmatpush1.msra.mxu0 0.0
    %2472 = vmatprep.subr.mxu0 0.0
    %2473 = vmatpush1.msra.mxu0 0.0
    %2474 = vmatprep.subr.mxu0 0.0
    %2475 = vmatpush1.msra.mxu0 0.0
    %2476 = vmatprep.subr.mxu0 0.0
    %2477 = vmatpush1.msra.mxu0 0.0
    %2478 = vmatprep.subr.mxu0 0.0
    %2479 = vmatpush1.msra.mxu0 0.0
    %2480 = vmatprep.subr.mxu0 0.0
    %2481 = vmatpush1.msra.mxu0 0.0
    %2482 = vmatprep.subr.mxu0 0.0
    %2483 = vmatpush1.msra.mxu0 0.0
    %2484 = vmatprep.subr.mxu0 0.0
    %2485 = vmatpush1.msra.mxu0 0.0
    %2486 = vmatprep.subr.mxu0 0.0
    %2487 = vmatpush1.msra.mxu0 0.0
    %2488 = vmatprep.mubr.f32.mxu0 0.0
    %2489 = vmatmul.mubr.f32.gmra.mrb[0].mxu0 %v2212
    %v2490 = vpop.f32.mrb[0].mxu0
    %v2491 = vadd.f32 %v2206, %v2490
    %v2492 = vpop.f32.mrb[0].mxu0
    %2493 = vdwg.mxu0
    %v2498 = vlaneseq
    %v2499 = vshrl.u32 %v2498, 7
    %v2500 = vsub.s32 0, %v2499
    %v2501 = vrot.slane %v197, %v2500
    %v2502 = vlaneseq
    %v2503 = vshrl.u32 %v2502, 7
    %v2504 = vsub.s32 0, %v2503
    %v2505 = vrot.slane %v198, %v2504
    %v2506 = vlaneseq
    %v2507 = vshrl.u32 %v2506, 7
    %v2508 = vsub.s32 0, %v2507
    %v2509 = vrot.slane %v199, %v2508
    %v2510 = vlaneseq
    %v2511 = vshrl.u32 %v2510, 7
    %v2512 = vsub.s32 0, %v2511
    %v2513 = vrot.slane %v200, %v2512
    %v2519 = vsel %vm256, %v255, 0
    %2521 = vmatprep.subr.mxu0 0.0
    %2522 = vmatpush1.msra.mxu0 %v181
    %2523 = vmatprep.subr.mxu0 0.0
    %2524 = vmatpush1.msra.mxu0 %v182
    %2525 = vmatprep.subr.mxu0 0.0
    %2526 = vmatpush1.msra.mxu0 %v183
    %2527 = vmatprep.subr.mxu0 0.0
    %2528 = vmatpush1.msra.mxu0 %v184
    %2529 = vmatprep.subr.mxu0 0.0
    %2530 = vmatpush1.msra.mxu0 0.0
    %2531 = vmatprep.subr.mxu0 0.0
    %2532 = vmatpush1.msra.mxu0 0.0
    %2533 = vmatprep.subr.mxu0 0.0
    %2534 = vmatpush1.msra.mxu0 0.0
    %2535 = vmatprep.subr.mxu0 0.0
    %2536 = vmatpush1.msra.mxu0 0.0
    %2537 = vmatprep.subr.mxu0 0.0
    %2538 = vmatpush1.msra.mxu0 0.0
    %2539 = vmatprep.subr.mxu0 0.0
    %2540 = vmatpush1.msra.mxu0 0.0
    %2541 = vmatprep.subr.mxu0 0.0
    %2542 = vmatpush1.msra.mxu0 0.0
    %2543 = vmatprep.subr.mxu0 0.0
    %2544 = vmatpush1.msra.mxu0 0.0
    %2545 = vmatprep.subr.mxu0 0.0
    %2546 = vmatpush1.msra.mxu0 0.0
    %2547 = vmatprep.subr.mxu0 0.0
    %2548 = vmatpush1.msra.mxu0 0.0
    %2549 = vmatprep.subr.mxu0 0.0
    %2550 = vmatpush1.msra.mxu0 0.0
    %2551 = vmatprep.subr.mxu0 0.0
    %2552 = vmatpush1.msra.mxu0 0.0
    %2553 = vmatprep.subr.mxu0 0.0
    %2554 = vmatpush1.msra.mxu0 0.0
    %2555 = vmatprep.subr.mxu0 0.0
    %2556 = vmatpush1.msra.mxu0 0.0
    %2557 = vmatprep.subr.mxu0 0.0
    %2558 = vmatpush1.msra.mxu0 0.0
    %2559 = vmatprep.subr.mxu0 0.0
    %2560 = vmatpush1.msra.mxu0 0.0
    %2561 = vmatprep.subr.mxu0 0.0
    %2562 = vmatpush1.msra.mxu0 0.0
    %2563 = vmatprep.subr.mxu0 0.0
    %2564 = vmatpush1.msra.mxu0 0.0
    %2565 = vmatprep.subr.mxu0 0.0
    %2566 = vmatpush1.msra.mxu0 0.0
    %2567 = vmatprep.subr.mxu0 0.0
    %2568 = vmatpush1.msra.mxu0 0.0
    %2569 = vmatprep.subr.mxu0 0.0
    %2570 = vmatpush1.msra.mxu0 0.0
    %2571 = vmatprep.subr.mxu0 0.0
    %2572 = vmatpush1.msra.mxu0 0.0
    %2573 = vmatprep.subr.mxu0 0.0
    %2574 = vmatpush1.msra.mxu0 0.0
    %2575 = vmatprep.subr.mxu0 0.0
    %2576 = vmatpush1.msra.mxu0 0.0
    %2577 = vmatprep.subr.mxu0 0.0
    %2578 = vmatpush1.msra.mxu0 0.0
    %2579 = vmatprep.subr.mxu0 0.0
    %2580 = vmatpush1.msra.mxu0 0.0
    %2581 = vmatprep.subr.mxu0 0.0
    %2582 = vmatpush1.msra.mxu0 0.0
    %2583 = vmatprep.subr.mxu0 0.0
    %2584 = vmatpush1.msra.mxu0 0.0
    %2585 = vmatprep.mubr.f32.mxu0 0.0
    %2586 = vmatmul.mubr.f32.gmra.mrb[0].mxu0 %v2519
    %v2587 = vpop.f32.mrb[0].mxu0
    %v2588 = vadd.f32 %v2501, %v2587
    %v2589 = vpop.f32.mrb[0].mxu0
    %2590 = vdwg.mxu0
    %2591 = vmatprep.subr.mxu0 0.0
    %2592 = vmatpush1.msra.mxu0 %v185
    %2593 = vmatprep.subr.mxu0 0.0
    %2594 = vmatpush1.msra.mxu0 %v186
    %2595 = vmatprep.subr.mxu0 0.0
    %2596 = vmatpush1.msra.mxu0 %v187
    %2597 = vmatprep.subr.mxu0 0.0
    %2598 = vmatpush1.msra.mxu0 %v188
    %2599 = vmatprep.subr.mxu0 0.0
    %2600 = vmatpush1.msra.mxu0 0.0
    %2601 = vmatprep.subr.mxu0 0.0
    %2602 = vmatpush1.msra.mxu0 0.0
    %2603 = vmatprep.subr.mxu0 0.0
    %2604 = vmatpush1.msra.mxu0 0.0
    %2605 = vmatprep.subr.mxu0 0.0
    %2606 = vmatpush1.msra.mxu0 0.0
    %2607 = vmatprep.subr.mxu0 0.0
    %2608 = vmatpush1.msra.mxu0 0.0
    %2609 = vmatprep.subr.mxu0 0.0
    %2610 = vmatpush1.msra.mxu0 0.0
    %2611 = vmatprep.subr.mxu0 0.0
    %2612 = vmatpush1.msra.mxu0 0.0
    %2613 = vmatprep.subr.mxu0 0.0
    %2614 = vmatpush1.msra.mxu0 0.0
    %2615 = vmatprep.subr.mxu0 0.0
    %2616 = vmatpush1.msra.mxu0 0.0
    %2617 = vmatprep.subr.mxu0 0.0
    %2618 = vmatpush1.msra.mxu0 0.0
    %2619 = vmatprep.subr.mxu0 0.0
    %2620 = vmatpush1.msra.mxu0 0.0
    %2621 = vmatprep.subr.mxu0 0.0
    %2622 = vmatpush1.msra.mxu0 0.0
    %2623 = vmatprep.subr.mxu0 0.0
    %2624 = vmatpush1.msra.mxu0 0.0
    %2625 = vmatprep.subr.mxu0 0.0
    %2626 = vmatpush1.msra.mxu0 0.0
    %2627 = vmatprep.subr.mxu0 0.0
    %2628 = vmatpush1.msra.mxu0 0.0
    %2629 = vmatprep.subr.mxu0 0.0
    %2630 = vmatpush1.msra.mxu0 0.0
    %2631 = vmatprep.subr.mxu0 0.0
    %2632 = vmatpush1.msra.mxu0 0.0
    %2633 = vmatprep.subr.mxu0 0.0
    %2634 = vmatpush1.msra.mxu0 0.0
    %2635 = vmatprep.subr.mxu0 0.0
    %2636 = vmatpush1.msra.mxu0 0.0
    %2637 = vmatprep.subr.mxu0 0.0
    %2638 = vmatpush1.msra.mxu0 0.0
    %2639 = vmatprep.subr.mxu0 0.0
    %2640 = vmatpush1.msra.mxu0 0.0
    %2641 = vmatprep.subr.mxu0 0.0
    %2642 = vmatpush1.msra.mxu0 0.0
    %2643 = vmatprep.subr.mxu0 0.0
    %2644 = vmatpush1.msra.mxu0 0.0
    %2645 = vmatprep.subr.mxu0 0.0
    %2646 = vmatpush1.msra.mxu0 0.0
    %2647 = vmatprep.subr.mxu0 0.0
    %2648 = vmatpush1.msra.mxu0 0.0
    %2649 = vmatprep.subr.mxu0 0.0
    %2650 = vmatpush1.msra.mxu0 0.0
    %2651 = vmatprep.subr.mxu0 0.0
    %2652 = vmatpush1.msra.mxu0 0.0
    %2653 = vmatprep.subr.mxu0 0.0
    %2654 = vmatpush1.msra.mxu0 0.0
    %2655 = vmatprep.mubr.f32.mxu0 0.0
    %2656 = vmatmul.mubr.f32.gmra.mrb[0].mxu0 %v2519
    %v2657 = vpop.f32.mrb[0].mxu0
    %v2658 = vadd.f32 %v2505, %v2657
    %v2659 = vpop.f32.mrb[0].mxu0
    %2660 = vdwg.mxu0
    %2661 = vmatprep.subr.mxu0 0.0
    %2662 = vmatpush1.msra.mxu0 %v189
    %2663 = vmatprep.subr.mxu0 0.0
    %2664 = vmatpush1.msra.mxu0 %v190
    %2665 = vmatprep.subr.mxu0 0.0
    %2666 = vmatpush1.msra.mxu0 %v191
    %2667 = vmatprep.subr.mxu0 0.0
    %2668 = vmatpush1.msra.mxu0 %v192
    %2669 = vmatprep.subr.mxu0 0.0
    %2670 = vmatpush1.msra.mxu0 0.0
    %2671 = vmatprep.subr.mxu0 0.0
    %2672 = vmatpush1.msra.mxu0 0.0
    %2673 = vmatprep.subr.mxu0 0.0
    %2674 = vmatpush1.msra.mxu0 0.0
    %2675 = vmatprep.subr.mxu0 0.0
    %2676 = vmatpush1.msra.mxu0 0.0
    %2677 = vmatprep.subr.mxu0 0.0
    %2678 = vmatpush1.msra.mxu0 0.0
    %2679 = vmatprep.subr.mxu0 0.0
    %2680 = vmatpush1.msra.mxu0 0.0
    %2681 = vmatprep.subr.mxu0 0.0
    %2682 = vmatpush1.msra.mxu0 0.0
    %2683 = vmatprep.subr.mxu0 0.0
    %2684 = vmatpush1.msra.mxu0 0.0
    %2685 = vmatprep.subr.mxu0 0.0
    %2686 = vmatpush1.msra.mxu0 0.0
    %2687 = vmatprep.subr.mxu0 0.0
    %2688 = vmatpush1.msra.mxu0 0.0
    %2689 = vmatprep.subr.mxu0 0.0
    %2690 = vmatpush1.msra.mxu0 0.0
    %2691 = vmatprep.subr.mxu0 0.0
    %2692 = vmatpush1.msra.mxu0 0.0
    %2693 = vmatprep.subr.mxu0 0.0
    %2694 = vmatpush1.msra.mxu0 0.0
    %2695 = vmatprep.subr.mxu0 0.0
    %2696 = vmatpush1.msra.mxu0 0.0
    %2697 = vmatprep.subr.mxu0 0.0
    %2698 = vmatpush1.msra.mxu0 0.0
    %2699 = vmatprep.subr.mxu0 0.0
    %2700 = vmatpush1.msra.mxu0 0.0
    %2701 = vmatprep.subr.mxu0 0.0
    %2702 = vmatpush1.msra.mxu0 0.0
    %2703 = vmatprep.subr.mxu0 0.0
    %2704 = vmatpush1.msra.mxu0 0.0
    %2705 = vmatprep.subr.mxu0 0.0
    %2706 = vmatpush1.msra.mxu0 0.0
    %2707 = vmatprep.subr.mxu0 0.0
    %2708 = vmatpush1.msra.mxu0 0.0
    %2709 = vmatprep.subr.mxu0 0.0
    %2710 = vmatpush1.msra.mxu0 0.0
    %2711 = vmatprep.subr.mxu0 0.0
    %2712 = vmatpush1.msra.mxu0 0.0
    %2713 = vmatprep.subr.mxu0 0.0
    %2714 = vmatpush1.msra.mxu0 0.0
    %2715 = vmatprep.subr.mxu0 0.0
    %2716 = vmatpush1.msra.mxu0 0.0
    %2717 = vmatprep.subr.mxu0 0.0
    %2718 = vmatpush1.msra.mxu0 0.0
    %2719 = vmatprep.subr.mxu0 0.0
    %2720 = vmatpush1.msra.mxu0 0.0
    %2721 = vmatprep.subr.mxu0 0.0
    %2722 = vmatpush1.msra.mxu0 0.0
    %2723 = vmatprep.subr.mxu0 0.0
    %2724 = vmatpush1.msra.mxu0 0.0
    %2725 = vmatprep.mubr.f32.mxu0 0.0
    %2726 = vmatmul.mubr.f32.gmra.mrb[0].mxu0 %v2519
    %v2727 = vpop.f32.mrb[0].mxu0
    %v2728 = vadd.f32 %v2509, %v2727
    %v2729 = vpop.f32.mrb[0].mxu0
    %2730 = vdwg.mxu0
    %2731 = vmatprep.subr.mxu0 0.0
    %2732 = vmatpush1.msra.mxu0 %v193
    %2733 = vmatprep.subr.mxu0 0.0
    %2734 = vmatpush1.msra.mxu0 %v194
    %2735 = vmatprep.subr.mxu0 0.0
    %2736 = vmatpush1.msra.mxu0 %v195
    %2737 = vmatprep.subr.mxu0 0.0
    %2738 = vmatpush1.msra.mxu0 %v196
    %2739 = vmatprep.subr.mxu0 0.0
    %2740 = vmatpush1.msra.mxu0 0.0
    %2741 = vmatprep.subr.mxu0 0.0
    %2742 = vmatpush1.msra.mxu0 0.0
    %2743 = vmatprep.subr.mxu0 0.0
    %2744 = vmatpush1.msra.mxu0 0.0
    %2745 = vmatprep.subr.mxu0 0.0
    %2746 = vmatpush1.msra.mxu0 0.0
    %2747 = vmatprep.subr.mxu0 0.0
    %2748 = vmatpush1.msra.mxu0 0.0
    %2749 = vmatprep.subr.mxu0 0.0
    %2750 = vmatpush1.msra.mxu0 0.0
    %2751 = vmatprep.subr.mxu0 0.0
    %2752 = vmatpush1.msra.mxu0 0.0
    %2753 = vmatprep.subr.mxu0 0.0
    %2754 = vmatpush1.msra.mxu0 0.0
    %2755 = vmatprep.subr.mxu0 0.0
    %2756 = vmatpush1.msra.mxu0 0.0
    %2757 = vmatprep.subr.mxu0 0.0
    %2758 = vmatpush1.msra.mxu0 0.0
    %2759 = vmatprep.subr.mxu0 0.0
    %2760 = vmatpush1.msra.mxu0 0.0
    %2761 = vmatprep.subr.mxu0 0.0
    %2762 = vmatpush1.msra.mxu0 0.0
    %2763 = vmatprep.subr.mxu0 0.0
    %2764 = vmatpush1.msra.mxu0 0.0
    %2765 = vmatprep.subr.mxu0 0.0
    %2766 = vmatpush1.msra.mxu0 0.0
    %2767 = vmatprep.subr.mxu0 0.0
    %2768 = vmatpush1.msra.mxu0 0.0
    %2769 = vmatprep.subr.mxu0 0.0
    %2770 = vmatpush1.msra.mxu0 0.0
    %2771 = vmatprep.subr.mxu0 0.0
    %2772 = vmatpush1.msra.mxu0 0.0
    %2773 = vmatprep.subr.mxu0 0.0
    %2774 = vmatpush1.msra.mxu0 0.0
    %2775 = vmatprep.subr.mxu0 0.0
    %2776 = vmatpush1.msra.mxu0 0.0
    %2777 = vmatprep.subr.mxu0 0.0
    %2778 = vmatpush1.msra.mxu0 0.0
    %2779 = vmatprep.subr.mxu0 0.0
    %2780 = vmatpush1.msra.mxu0 0.0
    %2781 = vmatprep.subr.mxu0 0.0
    %2782 = vmatpush1.msra.mxu0 0.0
    %2783 = vmatprep.subr.mxu0 0.0
    %2784 = vmatpush1.msra.mxu0 0.0
    %2785 = vmatprep.subr.mxu0 0.0
    %2786 = vmatpush1.msra.mxu0 0.0
    %2787 = vmatprep.subr.mxu0 0.0
    %2788 = vmatpush1.msra.mxu0 0.0
    %2789 = vmatprep.subr.mxu0 0.0
    %2790 = vmatpush1.msra.mxu0 0.0
    %2791 = vmatprep.subr.mxu0 0.0
    %2792 = vmatpush1.msra.mxu0 0.0
    %2793 = vmatprep.subr.mxu0 0.0
    %2794 = vmatpush1.msra.mxu0 0.0
    %2795 = vmatprep.mubr.f32.mxu0 0.0
    %2796 = vmatmul.mubr.f32.gmra.mrb[0].mxu0 %v2519
    %v2797 = vpop.f32.mrb[0].mxu0
    %v2798 = vadd.f32 %v2513, %v2797
    %v2799 = vpop.f32.mrb[0].mxu0
    %2800 = vdwg.mxu0
    %v2805 = vlaneseq
    %v2806 = vshrl.u32 %v2805, 7
    %v2807 = vsub.s32 0, %v2806
    %v2808 = vrot.slane %v217, %v2807
    %v2809 = vlaneseq
    %v2810 = vshrl.u32 %v2809, 7
    %v2811 = vsub.s32 0, %v2810
    %v2812 = vrot.slane %v218, %v2811
    %v2813 = vlaneseq
    %v2814 = vshrl.u32 %v2813, 7
    %v2815 = vsub.s32 0, %v2814
    %v2816 = vrot.slane %v219, %v2815
    %v2817 = vlaneseq
    %v2818 = vshrl.u32 %v2817, 7
    %v2819 = vsub.s32 0, %v2818
    %v2820 = vrot.slane %v220, %v2819
    %2825 = vmatprep.subr.mxu0 0.0
    %2826 = vmatpush1.msra.mxu0 %v201
    %2827 = vmatprep.subr.mxu0 0.0
    %2828 = vmatpush1.msra.mxu0 %v202
    %2829 = vmatprep.subr.mxu0 0.0
    %2830 = vmatpush1.msra.mxu0 %v203
    %2831 = vmatprep.subr.mxu0 0.0
    %2832 = vmatpush1.msra.mxu0 %v204
    %2833 = vmatprep.subr.mxu0 0.0
    %2834 = vmatpush1.msra.mxu0 0.0
    %2835 = vmatprep.subr.mxu0 0.0
    %2836 = vmatpush1.msra.mxu0 0.0
    %2837 = vmatprep.subr.mxu0 0.0
    %2838 = vmatpush1.msra.mxu0 0.0
    %2839 = vmatprep.subr.mxu0 0.0
    %2840 = vmatpush1.msra.mxu0 0.0
    %2841 = vmatprep.subr.mxu0 0.0
    %2842 = vmatpush1.msra.mxu0 0.0
    %2843 = vmatprep.subr.mxu0 0.0
    %2844 = vmatpush1.msra.mxu0 0.0
    %2845 = vmatprep.subr.mxu0 0.0
    %2846 = vmatpush1.msra.mxu0 0.0
    %2847 = vmatprep.subr.mxu0 0.0
    %2848 = vmatpush1.msra.mxu0 0.0
    %2849 = vmatprep.subr.mxu0 0.0
    %2850 = vmatpush1.msra.mxu0 0.0
    %2851 = vmatprep.subr.mxu0 0.0
    %2852 = vmatpush1.msra.mxu0 0.0
    %2853 = vmatprep.subr.mxu0 0.0
    %2854 = vmatpush1.msra.mxu0 0.0
    %2855 = vmatprep.subr.mxu0 0.0
    %2856 = vmatpush1.msra.mxu0 0.0
    %2857 = vmatprep.subr.mxu0 0.0
    %2858 = vmatpush1.msra.mxu0 0.0
    %2859 = vmatprep.subr.mxu0 0.0
    %2860 = vmatpush1.msra.mxu0 0.0
    %2861 = vmatprep.subr.mxu0 0.0
    %2862 = vmatpush1.msra.mxu0 0.0
    %2863 = vmatprep.subr.mxu0 0.0
    %2864 = vmatpush1.msra.mxu0 0.0
    %2865 = vmatprep.subr.mxu0 0.0
    %2866 = vmatpush1.msra.mxu0 0.0
    %2867 = vmatprep.subr.mxu0 0.0
    %2868 = vmatpush1.msra.mxu0 0.0
    %2869 = vmatprep.subr.mxu0 0.0
    %2870 = vmatpush1.msra.mxu0 0.0
    %2871 = vmatprep.subr.mxu0 0.0
    %2872 = vmatpush1.msra.mxu0 0.0
    %2873 = vmatprep.subr.mxu0 0.0
    %2874 = vmatpush1.msra.mxu0 0.0
    %2875 = vmatprep.subr.mxu0 0.0
    %2876 = vmatpush1.msra.mxu0 0.0
    %2877 = vmatprep.subr.mxu0 0.0
    %2878 = vmatpush1.msra.mxu0 0.0
    %2879 = vmatprep.subr.mxu0 0.0
    %2880 = vmatpush1.msra.mxu0 0.0
    %2881 = vmatprep.subr.mxu0 0.0
    %2882 = vmatpush1.msra.mxu0 0.0
    %2883 = vmatprep.subr.mxu0 0.0
    %2884 = vmatpush1.msra.mxu0 0.0
    %2885 = vmatprep.subr.mxu0 0.0
    %2886 = vmatpush1.msra.mxu0 0.0
    %2887 = vmatprep.subr.mxu0 0.0
    %2888 = vmatpush1.msra.mxu0 0.0
    %2889 = vmatprep.mubr.f32.mxu0 0.0
    %2890 = vmatmul.mubr.f32.gmra.mrb[0].mxu0 %v2519
    %v2891 = vpop.f32.mrb[0].mxu0
    %v2892 = vadd.f32 %v2808, %v2891
    %v2893 = vpop.f32.mrb[0].mxu0
    %2894 = vdwg.mxu0
    %2895 = vmatprep.subr.mxu0 0.0
    %2896 = vmatpush1.msra.mxu0 %v205
    %2897 = vmatprep.subr.mxu0 0.0
    %2898 = vmatpush1.msra.mxu0 %v206
    %2899 = vmatprep.subr.mxu0 0.0
    %2900 = vmatpush1.msra.mxu0 %v207
    %2901 = vmatprep.subr.mxu0 0.0
    %2902 = vmatpush1.msra.mxu0 %v208
    %2903 = vmatprep.subr.mxu0 0.0
    %2904 = vmatpush1.msra.mxu0 0.0
    %2905 = vmatprep.subr.mxu0 0.0
    %2906 = vmatpush1.msra.mxu0 0.0
    %2907 = vmatprep.subr.mxu0 0.0
    %2908 = vmatpush1.msra.mxu0 0.0
    %2909 = vmatprep.subr.mxu0 0.0
    %2910 = vmatpush1.msra.mxu0 0.0
    %2911 = vmatprep.subr.mxu0 0.0
    %2912 = vmatpush1.msra.mxu0 0.0
    %2913 = vmatprep.subr.mxu0 0.0
    %2914 = vmatpush1.msra.mxu0 0.0
    %2915 = vmatprep.subr.mxu0 0.0
    %2916 = vmatpush1.msra.mxu0 0.0
    %2917 = vmatprep.subr.mxu0 0.0
    %2918 = vmatpush1.msra.mxu0 0.0
    %2919 = vmatprep.subr.mxu0 0.0
    %2920 = vmatpush1.msra.mxu0 0.0
    %2921 = vmatprep.subr.mxu0 0.0
    %2922 = vmatpush1.msra.mxu0 0.0
    %2923 = vmatprep.subr.mxu0 0.0
    %2924 = vmatpush1.msra.mxu0 0.0
    %2925 = vmatprep.subr.mxu0 0.0
    %2926 = vmatpush1.msra.mxu0 0.0
    %2927 = vmatprep.subr.mxu0 0.0
    %2928 = vmatpush1.msra.mxu0 0.0
    %2929 = vmatprep.subr.mxu0 0.0
    %2930 = vmatpush1.msra.mxu0 0.0
    %2931 = vmatprep.subr.mxu0 0.0
    %2932 = vmatpush1.msra.mxu0 0.0
    %2933 = vmatprep.subr.mxu0 0.0
    %2934 = vmatpush1.msra.mxu0 0.0
    %2935 = vmatprep.subr.mxu0 0.0
    %2936 = vmatpush1.msra.mxu0 0.0
    %2937 = vmatprep.subr.mxu0 0.0
    %2938 = vmatpush1.msra.mxu0 0.0
    %2939 = vmatprep.subr.mxu0 0.0
    %2940 = vmatpush1.msra.mxu0 0.0
    %2941 = vmatprep.subr.mxu0 0.0
    %2942 = vmatpush1.msra.mxu0 0.0
    %2943 = vmatprep.subr.mxu0 0.0
    %2944 = vmatpush1.msra.mxu0 0.0
    %2945 = vmatprep.subr.mxu0 0.0
    %2946 = vmatpush1.msra.mxu0 0.0
    %2947 = vmatprep.subr.mxu0 0.0
    %2948 = vmatpush1.msra.mxu0 0.0
    %2949 = vmatprep.subr.mxu0 0.0
    %2950 = vmatpush1.msra.mxu0 0.0
    %2951 = vmatprep.subr.mxu0 0.0
    %2952 = vmatpush1.msra.mxu0 0.0
    %2953 = vmatprep.subr.mxu0 0.0
    %2954 = vmatpush1.msra.mxu0 0.0
    %2955 = vmatprep.subr.mxu0 0.0
    %2956 = vmatpush1.msra.mxu0 0.0
    %2957 = vmatprep.subr.mxu0 0.0
    %2958 = vmatpush1.msra.mxu0 0.0
    %2959 = vmatprep.mubr.f32.mxu0 0.0
    %2960 = vmatmul.mubr.f32.gmra.mrb[0].mxu0 %v2519
    %v2961 = vpop.f32.mrb[0].mxu0
    %v2962 = vadd.f32 %v2812, %v2961
    %v2963 = vpop.f32.mrb[0].mxu0
    %2964 = vdwg.mxu0
    %2965 = vmatprep.subr.mxu0 0.0
    %2966 = vmatpush1.msra.mxu0 %v209
    %2967 = vmatprep.subr.mxu0 0.0
    %2968 = vmatpush1.msra.mxu0 %v210
    %2969 = vmatprep.subr.mxu0 0.0
    %2970 = vmatpush1.msra.mxu0 %v211
    %2971 = vmatprep.subr.mxu0 0.0
    %2972 = vmatpush1.msra.mxu0 %v212
    %2973 = vmatprep.subr.mxu0 0.0
    %2974 = vmatpush1.msra.mxu0 0.0
    %2975 = vmatprep.subr.mxu0 0.0
    %2976 = vmatpush1.msra.mxu0 0.0
    %2977 = vmatprep.subr.mxu0 0.0
    %2978 = vmatpush1.msra.mxu0 0.0
    %2979 = vmatprep.subr.mxu0 0.0
    %2980 = vmatpush1.msra.mxu0 0.0
    %2981 = vmatprep.subr.mxu0 0.0
    %2982 = vmatpush1.msra.mxu0 0.0
    %2983 = vmatprep.subr.mxu0 0.0
    %2984 = vmatpush1.msra.mxu0 0.0
    %2985 = vmatprep.subr.mxu0 0.0
    %2986 = vmatpush1.msra.mxu0 0.0
    %2987 = vmatprep.subr.mxu0 0.0
    %2988 = vmatpush1.msra.mxu0 0.0
    %2989 = vmatprep.subr.mxu0 0.0
    %2990 = vmatpush1.msra.mxu0 0.0
    %2991 = vmatprep.subr.mxu0 0.0
    %2992 = vmatpush1.msra.mxu0 0.0
    %2993 = vmatprep.subr.mxu0 0.0
    %2994 = vmatpush1.msra.mxu0 0.0
    %2995 = vmatprep.subr.mxu0 0.0
    %2996 = vmatpush1.msra.mxu0 0.0
    %2997 = vmatprep.subr.mxu0 0.0
    %2998 = vmatpush1.msra.mxu0 0.0
    %2999 = vmatprep.subr.mxu0 0.0
    %3000 = vmatpush1.msra.mxu0 0.0
    %3001 = vmatprep.subr.mxu0 0.0
    %3002 = vmatpush1.msra.mxu0 0.0
    %3003 = vmatprep.subr.mxu0 0.0
    %3004 = vmatpush1.msra.mxu0 0.0
    %3005 = vmatprep.subr.mxu0 0.0
    %3006 = vmatpush1.msra.mxu0 0.0
    %3007 = vmatprep.subr.mxu0 0.0
    %3008 = vmatpush1.msra.mxu0 0.0
    %3009 = vmatprep.subr.mxu0 0.0
    %3010 = vmatpush1.msra.mxu0 0.0
    %3011 = vmatprep.subr.mxu0 0.0
    %3012 = vmatpush1.msra.mxu0 0.0
    %3013 = vmatprep.subr.mxu0 0.0
    %3014 = vmatpush1.msra.mxu0 0.0
    %3015 = vmatprep.subr.mxu0 0.0
    %3016 = vmatpush1.msra.mxu0 0.0
    %3017 = vmatprep.subr.mxu0 0.0
    %3018 = vmatpush1.msra.mxu0 0.0
    %3019 = vmatprep.subr.mxu0 0.0
    %3020 = vmatpush1.msra.mxu0 0.0
    %3021 = vmatprep.subr.mxu0 0.0
    %3022 = vmatpush1.msra.mxu0 0.0
    %3023 = vmatprep.subr.mxu0 0.0
    %3024 = vmatpush1.msra.mxu0 0.0
    %3025 = vmatprep.subr.mxu0 0.0
    %3026 = vmatpush1.msra.mxu0 0.0
    %3027 = vmatprep.subr.mxu0 0.0
    %3028 = vmatpush1.msra.mxu0 0.0
    %3029 = vmatprep.mubr.f32.mxu0 0.0
    %3030 = vmatmul.mubr.f32.gmra.mrb[0].mxu0 %v2519
    %v3031 = vpop.f32.mrb[0].mxu0
    %v3032 = vadd.f32 %v2816, %v3031
    %v3033 = vpop.f32.mrb[0].mxu0
    %3034 = vdwg.mxu0
    %3035 = vmatprep.subr.mxu0 0.0
    %3036 = vmatpush1.msra.mxu0 %v213
    %3037 = vmatprep.subr.mxu0 0.0
    %3038 = vmatpush1.msra.mxu0 %v214
    %3039 = vmatprep.subr.mxu0 0.0
    %3040 = vmatpush1.msra.mxu0 %v215
    %3041 = vmatprep.subr.mxu0 0.0
    %3042 = vmatpush1.msra.mxu0 %v216
    %3043 = vmatprep.subr.mxu0 0.0
    %3044 = vmatpush1.msra.mxu0 0.0
    %3045 = vmatprep.subr.mxu0 0.0
    %3046 = vmatpush1.msra.mxu0 0.0
    %3047 = vmatprep.subr.mxu0 0.0
    %3048 = vmatpush1.msra.mxu0 0.0
    %3049 = vmatprep.subr.mxu0 0.0
    %3050 = vmatpush1.msra.mxu0 0.0
    %3051 = vmatprep.subr.mxu0 0.0
    %3052 = vmatpush1.msra.mxu0 0.0
    %3053 = vmatprep.subr.mxu0 0.0
    %3054 = vmatpush1.msra.mxu0 0.0
    %3055 = vmatprep.subr.mxu0 0.0
    %3056 = vmatpush1.msra.mxu0 0.0
    %3057 = vmatprep.subr.mxu0 0.0
    %3058 = vmatpush1.msra.mxu0 0.0
    %3059 = vmatprep.subr.mxu0 0.0
    %3060 = vmatpush1.msra.mxu0 0.0
    %3061 = vmatprep.subr.mxu0 0.0
    %3062 = vmatpush1.msra.mxu0 0.0
    %3063 = vmatprep.subr.mxu0 0.0
    %3064 = vmatpush1.msra.mxu0 0.0
    %3065 = vmatprep.subr.mxu0 0.0
    %3066 = vmatpush1.msra.mxu0 0.0
    %3067 = vmatprep.subr.mxu0 0.0
    %3068 = vmatpush1.msra.mxu0 0.0
    %3069 = vmatprep.subr.mxu0 0.0
    %3070 = vmatpush1.msra.mxu0 0.0
    %3071 = vmatprep.subr.mxu0 0.0
    %3072 = vmatpush1.msra.mxu0 0.0
    %3073 = vmatprep.subr.mxu0 0.0
    %3074 = vmatpush1.msra.mxu0 0.0
    %3075 = vmatprep.subr.mxu0 0.0
    %3076 = vmatpush1.msra.mxu0 0.0
    %3077 = vmatprep.subr.mxu0 0.0
    %3078 = vmatpush1.msra.mxu0 0.0
    %3079 = vmatprep.subr.mxu0 0.0
    %3080 = vmatpush1.msra.mxu0 0.0
    %3081 = vmatprep.subr.mxu0 0.0
    %3082 = vmatpush1.msra.mxu0 0.0
    %3083 = vmatprep.subr.mxu0 0.0
    %3084 = vmatpush1.msra.mxu0 0.0
    %3085 = vmatprep.subr.mxu0 0.0
    %3086 = vmatpush1.msra.mxu0 0.0
    %3087 = vmatprep.subr.mxu0 0.0
    %3088 = vmatpush1.msra.mxu0 0.0
    %3089 = vmatprep.subr.mxu0 0.0
    %3090 = vmatpush1.msra.mxu0 0.0
    %3091 = vmatprep.subr.mxu0 0.0
    %3092 = vmatpush1.msra.mxu0 0.0
    %3093 = vmatprep.subr.mxu0 0.0
    %3094 = vmatpush1.msra.mxu0 0.0
    %3095 = vmatprep.subr.mxu0 0.0
    %3096 = vmatpush1.msra.mxu0 0.0
    %3097 = vmatprep.subr.mxu0 0.0
    %3098 = vmatpush1.msra.mxu0 0.0
    %3099 = vmatprep.mubr.f32.mxu0 0.0
    %3100 = vmatmul.mubr.f32.gmra.mrb[0].mxu0 %v2519
    %v3101 = vpop.f32.mrb[0].mxu0
    %v3102 = vadd.f32 %v2820, %v3101
    %v3103 = vpop.f32.mrb[0].mxu0
    %3104 = vdwg.mxu0
    %v3106 = vsel %vm1202, %v2281, 0
    %v3109 = vsel %vm1202, %v2588, 0
    %3111 = vmatprep.subr.mxu0 0.0
    %3112 = vmatpush1.xpose.msra.mxu0 %v3109
    %3113 = vmatprep.subr.mxu0 0.0
    %3114 = vmatpush1.xpose.msra.mxu0 0.0
    %3115 = vmatprep.subr.mxu0 0.0
    %3116 = vmatpush1.xpose.msra.mxu0 0.0
    %3117 = vmatprep.subr.mxu0 0.0
    %3118 = vmatpush1.xpose.msra.mxu0 0.0
    %3119 = vmatprep.subr.mxu0 0.0
    %3120 = vmatpush1.xpose.msra.mxu0 0.0
    %3121 = vmatprep.subr.mxu0 0.0
    %3122 = vmatpush1.xpose.msra.mxu0 0.0
    %3123 = vmatprep.subr.mxu0 0.0
    %3124 = vmatpush1.xpose.msra.mxu0 0.0
    %3125 = vmatprep.subr.mxu0 0.0
    %3126 = vmatpush1.xpose.msra.mxu0 0.0
    %3127 = vmatprep.subr.mxu0 0.0
    %3128 = vmatpush1.xpose.msra.mxu0 0.0
    %3129 = vmatprep.subr.mxu0 0.0
    %3130 = vmatpush1.xpose.msra.mxu0 0.0
    %3131 = vmatprep.subr.mxu0 0.0
    %3132 = vmatpush1.xpose.msra.mxu0 0.0
    %3133 = vmatprep.subr.mxu0 0.0
    %3134 = vmatpush1.xpose.msra.mxu0 0.0
    %3135 = vmatprep.subr.mxu0 0.0
    %3136 = vmatpush1.xpose.msra.mxu0 0.0
    %3137 = vmatprep.subr.mxu0 0.0
    %3138 = vmatpush1.xpose.msra.mxu0 0.0
    %3139 = vmatprep.subr.mxu0 0.0
    %3140 = vmatpush1.xpose.msra.mxu0 0.0
    %3141 = vmatprep.subr.mxu0 0.0
    %3142 = vmatpush1.xpose.msra.mxu0 0.0
    %3143 = vmatprep.subr.mxu0 0.0
    %3144 = vmatpush1.xpose.msra.mxu0 0.0
    %3145 = vmatprep.subr.mxu0 0.0
    %3146 = vmatpush1.xpose.msra.mxu0 0.0
    %3147 = vmatprep.subr.mxu0 0.0
    %3148 = vmatpush1.xpose.msra.mxu0 0.0
    %3149 = vmatprep.subr.mxu0 0.0
    %3150 = vmatpush1.xpose.msra.mxu0 0.0
    %3151 = vmatprep.subr.mxu0 0.0
    %3152 = vmatpush1.xpose.msra.mxu0 0.0
    %3153 = vmatprep.subr.mxu0 0.0
    %3154 = vmatpush1.xpose.msra.mxu0 0.0
    %3155 = vmatprep.subr.mxu0 0.0
    %3156 = vmatpush1.xpose.msra.mxu0 0.0
    %3157 = vmatprep.subr.mxu0 0.0
    %3158 = vmatpush1.xpose.msra.mxu0 0.0
    %3159 = vmatprep.subr.mxu0 0.0
    %3160 = vmatpush1.xpose.msra.mxu0 0.0
    %3161 = vmatprep.subr.mxu0 0.0
    %3162 = vmatpush1.xpose.msra.mxu0 0.0
    %3163 = vmatprep.subr.mxu0 0.0
    %3164 = vmatpush1.xpose.msra.mxu0 0.0
    %3165 = vmatprep.subr.mxu0 0.0
    %3166 = vmatpush1.xpose.msra.mxu0 0.0
    %3167 = vmatprep.subr.mxu0 0.0
    %3168 = vmatpush1.xpose.msra.mxu0 0.0
    %3169 = vmatprep.subr.mxu0 0.0
    %3170 = vmatpush1.xpose.msra.mxu0 0.0
    %3171 = vmatprep.subr.mxu0 0.0
    %3172 = vmatpush1.xpose.msra.mxu0 0.0
    %3173 = vmatprep.subr.mxu0 0.0
    %3174 = vmatpush1.xpose.msra.mxu0 0.0
    %3175 = vmatprep.mubr.f32.mxu0 0.0
    %3176 = vmatmul.mubr.f32.gmra.mrb[0].mxu0 %v3106
    %v3177 = vpop.f32.mrb[0].mxu0
    %v3178 = vadd.f32 0.0, %v3177
    %v3179 = vpop.f32.mrb[0].mxu0
    %3180 = vdwg.mxu0
    %v3182 = vsel %vm1202, %v2351, 0
    %v3185 = vsel %vm1202, %v2658, 0
    %3187 = vmatprep.subr.mxu0 0.0
    %3188 = vmatpush1.xpose.msra.mxu0 %v3185
    %3189 = vmatprep.subr.mxu0 0.0
    %3190 = vmatpush1.xpose.msra.mxu0 0.0
    %3191 = vmatprep.subr.mxu0 0.0
    %3192 = vmatpush1.xpose.msra.mxu0 0.0
    %3193 = vmatprep.subr.mxu0 0.0
    %3194 = vmatpush1.xpose.msra.mxu0 0.0
    %3195 = vmatprep.subr.mxu0 0.0
    %3196 = vmatpush1.xpose.msra.mxu0 0.0
    %3197 = vmatprep.subr.mxu0 0.0
    %3198 = vmatpush1.xpose.msra.mxu0 0.0
    %3199 = vmatprep.subr.mxu0 0.0
    %3200 = vmatpush1.xpose.msra.mxu0 0.0
    %3201 = vmatprep.subr.mxu0 0.0
    %3202 = vmatpush1.xpose.msra.mxu0 0.0
    %3203 = vmatprep.subr.mxu0 0.0
    %3204 = vmatpush1.xpose.msra.mxu0 0.0
    %3205 = vmatprep.subr.mxu0 0.0
    %3206 = vmatpush1.xpose.msra.mxu0 0.0
    %3207 = vmatprep.subr.mxu0 0.0
    %3208 = vmatpush1.xpose.msra.mxu0 0.0
    %3209 = vmatprep.subr.mxu0 0.0
    %3210 = vmatpush1.xpose.msra.mxu0 0.0
    %3211 = vmatprep.subr.mxu0 0.0
    %3212 = vmatpush1.xpose.msra.mxu0 0.0
    %3213 = vmatprep.subr.mxu0 0.0
    %3214 = vmatpush1.xpose.msra.mxu0 0.0
    %3215 = vmatprep.subr.mxu0 0.0
    %3216 = vmatpush1.xpose.msra.mxu0 0.0
    %3217 = vmatprep.subr.mxu0 0.0
    %3218 = vmatpush1.xpose.msra.mxu0 0.0
    %3219 = vmatprep.subr.mxu0 0.0
    %3220 = vmatpush1.xpose.msra.mxu0 0.0
    %3221 = vmatprep.subr.mxu0 0.0
    %3222 = vmatpush1.xpose.msra.mxu0 0.0
    %3223 = vmatprep.subr.mxu0 0.0
    %3224 = vmatpush1.xpose.msra.mxu0 0.0
    %3225 = vmatprep.subr.mxu0 0.0
    %3226 = vmatpush1.xpose.msra.mxu0 0.0
    %3227 = vmatprep.subr.mxu0 0.0
    %3228 = vmatpush1.xpose.msra.mxu0 0.0
    %3229 = vmatprep.subr.mxu0 0.0
    %3230 = vmatpush1.xpose.msra.mxu0 0.0
    %3231 = vmatprep.subr.mxu0 0.0
    %3232 = vmatpush1.xpose.msra.mxu0 0.0
    %3233 = vmatprep.subr.mxu0 0.0
    %3234 = vmatpush1.xpose.msra.mxu0 0.0
    %3235 = vmatprep.subr.mxu0 0.0
    %3236 = vmatpush1.xpose.msra.mxu0 0.0
    %3237 = vmatprep.subr.mxu0 0.0
    %3238 = vmatpush1.xpose.msra.mxu0 0.0
    %3239 = vmatprep.subr.mxu0 0.0
    %3240 = vmatpush1.xpose.msra.mxu0 0.0
    %3241 = vmatprep.subr.mxu0 0.0
    %3242 = vmatpush1.xpose.msra.mxu0 0.0
    %3243 = vmatprep.subr.mxu0 0.0
    %3244 = vmatpush1.xpose.msra.mxu0 0.0
    %3245 = vmatprep.subr.mxu0 0.0
    %3246 = vmatpush1.xpose.msra.mxu0 0.0
    %3247 = vmatprep.subr.mxu0 0.0
    %3248 = vmatpush1.xpose.msra.mxu0 0.0
    %3249 = vmatprep.subr.mxu0 0.0
    %3250 = vmatpush1.xpose.msra.mxu0 0.0
    %3251 = vmatprep.mubr.f32.mxu0 0.0
    %3252 = vmatmul.mubr.f32.gmra.mrb[0].mxu0 %v3182
    %v3253 = vpop.f32.mrb[0].mxu0
    %v3254 = vadd.f32 0.0, %v3253
    %v3255 = vpop.f32.mrb[0].mxu0
    %3256 = vdwg.mxu0
    %v3258 = vsel %vm1202, %v2421, 0
    %v3261 = vsel %vm1202, %v2728, 0
    %3263 = vmatprep.subr.mxu0 0.0
    %3264 = vmatpush1.xpose.msra.mxu0 %v3261
    %3265 = vmatprep.subr.mxu0 0.0
    %3266 = vmatpush1.xpose.msra.mxu0 0.0
    %3267 = vmatprep.subr.mxu0 0.0
    %3268 = vmatpush1.xpose.msra.mxu0 0.0
    %3269 = vmatprep.subr.mxu0 0.0
    %3270 = vmatpush1.xpose.msra.mxu0 0.0
    %3271 = vmatprep.subr.mxu0 0.0
    %3272 = vmatpush1.xpose.msra.mxu0 0.0
    %3273 = vmatprep.subr.mxu0 0.0
    %3274 = vmatpush1.xpose.msra.mxu0 0.0
    %3275 = vmatprep.subr.mxu0 0.0
    %3276 = vmatpush1.xpose.msra.mxu0 0.0
    %3277 = vmatprep.subr.mxu0 0.0
    %3278 = vmatpush1.xpose.msra.mxu0 0.0
    %3279 = vmatprep.subr.mxu0 0.0
    %3280 = vmatpush1.xpose.msra.mxu0 0.0
    %3281 = vmatprep.subr.mxu0 0.0
    %3282 = vmatpush1.xpose.msra.mxu0 0.0
    %3283 = vmatprep.subr.mxu0 0.0
    %3284 = vmatpush1.xpose.msra.mxu0 0.0
    %3285 = vmatprep.subr.mxu0 0.0
    %3286 = vmatpush1.xpose.msra.mxu0 0.0
    %3287 = vmatprep.subr.mxu0 0.0
    %3288 = vmatpush1.xpose.msra.mxu0 0.0
    %3289 = vmatprep.subr.mxu0 0.0
    %3290 = vmatpush1.xpose.msra.mxu0 0.0
    %3291 = vmatprep.subr.mxu0 0.0
    %3292 = vmatpush1.xpose.msra.mxu0 0.0
    %3293 = vmatprep.subr.mxu0 0.0
    %3294 = vmatpush1.xpose.msra.mxu0 0.0
    %3295 = vmatprep.subr.mxu0 0.0
    %3296 = vmatpush1.xpose.msra.mxu0 0.0
    %3297 = vmatprep.subr.mxu0 0.0
    %3298 = vmatpush1.xpose.msra.mxu0 0.0
    %3299 = vmatprep.subr.mxu0 0.0
    %3300 = vmatpush1.xpose.msra.mxu0 0.0
    %3301 = vmatprep.subr.mxu0 0.0
    %3302 = vmatpush1.xpose.msra.mxu0 0.0
    %3303 = vmatprep.subr.mxu0 0.0
    %3304 = vmatpush1.xpose.msra.mxu0 0.0
    %3305 = vmatprep.subr.mxu0 0.0
    %3306 = vmatpush1.xpose.msra.mxu0 0.0
    %3307 = vmatprep.subr.mxu0 0.0
    %3308 = vmatpush1.xpose.msra.mxu0 0.0
    %3309 = vmatprep.subr.mxu0 0.0
    %3310 = vmatpush1.xpose.msra.mxu0 0.0
    %3311 = vmatprep.subr.mxu0 0.0
    %3312 = vmatpush1.xpose.msra.mxu0 0.0
    %3313 = vmatprep.subr.mxu0 0.0
    %3314 = vmatpush1.xpose.msra.mxu0 0.0
    %3315 = vmatprep.subr.mxu0 0.0
    %3316 = vmatpush1.xpose.msra.mxu0 0.0
    %3317 = vmatprep.subr.mxu0 0.0
    %3318 = vmatpush1.xpose.msra.mxu0 0.0
    %3319 = vmatprep.subr.mxu0 0.0
    %3320 = vmatpush1.xpose.msra.mxu0 0.0
    %3321 = vmatprep.subr.mxu0 0.0
    %3322 = vmatpush1.xpose.msra.mxu0 0.0
    %3323 = vmatprep.subr.mxu0 0.0
    %3324 = vmatpush1.xpose.msra.mxu0 0.0
    %3325 = vmatprep.subr.mxu0 0.0
    %3326 = vmatpush1.xpose.msra.mxu0 0.0
    %3327 = vmatprep.mubr.f32.mxu0 0.0
    %3328 = vmatmul.mubr.f32.gmra.mrb[0].mxu0 %v3258
    %v3329 = vpop.f32.mrb[0].mxu0
    %v3330 = vadd.f32 0.0, %v3329
    %v3331 = vpop.f32.mrb[0].mxu0
    %3332 = vdwg.mxu0
    %v3334 = vsel %vm1202, %v2491, 0
    %v3337 = vsel %vm1202, %v2798, 0
    %3339 = vmatprep.subr.mxu0 0.0
    %3340 = vmatpush1.xpose.msra.mxu0 %v3337
    %3341 = vmatprep.subr.mxu0 0.0
    %3342 = vmatpush1.xpose.msra.mxu0 0.0
    %3343 = vmatprep.subr.mxu0 0.0
    %3344 = vmatpush1.xpose.msra.mxu0 0.0
    %3345 = vmatprep.subr.mxu0 0.0
    %3346 = vmatpush1.xpose.msra.mxu0 0.0
    %3347 = vmatprep.subr.mxu0 0.0
    %3348 = vmatpush1.xpose.msra.mxu0 0.0
    %3349 = vmatprep.subr.mxu0 0.0
    %3350 = vmatpush1.xpose.msra.mxu0 0.0
    %3351 = vmatprep.subr.mxu0 0.0
    %3352 = vmatpush1.xpose.msra.mxu0 0.0
    %3353 = vmatprep.subr.mxu0 0.0
    %3354 = vmatpush1.xpose.msra.mxu0 0.0
    %3355 = vmatprep.subr.mxu0 0.0
    %3356 = vmatpush1.xpose.msra.mxu0 0.0
    %3357 = vmatprep.subr.mxu0 0.0
    %3358 = vmatpush1.xpose.msra.mxu0 0.0
    %3359 = vmatprep.subr.mxu0 0.0
    %3360 = vmatpush1.xpose.msra.mxu0 0.0
    %3361 = vmatprep.subr.mxu0 0.0
    %3362 = vmatpush1.xpose.msra.mxu0 0.0
    %3363 = vmatprep.subr.mxu0 0.0
    %3364 = vmatpush1.xpose.msra.mxu0 0.0
    %3365 = vmatprep.subr.mxu0 0.0
    %3366 = vmatpush1.xpose.msra.mxu0 0.0
    %3367 = vmatprep.subr.mxu0 0.0
    %3368 = vmatpush1.xpose.msra.mxu0 0.0
    %3369 = vmatprep.subr.mxu0 0.0
    %3370 = vmatpush1.xpose.msra.mxu0 0.0
    %3371 = vmatprep.subr.mxu0 0.0
    %3372 = vmatpush1.xpose.msra.mxu0 0.0
    %3373 = vmatprep.subr.mxu0 0.0
    %3374 = vmatpush1.xpose.msra.mxu0 0.0
    %3375 = vmatprep.subr.mxu0 0.0
    %3376 = vmatpush1.xpose.msra.mxu0 0.0
    %3377 = vmatprep.subr.mxu0 0.0
    %3378 = vmatpush1.xpose.msra.mxu0 0.0
    %3379 = vmatprep.subr.mxu0 0.0
    %3380 = vmatpush1.xpose.msra.mxu0 0.0
    %3381 = vmatprep.subr.mxu0 0.0
    %3382 = vmatpush1.xpose.msra.mxu0 0.0
    %3383 = vmatprep.subr.mxu0 0.0
    %3384 = vmatpush1.xpose.msra.mxu0 0.0
    %3385 = vmatprep.subr.mxu0 0.0
    %3386 = vmatpush1.xpose.msra.mxu0 0.0
    %3387 = vmatprep.subr.mxu0 0.0
    %3388 = vmatpush1.xpose.msra.mxu0 0.0
    %3389 = vmatprep.subr.mxu0 0.0
    %3390 = vmatpush1.xpose.msra.mxu0 0.0
    %3391 = vmatprep.subr.mxu0 0.0
    %3392 = vmatpush1.xpose.msra.mxu0 0.0
    %3393 = vmatprep.subr.mxu0 0.0
    %3394 = vmatpush1.xpose.msra.mxu0 0.0
    %3395 = vmatprep.subr.mxu0 0.0
    %3396 = vmatpush1.xpose.msra.mxu0 0.0
    %3397 = vmatprep.subr.mxu0 0.0
    %3398 = vmatpush1.xpose.msra.mxu0 0.0
    %3399 = vmatprep.subr.mxu0 0.0
    %3400 = vmatpush1.xpose.msra.mxu0 0.0
    %3401 = vmatprep.subr.mxu0 0.0
    %3402 = vmatpush1.xpose.msra.mxu0 0.0
    %3403 = vmatprep.mubr.f32.mxu0 0.0
    %3404 = vmatmul.mubr.f32.gmra.mrb[0].mxu0 %v3334
    %v3405 = vpop.f32.mrb[0].mxu0
    %v3406 = vadd.f32 0.0, %v3405
    %v3407 = vpop.f32.mrb[0].mxu0
    %3408 = vdwg.mxu0
    %v3409 = vmul.f32 %v3178, 0.35355338
    %v3410 = vmul.f32 %v3254, 0.35355338
    %v3411 = vmul.f32 %v3330, 0.35355338
    %v3412 = vmul.f32 %v3406, 0.35355338
    %v3413 = vsel %vm1202, %v3409, -inf
    %3414 = vmax.xlane.f32.xlu0 %v3413
    %v3415 = vpop.xlane.xlu0 %3414
    %v3416 = vsel %vm1202, %v3410, -inf
    %3417 = vmax.xlane.f32.xlu0 %v3416
    %v3418 = vpop.xlane.xlu0 %3417
    %v3419 = vsel %vm1202, %v3411, -inf
    %3420 = vmax.xlane.f32.xlu0 %v3419
    %v3421 = vpop.xlane.xlu0 %3420
    %v3422 = vsel %vm1202, %v3412, -inf
    %3423 = vmax.xlane.f32.xlu0 %v3422
    %v3424 = vpop.xlane.xlu0 %3423
    %v3425 = vsub.f32 %v3409, %v3415
    %v3426 = vsub.f32 %v3410, %v3418
    %v3427 = vsub.f32 %v3411, %v3421
    %v3428 = vsub.f32 %v3412, %v3424
    %v3429 = vmul.f32 %v3425, 1.442695
    %v3430 = vpow.pop %v3429
    %v3431 = vmul.f32 %v3426, 1.442695
    %v3432 = vpow.pop %v3431
    %v3433 = vmul.f32 %v3427, 1.442695
    %v3434 = vpow.pop %v3433
    %v3435 = vmul.f32 %v3428, 1.442695
    %v3436 = vpow.pop %v3435
    %v3437 = vsel %vm1202, %v3430, 0.0
    %3438 = vadd.xlane.f32.xlu0 %v3437
    %v3439 = vpop.xlane.xlu0 %3438
    %v3440 = vsel %vm1202, %v3432, 0.0
    %3441 = vadd.xlane.f32.xlu0 %v3440
    %v3442 = vpop.xlane.xlu0 %3441
    %v3443 = vsel %vm1202, %v3434, 0.0
    %3444 = vadd.xlane.f32.xlu0 %v3443
    %v3445 = vpop.xlane.xlu0 %3444
    %v3446 = vsel %vm1202, %v3436, 0.0
    %3447 = vadd.xlane.f32.xlu0 %v3446
    %v3448 = vpop.xlane.xlu0 %3447
    %v3449 = vrcp.pop %v3439
    %v3450 = vrcp.pop %v3442
    %v3451 = vrcp.pop %v3445
    %v3452 = vrcp.pop %v3448
    %v3453 = vmul.f32 %v3430, %v3449
    %v3454 = vmul.f32 %v3432, %v3450
    %v3455 = vmul.f32 %v3434, %v3451
    %v3456 = vmul.f32 %v3436, %v3452
    %v3458 = vsel %vm1202, %v3453, 0
    %3460 = vmatprep.subr.mxu0 0.0
    %3461 = vmatpush1.msra.mxu0 %v2892
    %3462 = vmatprep.subr.mxu0 0.0
    %3463 = vmatpush1.msra.mxu0 0.0
    %3464 = vmatprep.subr.mxu0 0.0
    %3465 = vmatpush1.msra.mxu0 0.0
    %3466 = vmatprep.subr.mxu0 0.0
    %3467 = vmatpush1.msra.mxu0 0.0
    %3468 = vmatprep.subr.mxu0 0.0
    %3469 = vmatpush1.msra.mxu0 0.0
    %3470 = vmatprep.subr.mxu0 0.0
    %3471 = vmatpush1.msra.mxu0 0.0
    %3472 = vmatprep.subr.mxu0 0.0
    %3473 = vmatpush1.msra.mxu0 0.0
    %3474 = vmatprep.subr.mxu0 0.0
    %3475 = vmatpush1.msra.mxu0 0.0
    %3476 = vmatprep.subr.mxu0 0.0
    %3477 = vmatpush1.msra.mxu0 0.0
    %3478 = vmatprep.subr.mxu0 0.0
    %3479 = vmatpush1.msra.mxu0 0.0
    %3480 = vmatprep.subr.mxu0 0.0
    %3481 = vmatpush1.msra.mxu0 0.0
    %3482 = vmatprep.subr.mxu0 0.0
    %3483 = vmatpush1.msra.mxu0 0.0
    %3484 = vmatprep.subr.mxu0 0.0
    %3485 = vmatpush1.msra.mxu0 0.0
    %3486 = vmatprep.subr.mxu0 0.0
    %3487 = vmatpush1.msra.mxu0 0.0
    %3488 = vmatprep.subr.mxu0 0.0
    %3489 = vmatpush1.msra.mxu0 0.0
    %3490 = vmatprep.subr.mxu0 0.0
    %3491 = vmatpush1.msra.mxu0 0.0
    %3492 = vmatprep.subr.mxu0 0.0
    %3493 = vmatpush1.msra.mxu0 0.0
    %3494 = vmatprep.subr.mxu0 0.0
    %3495 = vmatpush1.msra.mxu0 0.0
    %3496 = vmatprep.subr.mxu0 0.0
    %3497 = vmatpush1.msra.mxu0 0.0
    %3498 = vmatprep.subr.mxu0 0.0
    %3499 = vmatpush1.msra.mxu0 0.0
    %3500 = vmatprep.subr.mxu0 0.0
    %3501 = vmatpush1.msra.mxu0 0.0
    %3502 = vmatprep.subr.mxu0 0.0
    %3503 = vmatpush1.msra.mxu0 0.0
    %3504 = vmatprep.subr.mxu0 0.0
    %3505 = vmatpush1.msra.mxu0 0.0
    %3506 = vmatprep.subr.mxu0 0.0
    %3507 = vmatpush1.msra.mxu0 0.0
    %3508 = vmatprep.subr.mxu0 0.0
    %3509 = vmatpush1.msra.mxu0 0.0
    %3510 = vmatprep.subr.mxu0 0.0
    %3511 = vmatpush1.msra.mxu0 0.0
    %3512 = vmatprep.subr.mxu0 0.0
    %3513 = vmatpush1.msra.mxu0 0.0
    %3514 = vmatprep.subr.mxu0 0.0
    %3515 = vmatpush1.msra.mxu0 0.0
    %3516 = vmatprep.subr.mxu0 0.0
    %3517 = vmatpush1.msra.mxu0 0.0
    %3518 = vmatprep.subr.mxu0 0.0
    %3519 = vmatpush1.msra.mxu0 0.0
    %3520 = vmatprep.subr.mxu0 0.0
    %3521 = vmatpush1.msra.mxu0 0.0
    %3522 = vmatprep.subr.mxu0 0.0
    %3523 = vmatpush1.msra.mxu0 0.0
    %3524 = vmatprep.mubr.f32.mxu0 0.0
    %3525 = vmatmul.mubr.f32.gmra.mrb[0].mxu0 %v3458
    %v3526 = vpop.f32.mrb[0].mxu0
    %v3527 = vadd.f32 0.0, %v3526
    %v3528 = vpop.f32.mrb[0].mxu0
    %3529 = vdwg.mxu0
    %v3531 = vsel %vm1202, %v3454, 0
    %3533 = vmatprep.subr.mxu0 0.0
    %3534 = vmatpush1.msra.mxu0 %v2962
    %3535 = vmatprep.subr.mxu0 0.0
    %3536 = vmatpush1.msra.mxu0 0.0
    %3537 = vmatprep.subr.mxu0 0.0
    %3538 = vmatpush1.msra.mxu0 0.0
    %3539 = vmatprep.subr.mxu0 0.0
    %3540 = vmatpush1.msra.mxu0 0.0
    %3541 = vmatprep.subr.mxu0 0.0
    %3542 = vmatpush1.msra.mxu0 0.0
    %3543 = vmatprep.subr.mxu0 0.0
    %3544 = vmatpush1.msra.mxu0 0.0
    %3545 = vmatprep.subr.mxu0 0.0
    %3546 = vmatpush1.msra.mxu0 0.0
    %3547 = vmatprep.subr.mxu0 0.0
    %3548 = vmatpush1.msra.mxu0 0.0
    %3549 = vmatprep.subr.mxu0 0.0
    %3550 = vmatpush1.msra.mxu0 0.0
    %3551 = vmatprep.subr.mxu0 0.0
    %3552 = vmatpush1.msra.mxu0 0.0
    %3553 = vmatprep.subr.mxu0 0.0
    %3554 = vmatpush1.msra.mxu0 0.0
    %3555 = vmatprep.subr.mxu0 0.0
    %3556 = vmatpush1.msra.mxu0 0.0
    %3557 = vmatprep.subr.mxu0 0.0
    %3558 = vmatpush1.msra.mxu0 0.0
    %3559 = vmatprep.subr.mxu0 0.0
    %3560 = vmatpush1.msra.mxu0 0.0
    %3561 = vmatprep.subr.mxu0 0.0
    %3562 = vmatpush1.msra.mxu0 0.0
    %3563 = vmatprep.subr.mxu0 0.0
    %3564 = vmatpush1.msra.mxu0 0.0
    %3565 = vmatprep.subr.mxu0 0.0
    %3566 = vmatpush1.msra.mxu0 0.0
    %3567 = vmatprep.subr.mxu0 0.0
    %3568 = vmatpush1.msra.mxu0 0.0
    %3569 = vmatprep.subr.mxu0 0.0
    %3570 = vmatpush1.msra.mxu0 0.0
    %3571 = vmatprep.subr.mxu0 0.0
    %3572 = vmatpush1.msra.mxu0 0.0
    %3573 = vmatprep.subr.mxu0 0.0
    %3574 = vmatpush1.msra.mxu0 0.0
    %3575 = vmatprep.subr.mxu0 0.0
    %3576 = vmatpush1.msra.mxu0 0.0
    %3577 = vmatprep.subr.mxu0 0.0
    %3578 = vmatpush1.msra.mxu0 0.0
    %3579 = vmatprep.subr.mxu0 0.0
    %3580 = vmatpush1.msra.mxu0 0.0
    %3581 = vmatprep.subr.mxu0 0.0
    %3582 = vmatpush1.msra.mxu0 0.0
    %3583 = vmatprep.subr.mxu0 0.0
    %3584 = vmatpush1.msra.mxu0 0.0
    %3585 = vmatprep.subr.mxu0 0.0
    %3586 = vmatpush1.msra.mxu0 0.0
    %3587 = vmatprep.subr.mxu0 0.0
    %3588 = vmatpush1.msra.mxu0 0.0
    %3589 = vmatprep.subr.mxu0 0.0
    %3590 = vmatpush1.msra.mxu0 0.0
    %3591 = vmatprep.subr.mxu0 0.0
    %3592 = vmatpush1.msra.mxu0 0.0
    %3593 = vmatprep.subr.mxu0 0.0
    %3594 = vmatpush1.msra.mxu0 0.0
    %3595 = vmatprep.subr.mxu0 0.0
    %3596 = vmatpush1.msra.mxu0 0.0
    %3597 = vmatprep.mubr.f32.mxu0 0.0
    %3598 = vmatmul.mubr.f32.gmra.mrb[0].mxu0 %v3531
    %v3599 = vpop.f32.mrb[0].mxu0
    %v3600 = vadd.f32 0.0, %v3599
    %v3601 = vpop.f32.mrb[0].mxu0
    %3602 = vdwg.mxu0
    %v3604 = vsel %vm1202, %v3455, 0
    %3606 = vmatprep.subr.mxu0 0.0
    %3607 = vmatpush1.msra.mxu0 %v3032
    %3608 = vmatprep.subr.mxu0 0.0
    %3609 = vmatpush1.msra.mxu0 0.0
    %3610 = vmatprep.subr.mxu0 0.0
    %3611 = vmatpush1.msra.mxu0 0.0
    %3612 = vmatprep.subr.mxu0 0.0
    %3613 = vmatpush1.msra.mxu0 0.0
    %3614 = vmatprep.subr.mxu0 0.0
    %3615 = vmatpush1.msra.mxu0 0.0
    %3616 = vmatprep.subr.mxu0 0.0
    %3617 = vmatpush1.msra.mxu0 0.0
    %3618 = vmatprep.subr.mxu0 0.0
    %3619 = vmatpush1.msra.mxu0 0.0
    %3620 = vmatprep.subr.mxu0 0.0
    %3621 = vmatpush1.msra.mxu0 0.0
    %3622 = vmatprep.subr.mxu0 0.0
    %3623 = vmatpush1.msra.mxu0 0.0
    %3624 = vmatprep.subr.mxu0 0.0
    %3625 = vmatpush1.msra.mxu0 0.0
    %3626 = vmatprep.subr.mxu0 0.0
    %3627 = vmatpush1.msra.mxu0 0.0
    %3628 = vmatprep.subr.mxu0 0.0
    %3629 = vmatpush1.msra.mxu0 0.0
    %3630 = vmatprep.subr.mxu0 0.0
    %3631 = vmatpush1.msra.mxu0 0.0
    %3632 = vmatprep.subr.mxu0 0.0
    %3633 = vmatpush1.msra.mxu0 0.0
    %3634 = vmatprep.subr.mxu0 0.0
    %3635 = vmatpush1.msra.mxu0 0.0
    %3636 = vmatprep.subr.mxu0 0.0
    %3637 = vmatpush1.msra.mxu0 0.0
    %3638 = vmatprep.subr.mxu0 0.0
    %3639 = vmatpush1.msra.mxu0 0.0
    %3640 = vmatprep.subr.mxu0 0.0
    %3641 = vmatpush1.msra.mxu0 0.0
    %3642 = vmatprep.subr.mxu0 0.0
    %3643 = vmatpush1.msra.mxu0 0.0
    %3644 = vmatprep.subr.mxu0 0.0
    %3645 = vmatpush1.msra.mxu0 0.0
    %3646 = vmatprep.subr.mxu0 0.0
    %3647 = vmatpush1.msra.mxu0 0.0
    %3648 = vmatprep.subr.mxu0 0.0
    %3649 = vmatpush1.msra.mxu0 0.0
    %3650 = vmatprep.subr.mxu0 0.0
    %3651 = vmatpush1.msra.mxu0 0.0
    %3652 = vmatprep.subr.mxu0 0.0
    %3653 = vmatpush1.msra.mxu0 0.0
    %3654 = vmatprep.subr.mxu0 0.0
    %3655 = vmatpush1.msra.mxu0 0.0
    %3656 = vmatprep.subr.mxu0 0.0
    %3657 = vmatpush1.msra.mxu0 0.0
    %3658 = vmatprep.subr.mxu0 0.0
    %3659 = vmatpush1.msra.mxu0 0.0
    %3660 = vmatprep.subr.mxu0 0.0
    %3661 = vmatpush1.msra.mxu0 0.0
    %3662 = vmatprep.subr.mxu0 0.0
    %3663 = vmatpush1.msra.mxu0 0.0
    %3664 = vmatprep.subr.mxu0 0.0
    %3665 = vmatpush1.msra.mxu0 0.0
    %3666 = vmatprep.subr.mxu0 0.0
    %3667 = vmatpush1.msra.mxu0 0.0
    %3668 = vmatprep.subr.mxu0 0.0
    %3669 = vmatpush1.msra.mxu0 0.0
    %3670 = vmatprep.mubr.f32.mxu0 0.0
    %3671 = vmatmul.mubr.f32.gmra.mrb[0].mxu0 %v3604
    %v3672 = vpop.f32.mrb[0].mxu0
    %v3673 = vadd.f32 0.0, %v3672
    %v3674 = vpop.f32.mrb[0].mxu0
    %3675 = vdwg.mxu0
    %v3677 = vsel %vm1202, %v3456, 0
    %3679 = vmatprep.subr.mxu0 0.0
    %3680 = vmatpush1.msra.mxu0 %v3102
    %3681 = vmatprep.subr.mxu0 0.0
    %3682 = vmatpush1.msra.mxu0 0.0
    %3683 = vmatprep.subr.mxu0 0.0
    %3684 = vmatpush1.msra.mxu0 0.0
    %3685 = vmatprep.subr.mxu0 0.0
    %3686 = vmatpush1.msra.mxu0 0.0
    %3687 = vmatprep.subr.mxu0 0.0
    %3688 = vmatpush1.msra.mxu0 0.0
    %3689 = vmatprep.subr.mxu0 0.0
    %3690 = vmatpush1.msra.mxu0 0.0
    %3691 = vmatprep.subr.mxu0 0.0
    %3692 = vmatpush1.msra.mxu0 0.0
    %3693 = vmatprep.subr.mxu0 0.0
    %3694 = vmatpush1.msra.mxu0 0.0
    %3695 = vmatprep.subr.mxu0 0.0
    %3696 = vmatpush1.msra.mxu0 0.0
    %3697 = vmatprep.subr.mxu0 0.0
    %3698 = vmatpush1.msra.mxu0 0.0
    %3699 = vmatprep.subr.mxu0 0.0
    %3700 = vmatpush1.msra.mxu0 0.0
    %3701 = vmatprep.subr.mxu0 0.0
    %3702 = vmatpush1.msra.mxu0 0.0
    %3703 = vmatprep.subr.mxu0 0.0
    %3704 = vmatpush1.msra.mxu0 0.0
    %3705 = vmatprep.subr.mxu0 0.0
    %3706 = vmatpush1.msra.mxu0 0.0
    %3707 = vmatprep.subr.mxu0 0.0
    %3708 = vmatpush1.msra.mxu0 0.0
    %3709 = vmatprep.subr.mxu0 0.0
    %3710 = vmatpush1.msra.mxu0 0.0
    %3711 = vmatprep.subr.mxu0 0.0
    %3712 = vmatpush1.msra.mxu0 0.0
    %3713 = vmatprep.subr.mxu0 0.0
    %3714 = vmatpush1.msra.mxu0 0.0
    %3715 = vmatprep.subr.mxu0 0.0
    %3716 = vmatpush1.msra.mxu0 0.0
    %3717 = vmatprep.subr.mxu0 0.0
    %3718 = vmatpush1.msra.mxu0 0.0
    %3719 = vmatprep.subr.mxu0 0.0
    %3720 = vmatpush1.msra.mxu0 0.0
    %3721 = vmatprep.subr.mxu0 0.0
    %3722 = vmatpush1.msra.mxu0 0.0
    %3723 = vmatprep.subr.mxu0 0.0
    %3724 = vmatpush1.msra.mxu0 0.0
    %3725 = vmatprep.subr.mxu0 0.0
    %3726 = vmatpush1.msra.mxu0 0.0
    %3727 = vmatprep.subr.mxu0 0.0
    %3728 = vmatpush1.msra.mxu0 0.0
    %3729 = vmatprep.subr.mxu0 0.0
    %3730 = vmatpush1.msra.mxu0 0.0
    %3731 = vmatprep.subr.mxu0 0.0
    %3732 = vmatpush1.msra.mxu0 0.0
    %3733 = vmatprep.subr.mxu0 0.0
    %3734 = vmatpush1.msra.mxu0 0.0
    %3735 = vmatprep.subr.mxu0 0.0
    %3736 = vmatpush1.msra.mxu0 0.0
    %3737 = vmatprep.subr.mxu0 0.0
    %3738 = vmatpush1.msra.mxu0 0.0
    %3739 = vmatprep.subr.mxu0 0.0
    %3740 = vmatpush1.msra.mxu0 0.0
    %3741 = vmatprep.subr.mxu0 0.0
    %3742 = vmatpush1.msra.mxu0 0.0
    %3743 = vmatprep.mubr.f32.mxu0 0.0
    %3744 = vmatmul.mubr.f32.gmra.mrb[0].mxu0 %v3677
    %v3745 = vpop.f32.mrb[0].mxu0
    %v3746 = vadd.f32 0.0, %v3745
    %v3747 = vpop.f32.mrb[0].mxu0
    %3748 = vdwg.mxu0
    %v3750 = vsel %vm1202, %v3527, 0
    %3752 = vmatprep.subr.mxu0 0.0
    %3753 = vmatpush1.msra.mxu0 %v221
    %3754 = vmatprep.subr.mxu0 0.0
    %3755 = vmatpush1.msra.mxu0 0.0
    %3756 = vmatprep.subr.mxu0 0.0
    %3757 = vmatpush1.msra.mxu0 0.0
    %3758 = vmatprep.subr.mxu0 0.0
    %3759 = vmatpush1.msra.mxu0 0.0
    %3760 = vmatprep.subr.mxu0 0.0
    %3761 = vmatpush1.msra.mxu0 0.0
    %3762 = vmatprep.subr.mxu0 0.0
    %3763 = vmatpush1.msra.mxu0 0.0
    %3764 = vmatprep.subr.mxu0 0.0
    %3765 = vmatpush1.msra.mxu0 0.0
    %3766 = vmatprep.subr.mxu0 0.0
    %3767 = vmatpush1.msra.mxu0 0.0
    %3768 = vmatprep.subr.mxu0 0.0
    %3769 = vmatpush1.msra.mxu0 0.0
    %3770 = vmatprep.subr.mxu0 0.0
    %3771 = vmatpush1.msra.mxu0 0.0
    %3772 = vmatprep.subr.mxu0 0.0
    %3773 = vmatpush1.msra.mxu0 0.0
    %3774 = vmatprep.subr.mxu0 0.0
    %3775 = vmatpush1.msra.mxu0 0.0
    %3776 = vmatprep.subr.mxu0 0.0
    %3777 = vmatpush1.msra.mxu0 0.0
    %3778 = vmatprep.subr.mxu0 0.0
    %3779 = vmatpush1.msra.mxu0 0.0
    %3780 = vmatprep.subr.mxu0 0.0
    %3781 = vmatpush1.msra.mxu0 0.0
    %3782 = vmatprep.subr.mxu0 0.0
    %3783 = vmatpush1.msra.mxu0 0.0
    %3784 = vmatprep.subr.mxu0 0.0
    %3785 = vmatpush1.msra.mxu0 0.0
    %3786 = vmatprep.subr.mxu0 0.0
    %3787 = vmatpush1.msra.mxu0 0.0
    %3788 = vmatprep.subr.mxu0 0.0
    %3789 = vmatpush1.msra.mxu0 0.0
    %3790 = vmatprep.subr.mxu0 0.0
    %3791 = vmatpush1.msra.mxu0 0.0
    %3792 = vmatprep.subr.mxu0 0.0
    %3793 = vmatpush1.msra.mxu0 0.0
    %3794 = vmatprep.subr.mxu0 0.0
    %3795 = vmatpush1.msra.mxu0 0.0
    %3796 = vmatprep.subr.mxu0 0.0
    %3797 = vmatpush1.msra.mxu0 0.0
    %3798 = vmatprep.subr.mxu0 0.0
    %3799 = vmatpush1.msra.mxu0 0.0
    %3800 = vmatprep.subr.mxu0 0.0
    %3801 = vmatpush1.msra.mxu0 0.0
    %3802 = vmatprep.subr.mxu0 0.0
    %3803 = vmatpush1.msra.mxu0 0.0
    %3804 = vmatprep.subr.mxu0 0.0
    %3805 = vmatpush1.msra.mxu0 0.0
    %3806 = vmatprep.subr.mxu0 0.0
    %3807 = vmatpush1.msra.mxu0 0.0
    %3808 = vmatprep.subr.mxu0 0.0
    %3809 = vmatpush1.msra.mxu0 0.0
    %3810 = vmatprep.subr.mxu0 0.0
    %3811 = vmatpush1.msra.mxu0 0.0
    %3812 = vmatprep.subr.mxu0 0.0
    %3813 = vmatpush1.msra.mxu0 0.0
    %3814 = vmatprep.subr.mxu0 0.0
    %3815 = vmatpush1.msra.mxu0 0.0
    %3816 = vmatprep.mubr.f32.mxu0 0.0
    %3817 = vmatmul.mubr.f32.gmra.mrb[0].mxu0 %v3750
    %v3818 = vpop.f32.mrb[0].mxu0
    %v3819 = vadd.f32 0.0, %v3818
    %v3820 = vpop.f32.mrb[0].mxu0
    %3821 = vdwg.mxu0
    %v3823 = vsel %vm1202, %v3600, 0
    %3825 = vmatprep.subr.mxu0 0.0
    %3826 = vmatpush1.msra.mxu0 %v222
    %3827 = vmatprep.subr.mxu0 0.0
    %3828 = vmatpush1.msra.mxu0 0.0
    %3829 = vmatprep.subr.mxu0 0.0
    %3830 = vmatpush1.msra.mxu0 0.0
    %3831 = vmatprep.subr.mxu0 0.0
    %3832 = vmatpush1.msra.mxu0 0.0
    %3833 = vmatprep.subr.mxu0 0.0
    %3834 = vmatpush1.msra.mxu0 0.0
    %3835 = vmatprep.subr.mxu0 0.0
    %3836 = vmatpush1.msra.mxu0 0.0
    %3837 = vmatprep.subr.mxu0 0.0
    %3838 = vmatpush1.msra.mxu0 0.0
    %3839 = vmatprep.subr.mxu0 0.0
    %3840 = vmatpush1.msra.mxu0 0.0
    %3841 = vmatprep.subr.mxu0 0.0
    %3842 = vmatpush1.msra.mxu0 0.0
    %3843 = vmatprep.subr.mxu0 0.0
    %3844 = vmatpush1.msra.mxu0 0.0
    %3845 = vmatprep.subr.mxu0 0.0
    %3846 = vmatpush1.msra.mxu0 0.0
    %3847 = vmatprep.subr.mxu0 0.0
    %3848 = vmatpush1.msra.mxu0 0.0
    %3849 = vmatprep.subr.mxu0 0.0
    %3850 = vmatpush1.msra.mxu0 0.0
    %3851 = vmatprep.subr.mxu0 0.0
    %3852 = vmatpush1.msra.mxu0 0.0
    %3853 = vmatprep.subr.mxu0 0.0
    %3854 = vmatpush1.msra.mxu0 0.0
    %3855 = vmatprep.subr.mxu0 0.0
    %3856 = vmatpush1.msra.mxu0 0.0
    %3857 = vmatprep.subr.mxu0 0.0
    %3858 = vmatpush1.msra.mxu0 0.0
    %3859 = vmatprep.subr.mxu0 0.0
    %3860 = vmatpush1.msra.mxu0 0.0
    %3861 = vmatprep.subr.mxu0 0.0
    %3862 = vmatpush1.msra.mxu0 0.0
    %3863 = vmatprep.subr.mxu0 0.0
    %3864 = vmatpush1.msra.mxu0 0.0
    %3865 = vmatprep.subr.mxu0 0.0
    %3866 = vmatpush1.msra.mxu0 0.0
    %3867 = vmatprep.subr.mxu0 0.0
    %3868 = vmatpush1.msra.mxu0 0.0
    %3869 = vmatprep.subr.mxu0 0.0
    %3870 = vmatpush1.msra.mxu0 0.0
    %3871 = vmatprep.subr.mxu0 0.0
    %3872 = vmatpush1.msra.mxu0 0.0
    %3873 = vmatprep.subr.mxu0 0.0
    %3874 = vmatpush1.msra.mxu0 0.0
    %3875 = vmatprep.subr.mxu0 0.0
    %3876 = vmatpush1.msra.mxu0 0.0
    %3877 = vmatprep.subr.mxu0 0.0
    %3878 = vmatpush1.msra.mxu0 0.0
    %3879 = vmatprep.subr.mxu0 0.0
    %3880 = vmatpush1.msra.mxu0 0.0
    %3881 = vmatprep.subr.mxu0 0.0
    %3882 = vmatpush1.msra.mxu0 0.0
    %3883 = vmatprep.subr.mxu0 0.0
    %3884 = vmatpush1.msra.mxu0 0.0
    %3885 = vmatprep.subr.mxu0 0.0
    %3886 = vmatpush1.msra.mxu0 0.0
    %3887 = vmatprep.subr.mxu0 0.0
    %3888 = vmatpush1.msra.mxu0 0.0
    %3889 = vmatprep.mubr.f32.mxu0 0.0
    %3890 = vmatmul.mubr.f32.gmra.mrb[0].mxu0 %v3823
    %v3891 = vpop.f32.mrb[0].mxu0
    %v3892 = vadd.f32 0.0, %v3891
    %v3893 = vpop.f32.mrb[0].mxu0
    %3894 = vdwg.mxu0
    %v3896 = vsel %vm1202, %v3673, 0
    %3898 = vmatprep.subr.mxu0 0.0
    %3899 = vmatpush1.msra.mxu0 %v223
    %3900 = vmatprep.subr.mxu0 0.0
    %3901 = vmatpush1.msra.mxu0 0.0
    %3902 = vmatprep.subr.mxu0 0.0
    %3903 = vmatpush1.msra.mxu0 0.0
    %3904 = vmatprep.subr.mxu0 0.0
    %3905 = vmatpush1.msra.mxu0 0.0
    %3906 = vmatprep.subr.mxu0 0.0
    %3907 = vmatpush1.msra.mxu0 0.0
    %3908 = vmatprep.subr.mxu0 0.0
    %3909 = vmatpush1.msra.mxu0 0.0
    %3910 = vmatprep.subr.mxu0 0.0
    %3911 = vmatpush1.msra.mxu0 0.0
    %3912 = vmatprep.subr.mxu0 0.0
    %3913 = vmatpush1.msra.mxu0 0.0
    %3914 = vmatprep.subr.mxu0 0.0
    %3915 = vmatpush1.msra.mxu0 0.0
    %3916 = vmatprep.subr.mxu0 0.0
    %3917 = vmatpush1.msra.mxu0 0.0
    %3918 = vmatprep.subr.mxu0 0.0
    %3919 = vmatpush1.msra.mxu0 0.0
    %3920 = vmatprep.subr.mxu0 0.0
    %3921 = vmatpush1.msra.mxu0 0.0
    %3922 = vmatprep.subr.mxu0 0.0
    %3923 = vmatpush1.msra.mxu0 0.0
    %3924 = vmatprep.subr.mxu0 0.0
    %3925 = vmatpush1.msra.mxu0 0.0
    %3926 = vmatprep.subr.mxu0 0.0
    %3927 = vmatpush1.msra.mxu0 0.0
    %3928 = vmatprep.subr.mxu0 0.0
    %3929 = vmatpush1.msra.mxu0 0.0
    %3930 = vmatprep.subr.mxu0 0.0
    %3931 = vmatpush1.msra.mxu0 0.0
    %3932 = vmatprep.subr.mxu0 0.0
    %3933 = vmatpush1.msra.mxu0 0.0
    %3934 = vmatprep.subr.mxu0 0.0
    %3935 = vmatpush1.msra.mxu0 0.0
    %3936 = vmatprep.subr.mxu0 0.0
    %3937 = vmatpush1.msra.mxu0 0.0
    %3938 = vmatprep.subr.mxu0 0.0
    %3939 = vmatpush1.msra.mxu0 0.0
    %3940 = vmatprep.subr.mxu0 0.0
    %3941 = vmatpush1.msra.mxu0 0.0
    %3942 = vmatprep.subr.mxu0 0.0
    %3943 = vmatpush1.msra.mxu0 0.0
    %3944 = vmatprep.subr.mxu0 0.0
    %3945 = vmatpush1.msra.mxu0 0.0
    %3946 = vmatprep.subr.mxu0 0.0
    %3947 = vmatpush1.msra.mxu0 0.0
    %3948 = vmatprep.subr.mxu0 0.0
    %3949 = vmatpush1.msra.mxu0 0.0
    %3950 = vmatprep.subr.mxu0 0.0
    %3951 = vmatpush1.msra.mxu0 0.0
    %3952 = vmatprep.subr.mxu0 0.0
    %3953 = vmatpush1.msra.mxu0 0.0
    %3954 = vmatprep.subr.mxu0 0.0
    %3955 = vmatpush1.msra.mxu0 0.0
    %3956 = vmatprep.subr.mxu0 0.0
    %3957 = vmatpush1.msra.mxu0 0.0
    %3958 = vmatprep.subr.mxu0 0.0
    %3959 = vmatpush1.msra.mxu0 0.0
    %3960 = vmatprep.subr.mxu0 0.0
    %3961 = vmatpush1.msra.mxu0 0.0
    %3962 = vmatprep.mubr.f32.mxu0 0.0
    %3963 = vmatmul.mubr.f32.gmra.mrb[0].mxu0 %v3896
    %v3964 = vpop.f32.mrb[0].mxu0
    %v3965 = vadd.f32 0.0, %v3964
    %v3966 = vpop.f32.mrb[0].mxu0
    %3967 = vdwg.mxu0
    %v3969 = vsel %vm1202, %v3746, 0
    %3971 = vmatprep.subr.mxu0 0.0
    %3972 = vmatpush1.msra.mxu0 %v224
    %3973 = vmatprep.subr.mxu0 0.0
    %3974 = vmatpush1.msra.mxu0 0.0
    %3975 = vmatprep.subr.mxu0 0.0
    %3976 = vmatpush1.msra.mxu0 0.0
    %3977 = vmatprep.subr.mxu0 0.0
    %3978 = vmatpush1.msra.mxu0 0.0
    %3979 = vmatprep.subr.mxu0 0.0
    %3980 = vmatpush1.msra.mxu0 0.0
    %3981 = vmatprep.subr.mxu0 0.0
    %3982 = vmatpush1.msra.mxu0 0.0
    %3983 = vmatprep.subr.mxu0 0.0
    %3984 = vmatpush1.msra.mxu0 0.0
    %3985 = vmatprep.subr.mxu0 0.0
    %3986 = vmatpush1.msra.mxu0 0.0
    %3987 = vmatprep.subr.mxu0 0.0
    %3988 = vmatpush1.msra.mxu0 0.0
    %3989 = vmatprep.subr.mxu0 0.0
    %3990 = vmatpush1.msra.mxu0 0.0
    %3991 = vmatprep.subr.mxu0 0.0
    %3992 = vmatpush1.msra.mxu0 0.0
    %3993 = vmatprep.subr.mxu0 0.0
    %3994 = vmatpush1.msra.mxu0 0.0
    %3995 = vmatprep.subr.mxu0 0.0
    %3996 = vmatpush1.msra.mxu0 0.0
    %3997 = vmatprep.subr.mxu0 0.0
    %3998 = vmatpush1.msra.mxu0 0.0
    %3999 = vmatprep.subr.mxu0 0.0
    %4000 = vmatpush1.msra.mxu0 0.0
    %4001 = vmatprep.subr.mxu0 0.0
    %4002 = vmatpush1.msra.mxu0 0.0
    %4003 = vmatprep.subr.mxu0 0.0
    %4004 = vmatpush1.msra.mxu0 0.0
    %4005 = vmatprep.subr.mxu0 0.0
    %4006 = vmatpush1.msra.mxu0 0.0
    %4007 = vmatprep.subr.mxu0 0.0
    %4008 = vmatpush1.msra.mxu0 0.0
    %4009 = vmatprep.subr.mxu0 0.0
    %4010 = vmatpush1.msra.mxu0 0.0
    %4011 = vmatprep.subr.mxu0 0.0
    %4012 = vmatpush1.msra.mxu0 0.0
    %4013 = vmatprep.subr.mxu0 0.0
    %4014 = vmatpush1.msra.mxu0 0.0
    %4015 = vmatprep.subr.mxu0 0.0
    %4016 = vmatpush1.msra.mxu0 0.0
    %4017 = vmatprep.subr.mxu0 0.0
    %4018 = vmatpush1.msra.mxu0 0.0
    %4019 = vmatprep.subr.mxu0 0.0
    %4020 = vmatpush1.msra.mxu0 0.0
    %4021 = vmatprep.subr.mxu0 0.0
    %4022 = vmatpush1.msra.mxu0 0.0
    %4023 = vmatprep.subr.mxu0 0.0
    %4024 = vmatpush1.msra.mxu0 0.0
    %4025 = vmatprep.subr.mxu0 0.0
    %4026 = vmatpush1.msra.mxu0 0.0
    %4027 = vmatprep.subr.mxu0 0.0
    %4028 = vmatpush1.msra.mxu0 0.0
    %4029 = vmatprep.subr.mxu0 0.0
    %4030 = vmatpush1.msra.mxu0 0.0
    %4031 = vmatprep.subr.mxu0 0.0
    %4032 = vmatpush1.msra.mxu0 0.0
    %4033 = vmatprep.subr.mxu0 0.0
    %4034 = vmatpush1.msra.mxu0 0.0
    %4035 = vmatprep.mubr.f32.mxu0 0.0
    %4036 = vmatmul.mubr.f32.gmra.mrb[0].mxu0 %v3969
    %v4037 = vpop.f32.mrb[0].mxu0
    %v4038 = vadd.f32 0.0, %v4037
    %v4039 = vpop.f32.mrb[0].mxu0
    %4040 = vdwg.mxu0
    %v4041 = vsel %vm256, %v3819, 0.0
    %v4042 = vsel %vm256, %v3892, 0.0
    %v4043 = vadd.f32 %v4041, %v4042
    %v4044 = vsel %vm256, %v3965, 0.0
    %v4045 = vadd.f32 %v4043, %v4044
    %v4046 = vsel %vm256, %v4038, 0.0
    %v4047 = vadd.f32 %v4045, %v4046
    %v4049 = vlaneseq
    %v4050 = vshrl.u32 %v4049, 7
    %v4051 = vsub.s32 0, %v4050
    %v4052 = vrot.slane %v225, %v4051
    %v4054 = vadd.f32 %v4047, %v4052
    %v4055 = vadd.f32 %v2157, %v4054
    %v4056 = vsel %vm256, %v4055, 0.0
    %4057 = vadd.xlane.f32.xlu0 %v4056
    %v4058 = vpop.xlane.xlu0 %4057
    %v4059 = vmul.f32 %v4058, %v260
    %v4060 = vmul.f32 %v4055, %v4055
    %v4061 = vsel %vm256, %v4060, 0.0
    %4062 = vadd.xlane.f32.xlu0 %v4061
    %v4063 = vpop.xlane.xlu0 %4062
    %v4064 = vmul.f32 %v4063, %v260
    %v4065 = vmul.f32 %v4059, %v4059
    %v4066 = vsub.f32 %v4064, %v4065
    %v4067 = vsub.f32 %v4055, %v4059
    %v4068 = vadd.f32 %v4066, 1e-05
    %v4069 = vrsqrt.pop %v4068
    %v4070 = vmul.f32 %v4067, %v4069
    %v4072 = vlaneseq
    %v4073 = vshrl.u32 %v4072, 7
    %v4074 = vsub.s32 0, %v4073
    %v4075 = vrot.slane %v94, %v4074
    %v4077 = vmul.f32 %v4070, %v4075
    %v4079 = vlaneseq
    %v4080 = vshrl.u32 %v4079, 7
    %v4081 = vsub.s32 0, %v4080
    %v4082 = vrot.slane %v95, %v4081
    %v4084 = vadd.f32 %v4077, %v4082
    %v4086 = vlaneseq
    %v4087 = vshrl.u32 %v4086, 7
    %v4088 = vsub.s32 0, %v4087
    %v4089 = vrot.slane %v230, %v4088
    %v4092 = vsel %vm256, %v4084, 0
    %4094 = vmatprep.subr.mxu0 0.0
    %4095 = vmatpush1.msra.mxu0 %v226
    %4096 = vmatprep.subr.mxu0 0.0
    %4097 = vmatpush1.msra.mxu0 %v227
    %4098 = vmatprep.subr.mxu0 0.0
    %4099 = vmatpush1.msra.mxu0 %v228
    %4100 = vmatprep.subr.mxu0 0.0
    %4101 = vmatpush1.msra.mxu0 %v229
    %4102 = vmatprep.subr.mxu0 0.0
    %4103 = vmatpush1.msra.mxu0 0.0
    %4104 = vmatprep.subr.mxu0 0.0
    %4105 = vmatpush1.msra.mxu0 0.0
    %4106 = vmatprep.subr.mxu0 0.0
    %4107 = vmatpush1.msra.mxu0 0.0
    %4108 = vmatprep.subr.mxu0 0.0
    %4109 = vmatpush1.msra.mxu0 0.0
    %4110 = vmatprep.subr.mxu0 0.0
    %4111 = vmatpush1.msra.mxu0 0.0
    %4112 = vmatprep.subr.mxu0 0.0
    %4113 = vmatpush1.msra.mxu0 0.0
    %4114 = vmatprep.subr.mxu0 0.0
    %4115 = vmatpush1.msra.mxu0 0.0
    %4116 = vmatprep.subr.mxu0 0.0
    %4117 = vmatpush1.msra.mxu0 0.0
    %4118 = vmatprep.subr.mxu0 0.0
    %4119 = vmatpush1.msra.mxu0 0.0
    %4120 = vmatprep.subr.mxu0 0.0
    %4121 = vmatpush1.msra.mxu0 0.0
    %4122 = vmatprep.subr.mxu0 0.0
    %4123 = vmatpush1.msra.mxu0 0.0
    %4124 = vmatprep.subr.mxu0 0.0
    %4125 = vmatpush1.msra.mxu0 0.0
    %4126 = vmatprep.subr.mxu0 0.0
    %4127 = vmatpush1.msra.mxu0 0.0
    %4128 = vmatprep.subr.mxu0 0.0
    %4129 = vmatpush1.msra.mxu0 0.0
    %4130 = vmatprep.subr.mxu0 0.0
    %4131 = vmatpush1.msra.mxu0 0.0
    %4132 = vmatprep.subr.mxu0 0.0
    %4133 = vmatpush1.msra.mxu0 0.0
    %4134 = vmatprep.subr.mxu0 0.0
    %4135 = vmatpush1.msra.mxu0 0.0
    %4136 = vmatprep.subr.mxu0 0.0
    %4137 = vmatpush1.msra.mxu0 0.0
    %4138 = vmatprep.subr.mxu0 0.0
    %4139 = vmatpush1.msra.mxu0 0.0
    %4140 = vmatprep.subr.mxu0 0.0
    %4141 = vmatpush1.msra.mxu0 0.0
    %4142 = vmatprep.subr.mxu0 0.0
    %4143 = vmatpush1.msra.mxu0 0.0
    %4144 = vmatprep.subr.mxu0 0.0
    %4145 = vmatpush1.msra.mxu0 0.0
    %4146 = vmatprep.subr.mxu0 0.0
    %4147 = vmatpush1.msra.mxu0 0.0
    %4148 = vmatprep.subr.mxu0 0.0
    %4149 = vmatpush1.msra.mxu0 0.0
    %4150 = vmatprep.subr.mxu0 0.0
    %4151 = vmatpush1.msra.mxu0 0.0
    %4152 = vmatprep.subr.mxu0 0.0
    %4153 = vmatpush1.msra.mxu0 0.0
    %4154 = vmatprep.subr.mxu0 0.0
    %4155 = vmatpush1.msra.mxu0 0.0
    %4156 = vmatprep.subr.mxu0 0.0
    %4157 = vmatpush1.msra.mxu0 0.0
    %4158 = vmatprep.mubr.f32.mxu0 0.0
    %4159 = vmatmul.mubr.f32.gmra.mrb[0].mxu0 %v4092
    %v4160 = vpop.f32.mrb[0].mxu0
    %v4161 = vadd.f32 %v4089, %v4160
    %v4162 = vpop.f32.mrb[0].mxu0
    %4163 = vdwg.mxu0
    %v4164 = vmul.f32 %v4161, 0.5
    %v4165 = vmul.f32 %v4161, 0.044715
    %v4166 = vmul.f32 %v4165, %v4161
    %v4167 = vmul.f32 %v4166, %v4161
    %v4168 = vadd.f32 %v4161, %v4167
    %v4169 = vmul.f32 %v4168, 0.7978846
    %v4170 = vtanh.pop %v4169
    %v4171 = vadd.f32 %v4170, 1.0
    %v4172 = vmul.f32 %v4164, %v4171
    %4173 = vmatprep.subr.mxu0 0.0
    %4174 = vmatpush1.msra.mxu0 %v231
    %4175 = vmatprep.subr.mxu0 0.0
    %4176 = vmatpush1.msra.mxu0 %v232
    %4177 = vmatprep.subr.mxu0 0.0
    %4178 = vmatpush1.msra.mxu0 %v233
    %4179 = vmatprep.subr.mxu0 0.0
    %4180 = vmatpush1.msra.mxu0 %v234
    %4181 = vmatprep.subr.mxu0 0.0
    %4182 = vmatpush1.msra.mxu0 %v235
    %4183 = vmatprep.subr.mxu0 0.0
    %4184 = vmatpush1.msra.mxu0 %v236
    %4185 = vmatprep.subr.mxu0 0.0
    %4186 = vmatpush1.msra.mxu0 %v237
    %4187 = vmatprep.subr.mxu0 0.0
    %4188 = vmatpush1.msra.mxu0 %v238
    %4189 = vmatprep.subr.mxu0 0.0
    %4190 = vmatpush1.msra.mxu0 %v239
    %4191 = vmatprep.subr.mxu0 0.0
    %4192 = vmatpush1.msra.mxu0 %v240
    %4193 = vmatprep.subr.mxu0 0.0
    %4194 = vmatpush1.msra.mxu0 %v241
    %4195 = vmatprep.subr.mxu0 0.0
    %4196 = vmatpush1.msra.mxu0 %v242
    %4197 = vmatprep.subr.mxu0 0.0
    %4198 = vmatpush1.msra.mxu0 %v243
    %4199 = vmatprep.subr.mxu0 0.0
    %4200 = vmatpush1.msra.mxu0 %v244
    %4201 = vmatprep.subr.mxu0 0.0
    %4202 = vmatpush1.msra.mxu0 %v245
    %4203 = vmatprep.subr.mxu0 0.0
    %4204 = vmatpush1.msra.mxu0 %v246
    %4205 = vmatprep.subr.mxu0 0.0
    %4206 = vmatpush1.msra.mxu0 0.0
    %4207 = vmatprep.subr.mxu0 0.0
    %4208 = vmatpush1.msra.mxu0 0.0
    %4209 = vmatprep.subr.mxu0 0.0
    %4210 = vmatpush1.msra.mxu0 0.0
    %4211 = vmatprep.subr.mxu0 0.0
    %4212 = vmatpush1.msra.mxu0 0.0
    %4213 = vmatprep.subr.mxu0 0.0
    %4214 = vmatpush1.msra.mxu0 0.0
    %4215 = vmatprep.subr.mxu0 0.0
    %4216 = vmatpush1.msra.mxu0 0.0
    %4217 = vmatprep.subr.mxu0 0.0
    %4218 = vmatpush1.msra.mxu0 0.0
    %4219 = vmatprep.subr.mxu0 0.0
    %4220 = vmatpush1.msra.mxu0 0.0
    %4221 = vmatprep.subr.mxu0 0.0
    %4222 = vmatpush1.msra.mxu0 0.0
    %4223 = vmatprep.subr.mxu0 0.0
    %4224 = vmatpush1.msra.mxu0 0.0
    %4225 = vmatprep.subr.mxu0 0.0
    %4226 = vmatpush1.msra.mxu0 0.0
    %4227 = vmatprep.subr.mxu0 0.0
    %4228 = vmatpush1.msra.mxu0 0.0
    %4229 = vmatprep.subr.mxu0 0.0
    %4230 = vmatpush1.msra.mxu0 0.0
    %4231 = vmatprep.subr.mxu0 0.0
    %4232 = vmatpush1.msra.mxu0 0.0
    %4233 = vmatprep.subr.mxu0 0.0
    %4234 = vmatpush1.msra.mxu0 0.0
    %4235 = vmatprep.subr.mxu0 0.0
    %4236 = vmatpush1.msra.mxu0 0.0
    %4237 = vmatprep.mubr.f32.mxu0 0.0
    %4238 = vmatmul.mubr.f32.gmra.mrb[0].mxu0 %v4172
    %v4239 = vpop.f32.mrb[0].mxu0
    %v4240 = vadd.f32 0.0, %v4239
    %v4241 = vpop.f32.mrb[0].mxu0
    %4242 = vdwg.mxu0
    %v4243 = vadd.f32 %v4055, %v4240
    %v4245 = vlaneseq
    %v4246 = vshrl.u32 %v4245, 7
    %v4247 = vsub.s32 0, %v4246
    %v4248 = vrot.slane %v247, %v4247
    %v4250 = vadd.f32 %v4243, %v4248
    %4251 = vst.msk [vmem:[#allocation2] sm:$0xff] %vm256, %v4250
    %s4252 = scalar_lea.vmem %s0, 8
    %v4253 = vld [vmem:[%s4252] sm:$0xff]
    %s4254 = scalar_lea.vmem %s1, 8
    %v4255 = vld [vmem:[%s4254] sm:$0xff]
    %v4256 = vsel %vm256, %v4253, 0.0
    %4257 = vadd.xlane.f32.xlu0 %v4256
    %v4258 = vpop.xlane.xlu0 %4257
    %v4259 = vmul.f32 %v4258, %v260
    %v4260 = vmul.f32 %v4253, %v4253
    %v4261 = vsel %vm256, %v4260, 0.0
    %4262 = vadd.xlane.f32.xlu0 %v4261
    %v4263 = vpop.xlane.xlu0 %4262
    %v4264 = vmul.f32 %v4263, %v260
    %v4265 = vmul.f32 %v4259, %v4259
    %v4266 = vsub.f32 %v4264, %v4265
    %v4267 = vsub.f32 %v4253, %v4259
    %v4268 = vadd.f32 %v4266, 1e-05
    %v4269 = vrsqrt.pop %v4268
    %v4270 = vmul.f32 %v4267, %v4269
    %v4271 = vmul.f32 %v4270, %v277
    %v4272 = vadd.f32 %v4271, %v284
    %v4274 = vsel %vm256, %v4272, 0
    %4276 = vmatprep.subr.mxu0 0.0
    %4277 = vmatpush1.msra.mxu0 %v96
    %4278 = vmatprep.subr.mxu0 0.0
    %4279 = vmatpush1.msra.mxu0 %v97
    %4280 = vmatprep.subr.mxu0 0.0
    %4281 = vmatpush1.msra.mxu0 %v98
    %4282 = vmatprep.subr.mxu0 0.0
    %4283 = vmatpush1.msra.mxu0 %v99
    %4284 = vmatprep.subr.mxu0 0.0
    %4285 = vmatpush1.msra.mxu0 0.0
    %4286 = vmatprep.subr.mxu0 0.0
    %4287 = vmatpush1.msra.mxu0 0.0
    %4288 = vmatprep.subr.mxu0 0.0
    %4289 = vmatpush1.msra.mxu0 0.0
    %4290 = vmatprep.subr.mxu0 0.0
    %4291 = vmatpush1.msra.mxu0 0.0
    %4292 = vmatprep.subr.mxu0 0.0
    %4293 = vmatpush1.msra.mxu0 0.0
    %4294 = vmatprep.subr.mxu0 0.0
    %4295 = vmatpush1.msra.mxu0 0.0
    %4296 = vmatprep.subr.mxu0 0.0
    %4297 = vmatpush1.msra.mxu0 0.0
    %4298 = vmatprep.subr.mxu0 0.0
    %4299 = vmatpush1.msra.mxu0 0.0
    %4300 = vmatprep.subr.mxu0 0.0
    %4301 = vmatpush1.msra.mxu0 0.0
    %4302 = vmatprep.subr.mxu0 0.0
    %4303 = vmatpush1.msra.mxu0 0.0
    %4304 = vmatprep.subr.mxu0 0.0
    %4305 = vmatpush1.msra.mxu0 0.0
    %4306 = vmatprep.subr.mxu0 0.0
    %4307 = vmatpush1.msra.mxu0 0.0
    %4308 = vmatprep.subr.mxu0 0.0
    %4309 = vmatpush1.msra.mxu0 0.0
    %4310 = vmatprep.subr.mxu0 0.0
    %4311 = vmatpush1.msra.mxu0 0.0
    %4312 = vmatprep.subr.mxu0 0.0
    %4313 = vmatpush1.msra.mxu0 0.0
    %4314 = vmatprep.subr.mxu0 0.0
    %4315 = vmatpush1.msra.mxu0 0.0
    %4316 = vmatprep.subr.mxu0 0.0
    %4317 = vmatpush1.msra.mxu0 0.0
    %4318 = vmatprep.subr.mxu0 0.0
    %4319 = vmatpush1.msra.mxu0 0.0
    %4320 = vmatprep.subr.mxu0 0.0
    %4321 = vmatpush1.msra.mxu0 0.0
    %4322 = vmatprep.subr.mxu0 0.0
    %4323 = vmatpush1.msra.mxu0 0.0
    %4324 = vmatprep.subr.mxu0 0.0
    %4325 = vmatpush1.msra.mxu0 0.0
    %4326 = vmatprep.subr.mxu0 0.0
    %4327 = vmatpush1.msra.mxu0 0.0
    %4328 = vmatprep.subr.mxu0 0.0
    %4329 = vmatpush1.msra.mxu0 0.0
    %4330 = vmatprep.subr.mxu0 0.0
    %4331 = vmatpush1.msra.mxu0 0.0
    %4332 = vmatprep.subr.mxu0 0.0
    %4333 = vmatpush1.msra.mxu0 0.0
    %4334 = vmatprep.subr.mxu0 0.0
    %4335 = vmatpush1.msra.mxu0 0.0
    %4336 = vmatprep.subr.mxu0 0.0
    %4337 = vmatpush1.msra.mxu0 0.0
    %4338 = vmatprep.subr.mxu0 0.0
    %4339 = vmatpush1.msra.mxu0 0.0
    %4340 = vmatprep.mubr.f32.mxu0 0.0
    %4341 = vmatmul.mubr.f32.gmra.mrb[0].mxu0 %v4274
    %v4342 = vpop.f32.mrb[0].mxu0
    %v4343 = vadd.f32 %v294, %v4342
    %v4344 = vpop.f32.mrb[0].mxu0
    %4345 = vdwg.mxu0
    %4346 = vmatprep.subr.mxu0 0.0
    %4347 = vmatpush1.msra.mxu0 %v100
    %4348 = vmatprep.subr.mxu0 0.0
    %4349 = vmatpush1.msra.mxu0 %v101
    %4350 = vmatprep.subr.mxu0 0.0
    %4351 = vmatpush1.msra.mxu0 %v102
    %4352 = vmatprep.subr.mxu0 0.0
    %4353 = vmatpush1.msra.mxu0 %v103
    %4354 = vmatprep.subr.mxu0 0.0
    %4355 = vmatpush1.msra.mxu0 0.0
    %4356 = vmatprep.subr.mxu0 0.0
    %4357 = vmatpush1.msra.mxu0 0.0
    %4358 = vmatprep.subr.mxu0 0.0
    %4359 = vmatpush1.msra.mxu0 0.0
    %4360 = vmatprep.subr.mxu0 0.0
    %4361 = vmatpush1.msra.mxu0 0.0
    %4362 = vmatprep.subr.mxu0 0.0
    %4363 = vmatpush1.msra.mxu0 0.0
    %4364 = vmatprep.subr.mxu0 0.0
    %4365 = vmatpush1.msra.mxu0 0.0
    %4366 = vmatprep.subr.mxu0 0.0
    %4367 = vmatpush1.msra.mxu0 0.0
    %4368 = vmatprep.subr.mxu0 0.0
    %4369 = vmatpush1.msra.mxu0 0.0
    %4370 = vmatprep.subr.mxu0 0.0
    %4371 = vmatpush1.msra.mxu0 0.0
    %4372 = vmatprep.subr.mxu0 0.0
    %4373 = vmatpush1.msra.mxu0 0.0
    %4374 = vmatprep.subr.mxu0 0.0
    %4375 = vmatpush1.msra.mxu0 0.0
    %4376 = vmatprep.subr.mxu0 0.0
    %4377 = vmatpush1.msra.mxu0 0.0
    %4378 = vmatprep.subr.mxu0 0.0
    %4379 = vmatpush1.msra.mxu0 0.0
    %4380 = vmatprep.subr.mxu0 0.0
    %4381 = vmatpush1.msra.mxu0 0.0
    %4382 = vmatprep.subr.mxu0 0.0
    %4383 = vmatpush1.msra.mxu0 0.0
    %4384 = vmatprep.subr.mxu0 0.0
    %4385 = vmatpush1.msra.mxu0 0.0
    %4386 = vmatprep.subr.mxu0 0.0
    %4387 = vmatpush1.msra.mxu0 0.0
    %4388 = vmatprep.subr.mxu0 0.0
    %4389 = vmatpush1.msra.mxu0 0.0
    %4390 = vmatprep.subr.mxu0 0.0
    %4391 = vmatpush1.msra.mxu0 0.0
    %4392 = vmatprep.subr.mxu0 0.0
    %4393 = vmatpush1.msra.mxu0 0.0
    %4394 = vmatprep.subr.mxu0 0.0
    %4395 = vmatpush1.msra.mxu0 0.0
    %4396 = vmatprep.subr.mxu0 0.0
    %4397 = vmatpush1.msra.mxu0 0.0
    %4398 = vmatprep.subr.mxu0 0.0
    %4399 = vmatpush1.msra.mxu0 0.0
    %4400 = vmatprep.subr.mxu0 0.0
    %4401 = vmatpush1.msra.mxu0 0.0
    %4402 = vmatprep.subr.mxu0 0.0
    %4403 = vmatpush1.msra.mxu0 0.0
    %4404 = vmatprep.subr.mxu0 0.0
    %4405 = vmatpush1.msra.mxu0 0.0
    %4406 = vmatprep.subr.mxu0 0.0
    %4407 = vmatpush1.msra.mxu0 0.0
    %4408 = vmatprep.subr.mxu0 0.0
    %4409 = vmatpush1.msra.mxu0 0.0
    %4410 = vmatprep.mubr.f32.mxu0 0.0
    %4411 = vmatmul.mubr.f32.gmra.mrb[0].mxu0 %v4274
    %v4412 = vpop.f32.mrb[0].mxu0
    %v4413 = vadd.f32 %v298, %v4412
    %v4414 = vpop.f32.mrb[0].mxu0
    %4415 = vdwg.mxu0
    %4416 = vmatprep.subr.mxu0 0.0
    %4417 = vmatpush1.msra.mxu0 %v104
    %4418 = vmatprep.subr.mxu0 0.0
    %4419 = vmatpush1.msra.mxu0 %v105
    %4420 = vmatprep.subr.mxu0 0.0
    %4421 = vmatpush1.msra.mxu0 %v106
    %4422 = vmatprep.subr.mxu0 0.0
    %4423 = vmatpush1.msra.mxu0 %v107
    %4424 = vmatprep.subr.mxu0 0.0
    %4425 = vmatpush1.msra.mxu0 0.0
    %4426 = vmatprep.subr.mxu0 0.0
    %4427 = vmatpush1.msra.mxu0 0.0
    %4428 = vmatprep.subr.mxu0 0.0
    %4429 = vmatpush1.msra.mxu0 0.0
    %4430 = vmatprep.subr.mxu0 0.0
    %4431 = vmatpush1.msra.mxu0 0.0
    %4432 = vmatprep.subr.mxu0 0.0
    %4433 = vmatpush1.msra.mxu0 0.0
    %4434 = vmatprep.subr.mxu0 0.0
    %4435 = vmatpush1.msra.mxu0 0.0
    %4436 = vmatprep.subr.mxu0 0.0
    %4437 = vmatpush1.msra.mxu0 0.0
    %4438 = vmatprep.subr.mxu0 0.0
    %4439 = vmatpush1.msra.mxu0 0.0
    %4440 = vmatprep.subr.mxu0 0.0
    %4441 = vmatpush1.msra.mxu0 0.0
    %4442 = vmatprep.subr.mxu0 0.0
    %4443 = vmatpush1.msra.mxu0 0.0
    %4444 = vmatprep.subr.mxu0 0.0
    %4445 = vmatpush1.msra.mxu0 0.0
    %4446 = vmatprep.subr.mxu0 0.0
    %4447 = vmatpush1.msra.mxu0 0.0
    %4448 = vmatprep.subr.mxu0 0.0
    %4449 = vmatpush1.msra.mxu0 0.0
    %4450 = vmatprep.subr.mxu0 0.0
    %4451 = vmatpush1.msra.mxu0 0.0
    %4452 = vmatprep.subr.mxu0 0.0
    %4453 = vmatpush1.msra.mxu0 0.0
    %4454 = vmatprep.subr.mxu0 0.0
    %4455 = vmatpush1.msra.mxu0 0.0
    %4456 = vmatprep.subr.mxu0 0.0
    %4457 = vmatpush1.msra.mxu0 0.0
    %4458 = vmatprep.subr.mxu0 0.0
    %4459 = vmatpush1.msra.mxu0 0.0
    %4460 = vmatprep.subr.mxu0 0.0
    %4461 = vmatpush1.msra.mxu0 0.0
    %4462 = vmatprep.subr.mxu0 0.0
    %4463 = vmatpush1.msra.mxu0 0.0
    %4464 = vmatprep.subr.mxu0 0.0
    %4465 = vmatpush1.msra.mxu0 0.0
    %4466 = vmatprep.subr.mxu0 0.0
    %4467 = vmatpush1.msra.mxu0 0.0
    %4468 = vmatprep.subr.mxu0 0.0
    %4469 = vmatpush1.msra.mxu0 0.0
    %4470 = vmatprep.subr.mxu0 0.0
    %4471 = vmatpush1.msra.mxu0 0.0
    %4472 = vmatprep.subr.mxu0 0.0
    %4473 = vmatpush1.msra.mxu0 0.0
    %4474 = vmatprep.subr.mxu0 0.0
    %4475 = vmatpush1.msra.mxu0 0.0
    %4476 = vmatprep.subr.mxu0 0.0
    %4477 = vmatpush1.msra.mxu0 0.0
    %4478 = vmatprep.subr.mxu0 0.0
    %4479 = vmatpush1.msra.mxu0 0.0
    %4480 = vmatprep.mubr.f32.mxu0 0.0
    %4481 = vmatmul.mubr.f32.gmra.mrb[0].mxu0 %v4274
    %v4482 = vpop.f32.mrb[0].mxu0
    %v4483 = vadd.f32 %v302, %v4482
    %v4484 = vpop.f32.mrb[0].mxu0
    %4485 = vdwg.mxu0
    %4486 = vmatprep.subr.mxu0 0.0
    %4487 = vmatpush1.msra.mxu0 %v108
    %4488 = vmatprep.subr.mxu0 0.0
    %4489 = vmatpush1.msra.mxu0 %v109
    %4490 = vmatprep.subr.mxu0 0.0
    %4491 = vmatpush1.msra.mxu0 %v110
    %4492 = vmatprep.subr.mxu0 0.0
    %4493 = vmatpush1.msra.mxu0 %v111
    %4494 = vmatprep.subr.mxu0 0.0
    %4495 = vmatpush1.msra.mxu0 0.0
    %4496 = vmatprep.subr.mxu0 0.0
    %4497 = vmatpush1.msra.mxu0 0.0
    %4498 = vmatprep.subr.mxu0 0.0
    %4499 = vmatpush1.msra.mxu0 0.0
    %4500 = vmatprep.subr.mxu0 0.0
    %4501 = vmatpush1.msra.mxu0 0.0
    %4502 = vmatprep.subr.mxu0 0.0
    %4503 = vmatpush1.msra.mxu0 0.0
    %4504 = vmatprep.subr.mxu0 0.0
    %4505 = vmatpush1.msra.mxu0 0.0
    %4506 = vmatprep.subr.mxu0 0.0
    %4507 = vmatpush1.msra.mxu0 0.0
    %4508 = vmatprep.subr.mxu0 0.0
    %4509 = vmatpush1.msra.mxu0 0.0
    %4510 = vmatprep.subr.mxu0 0.0
    %4511 = vmatpush1.msra.mxu0 0.0
    %4512 = vmatprep.subr.mxu0 0.0
    %4513 = vmatpush1.msra.mxu0 0.0
    %4514 = vmatprep.subr.mxu0 0.0
    %4515 = vmatpush1.msra.mxu0 0.0
    %4516 = vmatprep.subr.mxu0 0.0
    %4517 = vmatpush1.msra.mxu0 0.0
    %4518 = vmatprep.subr.mxu0 0.0
    %4519 = vmatpush1.msra.mxu0 0.0
    %4520 = vmatprep.subr.mxu0 0.0
    %4521 = vmatpush1.msra.mxu0 0.0
    %4522 = vmatprep.subr.mxu0 0.0
    %4523 = vmatpush1.msra.mxu0 0.0
    %4524 = vmatprep.subr.mxu0 0.0
    %4525 = vmatpush1.msra.mxu0 0.0
    %4526 = vmatprep.subr.mxu0 0.0
    %4527 = vmatpush1.msra.mxu0 0.0
    %4528 = vmatprep.subr.mxu0 0.0
    %4529 = vmatpush1.msra.mxu0 0.0
    %4530 = vmatprep.subr.mxu0 0.0
    %4531 = vmatpush1.msra.mxu0 0.0
    %4532 = vmatprep.subr.mxu0 0.0
    %4533 = vmatpush1.msra.mxu0 0.0
    %4534 = vmatprep.subr.mxu0 0.0
    %4535 = vmatpush1.msra.mxu0 0.0
    %4536 = vmatprep.subr.mxu0 0.0
    %4537 = vmatpush1.msra.mxu0 0.0
    %4538 = vmatprep.subr.mxu0 0.0
    %4539 = vmatpush1.msra.mxu0 0.0
    %4540 = vmatprep.subr.mxu0 0.0
    %4541 = vmatpush1.msra.mxu0 0.0
    %4542 = vmatprep.subr.mxu0 0.0
    %4543 = vmatpush1.msra.mxu0 0.0
    %4544 = vmatprep.subr.mxu0 0.0
    %4545 = vmatpush1.msra.mxu0 0.0
    %4546 = vmatprep.subr.mxu0 0.0
    %4547 = vmatpush1.msra.mxu0 0.0
    %4548 = vmatprep.subr.mxu0 0.0
    %4549 = vmatpush1.msra.mxu0 0.0
    %4550 = vmatprep.mubr.f32.mxu0 0.0
    %4551 = vmatmul.mubr.f32.gmra.mrb[0].mxu0 %v4274
    %v4552 = vpop.f32.mrb[0].mxu0
    %v4553 = vadd.f32 %v306, %v4552
    %v4554 = vpop.f32.mrb[0].mxu0
    %4555 = vdwg.mxu0
    %4556 = vmatprep.subr.mxu0 0.0
    %4557 = vmatpush1.msra.mxu0 %v112
    %4558 = vmatprep.subr.mxu0 0.0
    %4559 = vmatpush1.msra.mxu0 %v113
    %4560 = vmatprep.subr.mxu0 0.0
    %4561 = vmatpush1.msra.mxu0 %v114
    %4562 = vmatprep.subr.mxu0 0.0
    %4563 = vmatpush1.msra.mxu0 %v115
    %4564 = vmatprep.subr.mxu0 0.0
    %4565 = vmatpush1.msra.mxu0 0.0
    %4566 = vmatprep.subr.mxu0 0.0
    %4567 = vmatpush1.msra.mxu0 0.0
    %4568 = vmatprep.subr.mxu0 0.0
    %4569 = vmatpush1.msra.mxu0 0.0
    %4570 = vmatprep.subr.mxu0 0.0
    %4571 = vmatpush1.msra.mxu0 0.0
    %4572 = vmatprep.subr.mxu0 0.0
    %4573 = vmatpush1.msra.mxu0 0.0
    %4574 = vmatprep.subr.mxu0 0.0
    %4575 = vmatpush1.msra.mxu0 0.0
    %4576 = vmatprep.subr.mxu0 0.0
    %4577 = vmatpush1.msra.mxu0 0.0
    %4578 = vmatprep.subr.mxu0 0.0
    %4579 = vmatpush1.msra.mxu0 0.0
    %4580 = vmatprep.subr.mxu0 0.0
    %4581 = vmatpush1.msra.mxu0 0.0
    %4582 = vmatprep.subr.mxu0 0.0
    %4583 = vmatpush1.msra.mxu0 0.0
    %4584 = vmatprep.subr.mxu0 0.0
    %4585 = vmatpush1.msra.mxu0 0.0
    %4586 = vmatprep.subr.mxu0 0.0
    %4587 = vmatpush1.msra.mxu0 0.0
    %4588 = vmatprep.subr.mxu0 0.0
    %4589 = vmatpush1.msra.mxu0 0.0
    %4590 = vmatprep.subr.mxu0 0.0
    %4591 = vmatpush1.msra.mxu0 0.0
    %4592 = vmatprep.subr.mxu0 0.0
    %4593 = vmatpush1.msra.mxu0 0.0
    %4594 = vmatprep.subr.mxu0 0.0
    %4595 = vmatpush1.msra.mxu0 0.0
    %4596 = vmatprep.subr.mxu0 0.0
    %4597 = vmatpush1.msra.mxu0 0.0
    %4598 = vmatprep.subr.mxu0 0.0
    %4599 = vmatpush1.msra.mxu0 0.0
    %4600 = vmatprep.subr.mxu0 0.0
    %4601 = vmatpush1.msra.mxu0 0.0
    %4602 = vmatprep.subr.mxu0 0.0
    %4603 = vmatpush1.msra.mxu0 0.0
    %4604 = vmatprep.subr.mxu0 0.0
    %4605 = vmatpush1.msra.mxu0 0.0
    %4606 = vmatprep.subr.mxu0 0.0
    %4607 = vmatpush1.msra.mxu0 0.0
    %4608 = vmatprep.subr.mxu0 0.0
    %4609 = vmatpush1.msra.mxu0 0.0
    %4610 = vmatprep.subr.mxu0 0.0
    %4611 = vmatpush1.msra.mxu0 0.0
    %4612 = vmatprep.subr.mxu0 0.0
    %4613 = vmatpush1.msra.mxu0 0.0
    %4614 = vmatprep.subr.mxu0 0.0
    %4615 = vmatpush1.msra.mxu0 0.0
    %4616 = vmatprep.subr.mxu0 0.0
    %4617 = vmatpush1.msra.mxu0 0.0
    %4618 = vmatprep.subr.mxu0 0.0
    %4619 = vmatpush1.msra.mxu0 0.0
    %4620 = vmatprep.mubr.f32.mxu0 0.0
    %4621 = vmatmul.mubr.f32.gmra.mrb[0].mxu0 %v4274
    %v4622 = vpop.f32.mrb[0].mxu0
    %v4623 = vadd.f32 %v601, %v4622
    %v4624 = vpop.f32.mrb[0].mxu0
    %4625 = vdwg.mxu0
    %4626 = vmatprep.subr.mxu0 0.0
    %4627 = vmatpush1.msra.mxu0 %v116
    %4628 = vmatprep.subr.mxu0 0.0
    %4629 = vmatpush1.msra.mxu0 %v117
    %4630 = vmatprep.subr.mxu0 0.0
    %4631 = vmatpush1.msra.mxu0 %v118
    %4632 = vmatprep.subr.mxu0 0.0
    %4633 = vmatpush1.msra.mxu0 %v119
    %4634 = vmatprep.subr.mxu0 0.0
    %4635 = vmatpush1.msra.mxu0 0.0
    %4636 = vmatprep.subr.mxu0 0.0
    %4637 = vmatpush1.msra.mxu0 0.0
    %4638 = vmatprep.subr.mxu0 0.0
    %4639 = vmatpush1.msra.mxu0 0.0
    %4640 = vmatprep.subr.mxu0 0.0
    %4641 = vmatpush1.msra.mxu0 0.0
    %4642 = vmatprep.subr.mxu0 0.0
    %4643 = vmatpush1.msra.mxu0 0.0
    %4644 = vmatprep.subr.mxu0 0.0
    %4645 = vmatpush1.msra.mxu0 0.0
    %4646 = vmatprep.subr.mxu0 0.0
    %4647 = vmatpush1.msra.mxu0 0.0
    %4648 = vmatprep.subr.mxu0 0.0
    %4649 = vmatpush1.msra.mxu0 0.0
    %4650 = vmatprep.subr.mxu0 0.0
    %4651 = vmatpush1.msra.mxu0 0.0
    %4652 = vmatprep.subr.mxu0 0.0
    %4653 = vmatpush1.msra.mxu0 0.0
    %4654 = vmatprep.subr.mxu0 0.0
    %4655 = vmatpush1.msra.mxu0 0.0
    %4656 = vmatprep.subr.mxu0 0.0
    %4657 = vmatpush1.msra.mxu0 0.0
    %4658 = vmatprep.subr.mxu0 0.0
    %4659 = vmatpush1.msra.mxu0 0.0
    %4660 = vmatprep.subr.mxu0 0.0
    %4661 = vmatpush1.msra.mxu0 0.0
    %4662 = vmatprep.subr.mxu0 0.0
    %4663 = vmatpush1.msra.mxu0 0.0
    %4664 = vmatprep.subr.mxu0 0.0
    %4665 = vmatpush1.msra.mxu0 0.0
    %4666 = vmatprep.subr.mxu0 0.0
    %4667 = vmatpush1.msra.mxu0 0.0
    %4668 = vmatprep.subr.mxu0 0.0
    %4669 = vmatpush1.msra.mxu0 0.0
    %4670 = vmatprep.subr.mxu0 0.0
    %4671 = vmatpush1.msra.mxu0 0.0
    %4672 = vmatprep.subr.mxu0 0.0
    %4673 = vmatpush1.msra.mxu0 0.0
    %4674 = vmatprep.subr.mxu0 0.0
    %4675 = vmatpush1.msra.mxu0 0.0
    %4676 = vmatprep.subr.mxu0 0.0
    %4677 = vmatpush1.msra.mxu0 0.0
    %4678 = vmatprep.subr.mxu0 0.0
    %4679 = vmatpush1.msra.mxu0 0.0
    %4680 = vmatprep.subr.mxu0 0.0
    %4681 = vmatpush1.msra.mxu0 0.0
    %4682 = vmatprep.subr.mxu0 0.0
    %4683 = vmatpush1.msra.mxu0 0.0
    %4684 = vmatprep.subr.mxu0 0.0
    %4685 = vmatpush1.msra.mxu0 0.0
    %4686 = vmatprep.subr.mxu0 0.0
    %4687 = vmatpush1.msra.mxu0 0.0
    %4688 = vmatprep.subr.mxu0 0.0
    %4689 = vmatpush1.msra.mxu0 0.0
    %4690 = vmatprep.mubr.f32.mxu0 0.0
    %4691 = vmatmul.mubr.f32.gmra.mrb[0].mxu0 %v4274
    %v4692 = vpop.f32.mrb[0].mxu0
    %v4693 = vadd.f32 %v605, %v4692
    %v4694 = vpop.f32.mrb[0].mxu0
    %4695 = vdwg.mxu0
    %4696 = vmatprep.subr.mxu0 0.0
    %4697 = vmatpush1.msra.mxu0 %v120
    %4698 = vmatprep.subr.mxu0 0.0
    %4699 = vmatpush1.msra.mxu0 %v121
    %4700 = vmatprep.subr.mxu0 0.0
    %4701 = vmatpush1.msra.mxu0 %v122
    %4702 = vmatprep.subr.mxu0 0.0
    %4703 = vmatpush1.msra.mxu0 %v123
    %4704 = vmatprep.subr.mxu0 0.0
    %4705 = vmatpush1.msra.mxu0 0.0
    %4706 = vmatprep.subr.mxu0 0.0
    %4707 = vmatpush1.msra.mxu0 0.0
    %4708 = vmatprep.subr.mxu0 0.0
    %4709 = vmatpush1.msra.mxu0 0.0
    %4710 = vmatprep.subr.mxu0 0.0
    %4711 = vmatpush1.msra.mxu0 0.0
    %4712 = vmatprep.subr.mxu0 0.0
    %4713 = vmatpush1.msra.mxu0 0.0
    %4714 = vmatprep.subr.mxu0 0.0
    %4715 = vmatpush1.msra.mxu0 0.0
    %4716 = vmatprep.subr.mxu0 0.0
    %4717 = vmatpush1.msra.mxu0 0.0
    %4718 = vmatprep.subr.mxu0 0.0
    %4719 = vmatpush1.msra.mxu0 0.0
    %4720 = vmatprep.subr.mxu0 0.0
    %4721 = vmatpush1.msra.mxu0 0.0
    %4722 = vmatprep.subr.mxu0 0.0
    %4723 = vmatpush1.msra.mxu0 0.0
    %4724 = vmatprep.subr.mxu0 0.0
    %4725 = vmatpush1.msra.mxu0 0.0
    %4726 = vmatprep.subr.mxu0 0.0
    %4727 = vmatpush1.msra.mxu0 0.0
    %4728 = vmatprep.subr.mxu0 0.0
    %4729 = vmatpush1.msra.mxu0 0.0
    %4730 = vmatprep.subr.mxu0 0.0
    %4731 = vmatpush1.msra.mxu0 0.0
    %4732 = vmatprep.subr.mxu0 0.0
    %4733 = vmatpush1.msra.mxu0 0.0
    %4734 = vmatprep.subr.mxu0 0.0
    %4735 = vmatpush1.msra.mxu0 0.0
    %4736 = vmatprep.subr.mxu0 0.0
    %4737 = vmatpush1.msra.mxu0 0.0
    %4738 = vmatprep.subr.mxu0 0.0
    %4739 = vmatpush1.msra.mxu0 0.0
    %4740 = vmatprep.subr.mxu0 0.0
    %4741 = vmatpush1.msra.mxu0 0.0
    %4742 = vmatprep.subr.mxu0 0.0
    %4743 = vmatpush1.msra.mxu0 0.0
    %4744 = vmatprep.subr.mxu0 0.0
    %4745 = vmatpush1.msra.mxu0 0.0
    %4746 = vmatprep.subr.mxu0 0.0
    %4747 = vmatpush1.msra.mxu0 0.0
    %4748 = vmatprep.subr.mxu0 0.0
    %4749 = vmatpush1.msra.mxu0 0.0
    %4750 = vmatprep.subr.mxu0 0.0
    %4751 = vmatpush1.msra.mxu0 0.0
    %4752 = vmatprep.subr.mxu0 0.0
    %4753 = vmatpush1.msra.mxu0 0.0
    %4754 = vmatprep.subr.mxu0 0.0
    %4755 = vmatpush1.msra.mxu0 0.0
    %4756 = vmatprep.subr.mxu0 0.0
    %4757 = vmatpush1.msra.mxu0 0.0
    %4758 = vmatprep.subr.mxu0 0.0
    %4759 = vmatpush1.msra.mxu0 0.0
    %4760 = vmatprep.mubr.f32.mxu0 0.0
    %4761 = vmatmul.mubr.f32.gmra.mrb[0].mxu0 %v4274
    %v4762 = vpop.f32.mrb[0].mxu0
    %v4763 = vadd.f32 %v609, %v4762
    %v4764 = vpop.f32.mrb[0].mxu0
    %4765 = vdwg.mxu0
    %4766 = vmatprep.subr.mxu0 0.0
    %4767 = vmatpush1.msra.mxu0 %v124
    %4768 = vmatprep.subr.mxu0 0.0
    %4769 = vmatpush1.msra.mxu0 %v125
    %4770 = vmatprep.subr.mxu0 0.0
    %4771 = vmatpush1.msra.mxu0 %v126
    %4772 = vmatprep.subr.mxu0 0.0
    %4773 = vmatpush1.msra.mxu0 %v127
    %4774 = vmatprep.subr.mxu0 0.0
    %4775 = vmatpush1.msra.mxu0 0.0
    %4776 = vmatprep.subr.mxu0 0.0
    %4777 = vmatpush1.msra.mxu0 0.0
    %4778 = vmatprep.subr.mxu0 0.0
    %4779 = vmatpush1.msra.mxu0 0.0
    %4780 = vmatprep.subr.mxu0 0.0
    %4781 = vmatpush1.msra.mxu0 0.0
    %4782 = vmatprep.subr.mxu0 0.0
    %4783 = vmatpush1.msra.mxu0 0.0
    %4784 = vmatprep.subr.mxu0 0.0
    %4785 = vmatpush1.msra.mxu0 0.0
    %4786 = vmatprep.subr.mxu0 0.0
    %4787 = vmatpush1.msra.mxu0 0.0
    %4788 = vmatprep.subr.mxu0 0.0
    %4789 = vmatpush1.msra.mxu0 0.0
    %4790 = vmatprep.subr.mxu0 0.0
    %4791 = vmatpush1.msra.mxu0 0.0
    %4792 = vmatprep.subr.mxu0 0.0
    %4793 = vmatpush1.msra.mxu0 0.0
    %4794 = vmatprep.subr.mxu0 0.0
    %4795 = vmatpush1.msra.mxu0 0.0
    %4796 = vmatprep.subr.mxu0 0.0
    %4797 = vmatpush1.msra.mxu0 0.0
    %4798 = vmatprep.subr.mxu0 0.0
    %4799 = vmatpush1.msra.mxu0 0.0
    %4800 = vmatprep.subr.mxu0 0.0
    %4801 = vmatpush1.msra.mxu0 0.0
    %4802 = vmatprep.subr.mxu0 0.0
    %4803 = vmatpush1.msra.mxu0 0.0
    %4804 = vmatprep.subr.mxu0 0.0
    %4805 = vmatpush1.msra.mxu0 0.0
    %4806 = vmatprep.subr.mxu0 0.0
    %4807 = vmatpush1.msra.mxu0 0.0
    %4808 = vmatprep.subr.mxu0 0.0
    %4809 = vmatpush1.msra.mxu0 0.0
    %4810 = vmatprep.subr.mxu0 0.0
    %4811 = vmatpush1.msra.mxu0 0.0
    %4812 = vmatprep.subr.mxu0 0.0
    %4813 = vmatpush1.msra.mxu0 0.0
    %4814 = vmatprep.subr.mxu0 0.0
    %4815 = vmatpush1.msra.mxu0 0.0
    %4816 = vmatprep.subr.mxu0 0.0
    %4817 = vmatpush1.msra.mxu0 0.0
    %4818 = vmatprep.subr.mxu0 0.0
    %4819 = vmatpush1.msra.mxu0 0.0
    %4820 = vmatprep.subr.mxu0 0.0
    %4821 = vmatpush1.msra.mxu0 0.0
    %4822 = vmatprep.subr.mxu0 0.0
    %4823 = vmatpush1.msra.mxu0 0.0
    %4824 = vmatprep.subr.mxu0 0.0
    %4825 = vmatpush1.msra.mxu0 0.0
    %4826 = vmatprep.subr.mxu0 0.0
    %4827 = vmatpush1.msra.mxu0 0.0
    %4828 = vmatprep.subr.mxu0 0.0
    %4829 = vmatpush1.msra.mxu0 0.0
    %4830 = vmatprep.mubr.f32.mxu0 0.0
    %4831 = vmatmul.mubr.f32.gmra.mrb[0].mxu0 %v4274
    %v4832 = vpop.f32.mrb[0].mxu0
    %v4833 = vadd.f32 %v613, %v4832
    %v4834 = vpop.f32.mrb[0].mxu0
    %4835 = vdwg.mxu0
    %4836 = vmatprep.subr.mxu0 0.0
    %4837 = vmatpush1.msra.mxu0 %v128
    %4838 = vmatprep.subr.mxu0 0.0
    %4839 = vmatpush1.msra.mxu0 %v129
    %4840 = vmatprep.subr.mxu0 0.0
    %4841 = vmatpush1.msra.mxu0 %v130
    %4842 = vmatprep.subr.mxu0 0.0
    %4843 = vmatpush1.msra.mxu0 %v131
    %4844 = vmatprep.subr.mxu0 0.0
    %4845 = vmatpush1.msra.mxu0 0.0
    %4846 = vmatprep.subr.mxu0 0.0
    %4847 = vmatpush1.msra.mxu0 0.0
    %4848 = vmatprep.subr.mxu0 0.0
    %4849 = vmatpush1.msra.mxu0 0.0
    %4850 = vmatprep.subr.mxu0 0.0
    %4851 = vmatpush1.msra.mxu0 0.0
    %4852 = vmatprep.subr.mxu0 0.0
    %4853 = vmatpush1.msra.mxu0 0.0
    %4854 = vmatprep.subr.mxu0 0.0
    %4855 = vmatpush1.msra.mxu0 0.0
    %4856 = vmatprep.subr.mxu0 0.0
    %4857 = vmatpush1.msra.mxu0 0.0
    %4858 = vmatprep.subr.mxu0 0.0
    %4859 = vmatpush1.msra.mxu0 0.0
    %4860 = vmatprep.subr.mxu0 0.0
    %4861 = vmatpush1.msra.mxu0 0.0
    %4862 = vmatprep.subr.mxu0 0.0
    %4863 = vmatpush1.msra.mxu0 0.0
    %4864 = vmatprep.subr.mxu0 0.0
    %4865 = vmatpush1.msra.mxu0 0.0
    %4866 = vmatprep.subr.mxu0 0.0
    %4867 = vmatpush1.msra.mxu0 0.0
    %4868 = vmatprep.subr.mxu0 0.0
    %4869 = vmatpush1.msra.mxu0 0.0
    %4870 = vmatprep.subr.mxu0 0.0
    %4871 = vmatpush1.msra.mxu0 0.0
    %4872 = vmatprep.subr.mxu0 0.0
    %4873 = vmatpush1.msra.mxu0 0.0
    %4874 = vmatprep.subr.mxu0 0.0
    %4875 = vmatpush1.msra.mxu0 0.0
    %4876 = vmatprep.subr.mxu0 0.0
    %4877 = vmatpush1.msra.mxu0 0.0
    %4878 = vmatprep.subr.mxu0 0.0
    %4879 = vmatpush1.msra.mxu0 0.0
    %4880 = vmatprep.subr.mxu0 0.0
    %4881 = vmatpush1.msra.mxu0 0.0
    %4882 = vmatprep.subr.mxu0 0.0
    %4883 = vmatpush1.msra.mxu0 0.0
    %4884 = vmatprep.subr.mxu0 0.0
    %4885 = vmatpush1.msra.mxu0 0.0
    %4886 = vmatprep.subr.mxu0 0.0
    %4887 = vmatpush1.msra.mxu0 0.0
    %4888 = vmatprep.subr.mxu0 0.0
    %4889 = vmatpush1.msra.mxu0 0.0
    %4890 = vmatprep.subr.mxu0 0.0
    %4891 = vmatpush1.msra.mxu0 0.0
    %4892 = vmatprep.subr.mxu0 0.0
    %4893 = vmatpush1.msra.mxu0 0.0
    %4894 = vmatprep.subr.mxu0 0.0
    %4895 = vmatpush1.msra.mxu0 0.0
    %4896 = vmatprep.subr.mxu0 0.0
    %4897 = vmatpush1.msra.mxu0 0.0
    %4898 = vmatprep.subr.mxu0 0.0
    %4899 = vmatpush1.msra.mxu0 0.0
    %4900 = vmatprep.mubr.f32.mxu0 0.0
    %4901 = vmatmul.mubr.f32.gmra.mrb[0].mxu0 %v4274
    %v4902 = vpop.f32.mrb[0].mxu0
    %v4903 = vadd.f32 %v905, %v4902
    %v4904 = vpop.f32.mrb[0].mxu0
    %4905 = vdwg.mxu0
    %4906 = vmatprep.subr.mxu0 0.0
    %4907 = vmatpush1.msra.mxu0 %v132
    %4908 = vmatprep.subr.mxu0 0.0
    %4909 = vmatpush1.msra.mxu0 %v133
    %4910 = vmatprep.subr.mxu0 0.0
    %4911 = vmatpush1.msra.mxu0 %v134
    %4912 = vmatprep.subr.mxu0 0.0
    %4913 = vmatpush1.msra.mxu0 %v135
    %4914 = vmatprep.subr.mxu0 0.0
    %4915 = vmatpush1.msra.mxu0 0.0
    %4916 = vmatprep.subr.mxu0 0.0
    %4917 = vmatpush1.msra.mxu0 0.0
    %4918 = vmatprep.subr.mxu0 0.0
    %4919 = vmatpush1.msra.mxu0 0.0
    %4920 = vmatprep.subr.mxu0 0.0
    %4921 = vmatpush1.msra.mxu0 0.0
    %4922 = vmatprep.subr.mxu0 0.0
    %4923 = vmatpush1.msra.mxu0 0.0
    %4924 = vmatprep.subr.mxu0 0.0
    %4925 = vmatpush1.msra.mxu0 0.0
    %4926 = vmatprep.subr.mxu0 0.0
    %4927 = vmatpush1.msra.mxu0 0.0
    %4928 = vmatprep.subr.mxu0 0.0
    %4929 = vmatpush1.msra.mxu0 0.0
    %4930 = vmatprep.subr.mxu0 0.0
    %4931 = vmatpush1.msra.mxu0 0.0
    %4932 = vmatprep.subr.mxu0 0.0
    %4933 = vmatpush1.msra.mxu0 0.0
    %4934 = vmatprep.subr.mxu0 0.0
    %4935 = vmatpush1.msra.mxu0 0.0
    %4936 = vmatprep.subr.mxu0 0.0
    %4937 = vmatpush1.msra.mxu0 0.0
    %4938 = vmatprep.subr.mxu0 0.0
    %4939 = vmatpush1.msra.mxu0 0.0
    %4940 = vmatprep.subr.mxu0 0.0
    %4941 = vmatpush1.msra.mxu0 0.0
    %4942 = vmatprep.subr.mxu0 0.0
    %4943 = vmatpush1.msra.mxu0 0.0
    %4944 = vmatprep.subr.mxu0 0.0
    %4945 = vmatpush1.msra.mxu0 0.0
    %4946 = vmatprep.subr.mxu0 0.0
    %4947 = vmatpush1.msra.mxu0 0.0
    %4948 = vmatprep.subr.mxu0 0.0
    %4949 = vmatpush1.msra.mxu0 0.0
    %4950 = vmatprep.subr.mxu0 0.0
    %4951 = vmatpush1.msra.mxu0 0.0
    %4952 = vmatprep.subr.mxu0 0.0
    %4953 = vmatpush1.msra.mxu0 0.0
    %4954 = vmatprep.subr.mxu0 0.0
    %4955 = vmatpush1.msra.mxu0 0.0
    %4956 = vmatprep.subr.mxu0 0.0
    %4957 = vmatpush1.msra.mxu0 0.0
    %4958 = vmatprep.subr.mxu0 0.0
    %4959 = vmatpush1.msra.mxu0 0.0
    %4960 = vmatprep.subr.mxu0 0.0
    %4961 = vmatpush1.msra.mxu0 0.0
    %4962 = vmatprep.subr.mxu0 0.0
    %4963 = vmatpush1.msra.mxu0 0.0
    %4964 = vmatprep.subr.mxu0 0.0
    %4965 = vmatpush1.msra.mxu0 0.0
    %4966 = vmatprep.subr.mxu0 0.0
    %4967 = vmatpush1.msra.mxu0 0.0
    %4968 = vmatprep.subr.mxu0 0.0
    %4969 = vmatpush1.msra.mxu0 0.0
    %4970 = vmatprep.mubr.f32.mxu0 0.0
    %4971 = vmatmul.mubr.f32.gmra.mrb[0].mxu0 %v4274
    %v4972 = vpop.f32.mrb[0].mxu0
    %v4973 = vadd.f32 %v909, %v4972
    %v4974 = vpop.f32.mrb[0].mxu0
    %4975 = vdwg.mxu0
    %4976 = vmatprep.subr.mxu0 0.0
    %4977 = vmatpush1.msra.mxu0 %v136
    %4978 = vmatprep.subr.mxu0 0.0
    %4979 = vmatpush1.msra.mxu0 %v137
    %4980 = vmatprep.subr.mxu0 0.0
    %4981 = vmatpush1.msra.mxu0 %v138
    %4982 = vmatprep.subr.mxu0 0.0
    %4983 = vmatpush1.msra.mxu0 %v139
    %4984 = vmatprep.subr.mxu0 0.0
    %4985 = vmatpush1.msra.mxu0 0.0
    %4986 = vmatprep.subr.mxu0 0.0
    %4987 = vmatpush1.msra.mxu0 0.0
    %4988 = vmatprep.subr.mxu0 0.0
    %4989 = vmatpush1.msra.mxu0 0.0
    %4990 = vmatprep.subr.mxu0 0.0
    %4991 = vmatpush1.msra.mxu0 0.0
    %4992 = vmatprep.subr.mxu0 0.0
    %4993 = vmatpush1.msra.mxu0 0.0
    %4994 = vmatprep.subr.mxu0 0.0
    %4995 = vmatpush1.msra.mxu0 0.0
    %4996 = vmatprep.subr.mxu0 0.0
    %4997 = vmatpush1.msra.mxu0 0.0
    %4998 = vmatprep.subr.mxu0 0.0
    %4999 = vmatpush1.msra.mxu0 0.0
    %5000 = vmatprep.subr.mxu0 0.0
    %5001 = vmatpush1.msra.mxu0 0.0
    %5002 = vmatprep.subr.mxu0 0.0
    %5003 = vmatpush1.msra.mxu0 0.0
    %5004 = vmatprep.subr.mxu0 0.0
    %5005 = vmatpush1.msra.mxu0 0.0
    %5006 = vmatprep.subr.mxu0 0.0
    %5007 = vmatpush1.msra.mxu0 0.0
    %5008 = vmatprep.subr.mxu0 0.0
    %5009 = vmatpush1.msra.mxu0 0.0
    %5010 = vmatprep.subr.mxu0 0.0
    %5011 = vmatpush1.msra.mxu0 0.0
    %5012 = vmatprep.subr.mxu0 0.0
    %5013 = vmatpush1.msra.mxu0 0.0
    %5014 = vmatprep.subr.mxu0 0.0
    %5015 = vmatpush1.msra.mxu0 0.0
    %5016 = vmatprep.subr.mxu0 0.0
    %5017 = vmatpush1.msra.mxu0 0.0
    %5018 = vmatprep.subr.mxu0 0.0
    %5019 = vmatpush1.msra.mxu0 0.0
    %5020 = vmatprep.subr.mxu0 0.0
    %5021 = vmatpush1.msra.mxu0 0.0
    %5022 = vmatprep.subr.mxu0 0.0
    %5023 = vmatpush1.msra.mxu0 0.0
    %5024 = vmatprep.subr.mxu0 0.0
    %5025 = vmatpush1.msra.mxu0 0.0
    %5026 = vmatprep.subr.mxu0 0.0
    %5027 = vmatpush1.msra.mxu0 0.0
    %5028 = vmatprep.subr.mxu0 0.0
    %5029 = vmatpush1.msra.mxu0 0.0
    %5030 = vmatprep.subr.mxu0 0.0
    %5031 = vmatpush1.msra.mxu0 0.0
    %5032 = vmatprep.subr.mxu0 0.0
    %5033 = vmatpush1.msra.mxu0 0.0
    %5034 = vmatprep.subr.mxu0 0.0
    %5035 = vmatpush1.msra.mxu0 0.0
    %5036 = vmatprep.subr.mxu0 0.0
    %5037 = vmatpush1.msra.mxu0 0.0
    %5038 = vmatprep.subr.mxu0 0.0
    %5039 = vmatpush1.msra.mxu0 0.0
    %5040 = vmatprep.mubr.f32.mxu0 0.0
    %5041 = vmatmul.mubr.f32.gmra.mrb[0].mxu0 %v4274
    %v5042 = vpop.f32.mrb[0].mxu0
    %v5043 = vadd.f32 %v913, %v5042
    %v5044 = vpop.f32.mrb[0].mxu0
    %5045 = vdwg.mxu0
    %5046 = vmatprep.subr.mxu0 0.0
    %5047 = vmatpush1.msra.mxu0 %v140
    %5048 = vmatprep.subr.mxu0 0.0
    %5049 = vmatpush1.msra.mxu0 %v141
    %5050 = vmatprep.subr.mxu0 0.0
    %5051 = vmatpush1.msra.mxu0 %v142
    %5052 = vmatprep.subr.mxu0 0.0
    %5053 = vmatpush1.msra.mxu0 %v143
    %5054 = vmatprep.subr.mxu0 0.0
    %5055 = vmatpush1.msra.mxu0 0.0
    %5056 = vmatprep.subr.mxu0 0.0
    %5057 = vmatpush1.msra.mxu0 0.0
    %5058 = vmatprep.subr.mxu0 0.0
    %5059 = vmatpush1.msra.mxu0 0.0
    %5060 = vmatprep.subr.mxu0 0.0
    %5061 = vmatpush1.msra.mxu0 0.0
    %5062 = vmatprep.subr.mxu0 0.0
    %5063 = vmatpush1.msra.mxu0 0.0
    %5064 = vmatprep.subr.mxu0 0.0
    %5065 = vmatpush1.msra.mxu0 0.0
    %5066 = vmatprep.subr.mxu0 0.0
    %5067 = vmatpush1.msra.mxu0 0.0
    %5068 = vmatprep.subr.mxu0 0.0
    %5069 = vmatpush1.msra.mxu0 0.0
    %5070 = vmatprep.subr.mxu0 0.0
    %5071 = vmatpush1.msra.mxu0 0.0
    %5072 = vmatprep.subr.mxu0 0.0
    %5073 = vmatpush1.msra.mxu0 0.0
    %5074 = vmatprep.subr.mxu0 0.0
    %5075 = vmatpush1.msra.mxu0 0.0
    %5076 = vmatprep.subr.mxu0 0.0
    %5077 = vmatpush1.msra.mxu0 0.0
    %5078 = vmatprep.subr.mxu0 0.0
    %5079 = vmatpush1.msra.mxu0 0.0
    %5080 = vmatprep.subr.mxu0 0.0
    %5081 = vmatpush1.msra.mxu0 0.0
    %5082 = vmatprep.subr.mxu0 0.0
    %5083 = vmatpush1.msra.mxu0 0.0
    %5084 = vmatprep.subr.mxu0 0.0
    %5085 = vmatpush1.msra.mxu0 0.0
    %5086 = vmatprep.subr.mxu0 0.0
    %5087 = vmatpush1.msra.mxu0 0.0
    %5088 = vmatprep.subr.mxu0 0.0
    %5089 = vmatpush1.msra.mxu0 0.0
    %5090 = vmatprep.subr.mxu0 0.0
    %5091 = vmatpush1.msra.mxu0 0.0
    %5092 = vmatprep.subr.mxu0 0.0
    %5093 = vmatpush1.msra.mxu0 0.0
    %5094 = vmatprep.subr.mxu0 0.0
    %5095 = vmatpush1.msra.mxu0 0.0
    %5096 = vmatprep.subr.mxu0 0.0
    %5097 = vmatpush1.msra.mxu0 0.0
    %5098 = vmatprep.subr.mxu0 0.0
    %5099 = vmatpush1.msra.mxu0 0.0
    %5100 = vmatprep.subr.mxu0 0.0
    %5101 = vmatpush1.msra.mxu0 0.0
    %5102 = vmatprep.subr.mxu0 0.0
    %5103 = vmatpush1.msra.mxu0 0.0
    %5104 = vmatprep.subr.mxu0 0.0
    %5105 = vmatpush1.msra.mxu0 0.0
    %5106 = vmatprep.subr.mxu0 0.0
    %5107 = vmatpush1.msra.mxu0 0.0
    %5108 = vmatprep.subr.mxu0 0.0
    %5109 = vmatpush1.msra.mxu0 0.0
    %5110 = vmatprep.mubr.f32.mxu0 0.0
    %5111 = vmatmul.mubr.f32.gmra.mrb[0].mxu0 %v4274
    %v5112 = vpop.f32.mrb[0].mxu0
    %v5113 = vadd.f32 %v917, %v5112
    %v5114 = vpop.f32.mrb[0].mxu0
    %5115 = vdwg.mxu0
    %v5117 = vsel %vm1202, %v4343, 0
    %v5120 = vsel %vm1202, %v4623, 0
    %5122 = vmatprep.subr.mxu0 0.0
    %5123 = vmatpush1.xpose.msra.mxu0 %v5120
    %5124 = vmatprep.subr.mxu0 0.0
    %5125 = vmatpush1.xpose.msra.mxu0 0.0
    %5126 = vmatprep.subr.mxu0 0.0
    %5127 = vmatpush1.xpose.msra.mxu0 0.0
    %5128 = vmatprep.subr.mxu0 0.0
    %5129 = vmatpush1.xpose.msra.mxu0 0.0
    %5130 = vmatprep.subr.mxu0 0.0
    %5131 = vmatpush1.xpose.msra.mxu0 0.0
    %5132 = vmatprep.subr.mxu0 0.0
    %5133 = vmatpush1.xpose.msra.mxu0 0.0
    %5134 = vmatprep.subr.mxu0 0.0
    %5135 = vmatpush1.xpose.msra.mxu0 0.0
    %5136 = vmatprep.subr.mxu0 0.0
    %5137 = vmatpush1.xpose.msra.mxu0 0.0
    %5138 = vmatprep.subr.mxu0 0.0
    %5139 = vmatpush1.xpose.msra.mxu0 0.0
    %5140 = vmatprep.subr.mxu0 0.0
    %5141 = vmatpush1.xpose.msra.mxu0 0.0
    %5142 = vmatprep.subr.mxu0 0.0
    %5143 = vmatpush1.xpose.msra.mxu0 0.0
    %5144 = vmatprep.subr.mxu0 0.0
    %5145 = vmatpush1.xpose.msra.mxu0 0.0
    %5146 = vmatprep.subr.mxu0 0.0
    %5147 = vmatpush1.xpose.msra.mxu0 0.0
    %5148 = vmatprep.subr.mxu0 0.0
    %5149 = vmatpush1.xpose.msra.mxu0 0.0
    %5150 = vmatprep.subr.mxu0 0.0
    %5151 = vmatpush1.xpose.msra.mxu0 0.0
    %5152 = vmatprep.subr.mxu0 0.0
    %5153 = vmatpush1.xpose.msra.mxu0 0.0
    %5154 = vmatprep.subr.mxu0 0.0
    %5155 = vmatpush1.xpose.msra.mxu0 0.0
    %5156 = vmatprep.subr.mxu0 0.0
    %5157 = vmatpush1.xpose.msra.mxu0 0.0
    %5158 = vmatprep.subr.mxu0 0.0
    %5159 = vmatpush1.xpose.msra.mxu0 0.0
    %5160 = vmatprep.subr.mxu0 0.0
    %5161 = vmatpush1.xpose.msra.mxu0 0.0
    %5162 = vmatprep.subr.mxu0 0.0
    %5163 = vmatpush1.xpose.msra.mxu0 0.0
    %5164 = vmatprep.subr.mxu0 0.0
    %5165 = vmatpush1.xpose.msra.mxu0 0.0
    %5166 = vmatprep.subr.mxu0 0.0
    %5167 = vmatpush1.xpose.msra.mxu0 0.0
    %5168 = vmatprep.subr.mxu0 0.0
    %5169 = vmatpush1.xpose.msra.mxu0 0.0
    %5170 = vmatprep.subr.mxu0 0.0
    %5171 = vmatpush1.xpose.msra.mxu0 0.0
    %5172 = vmatprep.subr.mxu0 0.0
    %5173 = vmatpush1.xpose.msra.mxu0 0.0
    %5174 = vmatprep.subr.mxu0 0.0
    %5175 = vmatpush1.xpose.msra.mxu0 0.0
    %5176 = vmatprep.subr.mxu0 0.0
    %5177 = vmatpush1.xpose.msra.mxu0 0.0
    %5178 = vmatprep.subr.mxu0 0.0
    %5179 = vmatpush1.xpose.msra.mxu0 0.0
    %5180 = vmatprep.subr.mxu0 0.0
    %5181 = vmatpush1.xpose.msra.mxu0 0.0
    %5182 = vmatprep.subr.mxu0 0.0
    %5183 = vmatpush1.xpose.msra.mxu0 0.0
    %5184 = vmatprep.subr.mxu0 0.0
    %5185 = vmatpush1.xpose.msra.mxu0 0.0
    %5186 = vmatprep.mubr.f32.mxu0 0.0
    %5187 = vmatmul.mubr.f32.gmra.mrb[0].mxu0 %v5117
    %v5188 = vpop.f32.mrb[0].mxu0
    %v5189 = vadd.f32 0.0, %v5188
    %v5190 = vpop.f32.mrb[0].mxu0
    %5191 = vdwg.mxu0
    %v5193 = vsel %vm1202, %v4413, 0
    %v5196 = vsel %vm1202, %v4693, 0
    %5198 = vmatprep.subr.mxu0 0.0
    %5199 = vmatpush1.xpose.msra.mxu0 %v5196
    %5200 = vmatprep.subr.mxu0 0.0
    %5201 = vmatpush1.xpose.msra.mxu0 0.0
    %5202 = vmatprep.subr.mxu0 0.0
    %5203 = vmatpush1.xpose.msra.mxu0 0.0
    %5204 = vmatprep.subr.mxu0 0.0
    %5205 = vmatpush1.xpose.msra.mxu0 0.0
    %5206 = vmatprep.subr.mxu0 0.0
    %5207 = vmatpush1.xpose.msra.mxu0 0.0
    %5208 = vmatprep.subr.mxu0 0.0
    %5209 = vmatpush1.xpose.msra.mxu0 0.0
    %5210 = vmatprep.subr.mxu0 0.0
    %5211 = vmatpush1.xpose.msra.mxu0 0.0
    %5212 = vmatprep.subr.mxu0 0.0
    %5213 = vmatpush1.xpose.msra.mxu0 0.0
    %5214 = vmatprep.subr.mxu0 0.0
    %5215 = vmatpush1.xpose.msra.mxu0 0.0
    %5216 = vmatprep.subr.mxu0 0.0
    %5217 = vmatpush1.xpose.msra.mxu0 0.0
    %5218 = vmatprep.subr.mxu0 0.0
    %5219 = vmatpush1.xpose.msra.mxu0 0.0
    %5220 = vmatprep.subr.mxu0 0.0
    %5221 = vmatpush1.xpose.msra.mxu0 0.0
    %5222 = vmatprep.subr.mxu0 0.0
    %5223 = vmatpush1.xpose.msra.mxu0 0.0
    %5224 = vmatprep.subr.mxu0 0.0
    %5225 = vmatpush1.xpose.msra.mxu0 0.0
    %5226 = vmatprep.subr.mxu0 0.0
    %5227 = vmatpush1.xpose.msra.mxu0 0.0
    %5228 = vmatprep.subr.mxu0 0.0
    %5229 = vmatpush1.xpose.msra.mxu0 0.0
    %5230 = vmatprep.subr.mxu0 0.0
    %5231 = vmatpush1.xpose.msra.mxu0 0.0
    %5232 = vmatprep.subr.mxu0 0.0
    %5233 = vmatpush1.xpose.msra.mxu0 0.0
    %5234 = vmatprep.subr.mxu0 0.0
    %5235 = vmatpush1.xpose.msra.mxu0 0.0
    %5236 = vmatprep.subr.mxu0 0.0
    %5237 = vmatpush1.xpose.msra.mxu0 0.0
    %5238 = vmatprep.subr.mxu0 0.0
    %5239 = vmatpush1.xpose.msra.mxu0 0.0
    %5240 = vmatprep.subr.mxu0 0.0
    %5241 = vmatpush1.xpose.msra.mxu0 0.0
    %5242 = vmatprep.subr.mxu0 0.0
    %5243 = vmatpush1.xpose.msra.mxu0 0.0
    %5244 = vmatprep.subr.mxu0 0.0
    %5245 = vmatpush1.xpose.msra.mxu0 0.0
    %5246 = vmatprep.subr.mxu0 0.0
    %5247 = vmatpush1.xpose.msra.mxu0 0.0
    %5248 = vmatprep.subr.mxu0 0.0
    %5249 = vmatpush1.xpose.msra.mxu0 0.0
    %5250 = vmatprep.subr.mxu0 0.0
    %5251 = vmatpush1.xpose.msra.mxu0 0.0
    %5252 = vmatprep.subr.mxu0 0.0
    %5253 = vmatpush1.xpose.msra.mxu0 0.0
    %5254 = vmatprep.subr.mxu0 0.0
    %5255 = vmatpush1.xpose.msra.mxu0 0.0
    %5256 = vmatprep.subr.mxu0 0.0
    %5257 = vmatpush1.xpose.msra.mxu0 0.0
    %5258 = vmatprep.subr.mxu0 0.0
    %5259 = vmatpush1.xpose.msra.mxu0 0.0
    %5260 = vmatprep.subr.mxu0 0.0
    %5261 = vmatpush1.xpose.msra.mxu0 0.0
    %5262 = vmatprep.mubr.f32.mxu0 0.0
    %5263 = vmatmul.mubr.f32.gmra.mrb[0].mxu0 %v5193
    %v5264 = vpop.f32.mrb[0].mxu0
    %v5265 = vadd.f32 0.0, %v5264
    %v5266 = vpop.f32.mrb[0].mxu0
    %5267 = vdwg.mxu0
    %v5269 = vsel %vm1202, %v4483, 0
    %v5272 = vsel %vm1202, %v4763, 0
    %5274 = vmatprep.subr.mxu0 0.0
    %5275 = vmatpush1.xpose.msra.mxu0 %v5272
    %5276 = vmatprep.subr.mxu0 0.0
    %5277 = vmatpush1.xpose.msra.mxu0 0.0
    %5278 = vmatprep.subr.mxu0 0.0
    %5279 = vmatpush1.xpose.msra.mxu0 0.0
    %5280 = vmatprep.subr.mxu0 0.0
    %5281 = vmatpush1.xpose.msra.mxu0 0.0
    %5282 = vmatprep.subr.mxu0 0.0
    %5283 = vmatpush1.xpose.msra.mxu0 0.0
    %5284 = vmatprep.subr.mxu0 0.0
    %5285 = vmatpush1.xpose.msra.mxu0 0.0
    %5286 = vmatprep.subr.mxu0 0.0
    %5287 = vmatpush1.xpose.msra.mxu0 0.0
    %5288 = vmatprep.subr.mxu0 0.0
    %5289 = vmatpush1.xpose.msra.mxu0 0.0
    %5290 = vmatprep.subr.mxu0 0.0
    %5291 = vmatpush1.xpose.msra.mxu0 0.0
    %5292 = vmatprep.subr.mxu0 0.0
    %5293 = vmatpush1.xpose.msra.mxu0 0.0
    %5294 = vmatprep.subr.mxu0 0.0
    %5295 = vmatpush1.xpose.msra.mxu0 0.0
    %5296 = vmatprep.subr.mxu0 0.0
    %5297 = vmatpush1.xpose.msra.mxu0 0.0
    %5298 = vmatprep.subr.mxu0 0.0
    %5299 = vmatpush1.xpose.msra.mxu0 0.0
    %5300 = vmatprep.subr.mxu0 0.0
    %5301 = vmatpush1.xpose.msra.mxu0 0.0
    %5302 = vmatprep.subr.mxu0 0.0
    %5303 = vmatpush1.xpose.msra.mxu0 0.0
    %5304 = vmatprep.subr.mxu0 0.0
    %5305 = vmatpush1.xpose.msra.mxu0 0.0
    %5306 = vmatprep.subr.mxu0 0.0
    %5307 = vmatpush1.xpose.msra.mxu0 0.0
    %5308 = vmatprep.subr.mxu0 0.0
    %5309 = vmatpush1.xpose.msra.mxu0 0.0
    %5310 = vmatprep.subr.mxu0 0.0
    %5311 = vmatpush1.xpose.msra.mxu0 0.0
    %5312 = vmatprep.subr.mxu0 0.0
    %5313 = vmatpush1.xpose.msra.mxu0 0.0
    %5314 = vmatprep.subr.mxu0 0.0
    %5315 = vmatpush1.xpose.msra.mxu0 0.0
    %5316 = vmatprep.subr.mxu0 0.0
    %5317 = vmatpush1.xpose.msra.mxu0 0.0
    %5318 = vmatprep.subr.mxu0 0.0
    %5319 = vmatpush1.xpose.msra.mxu0 0.0
    %5320 = vmatprep.subr.mxu0 0.0
    %5321 = vmatpush1.xpose.msra.mxu0 0.0
    %5322 = vmatprep.subr.mxu0 0.0
    %5323 = vmatpush1.xpose.msra.mxu0 0.0
    %5324 = vmatprep.subr.mxu0 0.0
    %5325 = vmatpush1.xpose.msra.mxu0 0.0
    %5326 = vmatprep.subr.mxu0 0.0
    %5327 = vmatpush1.xpose.msra.mxu0 0.0
    %5328 = vmatprep.subr.mxu0 0.0
    %5329 = vmatpush1.xpose.msra.mxu0 0.0
    %5330 = vmatprep.subr.mxu0 0.0
    %5331 = vmatpush1.xpose.msra.mxu0 0.0
    %5332 = vmatprep.subr.mxu0 0.0
    %5333 = vmatpush1.xpose.msra.mxu0 0.0
    %5334 = vmatprep.subr.mxu0 0.0
    %5335 = vmatpush1.xpose.msra.mxu0 0.0
    %5336 = vmatprep.subr.mxu0 0.0
    %5337 = vmatpush1.xpose.msra.mxu0 0.0
    %5338 = vmatprep.mubr.f32.mxu0 0.0
    %5339 = vmatmul.mubr.f32.gmra.mrb[0].mxu0 %v5269
    %v5340 = vpop.f32.mrb[0].mxu0
    %v5341 = vadd.f32 0.0, %v5340
    %v5342 = vpop.f32.mrb[0].mxu0
    %5343 = vdwg.mxu0
    %v5345 = vsel %vm1202, %v4553, 0
    %v5348 = vsel %vm1202, %v4833, 0
    %5350 = vmatprep.subr.mxu0 0.0
    %5351 = vmatpush1.xpose.msra.mxu0 %v5348
    %5352 = vmatprep.subr.mxu0 0.0
    %5353 = vmatpush1.xpose.msra.mxu0 0.0
    %5354 = vmatprep.subr.mxu0 0.0
    %5355 = vmatpush1.xpose.msra.mxu0 0.0
    %5356 = vmatprep.subr.mxu0 0.0
    %5357 = vmatpush1.xpose.msra.mxu0 0.0
    %5358 = vmatprep.subr.mxu0 0.0
    %5359 = vmatpush1.xpose.msra.mxu0 0.0
    %5360 = vmatprep.subr.mxu0 0.0
    %5361 = vmatpush1.xpose.msra.mxu0 0.0
    %5362 = vmatprep.subr.mxu0 0.0
    %5363 = vmatpush1.xpose.msra.mxu0 0.0
    %5364 = vmatprep.subr.mxu0 0.0
    %5365 = vmatpush1.xpose.msra.mxu0 0.0
    %5366 = vmatprep.subr.mxu0 0.0
    %5367 = vmatpush1.xpose.msra.mxu0 0.0
    %5368 = vmatprep.subr.mxu0 0.0
    %5369 = vmatpush1.xpose.msra.mxu0 0.0
    %5370 = vmatprep.subr.mxu0 0.0
    %5371 = vmatpush1.xpose.msra.mxu0 0.0
    %5372 = vmatprep.subr.mxu0 0.0
    %5373 = vmatpush1.xpose.msra.mxu0 0.0
    %5374 = vmatprep.subr.mxu0 0.0
    %5375 = vmatpush1.xpose.msra.mxu0 0.0
    %5376 = vmatprep.subr.mxu0 0.0
    %5377 = vmatpush1.xpose.msra.mxu0 0.0
    %5378 = vmatprep.subr.mxu0 0.0
    %5379 = vmatpush1.xpose.msra.mxu0 0.0
    %5380 = vmatprep.subr.mxu0 0.0
    %5381 = vmatpush1.xpose.msra.mxu0 0.0
    %5382 = vmatprep.subr.mxu0 0.0
    %5383 = vmatpush1.xpose.msra.mxu0 0.0
    %5384 = vmatprep.subr.mxu0 0.0
    %5385 = vmatpush1.xpose.msra.mxu0 0.0
    %5386 = vmatprep.subr.mxu0 0.0
    %5387 = vmatpush1.xpose.msra.mxu0 0.0
    %5388 = vmatprep.subr.mxu0 0.0
    %5389 = vmatpush1.xpose.msra.mxu0 0.0
    %5390 = vmatprep.subr.mxu0 0.0
    %5391 = vmatpush1.xpose.msra.mxu0 0.0
    %5392 = vmatprep.subr.mxu0 0.0
    %5393 = vmatpush1.xpose.msra.mxu0 0.0
    %5394 = vmatprep.subr.mxu0 0.0
    %5395 = vmatpush1.xpose.msra.mxu0 0.0
    %5396 = vmatprep.subr.mxu0 0.0
    %5397 = vmatpush1.xpose.msra.mxu0 0.0
    %5398 = vmatprep.subr.mxu0 0.0
    %5399 = vmatpush1.xpose.msra.mxu0 0.0
    %5400 = vmatprep.subr.mxu0 0.0
    %5401 = vmatpush1.xpose.msra.mxu0 0.0
    %5402 = vmatprep.subr.mxu0 0.0
    %5403 = vmatpush1.xpose.msra.mxu0 0.0
    %5404 = vmatprep.subr.mxu0 0.0
    %5405 = vmatpush1.xpose.msra.mxu0 0.0
    %5406 = vmatprep.subr.mxu0 0.0
    %5407 = vmatpush1.xpose.msra.mxu0 0.0
    %5408 = vmatprep.subr.mxu0 0.0
    %5409 = vmatpush1.xpose.msra.mxu0 0.0
    %5410 = vmatprep.subr.mxu0 0.0
    %5411 = vmatpush1.xpose.msra.mxu0 0.0
    %5412 = vmatprep.subr.mxu0 0.0
    %5413 = vmatpush1.xpose.msra.mxu0 0.0
    %5414 = vmatprep.mubr.f32.mxu0 0.0
    %5415 = vmatmul.mubr.f32.gmra.mrb[0].mxu0 %v5345
    %v5416 = vpop.f32.mrb[0].mxu0
    %v5417 = vadd.f32 0.0, %v5416
    %v5418 = vpop.f32.mrb[0].mxu0
    %5419 = vdwg.mxu0
    %v5420 = vmul.f32 %v5189, 0.35355338
    %v5421 = vmul.f32 %v5265, 0.35355338
    %v5422 = vmul.f32 %v5341, 0.35355338
    %v5423 = vmul.f32 %v5417, 0.35355338
    %v5424 = vadd.f32 %v5420, %v253
    %v5425 = vadd.f32 %v5421, %v253
    %v5426 = vadd.f32 %v5422, %v253
    %v5427 = vadd.f32 %v5423, %v253
    %v5428 = vsel %vm1202, %v5424, -inf
    %5429 = vmax.xlane.f32.xlu0 %v5428
    %v5430 = vpop.xlane.xlu0 %5429
    %v5431 = vsel %vm1202, %v5425, -inf
    %5432 = vmax.xlane.f32.xlu0 %v5431
    %v5433 = vpop.xlane.xlu0 %5432
    %v5434 = vsel %vm1202, %v5426, -inf
    %5435 = vmax.xlane.f32.xlu0 %v5434
    %v5436 = vpop.xlane.xlu0 %5435
    %v5437 = vsel %vm1202, %v5427, -inf
    %5438 = vmax.xlane.f32.xlu0 %v5437
    %v5439 = vpop.xlane.xlu0 %5438
    %v5440 = vsub.f32 %v5424, %v5430
    %v5441 = vsub.f32 %v5425, %v5433
    %v5442 = vsub.f32 %v5426, %v5436
    %v5443 = vsub.f32 %v5427, %v5439
    %v5444 = vmul.f32 %v5440, 1.442695
    %v5445 = vpow.pop %v5444
    %v5446 = vmul.f32 %v5441, 1.442695
    %v5447 = vpow.pop %v5446
    %v5448 = vmul.f32 %v5442, 1.442695
    %v5449 = vpow.pop %v5448
    %v5450 = vmul.f32 %v5443, 1.442695
    %v5451 = vpow.pop %v5450
    %v5452 = vsel %vm1202, %v5445, 0.0
    %5453 = vadd.xlane.f32.xlu0 %v5452
    %v5454 = vpop.xlane.xlu0 %5453
    %v5455 = vsel %vm1202, %v5447, 0.0
    %5456 = vadd.xlane.f32.xlu0 %v5455
    %v5457 = vpop.xlane.xlu0 %5456
    %v5458 = vsel %vm1202, %v5449, 0.0
    %5459 = vadd.xlane.f32.xlu0 %v5458
    %v5460 = vpop.xlane.xlu0 %5459
    %v5461 = vsel %vm1202, %v5451, 0.0
    %5462 = vadd.xlane.f32.xlu0 %v5461
    %v5463 = vpop.xlane.xlu0 %5462
    %v5464 = vrcp.pop %v5454
    %v5465 = vrcp.pop %v5457
    %v5466 = vrcp.pop %v5460
    %v5467 = vrcp.pop %v5463
    %v5468 = vmul.f32 %v5445, %v5464
    %v5469 = vmul.f32 %v5447, %v5465
    %v5470 = vmul.f32 %v5449, %v5466
    %v5471 = vmul.f32 %v5451, %v5467
    %v5473 = vsel %vm1202, %v5468, 0
    %5475 = vmatprep.subr.mxu0 0.0
    %5476 = vmatpush1.msra.mxu0 %v4903
    %5477 = vmatprep.subr.mxu0 0.0
    %5478 = vmatpush1.msra.mxu0 0.0
    %5479 = vmatprep.subr.mxu0 0.0
    %5480 = vmatpush1.msra.mxu0 0.0
    %5481 = vmatprep.subr.mxu0 0.0
    %5482 = vmatpush1.msra.mxu0 0.0
    %5483 = vmatprep.subr.mxu0 0.0
    %5484 = vmatpush1.msra.mxu0 0.0
    %5485 = vmatprep.subr.mxu0 0.0
    %5486 = vmatpush1.msra.mxu0 0.0
    %5487 = vmatprep.subr.mxu0 0.0
    %5488 = vmatpush1.msra.mxu0 0.0
    %5489 = vmatprep.subr.mxu0 0.0
    %5490 = vmatpush1.msra.mxu0 0.0
    %5491 = vmatprep.subr.mxu0 0.0
    %5492 = vmatpush1.msra.mxu0 0.0
    %5493 = vmatprep.subr.mxu0 0.0
    %5494 = vmatpush1.msra.mxu0 0.0
    %5495 = vmatprep.subr.mxu0 0.0
    %5496 = vmatpush1.msra.mxu0 0.0
    %5497 = vmatprep.subr.mxu0 0.0
    %5498 = vmatpush1.msra.mxu0 0.0
    %5499 = vmatprep.subr.mxu0 0.0
    %5500 = vmatpush1.msra.mxu0 0.0
    %5501 = vmatprep.subr.mxu0 0.0
    %5502 = vmatpush1.msra.mxu0 0.0
    %5503 = vmatprep.subr.mxu0 0.0
    %5504 = vmatpush1.msra.mxu0 0.0
    %5505 = vmatprep.subr.mxu0 0.0
    %5506 = vmatpush1.msra.mxu0 0.0
    %5507 = vmatprep.subr.mxu0 0.0
    %5508 = vmatpush1.msra.mxu0 0.0
    %5509 = vmatprep.subr.mxu0 0.0
    %5510 = vmatpush1.msra.mxu0 0.0
    %5511 = vmatprep.subr.mxu0 0.0
    %5512 = vmatpush1.msra.mxu0 0.0
    %5513 = vmatprep.subr.mxu0 0.0
    %5514 = vmatpush1.msra.mxu0 0.0
    %5515 = vmatprep.subr.mxu0 0.0
    %5516 = vmatpush1.msra.mxu0 0.0
    %5517 = vmatprep.subr.mxu0 0.0
    %5518 = vmatpush1.msra.mxu0 0.0
    %5519 = vmatprep.subr.mxu0 0.0
    %5520 = vmatpush1.msra.mxu0 0.0
    %5521 = vmatprep.subr.mxu0 0.0
    %5522 = vmatpush1.msra.mxu0 0.0
    %5523 = vmatprep.subr.mxu0 0.0
    %5524 = vmatpush1.msra.mxu0 0.0
    %5525 = vmatprep.subr.mxu0 0.0
    %5526 = vmatpush1.msra.mxu0 0.0
    %5527 = vmatprep.subr.mxu0 0.0
    %5528 = vmatpush1.msra.mxu0 0.0
    %5529 = vmatprep.subr.mxu0 0.0
    %5530 = vmatpush1.msra.mxu0 0.0
    %5531 = vmatprep.subr.mxu0 0.0
    %5532 = vmatpush1.msra.mxu0 0.0
    %5533 = vmatprep.subr.mxu0 0.0
    %5534 = vmatpush1.msra.mxu0 0.0
    %5535 = vmatprep.subr.mxu0 0.0
    %5536 = vmatpush1.msra.mxu0 0.0
    %5537 = vmatprep.subr.mxu0 0.0
    %5538 = vmatpush1.msra.mxu0 0.0
    %5539 = vmatprep.mubr.f32.mxu0 0.0
    %5540 = vmatmul.mubr.f32.gmra.mrb[0].mxu0 %v5473
    %v5541 = vpop.f32.mrb[0].mxu0
    %v5542 = vadd.f32 0.0, %v5541
    %v5543 = vpop.f32.mrb[0].mxu0
    %5544 = vdwg.mxu0
    %v5546 = vsel %vm1202, %v5469, 0
    %5548 = vmatprep.subr.mxu0 0.0
    %5549 = vmatpush1.msra.mxu0 %v4973
    %5550 = vmatprep.subr.mxu0 0.0
    %5551 = vmatpush1.msra.mxu0 0.0
    %5552 = vmatprep.subr.mxu0 0.0
    %5553 = vmatpush1.msra.mxu0 0.0
    %5554 = vmatprep.subr.mxu0 0.0
    %5555 = vmatpush1.msra.mxu0 0.0
    %5556 = vmatprep.subr.mxu0 0.0
    %5557 = vmatpush1.msra.mxu0 0.0
    %5558 = vmatprep.subr.mxu0 0.0
    %5559 = vmatpush1.msra.mxu0 0.0
    %5560 = vmatprep.subr.mxu0 0.0
    %5561 = vmatpush1.msra.mxu0 0.0
    %5562 = vmatprep.subr.mxu0 0.0
    %5563 = vmatpush1.msra.mxu0 0.0
    %5564 = vmatprep.subr.mxu0 0.0
    %5565 = vmatpush1.msra.mxu0 0.0
    %5566 = vmatprep.subr.mxu0 0.0
    %5567 = vmatpush1.msra.mxu0 0.0
    %5568 = vmatprep.subr.mxu0 0.0
    %5569 = vmatpush1.msra.mxu0 0.0
    %5570 = vmatprep.subr.mxu0 0.0
    %5571 = vmatpush1.msra.mxu0 0.0
    %5572 = vmatprep.subr.mxu0 0.0
    %5573 = vmatpush1.msra.mxu0 0.0
    %5574 = vmatprep.subr.mxu0 0.0
    %5575 = vmatpush1.msra.mxu0 0.0
    %5576 = vmatprep.subr.mxu0 0.0
    %5577 = vmatpush1.msra.mxu0 0.0
    %5578 = vmatprep.subr.mxu0 0.0
    %5579 = vmatpush1.msra.mxu0 0.0
    %5580 = vmatprep.subr.mxu0 0.0
    %5581 = vmatpush1.msra.mxu0 0.0
    %5582 = vmatprep.subr.mxu0 0.0
    %5583 = vmatpush1.msra.mxu0 0.0
    %5584 = vmatprep.subr.mxu0 0.0
    %5585 = vmatpush1.msra.mxu0 0.0
    %5586 = vmatprep.subr.mxu0 0.0
    %5587 = vmatpush1.msra.mxu0 0.0
    %5588 = vmatprep.subr.mxu0 0.0
    %5589 = vmatpush1.msra.mxu0 0.0
    %5590 = vmatprep.subr.mxu0 0.0
    %5591 = vmatpush1.msra.mxu0 0.0
    %5592 = vmatprep.subr.mxu0 0.0
    %5593 = vmatpush1.msra.mxu0 0.0
    %5594 = vmatprep.subr.mxu0 0.0
    %5595 = vmatpush1.msra.mxu0 0.0
    %5596 = vmatprep.subr.mxu0 0.0
    %5597 = vmatpush1.msra.mxu0 0.0
    %5598 = vmatprep.subr.mxu0 0.0
    %5599 = vmatpush1.msra.mxu0 0.0
    %5600 = vmatprep.subr.mxu0 0.0
    %5601 = vmatpush1.msra.mxu0 0.0
    %5602 = vmatprep.subr.mxu0 0.0
    %5603 = vmatpush1.msra.mxu0 0.0
    %5604 = vmatprep.subr.mxu0 0.0
    %5605 = vmatpush1.msra.mxu0 0.0
    %5606 = vmatprep.subr.mxu0 0.0
    %5607 = vmatpush1.msra.mxu0 0.0
    %5608 = vmatprep.subr.mxu0 0.0
    %5609 = vmatpush1.msra.mxu0 0.0
    %5610 = vmatprep.subr.mxu0 0.0
    %5611 = vmatpush1.msra.mxu0 0.0
    %5612 = vmatprep.mubr.f32.mxu0 0.0
    %5613 = vmatmul.mubr.f32.gmra.mrb[0].mxu0 %v5546
    %v5614 = vpop.f32.mrb[0].mxu0
    %v5615 = vadd.f32 0.0, %v5614
    %v5616 = vpop.f32.mrb[0].mxu0
    %5617 = vdwg.mxu0
    %v5619 = vsel %vm1202, %v5470, 0
    %5621 = vmatprep.subr.mxu0 0.0
    %5622 = vmatpush1.msra.mxu0 %v5043
    %5623 = vmatprep.subr.mxu0 0.0
    %5624 = vmatpush1.msra.mxu0 0.0
    %5625 = vmatprep.subr.mxu0 0.0
    %5626 = vmatpush1.msra.mxu0 0.0
    %5627 = vmatprep.subr.mxu0 0.0
    %5628 = vmatpush1.msra.mxu0 0.0
    %5629 = vmatprep.subr.mxu0 0.0
    %5630 = vmatpush1.msra.mxu0 0.0
    %5631 = vmatprep.subr.mxu0 0.0
    %5632 = vmatpush1.msra.mxu0 0.0
    %5633 = vmatprep.subr.mxu0 0.0
    %5634 = vmatpush1.msra.mxu0 0.0
    %5635 = vmatprep.subr.mxu0 0.0
    %5636 = vmatpush1.msra.mxu0 0.0
    %5637 = vmatprep.subr.mxu0 0.0
    %5638 = vmatpush1.msra.mxu0 0.0
    %5639 = vmatprep.subr.mxu0 0.0
    %5640 = vmatpush1.msra.mxu0 0.0
    %5641 = vmatprep.subr.mxu0 0.0
    %5642 = vmatpush1.msra.mxu0 0.0
    %5643 = vmatprep.subr.mxu0 0.0
    %5644 = vmatpush1.msra.mxu0 0.0
    %5645 = vmatprep.subr.mxu0 0.0
    %5646 = vmatpush1.msra.mxu0 0.0
    %5647 = vmatprep.subr.mxu0 0.0
    %5648 = vmatpush1.msra.mxu0 0.0
    %5649 = vmatprep.subr.mxu0 0.0
    %5650 = vmatpush1.msra.mxu0 0.0
    %5651 = vmatprep.subr.mxu0 0.0
    %5652 = vmatpush1.msra.mxu0 0.0
    %5653 = vmatprep.subr.mxu0 0.0
    %5654 = vmatpush1.msra.mxu0 0.0
    %5655 = vmatprep.subr.mxu0 0.0
    %5656 = vmatpush1.msra.mxu0 0.0
    %5657 = vmatprep.subr.mxu0 0.0
    %5658 = vmatpush1.msra.mxu0 0.0
    %5659 = vmatprep.subr.mxu0 0.0
    %5660 = vmatpush1.msra.mxu0 0.0
    %5661 = vmatprep.subr.mxu0 0.0
    %5662 = vmatpush1.msra.mxu0 0.0
    %5663 = vmatprep.subr.mxu0 0.0
    %5664 = vmatpush1.msra.mxu0 0.0
    %5665 = vmatprep.subr.mxu0 0.0
    %5666 = vmatpush1.msra.mxu0 0.0
    %5667 = vmatprep.subr.mxu0 0.0
    %5668 = vmatpush1.msra.mxu0 0.0
    %5669 = vmatprep.subr.mxu0 0.0
    %5670 = vmatpush1.msra.mxu0 0.0
    %5671 = vmatprep.subr.mxu0 0.0
    %5672 = vmatpush1.msra.mxu0 0.0
    %5673 = vmatprep.subr.mxu0 0.0
    %5674 = vmatpush1.msra.mxu0 0.0
    %5675 = vmatprep.subr.mxu0 0.0
    %5676 = vmatpush1.msra.mxu0 0.0
    %5677 = vmatprep.subr.mxu0 0.0
    %5678 = vmatpush1.msra.mxu0 0.0
    %5679 = vmatprep.subr.mxu0 0.0
    %5680 = vmatpush1.msra.mxu0 0.0
    %5681 = vmatprep.subr.mxu0 0.0
    %5682 = vmatpush1.msra.mxu0 0.0
    %5683 = vmatprep.subr.mxu0 0.0
    %5684 = vmatpush1.msra.mxu0 0.0
    %5685 = vmatprep.mubr.f32.mxu0 0.0
    %5686 = vmatmul.mubr.f32.gmra.mrb[0].mxu0 %v5619
    %v5687 = vpop.f32.mrb[0].mxu0
    %v5688 = vadd.f32 0.0, %v5687
    %v5689 = vpop.f32.mrb[0].mxu0
    %5690 = vdwg.mxu0
    %v5692 = vsel %vm1202, %v5471, 0
    %5694 = vmatprep.subr.mxu0 0.0
    %5695 = vmatpush1.msra.mxu0 %v5113
    %5696 = vmatprep.subr.mxu0 0.0
    %5697 = vmatpush1.msra.mxu0 0.0
    %5698 = vmatprep.subr.mxu0 0.0
    %5699 = vmatpush1.msra.mxu0 0.0
    %5700 = vmatprep.subr.mxu0 0.0
    %5701 = vmatpush1.msra.mxu0 0.0
    %5702 = vmatprep.subr.mxu0 0.0
    %5703 = vmatpush1.msra.mxu0 0.0
    %5704 = vmatprep.subr.mxu0 0.0
    %5705 = vmatpush1.msra.mxu0 0.0
    %5706 = vmatprep.subr.mxu0 0.0
    %5707 = vmatpush1.msra.mxu0 0.0
    %5708 = vmatprep.subr.mxu0 0.0
    %5709 = vmatpush1.msra.mxu0 0.0
    %5710 = vmatprep.subr.mxu0 0.0
    %5711 = vmatpush1.msra.mxu0 0.0
    %5712 = vmatprep.subr.mxu0 0.0
    %5713 = vmatpush1.msra.mxu0 0.0
    %5714 = vmatprep.subr.mxu0 0.0
    %5715 = vmatpush1.msra.mxu0 0.0
    %5716 = vmatprep.subr.mxu0 0.0
    %5717 = vmatpush1.msra.mxu0 0.0
    %5718 = vmatprep.subr.mxu0 0.0
    %5719 = vmatpush1.msra.mxu0 0.0
    %5720 = vmatprep.subr.mxu0 0.0
    %5721 = vmatpush1.msra.mxu0 0.0
    %5722 = vmatprep.subr.mxu0 0.0
    %5723 = vmatpush1.msra.mxu0 0.0
    %5724 = vmatprep.subr.mxu0 0.0
    %5725 = vmatpush1.msra.mxu0 0.0
    %5726 = vmatprep.subr.mxu0 0.0
    %5727 = vmatpush1.msra.mxu0 0.0
    %5728 = vmatprep.subr.mxu0 0.0
    %5729 = vmatpush1.msra.mxu0 0.0
    %5730 = vmatprep.subr.mxu0 0.0
    %5731 = vmatpush1.msra.mxu0 0.0
    %5732 = vmatprep.subr.mxu0 0.0
    %5733 = vmatpush1.msra.mxu0 0.0
    %5734 = vmatprep.subr.mxu0 0.0
    %5735 = vmatpush1.msra.mxu0 0.0
    %5736 = vmatprep.subr.mxu0 0.0
    %5737 = vmatpush1.msra.mxu0 0.0
    %5738 = vmatprep.subr.mxu0 0.0
    %5739 = vmatpush1.msra.mxu0 0.0
    %5740 = vmatprep.subr.mxu0 0.0
    %5741 = vmatpush1.msra.mxu0 0.0
    %5742 = vmatprep.subr.mxu0 0.0
    %5743 = vmatpush1.msra.mxu0 0.0
    %5744 = vmatprep.subr.mxu0 0.0
    %5745 = vmatpush1.msra.mxu0 0.0
    %5746 = vmatprep.subr.mxu0 0.0
    %5747 = vmatpush1.msra.mxu0 0.0
    %5748 = vmatprep.subr.mxu0 0.0
    %5749 = vmatpush1.msra.mxu0 0.0
    %5750 = vmatprep.subr.mxu0 0.0
    %5751 = vmatpush1.msra.mxu0 0.0
    %5752 = vmatprep.subr.mxu0 0.0
    %5753 = vmatpush1.msra.mxu0 0.0
    %5754 = vmatprep.subr.mxu0 0.0
    %5755 = vmatpush1.msra.mxu0 0.0
    %5756 = vmatprep.subr.mxu0 0.0
    %5757 = vmatpush1.msra.mxu0 0.0
    %5758 = vmatprep.mubr.f32.mxu0 0.0
    %5759 = vmatmul.mubr.f32.gmra.mrb[0].mxu0 %v5692
    %v5760 = vpop.f32.mrb[0].mxu0
    %v5761 = vadd.f32 0.0, %v5760
    %v5762 = vpop.f32.mrb[0].mxu0
    %5763 = vdwg.mxu0
    %v5765 = vsel %vm1202, %v5542, 0
    %5767 = vmatprep.subr.mxu0 0.0
    %5768 = vmatpush1.msra.mxu0 %v156
    %5769 = vmatprep.subr.mxu0 0.0
    %5770 = vmatpush1.msra.mxu0 0.0
    %5771 = vmatprep.subr.mxu0 0.0
    %5772 = vmatpush1.msra.mxu0 0.0
    %5773 = vmatprep.subr.mxu0 0.0
    %5774 = vmatpush1.msra.mxu0 0.0
    %5775 = vmatprep.subr.mxu0 0.0
    %5776 = vmatpush1.msra.mxu0 0.0
    %5777 = vmatprep.subr.mxu0 0.0
    %5778 = vmatpush1.msra.mxu0 0.0
    %5779 = vmatprep.subr.mxu0 0.0
    %5780 = vmatpush1.msra.mxu0 0.0
    %5781 = vmatprep.subr.mxu0 0.0
    %5782 = vmatpush1.msra.mxu0 0.0
    %5783 = vmatprep.subr.mxu0 0.0
    %5784 = vmatpush1.msra.mxu0 0.0
    %5785 = vmatprep.subr.mxu0 0.0
    %5786 = vmatpush1.msra.mxu0 0.0
    %5787 = vmatprep.subr.mxu0 0.0
    %5788 = vmatpush1.msra.mxu0 0.0
    %5789 = vmatprep.subr.mxu0 0.0
    %5790 = vmatpush1.msra.mxu0 0.0
    %5791 = vmatprep.subr.mxu0 0.0
    %5792 = vmatpush1.msra.mxu0 0.0
    %5793 = vmatprep.subr.mxu0 0.0
    %5794 = vmatpush1.msra.mxu0 0.0
    %5795 = vmatprep.subr.mxu0 0.0
    %5796 = vmatpush1.msra.mxu0 0.0
    %5797 = vmatprep.subr.mxu0 0.0
    %5798 = vmatpush1.msra.mxu0 0.0
    %5799 = vmatprep.subr.mxu0 0.0
    %5800 = vmatpush1.msra.mxu0 0.0
    %5801 = vmatprep.subr.mxu0 0.0
    %5802 = vmatpush1.msra.mxu0 0.0
    %5803 = vmatprep.subr.mxu0 0.0
    %5804 = vmatpush1.msra.mxu0 0.0
    %5805 = vmatprep.subr.mxu0 0.0
    %5806 = vmatpush1.msra.mxu0 0.0
    %5807 = vmatprep.subr.mxu0 0.0
    %5808 = vmatpush1.msra.mxu0 0.0
    %5809 = vmatprep.subr.mxu0 0.0
    %5810 = vmatpush1.msra.mxu0 0.0
    %5811 = vmatprep.subr.mxu0 0.0
    %5812 = vmatpush1.msra.mxu0 0.0
    %5813 = vmatprep.subr.mxu0 0.0
    %5814 = vmatpush1.msra.mxu0 0.0
    %5815 = vmatprep.subr.mxu0 0.0
    %5816 = vmatpush1.msra.mxu0 0.0
    %5817 = vmatprep.subr.mxu0 0.0
    %5818 = vmatpush1.msra.mxu0 0.0
    %5819 = vmatprep.subr.mxu0 0.0
    %5820 = vmatpush1.msra.mxu0 0.0
    %5821 = vmatprep.subr.mxu0 0.0
    %5822 = vmatpush1.msra.mxu0 0.0
    %5823 = vmatprep.subr.mxu0 0.0
    %5824 = vmatpush1.msra.mxu0 0.0
    %5825 = vmatprep.subr.mxu0 0.0
    %5826 = vmatpush1.msra.mxu0 0.0
    %5827 = vmatprep.subr.mxu0 0.0
    %5828 = vmatpush1.msra.mxu0 0.0
    %5829 = vmatprep.subr.mxu0 0.0
    %5830 = vmatpush1.msra.mxu0 0.0
    %5831 = vmatprep.mubr.f32.mxu0 0.0
    %5832 = vmatmul.mubr.f32.gmra.mrb[0].mxu0 %v5765
    %v5833 = vpop.f32.mrb[0].mxu0
    %v5834 = vadd.f32 0.0, %v5833
    %v5835 = vpop.f32.mrb[0].mxu0
    %5836 = vdwg.mxu0
    %v5838 = vsel %vm1202, %v5615, 0
    %5840 = vmatprep.subr.mxu0 0.0
    %5841 = vmatpush1.msra.mxu0 %v157
    %5842 = vmatprep.subr.mxu0 0.0
    %5843 = vmatpush1.msra.mxu0 0.0
    %5844 = vmatprep.subr.mxu0 0.0
    %5845 = vmatpush1.msra.mxu0 0.0
    %5846 = vmatprep.subr.mxu0 0.0
    %5847 = vmatpush1.msra.mxu0 0.0
    %5848 = vmatprep.subr.mxu0 0.0
    %5849 = vmatpush1.msra.mxu0 0.0
    %5850 = vmatprep.subr.mxu0 0.0
    %5851 = vmatpush1.msra.mxu0 0.0
    %5852 = vmatprep.subr.mxu0 0.0
    %5853 = vmatpush1.msra.mxu0 0.0
    %5854 = vmatprep.subr.mxu0 0.0
    %5855 = vmatpush1.msra.mxu0 0.0
    %5856 = vmatprep.subr.mxu0 0.0
    %5857 = vmatpush1.msra.mxu0 0.0
    %5858 = vmatprep.subr.mxu0 0.0
    %5859 = vmatpush1.msra.mxu0 0.0
    %5860 = vmatprep.subr.mxu0 0.0
    %5861 = vmatpush1.msra.mxu0 0.0
    %5862 = vmatprep.subr.mxu0 0.0
    %5863 = vmatpush1.msra.mxu0 0.0
    %5864 = vmatprep.subr.mxu0 0.0
    %5865 = vmatpush1.msra.mxu0 0.0
    %5866 = vmatprep.subr.mxu0 0.0
    %5867 = vmatpush1.msra.mxu0 0.0
    %5868 = vmatprep.subr.mxu0 0.0
    %5869 = vmatpush1.msra.mxu0 0.0
    %5870 = vmatprep.subr.mxu0 0.0
    %5871 = vmatpush1.msra.mxu0 0.0
    %5872 = vmatprep.subr.mxu0 0.0
    %5873 = vmatpush1.msra.mxu0 0.0
    %5874 = vmatprep.subr.mxu0 0.0
    %5875 = vmatpush1.msra.mxu0 0.0
    %5876 = vmatprep.subr.mxu0 0.0
    %5877 = vmatpush1.msra.mxu0 0.0
    %5878 = vmatprep.subr.mxu0 0.0
    %5879 = vmatpush1.msra.mxu0 0.0
    %5880 = vmatprep.subr.mxu0 0.0
    %5881 = vmatpush1.msra.mxu0 0.0
    %5882 = vmatprep.subr.mxu0 0.0
    %5883 = vmatpush1.msra.mxu0 0.0
    %5884 = vmatprep.subr.mxu0 0.0
    %5885 = vmatpush1.msra.mxu0 0.0
    %5886 = vmatprep.subr.mxu0 0.0
    %5887 = vmatpush1.msra.mxu0 0.0
    %5888 = vmatprep.subr.mxu0 0.0
    %5889 = vmatpush1.msra.mxu0 0.0
    %5890 = vmatprep.subr.mxu0 0.0
    %5891 = vmatpush1.msra.mxu0 0.0
    %5892 = vmatprep.subr.mxu0 0.0
    %5893 = vmatpush1.msra.mxu0 0.0
    %5894 = vmatprep.subr.mxu0 0.0
    %5895 = vmatpush1.msra.mxu0 0.0
    %5896 = vmatprep.subr.mxu0 0.0
    %5897 = vmatpush1.msra.mxu0 0.0
    %5898 = vmatprep.subr.mxu0 0.0
    %5899 = vmatpush1.msra.mxu0 0.0
    %5900 = vmatprep.subr.mxu0 0.0
    %5901 = vmatpush1.msra.mxu0 0.0
    %5902 = vmatprep.subr.mxu0 0.0
    %5903 = vmatpush1.msra.mxu0 0.0
    %5904 = vmatprep.mubr.f32.mxu0 0.0
    %5905 = vmatmul.mubr.f32.gmra.mrb[0].mxu0 %v5838
    %v5906 = vpop.f32.mrb[0].mxu0
    %v5907 = vadd.f32 0.0, %v5906
    %v5908 = vpop.f32.mrb[0].mxu0
    %5909 = vdwg.mxu0
    %v5911 = vsel %vm1202, %v5688, 0
    %5913 = vmatprep.subr.mxu0 0.0
    %5914 = vmatpush1.msra.mxu0 %v158
    %5915 = vmatprep.subr.mxu0 0.0
    %5916 = vmatpush1.msra.mxu0 0.0
    %5917 = vmatprep.subr.mxu0 0.0
    %5918 = vmatpush1.msra.mxu0 0.0
    %5919 = vmatprep.subr.mxu0 0.0
    %5920 = vmatpush1.msra.mxu0 0.0
    %5921 = vmatprep.subr.mxu0 0.0
    %5922 = vmatpush1.msra.mxu0 0.0
    %5923 = vmatprep.subr.mxu0 0.0
    %5924 = vmatpush1.msra.mxu0 0.0
    %5925 = vmatprep.subr.mxu0 0.0
    %5926 = vmatpush1.msra.mxu0 0.0
    %5927 = vmatprep.subr.mxu0 0.0
    %5928 = vmatpush1.msra.mxu0 0.0
    %5929 = vmatprep.subr.mxu0 0.0
    %5930 = vmatpush1.msra.mxu0 0.0
    %5931 = vmatprep.subr.mxu0 0.0
    %5932 = vmatpush1.msra.mxu0 0.0
    %5933 = vmatprep.subr.mxu0 0.0
    %5934 = vmatpush1.msra.mxu0 0.0
    %5935 = vmatprep.subr.mxu0 0.0
    %5936 = vmatpush1.msra.mxu0 0.0
    %5937 = vmatprep.subr.mxu0 0.0
    %5938 = vmatpush1.msra.mxu0 0.0
    %5939 = vmatprep.subr.mxu0 0.0
    %5940 = vmatpush1.msra.mxu0 0.0
    %5941 = vmatprep.subr.mxu0 0.0
    %5942 = vmatpush1.msra.mxu0 0.0
    %5943 = vmatprep.subr.mxu0 0.0
    %5944 = vmatpush1.msra.mxu0 0.0
    %5945 = vmatprep.subr.mxu0 0.0
    %5946 = vmatpush1.msra.mxu0 0.0
    %5947 = vmatprep.subr.mxu0 0.0
    %5948 = vmatpush1.msra.mxu0 0.0
    %5949 = vmatprep.subr.mxu0 0.0
    %5950 = vmatpush1.msra.mxu0 0.0
    %5951 = vmatprep.subr.mxu0 0.0
    %5952 = vmatpush1.msra.mxu0 0.0
    %5953 = vmatprep.subr.mxu0 0.0
    %5954 = vmatpush1.msra.mxu0 0.0
    %5955 = vmatprep.subr.mxu0 0.0
    %5956 = vmatpush1.msra.mxu0 0.0
    %5957 = vmatprep.subr.mxu0 0.0
    %5958 = vmatpush1.msra.mxu0 0.0
    %5959 = vmatprep.subr.mxu0 0.0
    %5960 = vmatpush1.msra.mxu0 0.0
    %5961 = vmatprep.subr.mxu0 0.0
    %5962 = vmatpush1.msra.mxu0 0.0
    %5963 = vmatprep.subr.mxu0 0.0
    %5964 = vmatpush1.msra.mxu0 0.0
    %5965 = vmatprep.subr.mxu0 0.0
    %5966 = vmatpush1.msra.mxu0 0.0
    %5967 = vmatprep.subr.mxu0 0.0
    %5968 = vmatpush1.msra.mxu0 0.0
    %5969 = vmatprep.subr.mxu0 0.0
    %5970 = vmatpush1.msra.mxu0 0.0
    %5971 = vmatprep.subr.mxu0 0.0
    %5972 = vmatpush1.msra.mxu0 0.0
    %5973 = vmatprep.subr.mxu0 0.0
    %5974 = vmatpush1.msra.mxu0 0.0
    %5975 = vmatprep.subr.mxu0 0.0
    %5976 = vmatpush1.msra.mxu0 0.0
    %5977 = vmatprep.mubr.f32.mxu0 0.0
    %5978 = vmatmul.mubr.f32.gmra.mrb[0].mxu0 %v5911
    %v5979 = vpop.f32.mrb[0].mxu0
    %v5980 = vadd.f32 0.0, %v5979
    %v5981 = vpop.f32.mrb[0].mxu0
    %5982 = vdwg.mxu0
    %v5984 = vsel %vm1202, %v5761, 0
    %5986 = vmatprep.subr.mxu0 0.0
    %5987 = vmatpush1.msra.mxu0 %v159
    %5988 = vmatprep.subr.mxu0 0.0
    %5989 = vmatpush1.msra.mxu0 0.0
    %5990 = vmatprep.subr.mxu0 0.0
    %5991 = vmatpush1.msra.mxu0 0.0
    %5992 = vmatprep.subr.mxu0 0.0
    %5993 = vmatpush1.msra.mxu0 0.0
    %5994 = vmatprep.subr.mxu0 0.0
    %5995 = vmatpush1.msra.mxu0 0.0
    %5996 = vmatprep.subr.mxu0 0.0
    %5997 = vmatpush1.msra.mxu0 0.0
    %5998 = vmatprep.subr.mxu0 0.0
    %5999 = vmatpush1.msra.mxu0 0.0
    %6000 = vmatprep.subr.mxu0 0.0
    %6001 = vmatpush1.msra.mxu0 0.0
    %6002 = vmatprep.subr.mxu0 0.0
    %6003 = vmatpush1.msra.mxu0 0.0
    %6004 = vmatprep.subr.mxu0 0.0
    %6005 = vmatpush1.msra.mxu0 0.0
    %6006 = vmatprep.subr.mxu0 0.0
    %6007 = vmatpush1.msra.mxu0 0.0
    %6008 = vmatprep.subr.mxu0 0.0
    %6009 = vmatpush1.msra.mxu0 0.0
    %6010 = vmatprep.subr.mxu0 0.0
    %6011 = vmatpush1.msra.mxu0 0.0
    %6012 = vmatprep.subr.mxu0 0.0
    %6013 = vmatpush1.msra.mxu0 0.0
    %6014 = vmatprep.subr.mxu0 0.0
    %6015 = vmatpush1.msra.mxu0 0.0
    %6016 = vmatprep.subr.mxu0 0.0
    %6017 = vmatpush1.msra.mxu0 0.0
    %6018 = vmatprep.subr.mxu0 0.0
    %6019 = vmatpush1.msra.mxu0 0.0
    %6020 = vmatprep.subr.mxu0 0.0
    %6021 = vmatpush1.msra.mxu0 0.0
    %6022 = vmatprep.subr.mxu0 0.0
    %6023 = vmatpush1.msra.mxu0 0.0
    %6024 = vmatprep.subr.mxu0 0.0
    %6025 = vmatpush1.msra.mxu0 0.0
    %6026 = vmatprep.subr.mxu0 0.0
    %6027 = vmatpush1.msra.mxu0 0.0
    %6028 = vmatprep.subr.mxu0 0.0
    %6029 = vmatpush1.msra.mxu0 0.0
    %6030 = vmatprep.subr.mxu0 0.0
    %6031 = vmatpush1.msra.mxu0 0.0
    %6032 = vmatprep.subr.mxu0 0.0
    %6033 = vmatpush1.msra.mxu0 0.0
    %6034 = vmatprep.subr.mxu0 0.0
    %6035 = vmatpush1.msra.mxu0 0.0
    %6036 = vmatprep.subr.mxu0 0.0
    %6037 = vmatpush1.msra.mxu0 0.0
    %6038 = vmatprep.subr.mxu0 0.0
    %6039 = vmatpush1.msra.mxu0 0.0
    %6040 = vmatprep.subr.mxu0 0.0
    %6041 = vmatpush1.msra.mxu0 0.0
    %6042 = vmatprep.subr.mxu0 0.0
    %6043 = vmatpush1.msra.mxu0 0.0
    %6044 = vmatprep.subr.mxu0 0.0
    %6045 = vmatpush1.msra.mxu0 0.0
    %6046 = vmatprep.subr.mxu0 0.0
    %6047 = vmatpush1.msra.mxu0 0.0
    %6048 = vmatprep.subr.mxu0 0.0
    %6049 = vmatpush1.msra.mxu0 0.0
    %6050 = vmatprep.mubr.f32.mxu0 0.0
    %6051 = vmatmul.mubr.f32.gmra.mrb[0].mxu0 %v5984
    %v6052 = vpop.f32.mrb[0].mxu0
    %v6053 = vadd.f32 0.0, %v6052
    %v6054 = vpop.f32.mrb[0].mxu0
    %6055 = vdwg.mxu0
    %v6056 = vsel %vm256, %v5834, 0.0
    %v6057 = vsel %vm256, %v5907, 0.0
    %v6058 = vadd.f32 %v6056, %v6057
    %v6059 = vsel %vm256, %v5980, 0.0
    %v6060 = vadd.f32 %v6058, %v6059
    %v6061 = vsel %vm256, %v6053, 0.0
    %v6062 = vadd.f32 %v6060, %v6061
    %v6063 = vadd.f32 %v6062, %v2154
    %v6064 = vadd.f32 %v4253, %v6063
    %v6065 = vsel %vm256, %v6064, 0.0
    %6066 = vadd.xlane.f32.xlu0 %v6065
    %v6067 = vpop.xlane.xlu0 %6066
    %v6068 = vmul.f32 %v6067, %v260
    %v6069 = vmul.f32 %v6064, %v6064
    %v6070 = vsel %vm256, %v6069, 0.0
    %6071 = vadd.xlane.f32.xlu0 %v6070
    %v6072 = vpop.xlane.xlu0 %6071
    %v6073 = vmul.f32 %v6072, %v260
    %v6074 = vmul.f32 %v6068, %v6068
    %v6075 = vsub.f32 %v6073, %v6074
    %v6076 = vsub.f32 %v6064, %v6068
    %v6077 = vadd.f32 %v6075, 1e-05
    %v6078 = vrsqrt.pop %v6077
    %v6079 = vmul.f32 %v6076, %v6078
    %v6080 = vmul.f32 %v6079, %v2177
    %v6081 = vadd.f32 %v6080, %v2184
    %v6083 = vsel %vm256, %v6081, 0
    %6085 = vmatprep.subr.mxu0 0.0
    %6086 = vmatpush1.msra.mxu0 %v161
    %6087 = vmatprep.subr.mxu0 0.0
    %6088 = vmatpush1.msra.mxu0 %v162
    %6089 = vmatprep.subr.mxu0 0.0
    %6090 = vmatpush1.msra.mxu0 %v163
    %6091 = vmatprep.subr.mxu0 0.0
    %6092 = vmatpush1.msra.mxu0 %v164
    %6093 = vmatprep.subr.mxu0 0.0
    %6094 = vmatpush1.msra.mxu0 0.0
    %6095 = vmatprep.subr.mxu0 0.0
    %6096 = vmatpush1.msra.mxu0 0.0
    %6097 = vmatprep.subr.mxu0 0.0
    %6098 = vmatpush1.msra.mxu0 0.0
    %6099 = vmatprep.subr.mxu0 0.0
    %6100 = vmatpush1.msra.mxu0 0.0
    %6101 = vmatprep.subr.mxu0 0.0
    %6102 = vmatpush1.msra.mxu0 0.0
    %6103 = vmatprep.subr.mxu0 0.0
    %6104 = vmatpush1.msra.mxu0 0.0
    %6105 = vmatprep.subr.mxu0 0.0
    %6106 = vmatpush1.msra.mxu0 0.0
    %6107 = vmatprep.subr.mxu0 0.0
    %6108 = vmatpush1.msra.mxu0 0.0
    %6109 = vmatprep.subr.mxu0 0.0
    %6110 = vmatpush1.msra.mxu0 0.0
    %6111 = vmatprep.subr.mxu0 0.0
    %6112 = vmatpush1.msra.mxu0 0.0
    %6113 = vmatprep.subr.mxu0 0.0
    %6114 = vmatpush1.msra.mxu0 0.0
    %6115 = vmatprep.subr.mxu0 0.0
    %6116 = vmatpush1.msra.mxu0 0.0
    %6117 = vmatprep.subr.mxu0 0.0
    %6118 = vmatpush1.msra.mxu0 0.0
    %6119 = vmatprep.subr.mxu0 0.0
    %6120 = vmatpush1.msra.mxu0 0.0
    %6121 = vmatprep.subr.mxu0 0.0
    %6122 = vmatpush1.msra.mxu0 0.0
    %6123 = vmatprep.subr.mxu0 0.0
    %6124 = vmatpush1.msra.mxu0 0.0
    %6125 = vmatprep.subr.mxu0 0.0
    %6126 = vmatpush1.msra.mxu0 0.0
    %6127 = vmatprep.subr.mxu0 0.0
    %6128 = vmatpush1.msra.mxu0 0.0
    %6129 = vmatprep.subr.mxu0 0.0
    %6130 = vmatpush1.msra.mxu0 0.0
    %6131 = vmatprep.subr.mxu0 0.0
    %6132 = vmatpush1.msra.mxu0 0.0
    %6133 = vmatprep.subr.mxu0 0.0
    %6134 = vmatpush1.msra.mxu0 0.0
    %6135 = vmatprep.subr.mxu0 0.0
    %6136 = vmatpush1.msra.mxu0 0.0
    %6137 = vmatprep.subr.mxu0 0.0
    %6138 = vmatpush1.msra.mxu0 0.0
    %6139 = vmatprep.subr.mxu0 0.0
    %6140 = vmatpush1.msra.mxu0 0.0
    %6141 = vmatprep.subr.mxu0 0.0
    %6142 = vmatpush1.msra.mxu0 0.0
    %6143 = vmatprep.subr.mxu0 0.0
    %6144 = vmatpush1.msra.mxu0 0.0
    %6145 = vmatprep.subr.mxu0 0.0
    %6146 = vmatpush1.msra.mxu0 0.0
    %6147 = vmatprep.subr.mxu0 0.0
    %6148 = vmatpush1.msra.mxu0 0.0
    %6149 = vmatprep.mubr.f32.mxu0 0.0
    %6150 = vmatmul.mubr.f32.gmra.mrb[0].mxu0 %v6083
    %v6151 = vpop.f32.mrb[0].mxu0
    %v6152 = vadd.f32 %v2194, %v6151
    %v6153 = vpop.f32.mrb[0].mxu0
    %6154 = vdwg.mxu0
    %6155 = vmatprep.subr.mxu0 0.0
    %6156 = vmatpush1.msra.mxu0 %v165
    %6157 = vmatprep.subr.mxu0 0.0
    %6158 = vmatpush1.msra.mxu0 %v166
    %6159 = vmatprep.subr.mxu0 0.0
    %6160 = vmatpush1.msra.mxu0 %v167
    %6161 = vmatprep.subr.mxu0 0.0
    %6162 = vmatpush1.msra.mxu0 %v168
    %6163 = vmatprep.subr.mxu0 0.0
    %6164 = vmatpush1.msra.mxu0 0.0
    %6165 = vmatprep.subr.mxu0 0.0
    %6166 = vmatpush1.msra.mxu0 0.0
    %6167 = vmatprep.subr.mxu0 0.0
    %6168 = vmatpush1.msra.mxu0 0.0
    %6169 = vmatprep.subr.mxu0 0.0
    %6170 = vmatpush1.msra.mxu0 0.0
    %6171 = vmatprep.subr.mxu0 0.0
    %6172 = vmatpush1.msra.mxu0 0.0
    %6173 = vmatprep.subr.mxu0 0.0
    %6174 = vmatpush1.msra.mxu0 0.0
    %6175 = vmatprep.subr.mxu0 0.0
    %6176 = vmatpush1.msra.mxu0 0.0
    %6177 = vmatprep.subr.mxu0 0.0
    %6178 = vmatpush1.msra.mxu0 0.0
    %6179 = vmatprep.subr.mxu0 0.0
    %6180 = vmatpush1.msra.mxu0 0.0
    %6181 = vmatprep.subr.mxu0 0.0
    %6182 = vmatpush1.msra.mxu0 0.0
    %6183 = vmatprep.subr.mxu0 0.0
    %6184 = vmatpush1.msra.mxu0 0.0
    %6185 = vmatprep.subr.mxu0 0.0
    %6186 = vmatpush1.msra.mxu0 0.0
    %6187 = vmatprep.subr.mxu0 0.0
    %6188 = vmatpush1.msra.mxu0 0.0
    %6189 = vmatprep.subr.mxu0 0.0
    %6190 = vmatpush1.msra.mxu0 0.0
    %6191 = vmatprep.subr.mxu0 0.0
    %6192 = vmatpush1.msra.mxu0 0.0
    %6193 = vmatprep.subr.mxu0 0.0
    %6194 = vmatpush1.msra.mxu0 0.0
    %6195 = vmatprep.subr.mxu0 0.0
    %6196 = vmatpush1.msra.mxu0 0.0
    %6197 = vmatprep.subr.mxu0 0.0
    %6198 = vmatpush1.msra.mxu0 0.0
    %6199 = vmatprep.subr.mxu0 0.0
    %6200 = vmatpush1.msra.mxu0 0.0
    %6201 = vmatprep.subr.mxu0 0.0
    %6202 = vmatpush1.msra.mxu0 0.0
    %6203 = vmatprep.subr.mxu0 0.0
    %6204 = vmatpush1.msra.mxu0 0.0
    %6205 = vmatprep.subr.mxu0 0.0
    %6206 = vmatpush1.msra.mxu0 0.0
    %6207 = vmatprep.subr.mxu0 0.0
    %6208 = vmatpush1.msra.mxu0 0.0
    %6209 = vmatprep.subr.mxu0 0.0
    %6210 = vmatpush1.msra.mxu0 0.0
    %6211 = vmatprep.subr.mxu0 0.0
    %6212 = vmatpush1.msra.mxu0 0.0
    %6213 = vmatprep.subr.mxu0 0.0
    %6214 = vmatpush1.msra.mxu0 0.0
    %6215 = vmatprep.subr.mxu0 0.0
    %6216 = vmatpush1.msra.mxu0 0.0
    %6217 = vmatprep.subr.mxu0 0.0
    %6218 = vmatpush1.msra.mxu0 0.0
    %6219 = vmatprep.mubr.f32.mxu0 0.0
    %6220 = vmatmul.mubr.f32.gmra.mrb[0].mxu0 %v6083
    %v6221 = vpop.f32.mrb[0].mxu0
    %v6222 = vadd.f32 %v2198, %v6221
    %v6223 = vpop.f32.mrb[0].mxu0
    %6224 = vdwg.mxu0
    %6225 = vmatprep.subr.mxu0 0.0
    %6226 = vmatpush1.msra.mxu0 %v169
    %6227 = vmatprep.subr.mxu0 0.0
    %6228 = vmatpush1.msra.mxu0 %v170
    %6229 = vmatprep.subr.mxu0 0.0
    %6230 = vmatpush1.msra.mxu0 %v171
    %6231 = vmatprep.subr.mxu0 0.0
    %6232 = vmatpush1.msra.mxu0 %v172
    %6233 = vmatprep.subr.mxu0 0.0
    %6234 = vmatpush1.msra.mxu0 0.0
    %6235 = vmatprep.subr.mxu0 0.0
    %6236 = vmatpush1.msra.mxu0 0.0
    %6237 = vmatprep.subr.mxu0 0.0
    %6238 = vmatpush1.msra.mxu0 0.0
    %6239 = vmatprep.subr.mxu0 0.0
    %6240 = vmatpush1.msra.mxu0 0.0
    %6241 = vmatprep.subr.mxu0 0.0
    %6242 = vmatpush1.msra.mxu0 0.0
    %6243 = vmatprep.subr.mxu0 0.0
    %6244 = vmatpush1.msra.mxu0 0.0
    %6245 = vmatprep.subr.mxu0 0.0
    %6246 = vmatpush1.msra.mxu0 0.0
    %6247 = vmatprep.subr.mxu0 0.0
    %6248 = vmatpush1.msra.mxu0 0.0
    %6249 = vmatprep.subr.mxu0 0.0
    %6250 = vmatpush1.msra.mxu0 0.0
    %6251 = vmatprep.subr.mxu0 0.0
    %6252 = vmatpush1.msra.mxu0 0.0
    %6253 = vmatprep.subr.mxu0 0.0
    %6254 = vmatpush1.msra.mxu0 0.0
    %6255 = vmatprep.subr.mxu0 0.0
    %6256 = vmatpush1.msra.mxu0 0.0
    %6257 = vmatprep.subr.mxu0 0.0
    %6258 = vmatpush1.msra.mxu0 0.0
    %6259 = vmatprep.subr.mxu0 0.0
    %6260 = vmatpush1.msra.mxu0 0.0
    %6261 = vmatprep.subr.mxu0 0.0
    %6262 = vmatpush1.msra.mxu0 0.0
    %6263 = vmatprep.subr.mxu0 0.0
    %6264 = vmatpush1.msra.mxu0 0.0
    %6265 = vmatprep.subr.mxu0 0.0
    %6266 = vmatpush1.msra.mxu0 0.0
    %6267 = vmatprep.subr.mxu0 0.0
    %6268 = vmatpush1.msra.mxu0 0.0
    %6269 = vmatprep.subr.mxu0 0.0
    %6270 = vmatpush1.msra.mxu0 0.0
    %6271 = vmatprep.subr.mxu0 0.0
    %6272 = vmatpush1.msra.mxu0 0.0
    %6273 = vmatprep.subr.mxu0 0.0
    %6274 = vmatpush1.msra.mxu0 0.0
    %6275 = vmatprep.subr.mxu0 0.0
    %6276 = vmatpush1.msra.mxu0 0.0
    %6277 = vmatprep.subr.mxu0 0.0
    %6278 = vmatpush1.msra.mxu0 0.0
    %6279 = vmatprep.subr.mxu0 0.0
    %6280 = vmatpush1.msra.mxu0 0.0
    %6281 = vmatprep.subr.mxu0 0.0
    %6282 = vmatpush1.msra.mxu0 0.0
    %6283 = vmatprep.subr.mxu0 0.0
    %6284 = vmatpush1.msra.mxu0 0.0
    %6285 = vmatprep.subr.mxu0 0.0
    %6286 = vmatpush1.msra.mxu0 0.0
    %6287 = vmatprep.subr.mxu0 0.0
    %6288 = vmatpush1.msra.mxu0 0.0
    %6289 = vmatprep.mubr.f32.mxu0 0.0
    %6290 = vmatmul.mubr.f32.gmra.mrb[0].mxu0 %v6083
    %v6291 = vpop.f32.mrb[0].mxu0
    %v6292 = vadd.f32 %v2202, %v6291
    %v6293 = vpop.f32.mrb[0].mxu0
    %6294 = vdwg.mxu0
    %6295 = vmatprep.subr.mxu0 0.0
    %6296 = vmatpush1.msra.mxu0 %v173
    %6297 = vmatprep.subr.mxu0 0.0
    %6298 = vmatpush1.msra.mxu0 %v174
    %6299 = vmatprep.subr.mxu0 0.0
    %6300 = vmatpush1.msra.mxu0 %v175
    %6301 = vmatprep.subr.mxu0 0.0
    %6302 = vmatpush1.msra.mxu0 %v176
    %6303 = vmatprep.subr.mxu0 0.0
    %6304 = vmatpush1.msra.mxu0 0.0
    %6305 = vmatprep.subr.mxu0 0.0
    %6306 = vmatpush1.msra.mxu0 0.0
    %6307 = vmatprep.subr.mxu0 0.0
    %6308 = vmatpush1.msra.mxu0 0.0
    %6309 = vmatprep.subr.mxu0 0.0
    %6310 = vmatpush1.msra.mxu0 0.0
    %6311 = vmatprep.subr.mxu0 0.0
    %6312 = vmatpush1.msra.mxu0 0.0
    %6313 = vmatprep.subr.mxu0 0.0
    %6314 = vmatpush1.msra.mxu0 0.0
    %6315 = vmatprep.subr.mxu0 0.0
    %6316 = vmatpush1.msra.mxu0 0.0
    %6317 = vmatprep.subr.mxu0 0.0
    %6318 = vmatpush1.msra.mxu0 0.0
    %6319 = vmatprep.subr.mxu0 0.0
    %6320 = vmatpush1.msra.mxu0 0.0
    %6321 = vmatprep.subr.mxu0 0.0
    %6322 = vmatpush1.msra.mxu0 0.0
    %6323 = vmatprep.subr.mxu0 0.0
    %6324 = vmatpush1.msra.mxu0 0.0
    %6325 = vmatprep.subr.mxu0 0.0
    %6326 = vmatpush1.msra.mxu0 0.0
    %6327 = vmatprep.subr.mxu0 0.0
    %6328 = vmatpush1.msra.mxu0 0.0
    %6329 = vmatprep.subr.mxu0 0.0
    %6330 = vmatpush1.msra.mxu0 0.0
    %6331 = vmatprep.subr.mxu0 0.0
    %6332 = vmatpush1.msra.mxu0 0.0
    %6333 = vmatprep.subr.mxu0 0.0
    %6334 = vmatpush1.msra.mxu0 0.0
    %6335 = vmatprep.subr.mxu0 0.0
    %6336 = vmatpush1.msra.mxu0 0.0
    %6337 = vmatprep.subr.mxu0 0.0
    %6338 = vmatpush1.msra.mxu0 0.0
    %6339 = vmatprep.subr.mxu0 0.0
    %6340 = vmatpush1.msra.mxu0 0.0
    %6341 = vmatprep.subr.mxu0 0.0
    %6342 = vmatpush1.msra.mxu0 0.0
    %6343 = vmatprep.subr.mxu0 0.0
    %6344 = vmatpush1.msra.mxu0 0.0
    %6345 = vmatprep.subr.mxu0 0.0
    %6346 = vmatpush1.msra.mxu0 0.0
    %6347 = vmatprep.subr.mxu0 0.0
    %6348 = vmatpush1.msra.mxu0 0.0
    %6349 = vmatprep.subr.mxu0 0.0
    %6350 = vmatpush1.msra.mxu0 0.0
    %6351 = vmatprep.subr.mxu0 0.0
    %6352 = vmatpush1.msra.mxu0 0.0
    %6353 = vmatprep.subr.mxu0 0.0
    %6354 = vmatpush1.msra.mxu0 0.0
    %6355 = vmatprep.subr.mxu0 0.0
    %6356 = vmatpush1.msra.mxu0 0.0
    %6357 = vmatprep.subr.mxu0 0.0
    %6358 = vmatpush1.msra.mxu0 0.0
    %6359 = vmatprep.mubr.f32.mxu0 0.0
    %6360 = vmatmul.mubr.f32.gmra.mrb[0].mxu0 %v6083
    %v6361 = vpop.f32.mrb[0].mxu0
    %v6362 = vadd.f32 %v2206, %v6361
    %v6363 = vpop.f32.mrb[0].mxu0
    %6364 = vdwg.mxu0
    %v6366 = vsel %vm256, %v4255, 0
    %6368 = vmatprep.subr.mxu0 0.0
    %6369 = vmatpush1.msra.mxu0 %v181
    %6370 = vmatprep.subr.mxu0 0.0
    %6371 = vmatpush1.msra.mxu0 %v182
    %6372 = vmatprep.subr.mxu0 0.0
    %6373 = vmatpush1.msra.mxu0 %v183
    %6374 = vmatprep.subr.mxu0 0.0
    %6375 = vmatpush1.msra.mxu0 %v184
    %6376 = vmatprep.subr.mxu0 0.0
    %6377 = vmatpush1.msra.mxu0 0.0
    %6378 = vmatprep.subr.mxu0 0.0
    %6379 = vmatpush1.msra.mxu0 0.0
    %6380 = vmatprep.subr.mxu0 0.0
    %6381 = vmatpush1.msra.mxu0 0.0
    %6382 = vmatprep.subr.mxu0 0.0
    %6383 = vmatpush1.msra.mxu0 0.0
    %6384 = vmatprep.subr.mxu0 0.0
    %6385 = vmatpush1.msra.mxu0 0.0
    %6386 = vmatprep.subr.mxu0 0.0
    %6387 = vmatpush1.msra.mxu0 0.0
    %6388 = vmatprep.subr.mxu0 0.0
    %6389 = vmatpush1.msra.mxu0 0.0
    %6390 = vmatprep.subr.mxu0 0.0
    %6391 = vmatpush1.msra.mxu0 0.0
    %6392 = vmatprep.subr.mxu0 0.0
    %6393 = vmatpush1.msra.mxu0 0.0
    %6394 = vmatprep.subr.mxu0 0.0
    %6395 = vmatpush1.msra.mxu0 0.0
    %6396 = vmatprep.subr.mxu0 0.0
    %6397 = vmatpush1.msra.mxu0 0.0
    %6398 = vmatprep.subr.mxu0 0.0
    %6399 = vmatpush1.msra.mxu0 0.0
    %6400 = vmatprep.subr.mxu0 0.0
    %6401 = vmatpush1.msra.mxu0 0.0
    %6402 = vmatprep.subr.mxu0 0.0
    %6403 = vmatpush1.msra.mxu0 0.0
    %6404 = vmatprep.subr.mxu0 0.0
    %6405 = vmatpush1.msra.mxu0 0.0
    %6406 = vmatprep.subr.mxu0 0.0
    %6407 = vmatpush1.msra.mxu0 0.0
    %6408 = vmatprep.subr.mxu0 0.0
    %6409 = vmatpush1.msra.mxu0 0.0
    %6410 = vmatprep.subr.mxu0 0.0
    %6411 = vmatpush1.msra.mxu0 0.0
    %6412 = vmatprep.subr.mxu0 0.0
    %6413 = vmatpush1.msra.mxu0 0.0
    %6414 = vmatprep.subr.mxu0 0.0
    %6415 = vmatpush1.msra.mxu0 0.0
    %6416 = vmatprep.subr.mxu0 0.0
    %6417 = vmatpush1.msra.mxu0 0.0
    %6418 = vmatprep.subr.mxu0 0.0
    %6419 = vmatpush1.msra.mxu0 0.0
    %6420 = vmatprep.subr.mxu0 0.0
    %6421 = vmatpush1.msra.mxu0 0.0
    %6422 = vmatprep.subr.mxu0 0.0
    %6423 = vmatpush1.msra.mxu0 0.0
    %6424 = vmatprep.subr.mxu0 0.0
    %6425 = vmatpush1.msra.mxu0 0.0
    %6426 = vmatprep.subr.mxu0 0.0
    %6427 = vmatpush1.msra.mxu0 0.0
    %6428 = vmatprep.subr.mxu0 0.0
    %6429 = vmatpush1.msra.mxu0 0.0
    %6430 = vmatprep.subr.mxu0 0.0
    %6431 = vmatpush1.msra.mxu0 0.0
    %6432 = vmatprep.mubr.f32.mxu0 0.0
    %6433 = vmatmul.mubr.f32.gmra.mrb[0].mxu0 %v6366
    %v6434 = vpop.f32.mrb[0].mxu0
    %v6435 = vadd.f32 %v2501, %v6434
    %v6436 = vpop.f32.mrb[0].mxu0
    %6437 = vdwg.mxu0
    %6438 = vmatprep.subr.mxu0 0.0
    %6439 = vmatpush1.msra.mxu0 %v185
    %6440 = vmatprep.subr.mxu0 0.0
    %6441 = vmatpush1.msra.mxu0 %v186
    %6442 = vmatprep.subr.mxu0 0.0
    %6443 = vmatpush1.msra.mxu0 %v187
    %6444 = vmatprep.subr.mxu0 0.0
    %6445 = vmatpush1.msra.mxu0 %v188
    %6446 = vmatprep.subr.mxu0 0.0
    %6447 = vmatpush1.msra.mxu0 0.0
    %6448 = vmatprep.subr.mxu0 0.0
    %6449 = vmatpush1.msra.mxu0 0.0
    %6450 = vmatprep.subr.mxu0 0.0
    %6451 = vmatpush1.msra.mxu0 0.0
    %6452 = vmatprep.subr.mxu0 0.0
    %6453 = vmatpush1.msra.mxu0 0.0
    %6454 = vmatprep.subr.mxu0 0.0
    %6455 = vmatpush1.msra.mxu0 0.0
    %6456 = vmatprep.subr.mxu0 0.0
    %6457 = vmatpush1.msra.mxu0 0.0
    %6458 = vmatprep.subr.mxu0 0.0
    %6459 = vmatpush1.msra.mxu0 0.0
    %6460 = vmatprep.subr.mxu0 0.0
    %6461 = vmatpush1.msra.mxu0 0.0
    %6462 = vmatprep.subr.mxu0 0.0
    %6463 = vmatpush1.msra.mxu0 0.0
    %6464 = vmatprep.subr.mxu0 0.0
    %6465 = vmatpush1.msra.mxu0 0.0
    %6466 = vmatprep.subr.mxu0 0.0
    %6467 = vmatpush1.msra.mxu0 0.0
    %6468 = vmatprep.subr.mxu0 0.0
    %6469 = vmatpush1.msra.mxu0 0.0
    %6470 = vmatprep.subr.mxu0 0.0
    %6471 = vmatpush1.msra.mxu0 0.0
    %6472 = vmatprep.subr.mxu0 0.0
    %6473 = vmatpush1.msra.mxu0 0.0
    %6474 = vmatprep.subr.mxu0 0.0
    %6475 = vmatpush1.msra.mxu0 0.0
    %6476 = vmatprep.subr.mxu0 0.0
    %6477 = vmatpush1.msra.mxu0 0.0
    %6478 = vmatprep.subr.mxu0 0.0
    %6479 = vmatpush1.msra.mxu0 0.0
    %6480 = vmatprep.subr.mxu0 0.0
    %6481 = vmatpush1.msra.mxu0 0.0
    %6482 = vmatprep.subr.mxu0 0.0
    %6483 = vmatpush1.msra.mxu0 0.0
    %6484 = vmatprep.subr.mxu0 0.0
    %6485 = vmatpush1.msra.mxu0 0.0
    %6486 = vmatprep.subr.mxu0 0.0
    %6487 = vmatpush1.msra.mxu0 0.0
    %6488 = vmatprep.subr.mxu0 0.0
    %6489 = vmatpush1.msra.mxu0 0.0
    %6490 = vmatprep.subr.mxu0 0.0
    %6491 = vmatpush1.msra.mxu0 0.0
    %6492 = vmatprep.subr.mxu0 0.0
    %6493 = vmatpush1.msra.mxu0 0.0
    %6494 = vmatprep.subr.mxu0 0.0
    %6495 = vmatpush1.msra.mxu0 0.0
    %6496 = vmatprep.subr.mxu0 0.0
    %6497 = vmatpush1.msra.mxu0 0.0
    %6498 = vmatprep.subr.mxu0 0.0
    %6499 = vmatpush1.msra.mxu0 0.0
    %6500 = vmatprep.subr.mxu0 0.0
    %6501 = vmatpush1.msra.mxu0 0.0
    %6502 = vmatprep.mubr.f32.mxu0 0.0
    %6503 = vmatmul.mubr.f32.gmra.mrb[0].mxu0 %v6366
    %v6504 = vpop.f32.mrb[0].mxu0
    %v6505 = vadd.f32 %v2505, %v6504
    %v6506 = vpop.f32.mrb[0].mxu0
    %6507 = vdwg.mxu0
    %6508 = vmatprep.subr.mxu0 0.0
    %6509 = vmatpush1.msra.mxu0 %v189
    %6510 = vmatprep.subr.mxu0 0.0
    %6511 = vmatpush1.msra.mxu0 %v190
    %6512 = vmatprep.subr.mxu0 0.0
    %6513 = vmatpush1.msra.mxu0 %v191
    %6514 = vmatprep.subr.mxu0 0.0
    %6515 = vmatpush1.msra.mxu0 %v192
    %6516 = vmatprep.subr.mxu0 0.0
    %6517 = vmatpush1.msra.mxu0 0.0
    %6518 = vmatprep.subr.mxu0 0.0
    %6519 = vmatpush1.msra.mxu0 0.0
    %6520 = vmatprep.subr.mxu0 0.0
    %6521 = vmatpush1.msra.mxu0 0.0
    %6522 = vmatprep.subr.mxu0 0.0
    %6523 = vmatpush1.msra.mxu0 0.0
    %6524 = vmatprep.subr.mxu0 0.0
    %6525 = vmatpush1.msra.mxu0 0.0
    %6526 = vmatprep.subr.mxu0 0.0
    %6527 = vmatpush1.msra.mxu0 0.0
    %6528 = vmatprep.subr.mxu0 0.0
    %6529 = vmatpush1.msra.mxu0 0.0
    %6530 = vmatprep.subr.mxu0 0.0
    %6531 = vmatpush1.msra.mxu0 0.0
    %6532 = vmatprep.subr.mxu0 0.0
    %6533 = vmatpush1.msra.mxu0 0.0
    %6534 = vmatprep.subr.mxu0 0.0
    %6535 = vmatpush1.msra.mxu0 0.0
    %6536 = vmatprep.subr.mxu0 0.0
    %6537 = vmatpush1.msra.mxu0 0.0
    %6538 = vmatprep.subr.mxu0 0.0
    %6539 = vmatpush1.msra.mxu0 0.0
    %6540 = vmatprep.subr.mxu0 0.0
    %6541 = vmatpush1.msra.mxu0 0.0
    %6542 = vmatprep.subr.mxu0 0.0
    %6543 = vmatpush1.msra.mxu0 0.0
    %6544 = vmatprep.subr.mxu0 0.0
    %6545 = vmatpush1.msra.mxu0 0.0
    %6546 = vmatprep.subr.mxu0 0.0
    %6547 = vmatpush1.msra.mxu0 0.0
    %6548 = vmatprep.subr.mxu0 0.0
    %6549 = vmatpush1.msra.mxu0 0.0
    %6550 = vmatprep.subr.mxu0 0.0
    %6551 = vmatpush1.msra.mxu0 0.0
    %6552 = vmatprep.subr.mxu0 0.0
    %6553 = vmatpush1.msra.mxu0 0.0
    %6554 = vmatprep.subr.mxu0 0.0
    %6555 = vmatpush1.msra.mxu0 0.0
    %6556 = vmatprep.subr.mxu0 0.0
    %6557 = vmatpush1.msra.mxu0 0.0
    %6558 = vmatprep.subr.mxu0 0.0
    %6559 = vmatpush1.msra.mxu0 0.0
    %6560 = vmatprep.subr.mxu0 0.0
    %6561 = vmatpush1.msra.mxu0 0.0
    %6562 = vmatprep.subr.mxu0 0.0
    %6563 = vmatpush1.msra.mxu0 0.0
    %6564 = vmatprep.subr.mxu0 0.0
    %6565 = vmatpush1.msra.mxu0 0.0
    %6566 = vmatprep.subr.mxu0 0.0
    %6567 = vmatpush1.msra.mxu0 0.0
    %6568 = vmatprep.subr.mxu0 0.0
    %6569 = vmatpush1.msra.mxu0 0.0
    %6570 = vmatprep.subr.mxu0 0.0
    %6571 = vmatpush1.msra.mxu0 0.0
    %6572 = vmatprep.mubr.f32.mxu0 0.0
    %6573 = vmatmul.mubr.f32.gmra.mrb[0].mxu0 %v6366
    %v6574 = vpop.f32.mrb[0].mxu0
    %v6575 = vadd.f32 %v2509, %v6574
    %v6576 = vpop.f32.mrb[0].mxu0
    %6577 = vdwg.mxu0
    %6578 = vmatprep.subr.mxu0 0.0
    %6579 = vmatpush1.msra.mxu0 %v193
    %6580 = vmatprep.subr.mxu0 0.0
    %6581 = vmatpush1.msra.mxu0 %v194
    %6582 = vmatprep.subr.mxu0 0.0
    %6583 = vmatpush1.msra.mxu0 %v195
    %6584 = vmatprep.subr.mxu0 0.0
    %6585 = vmatpush1.msra.mxu0 %v196
    %6586 = vmatprep.subr.mxu0 0.0
    %6587 = vmatpush1.msra.mxu0 0.0
    %6588 = vmatprep.subr.mxu0 0.0
    %6589 = vmatpush1.msra.mxu0 0.0
    %6590 = vmatprep.subr.mxu0 0.0
    %6591 = vmatpush1.msra.mxu0 0.0
    %6592 = vmatprep.subr.mxu0 0.0
    %6593 = vmatpush1.msra.mxu0 0.0
    %6594 = vmatprep.subr.mxu0 0.0
    %6595 = vmatpush1.msra.mxu0 0.0
    %6596 = vmatprep.subr.mxu0 0.0
    %6597 = vmatpush1.msra.mxu0 0.0
    %6598 = vmatprep.subr.mxu0 0.0
    %6599 = vmatpush1.msra.mxu0 0.0
    %6600 = vmatprep.subr.mxu0 0.0
    %6601 = vmatpush1.msra.mxu0 0.0
    %6602 = vmatprep.subr.mxu0 0.0
    %6603 = vmatpush1.msra.mxu0 0.0
    %6604 = vmatprep.subr.mxu0 0.0
    %6605 = vmatpush1.msra.mxu0 0.0
    %6606 = vmatprep.subr.mxu0 0.0
    %6607 = vmatpush1.msra.mxu0 0.0
    %6608 = vmatprep.subr.mxu0 0.0
    %6609 = vmatpush1.msra.mxu0 0.0
    %6610 = vmatprep.subr.mxu0 0.0
    %6611 = vmatpush1.msra.mxu0 0.0
    %6612 = vmatprep.subr.mxu0 0.0
    %6613 = vmatpush1.msra.mxu0 0.0
    %6614 = vmatprep.subr.mxu0 0.0
    %6615 = vmatpush1.msra.mxu0 0.0
    %6616 = vmatprep.subr.mxu0 0.0
    %6617 = vmatpush1.msra.mxu0 0.0
    %6618 = vmatprep.subr.mxu0 0.0
    %6619 = vmatpush1.msra.mxu0 0.0
    %6620 = vmatprep.subr.mxu0 0.0
    %6621 = vmatpush1.msra.mxu0 0.0
    %6622 = vmatprep.subr.mxu0 0.0
    %6623 = vmatpush1.msra.mxu0 0.0
    %6624 = vmatprep.subr.mxu0 0.0
    %6625 = vmatpush1.msra.mxu0 0.0
    %6626 = vmatprep.subr.mxu0 0.0
    %6627 = vmatpush1.msra.mxu0 0.0
    %6628 = vmatprep.subr.mxu0 0.0
    %6629 = vmatpush1.msra.mxu0 0.0
    %6630 = vmatprep.subr.mxu0 0.0
    %6631 = vmatpush1.msra.mxu0 0.0
    %6632 = vmatprep.subr.mxu0 0.0
    %6633 = vmatpush1.msra.mxu0 0.0
    %6634 = vmatprep.subr.mxu0 0.0
    %6635 = vmatpush1.msra.mxu0 0.0
    %6636 = vmatprep.subr.mxu0 0.0
    %6637 = vmatpush1.msra.mxu0 0.0
    %6638 = vmatprep.subr.mxu0 0.0
    %6639 = vmatpush1.msra.mxu0 0.0
    %6640 = vmatprep.subr.mxu0 0.0
    %6641 = vmatpush1.msra.mxu0 0.0
    %6642 = vmatprep.mubr.f32.mxu0 0.0
    %6643 = vmatmul.mubr.f32.gmra.mrb[0].mxu0 %v6366
    %v6644 = vpop.f32.mrb[0].mxu0
    %v6645 = vadd.f32 %v2513, %v6644
    %v6646 = vpop.f32.mrb[0].mxu0
    %6647 = vdwg.mxu0
    %6648 = vmatprep.subr.mxu0 0.0
    %6649 = vmatpush1.msra.mxu0 %v201
    %6650 = vmatprep.subr.mxu0 0.0
    %6651 = vmatpush1.msra.mxu0 %v202
    %6652 = vmatprep.subr.mxu0 0.0
    %6653 = vmatpush1.msra.mxu0 %v203
    %6654 = vmatprep.subr.mxu0 0.0
    %6655 = vmatpush1.msra.mxu0 %v204
    %6656 = vmatprep.subr.mxu0 0.0
    %6657 = vmatpush1.msra.mxu0 0.0
    %6658 = vmatprep.subr.mxu0 0.0
    %6659 = vmatpush1.msra.mxu0 0.0
    %6660 = vmatprep.subr.mxu0 0.0
    %6661 = vmatpush1.msra.mxu0 0.0
    %6662 = vmatprep.subr.mxu0 0.0
    %6663 = vmatpush1.msra.mxu0 0.0
    %6664 = vmatprep.subr.mxu0 0.0
    %6665 = vmatpush1.msra.mxu0 0.0
    %6666 = vmatprep.subr.mxu0 0.0
    %6667 = vmatpush1.msra.mxu0 0.0
    %6668 = vmatprep.subr.mxu0 0.0
    %6669 = vmatpush1.msra.mxu0 0.0
    %6670 = vmatprep.subr.mxu0 0.0
    %6671 = vmatpush1.msra.mxu0 0.0
    %6672 = vmatprep.subr.mxu0 0.0
    %6673 = vmatpush1.msra.mxu0 0.0
    %6674 = vmatprep.subr.mxu0 0.0
    %6675 = vmatpush1.msra.mxu0 0.0
    %6676 = vmatprep.subr.mxu0 0.0
    %6677 = vmatpush1.msra.mxu0 0.0
    %6678 = vmatprep.subr.mxu0 0.0
    %6679 = vmatpush1.msra.mxu0 0.0
    %6680 = vmatprep.subr.mxu0 0.0
    %6681 = vmatpush1.msra.mxu0 0.0
    %6682 = vmatprep.subr.mxu0 0.0
    %6683 = vmatpush1.msra.mxu0 0.0
    %6684 = vmatprep.subr.mxu0 0.0
    %6685 = vmatpush1.msra.mxu0 0.0
    %6686 = vmatprep.subr.mxu0 0.0
    %6687 = vmatpush1.msra.mxu0 0.0
    %6688 = vmatprep.subr.mxu0 0.0
    %6689 = vmatpush1.msra.mxu0 0.0
    %6690 = vmatprep.subr.mxu0 0.0
    %6691 = vmatpush1.msra.mxu0 0.0
    %6692 = vmatprep.subr.mxu0 0.0
    %6693 = vmatpush1.msra.mxu0 0.0
    %6694 = vmatprep.subr.mxu0 0.0
    %6695 = vmatpush1.msra.mxu0 0.0
    %6696 = vmatprep.subr.mxu0 0.0
    %6697 = vmatpush1.msra.mxu0 0.0
    %6698 = vmatprep.subr.mxu0 0.0
    %6699 = vmatpush1.msra.mxu0 0.0
    %6700 = vmatprep.subr.mxu0 0.0
    %6701 = vmatpush1.msra.mxu0 0.0
    %6702 = vmatprep.subr.mxu0 0.0
    %6703 = vmatpush1.msra.mxu0 0.0
    %6704 = vmatprep.subr.mxu0 0.0
    %6705 = vmatpush1.msra.mxu0 0.0
    %6706 = vmatprep.subr.mxu0 0.0
    %6707 = vmatpush1.msra.mxu0 0.0
    %6708 = vmatprep.subr.mxu0 0.0
    %6709 = vmatpush1.msra.mxu0 0.0
    %6710 = vmatprep.subr.mxu0 0.0
    %6711 = vmatpush1.msra.mxu0 0.0
    %6712 = vmatprep.mubr.f32.mxu0 0.0
    %6713 = vmatmul.mubr.f32.gmra.mrb[0].mxu0 %v6366
    %v6714 = vpop.f32.mrb[0].mxu0
    %v6715 = vadd.f32 %v2808, %v6714
    %v6716 = vpop.f32.mrb[0].mxu0
    %6717 = vdwg.mxu0
    %6718 = vmatprep.subr.mxu0 0.0
    %6719 = vmatpush1.msra.mxu0 %v205
    %6720 = vmatprep.subr.mxu0 0.0
    %6721 = vmatpush1.msra.mxu0 %v206
    %6722 = vmatprep.subr.mxu0 0.0
    %6723 = vmatpush1.msra.mxu0 %v207
    %6724 = vmatprep.subr.mxu0 0.0
    %6725 = vmatpush1.msra.mxu0 %v208
    %6726 = vmatprep.subr.mxu0 0.0
    %6727 = vmatpush1.msra.mxu0 0.0
    %6728 = vmatprep.subr.mxu0 0.0
    %6729 = vmatpush1.msra.mxu0 0.0
    %6730 = vmatprep.subr.mxu0 0.0
    %6731 = vmatpush1.msra.mxu0 0.0
    %6732 = vmatprep.subr.mxu0 0.0
    %6733 = vmatpush1.msra.mxu0 0.0
    %6734 = vmatprep.subr.mxu0 0.0
    %6735 = vmatpush1.msra.mxu0 0.0
    %6736 = vmatprep.subr.mxu0 0.0
    %6737 = vmatpush1.msra.mxu0 0.0
    %6738 = vmatprep.subr.mxu0 0.0
    %6739 = vmatpush1.msra.mxu0 0.0
    %6740 = vmatprep.subr.mxu0 0.0
    %6741 = vmatpush1.msra.mxu0 0.0
    %6742 = vmatprep.subr.mxu0 0.0
    %6743 = vmatpush1.msra.mxu0 0.0
    %6744 = vmatprep.subr.mxu0 0.0
    %6745 = vmatpush1.msra.mxu0 0.0
    %6746 = vmatprep.subr.mxu0 0.0
    %6747 = vmatpush1.msra.mxu0 0.0
    %6748 = vmatprep.subr.mxu0 0.0
    %6749 = vmatpush1.msra.mxu0 0.0
    %6750 = vmatprep.subr.mxu0 0.0
    %6751 = vmatpush1.msra.mxu0 0.0
    %6752 = vmatprep.subr.mxu0 0.0
    %6753 = vmatpush1.msra.mxu0 0.0
    %6754 = vmatprep.subr.mxu0 0.0
    %6755 = vmatpush1.msra.mxu0 0.0
    %6756 = vmatprep.subr.mxu0 0.0
    %6757 = vmatpush1.msra.mxu0 0.0
    %6758 = vmatprep.subr.mxu0 0.0
    %6759 = vmatpush1.msra.mxu0 0.0
    %6760 = vmatprep.subr.mxu0 0.0
    %6761 = vmatpush1.msra.mxu0 0.0
    %6762 = vmatprep.subr.mxu0 0.0
    %6763 = vmatpush1.msra.mxu0 0.0
    %6764 = vmatprep.subr.mxu0 0.0
    %6765 = vmatpush1.msra.mxu0 0.0
    %6766 = vmatprep.subr.mxu0 0.0
    %6767 = vmatpush1.msra.mxu0 0.0
    %6768 = vmatprep.subr.mxu0 0.0
    %6769 = vmatpush1.msra.mxu0 0.0
    %6770 = vmatprep.subr.mxu0 0.0
    %6771 = vmatpush1.msra.mxu0 0.0
    %6772 = vmatprep.subr.mxu0 0.0
    %6773 = vmatpush1.msra.mxu0 0.0
    %6774 = vmatprep.subr.mxu0 0.0
    %6775 = vmatpush1.msra.mxu0 0.0
    %6776 = vmatprep.subr.mxu0 0.0
    %6777 = vmatpush1.msra.mxu0 0.0
    %6778 = vmatprep.subr.mxu0 0.0
    %6779 = vmatpush1.msra.mxu0 0.0
    %6780 = vmatprep.subr.mxu0 0.0
    %6781 = vmatpush1.msra.mxu0 0.0
    %6782 = vmatprep.mubr.f32.mxu0 0.0
    %6783 = vmatmul.mubr.f32.gmra.mrb[0].mxu0 %v6366
    %v6784 = vpop.f32.mrb[0].mxu0
    %v6785 = vadd.f32 %v2812, %v6784
    %v6786 = vpop.f32.mrb[0].mxu0
    %6787 = vdwg.mxu0
    %6788 = vmatprep.subr.mxu0 0.0
    %6789 = vmatpush1.msra.mxu0 %v209
    %6790 = vmatprep.subr.mxu0 0.0
    %6791 = vmatpush1.msra.mxu0 %v210
    %6792 = vmatprep.subr.mxu0 0.0
    %6793 = vmatpush1.msra.mxu0 %v211
    %6794 = vmatprep.subr.mxu0 0.0
    %6795 = vmatpush1.msra.mxu0 %v212
    %6796 = vmatprep.subr.mxu0 0.0
    %6797 = vmatpush1.msra.mxu0 0.0
    %6798 = vmatprep.subr.mxu0 0.0
    %6799 = vmatpush1.msra.mxu0 0.0
    %6800 = vmatprep.subr.mxu0 0.0
    %6801 = vmatpush1.msra.mxu0 0.0
    %6802 = vmatprep.subr.mxu0 0.0
    %6803 = vmatpush1.msra.mxu0 0.0
    %6804 = vmatprep.subr.mxu0 0.0
    %6805 = vmatpush1.msra.mxu0 0.0
    %6806 = vmatprep.subr.mxu0 0.0
    %6807 = vmatpush1.msra.mxu0 0.0
    %6808 = vmatprep.subr.mxu0 0.0
    %6809 = vmatpush1.msra.mxu0 0.0
    %6810 = vmatprep.subr.mxu0 0.0
    %6811 = vmatpush1.msra.mxu0 0.0
    %6812 = vmatprep.subr.mxu0 0.0
    %6813 = vmatpush1.msra.mxu0 0.0
    %6814 = vmatprep.subr.mxu0 0.0
    %6815 = vmatpush1.msra.mxu0 0.0
    %6816 = vmatprep.subr.mxu0 0.0
    %6817 = vmatpush1.msra.mxu0 0.0
    %6818 = vmatprep.subr.mxu0 0.0
    %6819 = vmatpush1.msra.mxu0 0.0
    %6820 = vmatprep.subr.mxu0 0.0
    %6821 = vmatpush1.msra.mxu0 0.0
    %6822 = vmatprep.subr.mxu0 0.0
    %6823 = vmatpush1.msra.mxu0 0.0
    %6824 = vmatprep.subr.mxu0 0.0
    %6825 = vmatpush1.msra.mxu0 0.0
    %6826 = vmatprep.subr.mxu0 0.0
    %6827 = vmatpush1.msra.mxu0 0.0
    %6828 = vmatprep.subr.mxu0 0.0
    %6829 = vmatpush1.msra.mxu0 0.0
    %6830 = vmatprep.subr.mxu0 0.0
    %6831 = vmatpush1.msra.mxu0 0.0
    %6832 = vmatprep.subr.mxu0 0.0
    %6833 = vmatpush1.msra.mxu0 0.0
    %6834 = vmatprep.subr.mxu0 0.0
    %6835 = vmatpush1.msra.mxu0 0.0
    %6836 = vmatprep.subr.mxu0 0.0
    %6837 = vmatpush1.msra.mxu0 0.0
    %6838 = vmatprep.subr.mxu0 0.0
    %6839 = vmatpush1.msra.mxu0 0.0
    %6840 = vmatprep.subr.mxu0 0.0
    %6841 = vmatpush1.msra.mxu0 0.0
    %6842 = vmatprep.subr.mxu0 0.0
    %6843 = vmatpush1.msra.mxu0 0.0
    %6844 = vmatprep.subr.mxu0 0.0
    %6845 = vmatpush1.msra.mxu0 0.0
    %6846 = vmatprep.subr.mxu0 0.0
    %6847 = vmatpush1.msra.mxu0 0.0
    %6848 = vmatprep.subr.mxu0 0.0
    %6849 = vmatpush1.msra.mxu0 0.0
    %6850 = vmatprep.subr.mxu0 0.0
    %6851 = vmatpush1.msra.mxu0 0.0
    %6852 = vmatprep.mubr.f32.mxu0 0.0
    %6853 = vmatmul.mubr.f32.gmra.mrb[0].mxu0 %v6366
    %v6854 = vpop.f32.mrb[0].mxu0
    %v6855 = vadd.f32 %v2816, %v6854
    %v6856 = vpop.f32.mrb[0].mxu0
    %6857 = vdwg.mxu0
    %6858 = vmatprep.subr.mxu0 0.0
    %6859 = vmatpush1.msra.mxu0 %v213
    %6860 = vmatprep.subr.mxu0 0.0
    %6861 = vmatpush1.msra.mxu0 %v214
    %6862 = vmatprep.subr.mxu0 0.0
    %6863 = vmatpush1.msra.mxu0 %v215
    %6864 = vmatprep.subr.mxu0 0.0
    %6865 = vmatpush1.msra.mxu0 %v216
    %6866 = vmatprep.subr.mxu0 0.0
    %6867 = vmatpush1.msra.mxu0 0.0
    %6868 = vmatprep.subr.mxu0 0.0
    %6869 = vmatpush1.msra.mxu0 0.0
    %6870 = vmatprep.subr.mxu0 0.0
    %6871 = vmatpush1.msra.mxu0 0.0
    %6872 = vmatprep.subr.mxu0 0.0
    %6873 = vmatpush1.msra.mxu0 0.0
    %6874 = vmatprep.subr.mxu0 0.0
    %6875 = vmatpush1.msra.mxu0 0.0
    %6876 = vmatprep.subr.mxu0 0.0
    %6877 = vmatpush1.msra.mxu0 0.0
    %6878 = vmatprep.subr.mxu0 0.0
    %6879 = vmatpush1.msra.mxu0 0.0
    %6880 = vmatprep.subr.mxu0 0.0
    %6881 = vmatpush1.msra.mxu0 0.0
    %6882 = vmatprep.subr.mxu0 0.0
    %6883 = vmatpush1.msra.mxu0 0.0
    %6884 = vmatprep.subr.mxu0 0.0
    %6885 = vmatpush1.msra.mxu0 0.0
    %6886 = vmatprep.subr.mxu0 0.0
    %6887 = vmatpush1.msra.mxu0 0.0
    %6888 = vmatprep.subr.mxu0 0.0
    %6889 = vmatpush1.msra.mxu0 0.0
    %6890 = vmatprep.subr.mxu0 0.0
    %6891 = vmatpush1.msra.mxu0 0.0
    %6892 = vmatprep.subr.mxu0 0.0
    %6893 = vmatpush1.msra.mxu0 0.0
    %6894 = vmatprep.subr.mxu0 0.0
    %6895 = vmatpush1.msra.mxu0 0.0
    %6896 = vmatprep.subr.mxu0 0.0
    %6897 = vmatpush1.msra.mxu0 0.0
    %6898 = vmatprep.subr.mxu0 0.0
    %6899 = vmatpush1.msra.mxu0 0.0
    %6900 = vmatprep.subr.mxu0 0.0
    %6901 = vmatpush1.msra.mxu0 0.0
    %6902 = vmatprep.subr.mxu0 0.0
    %6903 = vmatpush1.msra.mxu0 0.0
    %6904 = vmatprep.subr.mxu0 0.0
    %6905 = vmatpush1.msra.mxu0 0.0
    %6906 = vmatprep.subr.mxu0 0.0
    %6907 = vmatpush1.msra.mxu0 0.0
    %6908 = vmatprep.subr.mxu0 0.0
    %6909 = vmatpush1.msra.mxu0 0.0
    %6910 = vmatprep.subr.mxu0 0.0
    %6911 = vmatpush1.msra.mxu0 0.0
    %6912 = vmatprep.subr.mxu0 0.0
    %6913 = vmatpush1.msra.mxu0 0.0
    %6914 = vmatprep.subr.mxu0 0.0
    %6915 = vmatpush1.msra.mxu0 0.0
    %6916 = vmatprep.subr.mxu0 0.0
    %6917 = vmatpush1.msra.mxu0 0.0
    %6918 = vmatprep.subr.mxu0 0.0
    %6919 = vmatpush1.msra.mxu0 0.0
    %6920 = vmatprep.subr.mxu0 0.0
    %6921 = vmatpush1.msra.mxu0 0.0
    %6922 = vmatprep.mubr.f32.mxu0 0.0
    %6923 = vmatmul.mubr.f32.gmra.mrb[0].mxu0 %v6366
    %v6924 = vpop.f32.mrb[0].mxu0
    %v6925 = vadd.f32 %v2820, %v6924
    %v6926 = vpop.f32.mrb[0].mxu0
    %6927 = vdwg.mxu0
    %v6929 = vsel %vm1202, %v6152, 0
    %v6932 = vsel %vm1202, %v6435, 0
    %6934 = vmatprep.subr.mxu0 0.0
    %6935 = vmatpush1.xpose.msra.mxu0 %v6932
    %6936 = vmatprep.subr.mxu0 0.0
    %6937 = vmatpush1.xpose.msra.mxu0 0.0
    %6938 = vmatprep.subr.mxu0 0.0
    %6939 = vmatpush1.xpose.msra.mxu0 0.0
    %6940 = vmatprep.subr.mxu0 0.0
    %6941 = vmatpush1.xpose.msra.mxu0 0.0
    %6942 = vmatprep.subr.mxu0 0.0
    %6943 = vmatpush1.xpose.msra.mxu0 0.0
    %6944 = vmatprep.subr.mxu0 0.0
    %6945 = vmatpush1.xpose.msra.mxu0 0.0
    %6946 = vmatprep.subr.mxu0 0.0
    %6947 = vmatpush1.xpose.msra.mxu0 0.0
    %6948 = vmatprep.subr.mxu0 0.0
    %6949 = vmatpush1.xpose.msra.mxu0 0.0
    %6950 = vmatprep.subr.mxu0 0.0
    %6951 = vmatpush1.xpose.msra.mxu0 0.0
    %6952 = vmatprep.subr.mxu0 0.0
    %6953 = vmatpush1.xpose.msra.mxu0 0.0
    %6954 = vmatprep.subr.mxu0 0.0
    %6955 = vmatpush1.xpose.msra.mxu0 0.0
    %6956 = vmatprep.subr.mxu0 0.0
    %6957 = vmatpush1.xpose.msra.mxu0 0.0
    %6958 = vmatprep.subr.mxu0 0.0
    %6959 = vmatpush1.xpose.msra.mxu0 0.0
    %6960 = vmatprep.subr.mxu0 0.0
    %6961 = vmatpush1.xpose.msra.mxu0 0.0
    %6962 = vmatprep.subr.mxu0 0.0
    %6963 = vmatpush1.xpose.msra.mxu0 0.0
    %6964 = vmatprep.subr.mxu0 0.0
    %6965 = vmatpush1.xpose.msra.mxu0 0.0
    %6966 = vmatprep.subr.mxu0 0.0
    %6967 = vmatpush1.xpose.msra.mxu0 0.0
    %6968 = vmatprep.subr.mxu0 0.0
    %6969 = vmatpush1.xpose.msra.mxu0 0.0
    %6970 = vmatprep.subr.mxu0 0.0
    %6971 = vmatpush1.xpose.msra.mxu0 0.0
    %6972 = vmatprep.subr.mxu0 0.0
    %6973 = vmatpush1.xpose.msra.mxu0 0.0
    %6974 = vmatprep.subr.mxu0 0.0
    %6975 = vmatpush1.xpose.msra.mxu0 0.0
    %6976 = vmatprep.subr.mxu0 0.0
    %6977 = vmatpush1.xpose.msra.mxu0 0.0
    %6978 = vmatprep.subr.mxu0 0.0
    %6979 = vmatpush1.xpose.msra.mxu0 0.0
    %6980 = vmatprep.subr.mxu0 0.0
    %6981 = vmatpush1.xpose.msra.mxu0 0.0
    %6982 = vmatprep.subr.mxu0 0.0
    %6983 = vmatpush1.xpose.msra.mxu0 0.0
    %6984 = vmatprep.subr.mxu0 0.0
    %6985 = vmatpush1.xpose.msra.mxu0 0.0
    %6986 = vmatprep.subr.mxu0 0.0
    %6987 = vmatpush1.xpose.msra.mxu0 0.0
    %6988 = vmatprep.subr.mxu0 0.0
    %6989 = vmatpush1.xpose.msra.mxu0 0.0
    %6990 = vmatprep.subr.mxu0 0.0
    %6991 = vmatpush1.xpose.msra.mxu0 0.0
    %6992 = vmatprep.subr.mxu0 0.0
    %6993 = vmatpush1.xpose.msra.mxu0 0.0
    %6994 = vmatprep.subr.mxu0 0.0
    %6995 = vmatpush1.xpose.msra.mxu0 0.0
    %6996 = vmatprep.subr.mxu0 0.0
    %6997 = vmatpush1.xpose.msra.mxu0 0.0
    %6998 = vmatprep.mubr.f32.mxu0 0.0
    %6999 = vmatmul.mubr.f32.gmra.mrb[0].mxu0 %v6929
    %v7000 = vpop.f32.mrb[0].mxu0
    %v7001 = vadd.f32 0.0, %v7000
    %v7002 = vpop.f32.mrb[0].mxu0
    %7003 = vdwg.mxu0
    %v7005 = vsel %vm1202, %v6222, 0
    %v7008 = vsel %vm1202, %v6505, 0
    %7010 = vmatprep.subr.mxu0 0.0
    %7011 = vmatpush1.xpose.msra.mxu0 %v7008
    %7012 = vmatprep.subr.mxu0 0.0
    %7013 = vmatpush1.xpose.msra.mxu0 0.0
    %7014 = vmatprep.subr.mxu0 0.0
    %7015 = vmatpush1.xpose.msra.mxu0 0.0
    %7016 = vmatprep.subr.mxu0 0.0
    %7017 = vmatpush1.xpose.msra.mxu0 0.0
    %7018 = vmatprep.subr.mxu0 0.0
    %7019 = vmatpush1.xpose.msra.mxu0 0.0
    %7020 = vmatprep.subr.mxu0 0.0
    %7021 = vmatpush1.xpose.msra.mxu0 0.0
    %7022 = vmatprep.subr.mxu0 0.0
    %7023 = vmatpush1.xpose.msra.mxu0 0.0
    %7024 = vmatprep.subr.mxu0 0.0
    %7025 = vmatpush1.xpose.msra.mxu0 0.0
    %7026 = vmatprep.subr.mxu0 0.0
    %7027 = vmatpush1.xpose.msra.mxu0 0.0
    %7028 = vmatprep.subr.mxu0 0.0
    %7029 = vmatpush1.xpose.msra.mxu0 0.0
    %7030 = vmatprep.subr.mxu0 0.0
    %7031 = vmatpush1.xpose.msra.mxu0 0.0
    %7032 = vmatprep.subr.mxu0 0.0
    %7033 = vmatpush1.xpose.msra.mxu0 0.0
    %7034 = vmatprep.subr.mxu0 0.0
    %7035 = vmatpush1.xpose.msra.mxu0 0.0
    %7036 = vmatprep.subr.mxu0 0.0
    %7037 = vmatpush1.xpose.msra.mxu0 0.0
    %7038 = vmatprep.subr.mxu0 0.0
    %7039 = vmatpush1.xpose.msra.mxu0 0.0
    %7040 = vmatprep.subr.mxu0 0.0
    %7041 = vmatpush1.xpose.msra.mxu0 0.0
    %7042 = vmatprep.subr.mxu0 0.0
    %7043 = vmatpush1.xpose.msra.mxu0 0.0
    %7044 = vmatprep.subr.mxu0 0.0
    %7045 = vmatpush1.xpose.msra.mxu0 0.0
    %7046 = vmatprep.subr.mxu0 0.0
    %7047 = vmatpush1.xpose.msra.mxu0 0.0
    %7048 = vmatprep.subr.mxu0 0.0
    %7049 = vmatpush1.xpose.msra.mxu0 0.0
    %7050 = vmatprep.subr.mxu0 0.0
    %7051 = vmatpush1.xpose.msra.mxu0 0.0
    %7052 = vmatprep.subr.mxu0 0.0
    %7053 = vmatpush1.xpose.msra.mxu0 0.0
    %7054 = vmatprep.subr.mxu0 0.0
    %7055 = vmatpush1.xpose.msra.mxu0 0.0
    %7056 = vmatprep.subr.mxu0 0.0
    %7057 = vmatpush1.xpose.msra.mxu0 0.0
    %7058 = vmatprep.subr.mxu0 0.0
    %7059 = vmatpush1.xpose.msra.mxu0 0.0
    %7060 = vmatprep.subr.mxu0 0.0
    %7061 = vmatpush1.xpose.msra.mxu0 0.0
    %7062 = vmatprep.subr.mxu0 0.0
    %7063 = vmatpush1.xpose.msra.mxu0 0.0
    %7064 = vmatprep.subr.mxu0 0.0
    %7065 = vmatpush1.xpose.msra.mxu0 0.0
    %7066 = vmatprep.subr.mxu0 0.0
    %7067 = vmatpush1.xpose.msra.mxu0 0.0
    %7068 = vmatprep.subr.mxu0 0.0
    %7069 = vmatpush1.xpose.msra.mxu0 0.0
    %7070 = vmatprep.subr.mxu0 0.0
    %7071 = vmatpush1.xpose.msra.mxu0 0.0
    %7072 = vmatprep.subr.mxu0 0.0
    %7073 = vmatpush1.xpose.msra.mxu0 0.0
    %7074 = vmatprep.mubr.f32.mxu0 0.0
    %7075 = vmatmul.mubr.f32.gmra.mrb[0].mxu0 %v7005
    %v7076 = vpop.f32.mrb[0].mxu0
    %v7077 = vadd.f32 0.0, %v7076
    %v7078 = vpop.f32.mrb[0].mxu0
    %7079 = vdwg.mxu0
    %v7081 = vsel %vm1202, %v6292, 0
    %v7084 = vsel %vm1202, %v6575, 0
    %7086 = vmatprep.subr.mxu0 0.0
    %7087 = vmatpush1.xpose.msra.mxu0 %v7084
    %7088 = vmatprep.subr.mxu0 0.0
    %7089 = vmatpush1.xpose.msra.mxu0 0.0
    %7090 = vmatprep.subr.mxu0 0.0
    %7091 = vmatpush1.xpose.msra.mxu0 0.0
    %7092 = vmatprep.subr.mxu0 0.0
    %7093 = vmatpush1.xpose.msra.mxu0 0.0
    %7094 = vmatprep.subr.mxu0 0.0
    %7095 = vmatpush1.xpose.msra.mxu0 0.0
    %7096 = vmatprep.subr.mxu0 0.0
    %7097 = vmatpush1.xpose.msra.mxu0 0.0
    %7098 = vmatprep.subr.mxu0 0.0
    %7099 = vmatpush1.xpose.msra.mxu0 0.0
    %7100 = vmatprep.subr.mxu0 0.0
    %7101 = vmatpush1.xpose.msra.mxu0 0.0
    %7102 = vmatprep.subr.mxu0 0.0
    %7103 = vmatpush1.xpose.msra.mxu0 0.0
    %7104 = vmatprep.subr.mxu0 0.0
    %7105 = vmatpush1.xpose.msra.mxu0 0.0
    %7106 = vmatprep.subr.mxu0 0.0
    %7107 = vmatpush1.xpose.msra.mxu0 0.0
    %7108 = vmatprep.subr.mxu0 0.0
    %7109 = vmatpush1.xpose.msra.mxu0 0.0
    %7110 = vmatprep.subr.mxu0 0.0
    %7111 = vmatpush1.xpose.msra.mxu0 0.0
    %7112 = vmatprep.subr.mxu0 0.0
    %7113 = vmatpush1.xpose.msra.mxu0 0.0
    %7114 = vmatprep.subr.mxu0 0.0
    %7115 = vmatpush1.xpose.msra.mxu0 0.0
    %7116 = vmatprep.subr.mxu0 0.0
    %7117 = vmatpush1.xpose.msra.mxu0 0.0
    %7118 = vmatprep.subr.mxu0 0.0
    %7119 = vmatpush1.xpose.msra.mxu0 0.0
    %7120 = vmatprep.subr.mxu0 0.0
    %7121 = vmatpush1.xpose.msra.mxu0 0.0
    %7122 = vmatprep.subr.mxu0 0.0
    %7123 = vmatpush1.xpose.msra.mxu0 0.0
    %7124 = vmatprep.subr.mxu0 0.0
    %7125 = vmatpush1.xpose.msra.mxu0 0.0
    %7126 = vmatprep.subr.mxu0 0.0
    %7127 = vmatpush1.xpose.msra.mxu0 0.0
    %7128 = vmatprep.subr.mxu0 0.0
    %7129 = vmatpush1.xpose.msra.mxu0 0.0
    %7130 = vmatprep.subr.mxu0 0.0
    %7131 = vmatpush1.xpose.msra.mxu0 0.0
    %7132 = vmatprep.subr.mxu0 0.0
    %7133 = vmatpush1.xpose.msra.mxu0 0.0
    %7134 = vmatprep.subr.mxu0 0.0
    %7135 = vmatpush1.xpose.msra.mxu0 0.0
    %7136 = vmatprep.subr.mxu0 0.0
    %7137 = vmatpush1.xpose.msra.mxu0 0.0
    %7138 = vmatprep.subr.mxu0 0.0
    %7139 = vmatpush1.xpose.msra.mxu0 0.0
    %7140 = vmatprep.subr.mxu0 0.0
    %7141 = vmatpush1.xpose.msra.mxu0 0.0
    %7142 = vmatprep.subr.mxu0 0.0
    %7143 = vmatpush1.xpose.msra.mxu0 0.0
    %7144 = vmatprep.subr.mxu0 0.0
    %7145 = vmatpush1.xpose.msra.mxu0 0.0
    %7146 = vmatprep.subr.mxu0 0.0
    %7147 = vmatpush1.xpose.msra.mxu0 0.0
    %7148 = vmatprep.subr.mxu0 0.0
    %7149 = vmatpush1.xpose.msra.mxu0 0.0
    %7150 = vmatprep.mubr.f32.mxu0 0.0
    %7151 = vmatmul.mubr.f32.gmra.mrb[0].mxu0 %v7081
    %v7152 = vpop.f32.mrb[0].mxu0
    %v7153 = vadd.f32 0.0, %v7152
    %v7154 = vpop.f32.mrb[0].mxu0
    %7155 = vdwg.mxu0
    %v7157 = vsel %vm1202, %v6362, 0
    %v7160 = vsel %vm1202, %v6645, 0
    %7162 = vmatprep.subr.mxu0 0.0
    %7163 = vmatpush1.xpose.msra.mxu0 %v7160
    %7164 = vmatprep.subr.mxu0 0.0
    %7165 = vmatpush1.xpose.msra.mxu0 0.0
    %7166 = vmatprep.subr.mxu0 0.0
    %7167 = vmatpush1.xpose.msra.mxu0 0.0
    %7168 = vmatprep.subr.mxu0 0.0
    %7169 = vmatpush1.xpose.msra.mxu0 0.0
    %7170 = vmatprep.subr.mxu0 0.0
    %7171 = vmatpush1.xpose.msra.mxu0 0.0
    %7172 = vmatprep.subr.mxu0 0.0
    %7173 = vmatpush1.xpose.msra.mxu0 0.0
    %7174 = vmatprep.subr.mxu0 0.0
    %7175 = vmatpush1.xpose.msra.mxu0 0.0
    %7176 = vmatprep.subr.mxu0 0.0
    %7177 = vmatpush1.xpose.msra.mxu0 0.0
    %7178 = vmatprep.subr.mxu0 0.0
    %7179 = vmatpush1.xpose.msra.mxu0 0.0
    %7180 = vmatprep.subr.mxu0 0.0
    %7181 = vmatpush1.xpose.msra.mxu0 0.0
    %7182 = vmatprep.subr.mxu0 0.0
    %7183 = vmatpush1.xpose.msra.mxu0 0.0
    %7184 = vmatprep.subr.mxu0 0.0
    %7185 = vmatpush1.xpose.msra.mxu0 0.0
    %7186 = vmatprep.subr.mxu0 0.0
    %7187 = vmatpush1.xpose.msra.mxu0 0.0
    %7188 = vmatprep.subr.mxu0 0.0
    %7189 = vmatpush1.xpose.msra.mxu0 0.0
    %7190 = vmatprep.subr.mxu0 0.0
    %7191 = vmatpush1.xpose.msra.mxu0 0.0
    %7192 = vmatprep.subr.mxu0 0.0
    %7193 = vmatpush1.xpose.msra.mxu0 0.0
    %7194 = vmatprep.subr.mxu0 0.0
    %7195 = vmatpush1.xpose.msra.mxu0 0.0
    %7196 = vmatprep.subr.mxu0 0.0
    %7197 = vmatpush1.xpose.msra.mxu0 0.0
    %7198 = vmatprep.subr.mxu0 0.0
    %7199 = vmatpush1.xpose.msra.mxu0 0.0
    %7200 = vmatprep.subr.mxu0 0.0
    %7201 = vmatpush1.xpose.msra.mxu0 0.0
    %7202 = vmatprep.subr.mxu0 0.0
    %7203 = vmatpush1.xpose.msra.mxu0 0.0
    %7204 = vmatprep.subr.mxu0 0.0
    %7205 = vmatpush1.xpose.msra.mxu0 0.0
    %7206 = vmatprep.subr.mxu0 0.0
    %7207 = vmatpush1.xpose.msra.mxu0 0.0
    %7208 = vmatprep.subr.mxu0 0.0
    %7209 = vmatpush1.xpose.msra.mxu0 0.0
    %7210 = vmatprep.subr.mxu0 0.0
    %7211 = vmatpush1.xpose.msra.mxu0 0.0
    %7212 = vmatprep.subr.mxu0 0.0
    %7213 = vmatpush1.xpose.msra.mxu0 0.0
    %7214 = vmatprep.subr.mxu0 0.0
    %7215 = vmatpush1.xpose.msra.mxu0 0.0
    %7216 = vmatprep.subr.mxu0 0.0
    %7217 = vmatpush1.xpose.msra.mxu0 0.0
    %7218 = vmatprep.subr.mxu0 0.0
    %7219 = vmatpush1.xpose.msra.mxu0 0.0
    %7220 = vmatprep.subr.mxu0 0.0
    %7221 = vmatpush1.xpose.msra.mxu0 0.0
    %7222 = vmatprep.subr.mxu0 0.0
    %7223 = vmatpush1.xpose.msra.mxu0 0.0
    %7224 = vmatprep.subr.mxu0 0.0
    %7225 = vmatpush1.xpose.msra.mxu0 0.0
    %7226 = vmatprep.mubr.f32.mxu0 0.0
    %7227 = vmatmul.mubr.f32.gmra.mrb[0].mxu0 %v7157
    %v7228 = vpop.f32.mrb[0].mxu0
    %v7229 = vadd.f32 0.0, %v7228
    %v7230 = vpop.f32.mrb[0].mxu0
    %7231 = vdwg.mxu0
    %v7232 = vmul.f32 %v7001, 0.35355338
    %v7233 = vmul.f32 %v7077, 0.35355338
    %v7234 = vmul.f32 %v7153, 0.35355338
    %v7235 = vmul.f32 %v7229, 0.35355338
    %v7236 = vsel %vm1202, %v7232, -inf
    %7237 = vmax.xlane.f32.xlu0 %v7236
    %v7238 = vpop.xlane.xlu0 %7237
    %v7239 = vsel %vm1202, %v7233, -inf
    %7240 = vmax.xlane.f32.xlu0 %v7239
    %v7241 = vpop.xlane.xlu0 %7240
    %v7242 = vsel %vm1202, %v7234, -inf
    %7243 = vmax.xlane.f32.xlu0 %v7242
    %v7244 = vpop.xlane.xlu0 %7243
    %v7245 = vsel %vm1202, %v7235, -inf
    %7246 = vmax.xlane.f32.xlu0 %v7245
    %v7247 = vpop.xlane.xlu0 %7246
    %v7248 = vsub.f32 %v7232, %v7238
    %v7249 = vsub.f32 %v7233, %v7241
    %v7250 = vsub.f32 %v7234, %v7244
    %v7251 = vsub.f32 %v7235, %v7247
    %v7252 = vmul.f32 %v7248, 1.442695
    %v7253 = vpow.pop %v7252
    %v7254 = vmul.f32 %v7249, 1.442695
    %v7255 = vpow.pop %v7254
    %v7256 = vmul.f32 %v7250, 1.442695
    %v7257 = vpow.pop %v7256
    %v7258 = vmul.f32 %v7251, 1.442695
    %v7259 = vpow.pop %v7258
    %v7260 = vsel %vm1202, %v7253, 0.0
    %7261 = vadd.xlane.f32.xlu0 %v7260
    %v7262 = vpop.xlane.xlu0 %7261
    %v7263 = vsel %vm1202, %v7255, 0.0
    %7264 = vadd.xlane.f32.xlu0 %v7263
    %v7265 = vpop.xlane.xlu0 %7264
    %v7266 = vsel %vm1202, %v7257, 0.0
    %7267 = vadd.xlane.f32.xlu0 %v7266
    %v7268 = vpop.xlane.xlu0 %7267
    %v7269 = vsel %vm1202, %v7259, 0.0
    %7270 = vadd.xlane.f32.xlu0 %v7269
    %v7271 = vpop.xlane.xlu0 %7270
    %v7272 = vrcp.pop %v7262
    %v7273 = vrcp.pop %v7265
    %v7274 = vrcp.pop %v7268
    %v7275 = vrcp.pop %v7271
    %v7276 = vmul.f32 %v7253, %v7272
    %v7277 = vmul.f32 %v7255, %v7273
    %v7278 = vmul.f32 %v7257, %v7274
    %v7279 = vmul.f32 %v7259, %v7275
    %v7281 = vsel %vm1202, %v7276, 0
    %7283 = vmatprep.subr.mxu0 0.0
    %7284 = vmatpush1.msra.mxu0 %v6715
    %7285 = vmatprep.subr.mxu0 0.0
    %7286 = vmatpush1.msra.mxu0 0.0
    %7287 = vmatprep.subr.mxu0 0.0
    %7288 = vmatpush1.msra.mxu0 0.0
    %7289 = vmatprep.subr.mxu0 0.0
    %7290 = vmatpush1.msra.mxu0 0.0
    %7291 = vmatprep.subr.mxu0 0.0
    %7292 = vmatpush1.msra.mxu0 0.0
    %7293 = vmatprep.subr.mxu0 0.0
    %7294 = vmatpush1.msra.mxu0 0.0
    %7295 = vmatprep.subr.mxu0 0.0
    %7296 = vmatpush1.msra.mxu0 0.0
    %7297 = vmatprep.subr.mxu0 0.0
    %7298 = vmatpush1.msra.mxu0 0.0
    %7299 = vmatprep.subr.mxu0 0.0
    %7300 = vmatpush1.msra.mxu0 0.0
    %7301 = vmatprep.subr.mxu0 0.0
    %7302 = vmatpush1.msra.mxu0 0.0
    %7303 = vmatprep.subr.mxu0 0.0
    %7304 = vmatpush1.msra.mxu0 0.0
    %7305 = vmatprep.subr.mxu0 0.0
    %7306 = vmatpush1.msra.mxu0 0.0
    %7307 = vmatprep.subr.mxu0 0.0
    %7308 = vmatpush1.msra.mxu0 0.0
    %7309 = vmatprep.subr.mxu0 0.0
    %7310 = vmatpush1.msra.mxu0 0.0
    %7311 = vmatprep.subr.mxu0 0.0
    %7312 = vmatpush1.msra.mxu0 0.0
    %7313 = vmatprep.subr.mxu0 0.0
    %7314 = vmatpush1.msra.mxu0 0.0
    %7315 = vmatprep.subr.mxu0 0.0
    %7316 = vmatpush1.msra.mxu0 0.0
    %7317 = vmatprep.subr.mxu0 0.0
    %7318 = vmatpush1.msra.mxu0 0.0
    %7319 = vmatprep.subr.mxu0 0.0
    %7320 = vmatpush1.msra.mxu0 0.0
    %7321 = vmatprep.subr.mxu0 0.0
    %7322 = vmatpush1.msra.mxu0 0.0
    %7323 = vmatprep.subr.mxu0 0.0
    %7324 = vmatpush1.msra.mxu0 0.0
    %7325 = vmatprep.subr.mxu0 0.0
    %7326 = vmatpush1.msra.mxu0 0.0
    %7327 = vmatprep.subr.mxu0 0.0
    %7328 = vmatpush1.msra.mxu0 0.0
    %7329 = vmatprep.subr.mxu0 0.0
    %7330 = vmatpush1.msra.mxu0 0.0
    %7331 = vmatprep.subr.mxu0 0.0
    %7332 = vmatpush1.msra.mxu0 0.0
    %7333 = vmatprep.subr.mxu0 0.0
    %7334 = vmatpush1.msra.mxu0 0.0
    %7335 = vmatprep.subr.mxu0 0.0
    %7336 = vmatpush1.msra.mxu0 0.0
    %7337 = vmatprep.subr.mxu0 0.0
    %7338 = vmatpush1.msra.mxu0 0.0
    %7339 = vmatprep.subr.mxu0 0.0
    %7340 = vmatpush1.msra.mxu0 0.0
    %7341 = vmatprep.subr.mxu0 0.0
    %7342 = vmatpush1.msra.mxu0 0.0
    %7343 = vmatprep.subr.mxu0 0.0
    %7344 = vmatpush1.msra.mxu0 0.0
    %7345 = vmatprep.subr.mxu0 0.0
    %7346 = vmatpush1.msra.mxu0 0.0
    %7347 = vmatprep.mubr.f32.mxu0 0.0
    %7348 = vmatmul.mubr.f32.gmra.mrb[0].mxu0 %v7281
    %v7349 = vpop.f32.mrb[0].mxu0
    %v7350 = vadd.f32 0.0, %v7349
    %v7351 = vpop.f32.mrb[0].mxu0
    %7352 = vdwg.mxu0
    %v7354 = vsel %vm1202, %v7277, 0
    %7356 = vmatprep.subr.mxu0 0.0
    %7357 = vmatpush1.msra.mxu0 %v6785
    %7358 = vmatprep.subr.mxu0 0.0
    %7359 = vmatpush1.msra.mxu0 0.0
    %7360 = vmatprep.subr.mxu0 0.0
    %7361 = vmatpush1.msra.mxu0 0.0
    %7362 = vmatprep.subr.mxu0 0.0
    %7363 = vmatpush1.msra.mxu0 0.0
    %7364 = vmatprep.subr.mxu0 0.0
    %7365 = vmatpush1.msra.mxu0 0.0
    %7366 = vmatprep.subr.mxu0 0.0
    %7367 = vmatpush1.msra.mxu0 0.0
    %7368 = vmatprep.subr.mxu0 0.0
    %7369 = vmatpush1.msra.mxu0 0.0
    %7370 = vmatprep.subr.mxu0 0.0
    %7371 = vmatpush1.msra.mxu0 0.0
    %7372 = vmatprep.subr.mxu0 0.0
    %7373 = vmatpush1.msra.mxu0 0.0
    %7374 = vmatprep.subr.mxu0 0.0
    %7375 = vmatpush1.msra.mxu0 0.0
    %7376 = vmatprep.subr.mxu0 0.0
    %7377 = vmatpush1.msra.mxu0 0.0
    %7378 = vmatprep.subr.mxu0 0.0
    %7379 = vmatpush1.msra.mxu0 0.0
    %7380 = vmatprep.subr.mxu0 0.0
    %7381 = vmatpush1.msra.mxu0 0.0
    %7382 = vmatprep.subr.mxu0 0.0
    %7383 = vmatpush1.msra.mxu0 0.0
    %7384 = vmatprep.subr.mxu0 0.0
    %7385 = vmatpush1.msra.mxu0 0.0
    %7386 = vmatprep.subr.mxu0 0.0
    %7387 = vmatpush1.msra.mxu0 0.0
    %7388 = vmatprep.subr.mxu0 0.0
    %7389 = vmatpush1.msra.mxu0 0.0
    %7390 = vmatprep.subr.mxu0 0.0
    %7391 = vmatpush1.msra.mxu0 0.0
    %7392 = vmatprep.subr.mxu0 0.0
    %7393 = vmatpush1.msra.mxu0 0.0
    %7394 = vmatprep.subr.mxu0 0.0
    %7395 = vmatpush1.msra.mxu0 0.0
    %7396 = vmatprep.subr.mxu0 0.0
    %7397 = vmatpush1.msra.mxu0 0.0
    %7398 = vmatprep.subr.mxu0 0.0
    %7399 = vmatpush1.msra.mxu0 0.0
    %7400 = vmatprep.subr.mxu0 0.0
    %7401 = vmatpush1.msra.mxu0 0.0
    %7402 = vmatprep.subr.mxu0 0.0
    %7403 = vmatpush1.msra.mxu0 0.0
    %7404 = vmatprep.subr.mxu0 0.0
    %7405 = vmatpush1.msra.mxu0 0.0
    %7406 = vmatprep.subr.mxu0 0.0
    %7407 = vmatpush1.msra.mxu0 0.0
    %7408 = vmatprep.subr.mxu0 0.0
    %7409 = vmatpush1.msra.mxu0 0.0
    %7410 = vmatprep.subr.mxu0 0.0
    %7411 = vmatpush1.msra.mxu0 0.0
    %7412 = vmatprep.subr.mxu0 0.0
    %7413 = vmatpush1.msra.mxu0 0.0
    %7414 = vmatprep.subr.mxu0 0.0
    %7415 = vmatpush1.msra.mxu0 0.0
    %7416 = vmatprep.subr.mxu0 0.0
    %7417 = vmatpush1.msra.mxu0 0.0
    %7418 = vmatprep.subr.mxu0 0.0
    %7419 = vmatpush1.msra.mxu0 0.0
    %7420 = vmatprep.mubr.f32.mxu0 0.0
    %7421 = vmatmul.mubr.f32.gmra.mrb[0].mxu0 %v7354
    %v7422 = vpop.f32.mrb[0].mxu0
    %v7423 = vadd.f32 0.0, %v7422
    %v7424 = vpop.f32.mrb[0].mxu0
    %7425 = vdwg.mxu0
    %v7427 = vsel %vm1202, %v7278, 0
    %7429 = vmatprep.subr.mxu0 0.0
    %7430 = vmatpush1.msra.mxu0 %v6855
    %7431 = vmatprep.subr.mxu0 0.0
    %7432 = vmatpush1.msra.mxu0 0.0
    %7433 = vmatprep.subr.mxu0 0.0
    %7434 = vmatpush1.msra.mxu0 0.0
    %7435 = vmatprep.subr.mxu0 0.0
    %7436 = vmatpush1.msra.mxu0 0.0
    %7437 = vmatprep.subr.mxu0 0.0
    %7438 = vmatpush1.msra.mxu0 0.0
    %7439 = vmatprep.subr.mxu0 0.0
    %7440 = vmatpush1.msra.mxu0 0.0
    %7441 = vmatprep.subr.mxu0 0.0
    %7442 = vmatpush1.msra.mxu0 0.0
    %7443 = vmatprep.subr.mxu0 0.0
    %7444 = vmatpush1.msra.mxu0 0.0
    %7445 = vmatprep.subr.mxu0 0.0
    %7446 = vmatpush1.msra.mxu0 0.0
    %7447 = vmatprep.subr.mxu0 0.0
    %7448 = vmatpush1.msra.mxu0 0.0
    %7449 = vmatprep.subr.mxu0 0.0
    %7450 = vmatpush1.msra.mxu0 0.0
    %7451 = vmatprep.subr.mxu0 0.0
    %7452 = vmatpush1.msra.mxu0 0.0
    %7453 = vmatprep.subr.mxu0 0.0
    %7454 = vmatpush1.msra.mxu0 0.0
    %7455 = vmatprep.subr.mxu0 0.0
    %7456 = vmatpush1.msra.mxu0 0.0
    %7457 = vmatprep.subr.mxu0 0.0
    %7458 = vmatpush1.msra.mxu0 0.0
    %7459 = vmatprep.subr.mxu0 0.0
    %7460 = vmatpush1.msra.mxu0 0.0
    %7461 = vmatprep.subr.mxu0 0.0
    %7462 = vmatpush1.msra.mxu0 0.0
    %7463 = vmatprep.subr.mxu0 0.0
    %7464 = vmatpush1.msra.mxu0 0.0
    %7465 = vmatprep.subr.mxu0 0.0
    %7466 = vmatpush1.msra.mxu0 0.0
    %7467 = vmatprep.subr.mxu0 0.0
    %7468 = vmatpush1.msra.mxu0 0.0
    %7469 = vmatprep.subr.mxu0 0.0
    %7470 = vmatpush1.msra.mxu0 0.0
    %7471 = vmatprep.subr.mxu0 0.0
    %7472 = vmatpush1.msra.mxu0 0.0
    %7473 = vmatprep.subr.mxu0 0.0
    %7474 = vmatpush1.msra.mxu0 0.0
    %7475 = vmatprep.subr.mxu0 0.0
    %7476 = vmatpush1.msra.mxu0 0.0
    %7477 = vmatprep.subr.mxu0 0.0
    %7478 = vmatpush1.msra.mxu0 0.0
    %7479 = vmatprep.subr.mxu0 0.0
    %7480 = vmatpush1.msra.mxu0 0.0
    %7481 = vmatprep.subr.mxu0 0.0
    %7482 = vmatpush1.msra.mxu0 0.0
    %7483 = vmatprep.subr.mxu0 0.0
    %7484 = vmatpush1.msra.mxu0 0.0
    %7485 = vmatprep.subr.mxu0 0.0
    %7486 = vmatpush1.msra.mxu0 0.0
    %7487 = vmatprep.subr.mxu0 0.0
    %7488 = vmatpush1.msra.mxu0 0.0
    %7489 = vmatprep.subr.mxu0 0.0
    %7490 = vmatpush1.msra.mxu0 0.0
    %7491 = vmatprep.subr.mxu0 0.0
    %7492 = vmatpush1.msra.mxu0 0.0
    %7493 = vmatprep.mubr.f32.mxu0 0.0
    %7494 = vmatmul.mubr.f32.gmra.mrb[0].mxu0 %v7427
    %v7495 = vpop.f32.mrb[0].mxu0
    %v7496 = vadd.f32 0.0, %v7495
    %v7497 = vpop.f32.mrb[0].mxu0
    %7498 = vdwg.mxu0
    %v7500 = vsel %vm1202, %v7279, 0
    %7502 = vmatprep.subr.mxu0 0.0
    %7503 = vmatpush1.msra.mxu0 %v6925
    %7504 = vmatprep.subr.mxu0 0.0
    %7505 = vmatpush1.msra.mxu0 0.0
    %7506 = vmatprep.subr.mxu0 0.0
    %7507 = vmatpush1.msra.mxu0 0.0
    %7508 = vmatprep.subr.mxu0 0.0
    %7509 = vmatpush1.msra.mxu0 0.0
    %7510 = vmatprep.subr.mxu0 0.0
    %7511 = vmatpush1.msra.mxu0 0.0
    %7512 = vmatprep.subr.mxu0 0.0
    %7513 = vmatpush1.msra.mxu0 0.0
    %7514 = vmatprep.subr.mxu0 0.0
    %7515 = vmatpush1.msra.mxu0 0.0
    %7516 = vmatprep.subr.mxu0 0.0
    %7517 = vmatpush1.msra.mxu0 0.0
    %7518 = vmatprep.subr.mxu0 0.0
    %7519 = vmatpush1.msra.mxu0 0.0
    %7520 = vmatprep.subr.mxu0 0.0
    %7521 = vmatpush1.msra.mxu0 0.0
    %7522 = vmatprep.subr.mxu0 0.0
    %7523 = vmatpush1.msra.mxu0 0.0
    %7524 = vmatprep.subr.mxu0 0.0
    %7525 = vmatpush1.msra.mxu0 0.0
    %7526 = vmatprep.subr.mxu0 0.0
    %7527 = vmatpush1.msra.mxu0 0.0
    %7528 = vmatprep.subr.mxu0 0.0
    %7529 = vmatpush1.msra.mxu0 0.0
    %7530 = vmatprep.subr.mxu0 0.0
    %7531 = vmatpush1.msra.mxu0 0.0
    %7532 = vmatprep.subr.mxu0 0.0
    %7533 = vmatpush1.msra.mxu0 0.0
    %7534 = vmatprep.subr.mxu0 0.0
    %7535 = vmatpush1.msra.mxu0 0.0
    %7536 = vmatprep.subr.mxu0 0.0
    %7537 = vmatpush1.msra.mxu0 0.0
    %7538 = vmatprep.subr.mxu0 0.0
    %7539 = vmatpush1.msra.mxu0 0.0
    %7540 = vmatprep.subr.mxu0 0.0
    %7541 = vmatpush1.msra.mxu0 0.0
    %7542 = vmatprep.subr.mxu0 0.0
    %7543 = vmatpush1.msra.mxu0 0.0
    %7544 = vmatprep.subr.mxu0 0.0
    %7545 = vmatpush1.msra.mxu0 0.0
    %7546 = vmatprep.subr.mxu0 0.0
    %7547 = vmatpush1.msra.mxu0 0.0
    %7548 = vmatprep.subr.mxu0 0.0
    %7549 = vmatpush1.msra.mxu0 0.0
    %7550 = vmatprep.subr.mxu0 0.0
    %7551 = vmatpush1.msra.mxu0 0.0
    %7552 = vmatprep.subr.mxu0 0.0
    %7553 = vmatpush1.msra.mxu0 0.0
    %7554 = vmatprep.subr.mxu0 0.0
    %7555 = vmatpush1.msra.mxu0 0.0
    %7556 = vmatprep.subr.mxu0 0.0
    %7557 = vmatpush1.msra.mxu0 0.0
    %7558 = vmatprep.subr.mxu0 0.0
    %7559 = vmatpush1.msra.mxu0 0.0
    %7560 = vmatprep.subr.mxu0 0.0
    %7561 = vmatpush1.msra.mxu0 0.0
    %7562 = vmatprep.subr.mxu0 0.0
    %7563 = vmatpush1.msra.mxu0 0.0
    %7564 = vmatprep.subr.mxu0 0.0
    %7565 = vmatpush1.msra.mxu0 0.0
    %7566 = vmatprep.mubr.f32.mxu0 0.0
    %7567 = vmatmul.mubr.f32.gmra.mrb[0].mxu0 %v7500
    %v7568 = vpop.f32.mrb[0].mxu0
    %v7569 = vadd.f32 0.0, %v7568
    %v7570 = vpop.f32.mrb[0].mxu0
    %7571 = vdwg.mxu0
    %v7573 = vsel %vm1202, %v7350, 0
    %7575 = vmatprep.subr.mxu0 0.0
    %7576 = vmatpush1.msra.mxu0 %v221
    %7577 = vmatprep.subr.mxu0 0.0
    %7578 = vmatpush1.msra.mxu0 0.0
    %7579 = vmatprep.subr.mxu0 0.0
    %7580 = vmatpush1.msra.mxu0 0.0
    %7581 = vmatprep.subr.mxu0 0.0
    %7582 = vmatpush1.msra.mxu0 0.0
    %7583 = vmatprep.subr.mxu0 0.0
    %7584 = vmatpush1.msra.mxu0 0.0
    %7585 = vmatprep.subr.mxu0 0.0
    %7586 = vmatpush1.msra.mxu0 0.0
    %7587 = vmatprep.subr.mxu0 0.0
    %7588 = vmatpush1.msra.mxu0 0.0
    %7589 = vmatprep.subr.mxu0 0.0
    %7590 = vmatpush1.msra.mxu0 0.0
    %7591 = vmatprep.subr.mxu0 0.0
    %7592 = vmatpush1.msra.mxu0 0.0
    %7593 = vmatprep.subr.mxu0 0.0
    %7594 = vmatpush1.msra.mxu0 0.0
    %7595 = vmatprep.subr.mxu0 0.0
    %7596 = vmatpush1.msra.mxu0 0.0
    %7597 = vmatprep.subr.mxu0 0.0
    %7598 = vmatpush1.msra.mxu0 0.0
    %7599 = vmatprep.subr.mxu0 0.0
    %7600 = vmatpush1.msra.mxu0 0.0
    %7601 = vmatprep.subr.mxu0 0.0
    %7602 = vmatpush1.msra.mxu0 0.0
    %7603 = vmatprep.subr.mxu0 0.0
    %7604 = vmatpush1.msra.mxu0 0.0
    %7605 = vmatprep.subr.mxu0 0.0
    %7606 = vmatpush1.msra.mxu0 0.0
    %7607 = vmatprep.subr.mxu0 0.0
    %7608 = vmatpush1.msra.mxu0 0.0
    %7609 = vmatprep.subr.mxu0 0.0
    %7610 = vmatpush1.msra.mxu0 0.0
    %7611 = vmatprep.subr.mxu0 0.0
    %7612 = vmatpush1.msra.mxu0 0.0
    %7613 = vmatprep.subr.mxu0 0.0
    %7614 = vmatpush1.msra.mxu0 0.0
    %7615 = vmatprep.subr.mxu0 0.0
    %7616 = vmatpush1.msra.mxu0 0.0
    %7617 = vmatprep.subr.mxu0 0.0
    %7618 = vmatpush1.msra.mxu0 0.0
    %7619 = vmatprep.subr.mxu0 0.0
    %7620 = vmatpush1.msra.mxu0 0.0
    %7621 = vmatprep.subr.mxu0 0.0
    %7622 = vmatpush1.msra.mxu0 0.0
    %7623 = vmatprep.subr.mxu0 0.0
    %7624 = vmatpush1.msra.mxu0 0.0
    %7625 = vmatprep.subr.mxu0 0.0
    %7626 = vmatpush1.msra.mxu0 0.0
    %7627 = vmatprep.subr.mxu0 0.0
    %7628 = vmatpush1.msra.mxu0 0.0
    %7629 = vmatprep.subr.mxu0 0.0
    %7630 = vmatpush1.msra.mxu0 0.0
    %7631 = vmatprep.subr.mxu0 0.0
    %7632 = vmatpush1.msra.mxu0 0.0
    %7633 = vmatprep.subr.mxu0 0.0
    %7634 = vmatpush1.msra.mxu0 0.0
    %7635 = vmatprep.subr.mxu0 0.0
    %7636 = vmatpush1.msra.mxu0 0.0
    %7637 = vmatprep.subr.mxu0 0.0
    %7638 = vmatpush1.msra.mxu0 0.0
    %7639 = vmatprep.mubr.f32.mxu0 0.0
    %7640 = vmatmul.mubr.f32.gmra.mrb[0].mxu0 %v7573
    %v7641 = vpop.f32.mrb[0].mxu0
    %v7642 = vadd.f32 0.0, %v7641
    %v7643 = vpop.f32.mrb[0].mxu0
    %7644 = vdwg.mxu0
    %v7646 = vsel %vm1202, %v7423, 0
    %7648 = vmatprep.subr.mxu0 0.0
    %7649 = vmatpush1.msra.mxu0 %v222
    %7650 = vmatprep.subr.mxu0 0.0
    %7651 = vmatpush1.msra.mxu0 0.0
    %7652 = vmatprep.subr.mxu0 0.0
    %7653 = vmatpush1.msra.mxu0 0.0
    %7654 = vmatprep.subr.mxu0 0.0
    %7655 = vmatpush1.msra.mxu0 0.0
    %7656 = vmatprep.subr.mxu0 0.0
    %7657 = vmatpush1.msra.mxu0 0.0
    %7658 = vmatprep.subr.mxu0 0.0
    %7659 = vmatpush1.msra.mxu0 0.0
    %7660 = vmatprep.subr.mxu0 0.0
    %7661 = vmatpush1.msra.mxu0 0.0
    %7662 = vmatprep.subr.mxu0 0.0
    %7663 = vmatpush1.msra.mxu0 0.0
    %7664 = vmatprep.subr.mxu0 0.0
    %7665 = vmatpush1.msra.mxu0 0.0
    %7666 = vmatprep.subr.mxu0 0.0
    %7667 = vmatpush1.msra.mxu0 0.0
    %7668 = vmatprep.subr.mxu0 0.0
    %7669 = vmatpush1.msra.mxu0 0.0
    %7670 = vmatprep.subr.mxu0 0.0
    %7671 = vmatpush1.msra.mxu0 0.0
    %7672 = vmatprep.subr.mxu0 0.0
    %7673 = vmatpush1.msra.mxu0 0.0
    %7674 = vmatprep.subr.mxu0 0.0
    %7675 = vmatpush1.msra.mxu0 0.0
    %7676 = vmatprep.subr.mxu0 0.0
    %7677 = vmatpush1.msra.mxu0 0.0
    %7678 = vmatprep.subr.mxu0 0.0
    %7679 = vmatpush1.msra.mxu0 0.0
    %7680 = vmatprep.subr.mxu0 0.0
    %7681 = vmatpush1.msra.mxu0 0.0
    %7682 = vmatprep.subr.mxu0 0.0
    %7683 = vmatpush1.msra.mxu0 0.0
    %7684 = vmatprep.subr.mxu0 0.0
    %7685 = vmatpush1.msra.mxu0 0.0
    %7686 = vmatprep.subr.mxu0 0.0
    %7687 = vmatpush1.msra.mxu0 0.0
    %7688 = vmatprep.subr.mxu0 0.0
    %7689 = vmatpush1.msra.mxu0 0.0
    %7690 = vmatprep.subr.mxu0 0.0
    %7691 = vmatpush1.msra.mxu0 0.0
    %7692 = vmatprep.subr.mxu0 0.0
    %7693 = vmatpush1.msra.mxu0 0.0
    %7694 = vmatprep.subr.mxu0 0.0
    %7695 = vmatpush1.msra.mxu0 0.0
    %7696 = vmatprep.subr.mxu0 0.0
    %7697 = vmatpush1.msra.mxu0 0.0
    %7698 = vmatprep.subr.mxu0 0.0
    %7699 = vmatpush1.msra.mxu0 0.0
    %7700 = vmatprep.subr.mxu0 0.0
    %7701 = vmatpush1.msra.mxu0 0.0
    %7702 = vmatprep.subr.mxu0 0.0
    %7703 = vmatpush1.msra.mxu0 0.0
    %7704 = vmatprep.subr.mxu0 0.0
    %7705 = vmatpush1.msra.mxu0 0.0
    %7706 = vmatprep.subr.mxu0 0.0
    %7707 = vmatpush1.msra.mxu0 0.0
    %7708 = vmatprep.subr.mxu0 0.0
    %7709 = vmatpush1.msra.mxu0 0.0
    %7710 = vmatprep.subr.mxu0 0.0
    %7711 = vmatpush1.msra.mxu0 0.0
    %7712 = vmatprep.mubr.f32.mxu0 0.0
    %7713 = vmatmul.mubr.f32.gmra.mrb[0].mxu0 %v7646
    %v7714 = vpop.f32.mrb[0].mxu0
    %v7715 = vadd.f32 0.0, %v7714
    %v7716 = vpop.f32.mrb[0].mxu0
    %7717 = vdwg.mxu0
    %v7719 = vsel %vm1202, %v7496, 0
    %7721 = vmatprep.subr.mxu0 0.0
    %7722 = vmatpush1.msra.mxu0 %v223
    %7723 = vmatprep.subr.mxu0 0.0
    %7724 = vmatpush1.msra.mxu0 0.0
    %7725 = vmatprep.subr.mxu0 0.0
    %7726 = vmatpush1.msra.mxu0 0.0
    %7727 = vmatprep.subr.mxu0 0.0
    %7728 = vmatpush1.msra.mxu0 0.0
    %7729 = vmatprep.subr.mxu0 0.0
    %7730 = vmatpush1.msra.mxu0 0.0
    %7731 = vmatprep.subr.mxu0 0.0
    %7732 = vmatpush1.msra.mxu0 0.0
    %7733 = vmatprep.subr.mxu0 0.0
    %7734 = vmatpush1.msra.mxu0 0.0
    %7735 = vmatprep.subr.mxu0 0.0
    %7736 = vmatpush1.msra.mxu0 0.0
    %7737 = vmatprep.subr.mxu0 0.0
    %7738 = vmatpush1.msra.mxu0 0.0
    %7739 = vmatprep.subr.mxu0 0.0
    %7740 = vmatpush1.msra.mxu0 0.0
    %7741 = vmatprep.subr.mxu0 0.0
    %7742 = vmatpush1.msra.mxu0 0.0
    %7743 = vmatprep.subr.mxu0 0.0
    %7744 = vmatpush1.msra.mxu0 0.0
    %7745 = vmatprep.subr.mxu0 0.0
    %7746 = vmatpush1.msra.mxu0 0.0
    %7747 = vmatprep.subr.mxu0 0.0
    %7748 = vmatpush1.msra.mxu0 0.0
    %7749 = vmatprep.subr.mxu0 0.0
    %7750 = vmatpush1.msra.mxu0 0.0
    %7751 = vmatprep.subr.mxu0 0.0
    %7752 = vmatpush1.msra.mxu0 0.0
    %7753 = vmatprep.subr.mxu0 0.0
    %7754 = vmatpush1.msra.mxu0 0.0
    %7755 = vmatprep.subr.mxu0 0.0
    %7756 = vmatpush1.msra.mxu0 0.0
    %7757 = vmatprep.subr.mxu0 0.0
    %7758 = vmatpush1.msra.mxu0 0.0
    %7759 = vmatprep.subr.mxu0 0.0
    %7760 = vmatpush1.msra.mxu0 0.0
    %7761 = vmatprep.subr.mxu0 0.0
    %7762 = vmatpush1.msra.mxu0 0.0
    %7763 = vmatprep.subr.mxu0 0.0
    %7764 = vmatpush1.msra.mxu0 0.0
    %7765 = vmatprep.subr.mxu0 0.0
    %7766 = vmatpush1.msra.mxu0 0.0
    %7767 = vmatprep.subr.mxu0 0.0
    %7768 = vmatpush1.msra.mxu0 0.0
    %7769 = vmatprep.subr.mxu0 0.0
    %7770 = vmatpush1.msra.mxu0 0.0
    %7771 = vmatprep.subr.mxu0 0.0
    %7772 = vmatpush1.msra.mxu0 0.0
    %7773 = vmatprep.subr.mxu0 0.0
    %7774 = vmatpush1.msra.mxu0 0.0
    %7775 = vmatprep.subr.mxu0 0.0
    %7776 = vmatpush1.msra.mxu0 0.0
    %7777 = vmatprep.subr.mxu0 0.0
    %7778 = vmatpush1.msra.mxu0 0.0
    %7779 = vmatprep.subr.mxu0 0.0
    %7780 = vmatpush1.msra.mxu0 0.0
    %7781 = vmatprep.subr.mxu0 0.0
    %7782 = vmatpush1.msra.mxu0 0.0
    %7783 = vmatprep.subr.mxu0 0.0
    %7784 = vmatpush1.msra.mxu0 0.0
    %7785 = vmatprep.mubr.f32.mxu0 0.0
    %7786 = vmatmul.mubr.f32.gmra.mrb[0].mxu0 %v7719
    %v7787 = vpop.f32.mrb[0].mxu0
    %v7788 = vadd.f32 0.0, %v7787
    %v7789 = vpop.f32.mrb[0].mxu0
    %7790 = vdwg.mxu0
    %v7792 = vsel %vm1202, %v7569, 0
    %7794 = vmatprep.subr.mxu0 0.0
    %7795 = vmatpush1.msra.mxu0 %v224
    %7796 = vmatprep.subr.mxu0 0.0
    %7797 = vmatpush1.msra.mxu0 0.0
    %7798 = vmatprep.subr.mxu0 0.0
    %7799 = vmatpush1.msra.mxu0 0.0
    %7800 = vmatprep.subr.mxu0 0.0
    %7801 = vmatpush1.msra.mxu0 0.0
    %7802 = vmatprep.subr.mxu0 0.0
    %7803 = vmatpush1.msra.mxu0 0.0
    %7804 = vmatprep.subr.mxu0 0.0
    %7805 = vmatpush1.msra.mxu0 0.0
    %7806 = vmatprep.subr.mxu0 0.0
    %7807 = vmatpush1.msra.mxu0 0.0
    %7808 = vmatprep.subr.mxu0 0.0
    %7809 = vmatpush1.msra.mxu0 0.0
    %7810 = vmatprep.subr.mxu0 0.0
    %7811 = vmatpush1.msra.mxu0 0.0
    %7812 = vmatprep.subr.mxu0 0.0
    %7813 = vmatpush1.msra.mxu0 0.0
    %7814 = vmatprep.subr.mxu0 0.0
    %7815 = vmatpush1.msra.mxu0 0.0
    %7816 = vmatprep.subr.mxu0 0.0
    %7817 = vmatpush1.msra.mxu0 0.0
    %7818 = vmatprep.subr.mxu0 0.0
    %7819 = vmatpush1.msra.mxu0 0.0
    %7820 = vmatprep.subr.mxu0 0.0
    %7821 = vmatpush1.msra.mxu0 0.0
    %7822 = vmatprep.subr.mxu0 0.0
    %7823 = vmatpush1.msra.mxu0 0.0
    %7824 = vmatprep.subr.mxu0 0.0
    %7825 = vmatpush1.msra.mxu0 0.0
    %7826 = vmatprep.subr.mxu0 0.0
    %7827 = vmatpush1.msra.mxu0 0.0
    %7828 = vmatprep.subr.mxu0 0.0
    %7829 = vmatpush1.msra.mxu0 0.0
    %7830 = vmatprep.subr.mxu0 0.0
    %7831 = vmatpush1.msra.mxu0 0.0
    %7832 = vmatprep.subr.mxu0 0.0
    %7833 = vmatpush1.msra.mxu0 0.0
    %7834 = vmatprep.subr.mxu0 0.0
    %7835 = vmatpush1.msra.mxu0 0.0
    %7836 = vmatprep.subr.mxu0 0.0
    %7837 = vmatpush1.msra.mxu0 0.0
    %7838 = vmatprep.subr.mxu0 0.0
    %7839 = vmatpush1.msra.mxu0 0.0
    %7840 = vmatprep.subr.mxu0 0.0
    %7841 = vmatpush1.msra.mxu0 0.0
    %7842 = vmatprep.subr.mxu0 0.0
    %7843 = vmatpush1.msra.mxu0 0.0
    %7844 = vmatprep.subr.mxu0 0.0
    %7845 = vmatpush1.msra.mxu0 0.0
    %7846 = vmatprep.subr.mxu0 0.0
    %7847 = vmatpush1.msra.mxu0 0.0
    %7848 = vmatprep.subr.mxu0 0.0
    %7849 = vmatpush1.msra.mxu0 0.0
    %7850 = vmatprep.subr.mxu0 0.0
    %7851 = vmatpush1.msra.mxu0 0.0
    %7852 = vmatprep.subr.mxu0 0.0
    %7853 = vmatpush1.msra.mxu0 0.0
    %7854 = vmatprep.subr.mxu0 0.0
    %7855 = vmatpush1.msra.mxu0 0.0
    %7856 = vmatprep.subr.mxu0 0.0
    %7857 = vmatpush1.msra.mxu0 0.0
    %7858 = vmatprep.mubr.f32.mxu0 0.0
    %7859 = vmatmul.mubr.f32.gmra.mrb[0].mxu0 %v7792
    %v7860 = vpop.f32.mrb[0].mxu0
    %v7861 = vadd.f32 0.0, %v7860
    %v7862 = vpop.f32.mrb[0].mxu0
    %7863 = vdwg.mxu0
    %v7864 = vsel %vm256, %v7642, 0.0
    %v7865 = vsel %vm256, %v7715, 0.0
    %v7866 = vadd.f32 %v7864, %v7865
    %v7867 = vsel %vm256, %v7788, 0.0
    %v7868 = vadd.f32 %v7866, %v7867
    %v7869 = vsel %vm256, %v7861, 0.0
    %v7870 = vadd.f32 %v7868, %v7869
    %v7871 = vadd.f32 %v7870, %v4052
    %v7872 = vadd.f32 %v6064, %v7871
    %v7873 = vsel %vm256, %v7872, 0.0
    %7874 = vadd.xlane.f32.xlu0 %v7873
    %v7875 = vpop.xlane.xlu0 %7874
    %v7876 = vmul.f32 %v7875, %v260
    %v7877 = vmul.f32 %v7872, %v7872
    %v7878 = vsel %vm256, %v7877, 0.0
    %7879 = vadd.xlane.f32.xlu0 %v7878
    %v7880 = vpop.xlane.xlu0 %7879
    %v7881 = vmul.f32 %v7880, %v260
    %v7882 = vmul.f32 %v7876, %v7876
    %v7883 = vsub.f32 %v7881, %v7882
    %v7884 = vsub.f32 %v7872, %v7876
    %v7885 = vadd.f32 %v7883, 1e-05
    %v7886 = vrsqrt.pop %v7885
    %v7887 = vmul.f32 %v7884, %v7886
    %v7888 = vmul.f32 %v7887, %v4075
    %v7889 = vadd.f32 %v7888, %v4082
    %v7891 = vsel %vm256, %v7889, 0
    %7893 = vmatprep.subr.mxu0 0.0
    %7894 = vmatpush1.msra.mxu0 %v226
    %7895 = vmatprep.subr.mxu0 0.0
    %7896 = vmatpush1.msra.mxu0 %v227
    %7897 = vmatprep.subr.mxu0 0.0
    %7898 = vmatpush1.msra.mxu0 %v228
    %7899 = vmatprep.subr.mxu0 0.0
    %7900 = vmatpush1.msra.mxu0 %v229
    %7901 = vmatprep.subr.mxu0 0.0
    %7902 = vmatpush1.msra.mxu0 0.0
    %7903 = vmatprep.subr.mxu0 0.0
    %7904 = vmatpush1.msra.mxu0 0.0
    %7905 = vmatprep.subr.mxu0 0.0
    %7906 = vmatpush1.msra.mxu0 0.0
    %7907 = vmatprep.subr.mxu0 0.0
    %7908 = vmatpush1.msra.mxu0 0.0
    %7909 = vmatprep.subr.mxu0 0.0
    %7910 = vmatpush1.msra.mxu0 0.0
    %7911 = vmatprep.subr.mxu0 0.0
    %7912 = vmatpush1.msra.mxu0 0.0
    %7913 = vmatprep.subr.mxu0 0.0
    %7914 = vmatpush1.msra.mxu0 0.0
    %7915 = vmatprep.subr.mxu0 0.0
    %7916 = vmatpush1.msra.mxu0 0.0
    %7917 = vmatprep.subr.mxu0 0.0
    %7918 = vmatpush1.msra.mxu0 0.0
    %7919 = vmatprep.subr.mxu0 0.0
    %7920 = vmatpush1.msra.mxu0 0.0
    %7921 = vmatprep.subr.mxu0 0.0
    %7922 = vmatpush1.msra.mxu0 0.0
    %7923 = vmatprep.subr.mxu0 0.0
    %7924 = vmatpush1.msra.mxu0 0.0
    %7925 = vmatprep.subr.mxu0 0.0
    %7926 = vmatpush1.msra.mxu0 0.0
    %7927 = vmatprep.subr.mxu0 0.0
    %7928 = vmatpush1.msra.mxu0 0.0
    %7929 = vmatprep.subr.mxu0 0.0
    %7930 = vmatpush1.msra.mxu0 0.0
    %7931 = vmatprep.subr.mxu0 0.0
    %7932 = vmatpush1.msra.mxu0 0.0
    %7933 = vmatprep.subr.mxu0 0.0
    %7934 = vmatpush1.msra.mxu0 0.0
    %7935 = vmatprep.subr.mxu0 0.0
    %7936 = vmatpush1.msra.mxu0 0.0
    %7937 = vmatprep.subr.mxu0 0.0
    %7938 = vmatpush1.msra.mxu0 0.0
    %7939 = vmatprep.subr.mxu0 0.0
    %7940 = vmatpush1.msra.mxu0 0.0
    %7941 = vmatprep.subr.mxu0 0.0
    %7942 = vmatpush1.msra.mxu0 0.0
    %7943 = vmatprep.subr.mxu0 0.0
    %7944 = vmatpush1.msra.mxu0 0.0
    %7945 = vmatprep.subr.mxu0 0.0
    %7946 = vmatpush1.msra.mxu0 0.0
    %7947 = vmatprep.subr.mxu0 0.0
    %7948 = vmatpush1.msra.mxu0 0.0
    %7949 = vmatprep.subr.mxu0 0.0
    %7950 = vmatpush1.msra.mxu0 0.0
    %7951 = vmatprep.subr.mxu0 0.0
    %7952 = vmatpush1.msra.mxu0 0.0
    %7953 = vmatprep.subr.mxu0 0.0
    %7954 = vmatpush1.msra.mxu0 0.0
    %7955 = vmatprep.subr.mxu0 0.0
    %7956 = vmatpush1.msra.mxu0 0.0
    %7957 = vmatprep.mubr.f32.mxu0 0.0
    %7958 = vmatmul.mubr.f32.gmra.mrb[0].mxu0 %v7891
    %v7959 = vpop.f32.mrb[0].mxu0
    %v7960 = vadd.f32 %v4089, %v7959
    %v7961 = vpop.f32.mrb[0].mxu0
    %7962 = vdwg.mxu0
    %v7963 = vmul.f32 %v7960, 0.5
    %v7964 = vmul.f32 %v7960, 0.044715
    %v7965 = vmul.f32 %v7964, %v7960
    %v7966 = vmul.f32 %v7965, %v7960
    %v7967 = vadd.f32 %v7960, %v7966
    %v7968 = vmul.f32 %v7967, 0.7978846
    %v7969 = vtanh.pop %v7968
    %v7970 = vadd.f32 %v7969, 1.0
    %v7971 = vmul.f32 %v7963, %v7970
    %7972 = vmatprep.subr.mxu0 0.0
    %7973 = vmatpush1.msra.mxu0 %v231
    %7974 = vmatprep.subr.mxu0 0.0
    %7975 = vmatpush1.msra.mxu0 %v232
    %7976 = vmatprep.subr.mxu0 0.0
    %7977 = vmatpush1.msra.mxu0 %v233
    %7978 = vmatprep.subr.mxu0 0.0
    %7979 = vmatpush1.msra.mxu0 %v234
    %7980 = vmatprep.subr.mxu0 0.0
    %7981 = vmatpush1.msra.mxu0 %v235
    %7982 = vmatprep.subr.mxu0 0.0
    %7983 = vmatpush1.msra.mxu0 %v236
    %7984 = vmatprep.subr.mxu0 0.0
    %7985 = vmatpush1.msra.mxu0 %v237
    %7986 = vmatprep.subr.mxu0 0.0
    %7987 = vmatpush1.msra.mxu0 %v238
    %7988 = vmatprep.subr.mxu0 0.0
    %7989 = vmatpush1.msra.mxu0 %v239
    %7990 = vmatprep.subr.mxu0 0.0
    %7991 = vmatpush1.msra.mxu0 %v240
    %7992 = vmatprep.subr.mxu0 0.0
    %7993 = vmatpush1.msra.mxu0 %v241
    %7994 = vmatprep.subr.mxu0 0.0
    %7995 = vmatpush1.msra.mxu0 %v242
    %7996 = vmatprep.subr.mxu0 0.0
    %7997 = vmatpush1.msra.mxu0 %v243
    %7998 = vmatprep.subr.mxu0 0.0
    %7999 = vmatpush1.msra.mxu0 %v244
    %8000 = vmatprep.subr.mxu0 0.0
    %8001 = vmatpush1.msra.mxu0 %v245
    %8002 = vmatprep.subr.mxu0 0.0
    %8003 = vmatpush1.msra.mxu0 %v246
    %8004 = vmatprep.subr.mxu0 0.0
    %8005 = vmatpush1.msra.mxu0 0.0
    %8006 = vmatprep.subr.mxu0 0.0
    %8007 = vmatpush1.msra.mxu0 0.0
    %8008 = vmatprep.subr.mxu0 0.0
    %8009 = vmatpush1.msra.mxu0 0.0
    %8010 = vmatprep.subr.mxu0 0.0
    %8011 = vmatpush1.msra.mxu0 0.0
    %8012 = vmatprep.subr.mxu0 0.0
    %8013 = vmatpush1.msra.mxu0 0.0
    %8014 = vmatprep.subr.mxu0 0.0
    %8015 = vmatpush1.msra.mxu0 0.0
    %8016 = vmatprep.subr.mxu0 0.0
    %8017 = vmatpush1.msra.mxu0 0.0
    %8018 = vmatprep.subr.mxu0 0.0
    %8019 = vmatpush1.msra.mxu0 0.0
    %8020 = vmatprep.subr.mxu0 0.0
    %8021 = vmatpush1.msra.mxu0 0.0
    %8022 = vmatprep.subr.mxu0 0.0
    %8023 = vmatpush1.msra.mxu0 0.0
    %8024 = vmatprep.subr.mxu0 0.0
    %8025 = vmatpush1.msra.mxu0 0.0
    %8026 = vmatprep.subr.mxu0 0.0
    %8027 = vmatpush1.msra.mxu0 0.0
    %8028 = vmatprep.subr.mxu0 0.0
    %8029 = vmatpush1.msra.mxu0 0.0
    %8030 = vmatprep.subr.mxu0 0.0
    %8031 = vmatpush1.msra.mxu0 0.0
    %8032 = vmatprep.subr.mxu0 0.0
    %8033 = vmatpush1.msra.mxu0 0.0
    %8034 = vmatprep.subr.mxu0 0.0
    %8035 = vmatpush1.msra.mxu0 0.0
    %8036 = vmatprep.mubr.f32.mxu0 0.0
    %8037 = vmatmul.mubr.f32.gmra.mrb[0].mxu0 %v7971
    %v8038 = vpop.f32.mrb[0].mxu0
    %v8039 = vadd.f32 0.0, %v8038
    %v8040 = vpop.f32.mrb[0].mxu0
    %8041 = vdwg.mxu0
    %v8042 = vadd.f32 %v7872, %v8039
    %v8043 = vadd.f32 %v8042, %v4248
    %s8044 = scalar_lea.vmem [#allocation2], 8
    %8045 = vst.msk [vmem:[%s8044] sm:$0xff] %vm256, %v8043
    // Predicated region
    $region114: #{tpu_custom_call.1} parent=1 // pred_check
      _
    $region115: #{tpu_custom_call.1} parent=1 // pred_check_branch
      %8047 = sbr.rel (0) target = $region117
    $region116: #{tpu_custom_call.1} parent=1 // pred_region
      %s8049 = ssub.s32 256, 256
      %8050 = vsyncadd [#allocation3], %s8049
      %s8051 = sshll.u32 [#allocation2], 4
      %s8052 = int_to_ptr.vmem [resolvable:$true] %s8051
      %8057 = dma.vmem_to_hbm [thread:$0]  %s8052, 256, %s28, [#allocation3], 128, 128, 8
    $region117: #{tpu_custom_call.1} parent=1 // pred_fallthru
      _
    // Predicated region
    $region118: #{tpu_custom_call.1} parent=1 // pred_check
      _
    $region119: #{tpu_custom_call.1} parent=1 // pred_check_branch
      %8059 = sbr.rel (0) target = $region121
    $region120: #{tpu_custom_call.1} parent=1 // pred_region
      %8060 = dma.done [#allocation3], 256
    $region121: #{tpu_custom_call.1} parent=1 // pred_fallthru
      _
    %8061 = vsyncpa [#allocation3], 1

</llo_original>
